<compile_context>
chip_gen: v7x
topology: tpu7x:2x2x1
jax: 0.10.0
libtpu: 0.0.40
codegen_flags: <defaults>
</compile_context>

<pallas_src>
import functools

import jax
import jax.numpy as jnp
from jax.experimental import pallas as pl
from jax.experimental.pallas import tpu as pltpu


def _pooling_attention_kernel(x_ref, wqkv_ref, wp_ref, bp_ref, o_ref, cat_ref,
                              *, num_heads):
    """One grid step == `bb` batch elements.

    x_ref    : (bb, N, C)   VMEM, compute dtype
    wqkv_ref : (C, 3C)      VMEM, resident fused QKV weight (scale folded in Q)
    wp_ref   : (C, C)       VMEM, resident output-projection weight
    bp_ref   : (1, C)       VMEM, f32 projection bias
    o_ref    : (bb, N, C)   VMEM, output (original x dtype)
    cat_ref  : (bb*N, C)    VMEM scratch, per-head outputs concatenated on lanes
    """
    bb, n, c = x_ref.shape
    hd = c // num_heads
    cdt = wqkv_ref.dtype                      # MXU compute dtype (bf16 or f32)
    approx = bool(cdt != jnp.float32)         # exact reciprocal in the f32 path

    x2 = x_ref[...].reshape(bb * n, c)        # already compute dtype (wrapper)

    # Fused full-width QKV projection (the FLOPs-dominant term) on the MXU.
    qkv = jnp.dot(x2, wqkv_ref[...], preferred_element_type=jnp.float32)
    qkv = qkv.astype(cdt)                                     # (bb*n, 3C)

    # Static head loop (== full unroll); all slices below are static.
    # TODO(synk): sweep processing 2 heads per iteration (128-lane-dense cat
    # stores when hd=64) and a non-unrolled fori_loop on production shapes.
    for h in range(num_heads):
        qh = qkv[:, h * hd:(h + 1) * hd].reshape(bb, n, hd)
        kh = qkv[:, c + h * hd:c + (h + 1) * hd].reshape(bb, n, hd)
        vh = qkv[:, 2 * c + h * hd:2 * c + (h + 1) * hd].reshape(bb, n, hd)

        # q @ k^T as a batched contraction (trans_b handled by the MXU, no XLU
        # transpose).  Softmax scale was folded into the Q weight columns.
        logits = jnp.einsum('bqd,bkd->bqk', qh, kh,
                            preferred_element_type=jnp.float32)   # (bb, n, n)
        m = jnp.max(logits, axis=-1, keepdims=True)
        p = jnp.exp(logits - m)
        # TODO(synk): if EUP exp becomes the binding slot on v6e/v7x after the
        # MXU fixes, evaluate exp on bf16 logits here.
        denom = jnp.sum(p, axis=-1, keepdims=True)

        # Unnormalized p @ v, then deferred softmax normalization applied to
        # the small (n, hd) head output in f32 (EUP reciprocal slot).
        oh = jnp.einsum('bqk,bkd->bqd', p.astype(cdt), vh,
                        preferred_element_type=jnp.float32)       # (bb, n, hd)
        oh = oh * pl.reciprocal(denom, approx=approx)

        # "Concat heads" == store into this head's lane slot of the scratch;
        # every column is written exactly once, so no zero-init is needed.
        cat_ref[:, h * hd:(h + 1) * hd] = oh.reshape(bb * n, hd).astype(cdt)

    # Single full-width output projection + bias (f32 accumulate).
    y = jnp.dot(cat_ref[...], wp_ref[...],
                preferred_element_type=jnp.float32) + bp_ref[...]
    o_ref[...] = y.reshape(bb, n, c).astype(o_ref.dtype)


def _device_info():
    """(vmem_capacity_bytes, num_tensorcores) with conservative fallbacks."""
    vmem_cap = 64 * 1024 * 1024          # conservative default (v7x per-TC)
    try:
        info = pltpu.get_tpu_info()
        vmem_cap = int(getattr(info, "vmem_capacity_bytes", vmem_cap))
    except Exception:
        pass
    num_tc = 1
    try:
        kind = jax.devices()[0].device_kind.lower()
        if "v7" in kind or "7x" in kind:
            num_tc = 2
    except Exception:
        pass
    return vmem_cap, num_tc


def _step_vmem_bytes(bb, N, C, H, cdt_bytes, io_bytes, weight_buffers):
    """Per-grid-step VMEM estimate: pipeline buffers (real I/O dtypes) +
    resident weights + concat scratch + live in-kernel intermediates."""
    hd = C // H
    x_blk = bb * N * C * cdt_bytes * 2            # double-buffered input block
    o_blk = bb * N * C * io_bytes * 2             # double-buffered output block
    weights = (3 * C * C + C * C) * cdt_bytes * weight_buffers
    weights += C * 4 * weight_buffers             # f32 bias
    scratch = bb * N * C * cdt_bytes              # concat scratch
    interm = bb * N * 3 * C * (4 + cdt_bytes)     # fused qkv f32 + cdt copy
    interm += 2 * bb * N * N * 4                  # one head's logits + p (f32)
    interm += bb * N * hd * 4                     # one head's output (f32)
    interm += bb * N * C * 4                      # final f32 projection result
    return x_blk + o_blk + weights + scratch + interm


def _pick_batch_block(B, N, C, H, cdt_bytes, io_bytes, weight_buffers,
                      vmem_cap, num_tc):
    budget = int(0.6 * vmem_cap)
    best = 1
    for bb in range(1, B + 1):
        if B % bb:
            continue
        steps = B // bb
        if num_tc > 1 and B >= num_tc:
            # Multi-TC part (v7x): keep enough, evenly splittable grid steps so
            # every TensorCore gets work.  Single-TC parts (v5e/v6e) take the
            # largest block that fits; a 1-step grid is fine there.
            if steps < num_tc or steps % num_tc:
                continue
        if _step_vmem_bytes(bb, N, C, H, cdt_bytes, io_bytes,
                            weight_buffers) <= budget:
            best = bb
    return best


def pooling_attention(x, w_qkv, w_proj, b_proj, *, num_heads,
                      compute_dtype=jnp.bfloat16, batch_block=None):
    """x: (B, N, C). w_qkv: (3C, C) torch Linear layout. w_proj: (C, C).
    b_proj: (C,).  Returns (out, keep_index) like the PyTorch module."""
    B, N, C = x.shape
    H = num_heads
    assert C % H == 0, "dim must be divisible by num_heads"
    hd = C // H
    scale = hd ** (-0.5)
    out_dtype = x.dtype

    # Pre-transpose to (in, out), fold the softmax scale into the Q columns and
    # fuse q|k|v into a single (C, 3C) weight so the kernel runs one full-width
    # projection matmul.
    wq = w_qkv[0 * C:1 * C, :].T * scale
    wk = w_qkv[1 * C:2 * C, :].T
    wv = w_qkv[2 * C:3 * C, :].T
    wqkv = jnp.concatenate([wq, wk, wv], axis=1).astype(compute_dtype)  # (C,3C)
    wp = w_proj.T.astype(compute_dtype)                                 # (C, C)
    bp = b_proj.reshape(1, C).astype(jnp.float32)
    x_in = x.astype(compute_dtype)          # halve x DMA bytes in bf16 mode

    cdt_bytes = jnp.dtype(compute_dtype).itemsize
    io_bytes = jnp.dtype(out_dtype).itemsize
    vmem_cap, num_tc = _device_info()

    bb = batch_block or _pick_batch_block(B, N, C, H, cdt_bytes, io_bytes,
                                          2, vmem_cap, num_tc)
    assert B % bb == 0, "batch_block must divide B"

    est = _step_vmem_bytes(bb, N, C, H, cdt_bytes, io_bytes, 2)
    vmem_limit = int(min(vmem_cap, max(32 * 1024 * 1024, 1.5 * est)))

    kernel = functools.partial(_pooling_attention_kernel, num_heads=H)

    def _run(single_buffer_weights):
        def w_spec(shape):
            kwargs = {}
            if single_buffer_weights:
                # Constant index_map -> single buffering is enough; halves the
                # resident-weight VMEM footprint (matters most on v7x).
                kwargs["pipeline_mode"] = pl.Buffered(1)
            return pl.BlockSpec(shape, lambda *_: (0,) * len(shape), **kwargs)

        return pl.pallas_call(
            kernel,
            out_shape=jax.ShapeDtypeStruct((B, N, C), out_dtype),
            grid=(B // bb,),
            in_specs=[
                pl.BlockSpec((bb, N, C), lambda b: (b, 0, 0)),   # x (per step)
                w_spec((C, 3 * C)),                              # fused QKV W
                w_spec((C, C)),                                  # proj W
                w_spec((1, C)),                                  # proj bias
            ],
            out_specs=pl.BlockSpec((bb, N, C), lambda b: (b, 0, 0)),
            scratch_shapes=[pltpu.VMEM((bb * N, C), compute_dtype)],
            compiler_params=pltpu.CompilerParams(
                dimension_semantics=("parallel",),
                vmem_limit_bytes=vmem_limit),
        )(x_in, wqkv, wp, bp)

    try:
        out = _run(single_buffer_weights=True)
    except Exception:
        # Fallback for JAX versions that reject pipeline_mode on top-level
        # pallas_call BlockSpecs: default double-buffered resident weights.
        out = _run(single_buffer_weights=False)

    keep_index = None  # pool_config is None
    return out, keep_index


def _reference(x, w_qkv, w_proj, b_proj, num_heads):
    """Pure-JAX f32 reference matching the PyTorch forward (dropout p=0)."""
    B, N, C = x.shape
    hd = C // num_heads
    scale = hd ** (-0.5)
    qkv = x @ w_qkv.T                                        # (B, N, 3C)
    qkv = qkv.reshape(B, N, 3, num_heads, hd).transpose(2, 0, 3, 1, 4)
    q, k, v = qkv[0], qkv[1], qkv[2]                         # (B, H, N, hd)
    attn = jnp.einsum("bhnd,bhmd->bhnm", q, k) * scale
    attn = jax.nn.softmax(attn, axis=-1)
    out = jnp.einsum("bhnm,bhmd->bhnd", attn, v)             # (B, H, N, hd)
    out = out.transpose(0, 2, 1, 3).reshape(B, N, C)
    return out @ w_proj.T + b_proj


if __name__ == "__main__":
    B, N, C, H = 2, 8, 32, 8   # seq=8, hidden=32, 8 heads -> head_dim=4

    key = jax.random.PRNGKey(0)
    kx, kqkv, kproj, kb = jax.random.split(key, 4)

    x = jax.random.normal(kx, (B, N, C), dtype=jnp.float32)
    # torch nn.Linear layout: (out_features, in_features)
    w_qkv = 0.02 * jax.random.normal(kqkv, (3 * C, C), dtype=jnp.float32)
    w_proj = 0.02 * jax.random.normal(kproj, (C, C), dtype=jnp.float32)
    b_proj = 0.02 * jax.random.normal(kb, (C,), dtype=jnp.float32)

    y_ref = _reference(x, w_qkv, w_proj, b_proj, H)

    # Exact path (f32 MXU operands) -- tight check against the reference.
    y32, keep_index = pooling_attention(x, w_qkv, w_proj, b_proj,
                                        num_heads=H, compute_dtype=jnp.float32)
    y32 = jax.block_until_ready(y32)
    assert keep_index is None
    assert jnp.allclose(y32, y_ref, atol=1e-5, rtol=1e-5), "f32 path mismatch"

    # Fast path (bf16 MXU operands, f32 softmax/accumulation) -- bf16 tolerance.
    ybf, _ = pooling_attention(x, w_qkv, w_proj, b_proj,
                               num_heads=H, compute_dtype=jnp.bfloat16)
    ybf = jax.block_until_ready(ybf)
    assert jnp.allclose(ybf, y_ref, atol=2e-2, rtol=2e-2), "bf16 path mismatch"

    print("KERNEL_OK")
</pallas_src>

<mosaic_0001>
module attributes {stable_mosaic.version = 11 : i64} {
  func.func @_pooling_attention_kernel(%arg0: i32, %arg1: memref<2x8x32xf32, #tpu.memory_space<vmem>>, %arg2: memref<32x96xf32, #tpu.memory_space<vmem>>, %arg3: memref<32x32xf32, #tpu.memory_space<vmem>>, %arg4: memref<1x32xf32, #tpu.memory_space<vmem>>, %arg5: memref<2x8x32xf32, #tpu.memory_space<vmem>>, %arg6: memref<16x32xf32, #tpu.memory_space<vmem>>) attributes {dimension_semantics = [#tpu.dimension_semantics<parallel>], iteration_bounds = array<i64: 1>, scalar_prefetch = 0 : i64, scratch_operands = 1 : i64, tpu.core_type = #tpu.core_type<tc>, window_params = [{transform_indices = @transform_0, window_bounds = array<i64: 2, 8, 32>}, {pipeline_mode = #tpu.pipeline_mode<synchronous>, transform_indices = @transform_1, window_bounds = array<i64: 32, 96>}, {pipeline_mode = #tpu.pipeline_mode<synchronous>, transform_indices = @transform_2, window_bounds = array<i64: 32, 32>}, {pipeline_mode = #tpu.pipeline_mode<synchronous>, transform_indices = @transform_3, window_bounds = array<i64: 1, 32>}, {transform_indices = @transform_4, window_bounds = array<i64: 2, 8, 32>}]} {
    %c0 = arith.constant 0 : index
    %c0_0 = arith.constant 0 : index
    %c0_1 = arith.constant 0 : index
    %0 = vector.load %arg1[%c0, %c0_0, %c0_1] : memref<2x8x32xf32, #tpu.memory_space<vmem>>, vector<2x8x32xf32>
    %1 = vector.shape_cast %0 : vector<2x8x32xf32> to vector<16x32xf32>
    %c0_2 = arith.constant 0 : index
    %c0_3 = arith.constant 0 : index
    %2 = vector.load %arg2[%c0_2, %c0_3] : memref<32x96xf32, #tpu.memory_space<vmem>>, vector<32x96xf32>
    %cst = arith.constant dense<0.000000e+00> : vector<16x96xf32>
    %3 = tpu.matmul %1, %2, %cst {dimension_numbers = #tpu.dot_dimension_numbers<[1], [0], [0], [1], [0, 0, 1, 1], [], []>} : vector<16x32xf32>, vector<32x96xf32>, vector<16x96xf32> -> vector<16x96xf32>
    %4 = vector.extract_strided_slice %3 {offsets = [0, 0], sizes = [16, 4], strides = [1, 1]} : vector<16x96xf32> to vector<16x4xf32>
    %5 = vector.shape_cast %4 : vector<16x4xf32> to vector<2x8x4xf32>
    %6 = vector.extract_strided_slice %3 {offsets = [0, 32], sizes = [16, 4], strides = [1, 1]} : vector<16x96xf32> to vector<16x4xf32>
    %7 = vector.shape_cast %6 : vector<16x4xf32> to vector<2x8x4xf32>
    %8 = vector.extract_strided_slice %3 {offsets = [0, 64], sizes = [16, 4], strides = [1, 1]} : vector<16x96xf32> to vector<16x4xf32>
    %9 = vector.shape_cast %8 : vector<16x4xf32> to vector<2x8x4xf32>
    "tpu.trace_start"() <{level = 10 : i32, message = "bqd,bkd->bqk"}> : () -> ()
    %cst_4 = arith.constant dense<0.000000e+00> : vector<2x8x8xf32>
    %10 = tpu.matmul %5, %7, %cst_4 {dimension_numbers = #tpu.dot_dimension_numbers<[2], [2], [1], [1], [0, 0, 0, 1, 1, 1], [0], [0]>} : vector<2x8x4xf32>, vector<2x8x4xf32>, vector<2x8x8xf32> -> vector<2x8x8xf32>
    "tpu.trace_stop"() : () -> ()
    %cst_5 = arith.constant dense<0xFF800000> : vector<2x8xf32>
    %11 = vector.multi_reduction <maximumf>, %10, %cst_5 [2] : vector<2x8x8xf32> to vector<2x8xf32>
    %12 = vector.shape_cast %11 : vector<2x8xf32> to vector<2x8x1xf32>
    %13 = vector.broadcast %12 : vector<2x8x1xf32> to vector<2x8x8xf32>
    %14 = arith.subf %10, %13 : vector<2x8x8xf32>
    %15 = math.exp %14 : vector<2x8x8xf32>
    %cst_6 = arith.constant dense<0.000000e+00> : vector<2x8xf32>
    %16 = vector.multi_reduction <add>, %15, %cst_6 [2] : vector<2x8x8xf32> to vector<2x8xf32>
    %17 = vector.shape_cast %16 : vector<2x8xf32> to vector<2x8x1xf32>
    "tpu.trace_start"() <{level = 10 : i32, message = "bqk,bkd->bqd"}> : () -> ()
    %cst_7 = arith.constant dense<0.000000e+00> : vector<2x8x4xf32>
    %18 = tpu.matmul %15, %9, %cst_7 {dimension_numbers = #tpu.dot_dimension_numbers<[2], [1], [1], [2], [0, 0, 0, 1, 1, 2], [0], [0]>} : vector<2x8x8xf32>, vector<2x8x4xf32>, vector<2x8x4xf32> -> vector<2x8x4xf32>
    "tpu.trace_stop"() : () -> ()
    %19 = tpu.reciprocal %17 : vector<2x8x1xf32> -> vector<2x8x1xf32>
    %20 = vector.broadcast %19 : vector<2x8x1xf32> to vector<2x8x4xf32>
    %21 = arith.mulf %18, %20 : vector<2x8x4xf32>
    %22 = vector.shape_cast %21 : vector<2x8x4xf32> to vector<16x4xf32>
    %c0_8 = arith.constant 0 : index
    %c0_9 = arith.constant 0 : index
    %23 = vector.load %arg6[%c0_8, %c0_9] : memref<16x32xf32, #tpu.memory_space<vmem>>, vector<16x4xf32>
    tpu.vector_store %arg6[%c0_8, %c0_9], %22 {strides = array<i32>} : memref<16x32xf32, #tpu.memory_space<vmem>>, vector<16x4xf32>,
    %24 = vector.extract_strided_slice %3 {offsets = [0, 4], sizes = [16, 4], strides = [1, 1]} : vector<16x96xf32> to vector<16x4xf32>
    %25 = vector.shape_cast %24 : vector<16x4xf32> to vector<2x8x4xf32>
    %26 = vector.extract_strided_slice %3 {offsets = [0, 36], sizes = [16, 4], strides = [1, 1]} : vector<16x96xf32> to vector<16x4xf32>
    %27 = vector.shape_cast %26 : vector<16x4xf32> to vector<2x8x4xf32>
    %28 = vector.extract_strided_slice %3 {offsets = [0, 68], sizes = [16, 4], strides = [1, 1]} : vector<16x96xf32> to vector<16x4xf32>
    %29 = vector.shape_cast %28 : vector<16x4xf32> to vector<2x8x4xf32>
    "tpu.trace_start"() <{level = 10 : i32, message = "bqd,bkd->bqk"}> : () -> ()
    %cst_10 = arith.constant dense<0.000000e+00> : vector<2x8x8xf32>
    %30 = tpu.matmul %25, %27, %cst_10 {dimension_numbers = #tpu.dot_dimension_numbers<[2], [2], [1], [1], [0, 0, 0, 1, 1, 1], [0], [0]>} : vector<2x8x4xf32>, vector<2x8x4xf32>, vector<2x8x8xf32> -> vector<2x8x8xf32>
    "tpu.trace_stop"() : () -> ()
    %cst_11 = arith.constant dense<0xFF800000> : vector<2x8xf32>
    %31 = vector.multi_reduction <maximumf>, %30, %cst_11 [2] : vector<2x8x8xf32> to vector<2x8xf32>
    %32 = vector.shape_cast %31 : vector<2x8xf32> to vector<2x8x1xf32>
    %33 = vector.broadcast %32 : vector<2x8x1xf32> to vector<2x8x8xf32>
    %34 = arith.subf %30, %33 : vector<2x8x8xf32>
    %35 = math.exp %34 : vector<2x8x8xf32>
    %cst_12 = arith.constant dense<0.000000e+00> : vector<2x8xf32>
    %36 = vector.multi_reduction <add>, %35, %cst_12 [2] : vector<2x8x8xf32> to vector<2x8xf32>
    %37 = vector.shape_cast %36 : vector<2x8xf32> to vector<2x8x1xf32>
    "tpu.trace_start"() <{level = 10 : i32, message = "bqk,bkd->bqd"}> : () -> ()
    %cst_13 = arith.constant dense<0.000000e+00> : vector<2x8x4xf32>
    %38 = tpu.matmul %35, %29, %cst_13 {dimension_numbers = #tpu.dot_dimension_numbers<[2], [1], [1], [2], [0, 0, 0, 1, 1, 2], [0], [0]>} : vector<2x8x8xf32>, vector<2x8x4xf32>, vector<2x8x4xf32> -> vector<2x8x4xf32>
    "tpu.trace_stop"() : () -> ()
    %39 = tpu.reciprocal %37 : vector<2x8x1xf32> -> vector<2x8x1xf32>
    %40 = vector.broadcast %39 : vector<2x8x1xf32> to vector<2x8x4xf32>
    %41 = arith.mulf %38, %40 : vector<2x8x4xf32>
    %42 = vector.shape_cast %41 : vector<2x8x4xf32> to vector<16x4xf32>
    %c0_14 = arith.constant 0 : index
    %c4 = arith.constant 4 : index
    %43 = vector.load %arg6[%c0_14, %c4] : memref<16x32xf32, #tpu.memory_space<vmem>>, vector<16x4xf32>
    tpu.vector_store %arg6[%c0_14, %c4], %42 {strides = array<i32>} : memref<16x32xf32, #tpu.memory_space<vmem>>, vector<16x4xf32>,
    %44 = vector.extract_strided_slice %3 {offsets = [0, 8], sizes = [16, 4], strides = [1, 1]} : vector<16x96xf32> to vector<16x4xf32>
    %45 = vector.shape_cast %44 : vector<16x4xf32> to vector<2x8x4xf32>
    %46 = vector.extract_strided_slice %3 {offsets = [0, 40], sizes = [16, 4], strides = [1, 1]} : vector<16x96xf32> to vector<16x4xf32>
    %47 = vector.shape_cast %46 : vector<16x4xf32> to vector<2x8x4xf32>
    %48 = vector.extract_strided_slice %3 {offsets = [0, 72], sizes = [16, 4], strides = [1, 1]} : vector<16x96xf32> to vector<16x4xf32>
    %49 = vector.shape_cast %48 : vector<16x4xf32> to vector<2x8x4xf32>
    "tpu.trace_start"() <{level = 10 : i32, message = "bqd,bkd->bqk"}> : () -> ()
    %cst_15 = arith.constant dense<0.000000e+00> : vector<2x8x8xf32>
    %50 = tpu.matmul %45, %47, %cst_15 {dimension_numbers = #tpu.dot_dimension_numbers<[2], [2], [1], [1], [0, 0, 0, 1, 1, 1], [0], [0]>} : vector<2x8x4xf32>, vector<2x8x4xf32>, vector<2x8x8xf32> -> vector<2x8x8xf32>
    "tpu.trace_stop"() : () -> ()
    %cst_16 = arith.constant dense<0xFF800000> : vector<2x8xf32>
    %51 = vector.multi_reduction <maximumf>, %50, %cst_16 [2] : vector<2x8x8xf32> to vector<2x8xf32>
    %52 = vector.shape_cast %51 : vector<2x8xf32> to vector<2x8x1xf32>
    %53 = vector.broadcast %52 : vector<2x8x1xf32> to vector<2x8x8xf32>
    %54 = arith.subf %50, %53 : vector<2x8x8xf32>
    %55 = math.exp %54 : vector<2x8x8xf32>
    %cst_17 = arith.constant dense<0.000000e+00> : vector<2x8xf32>
    %56 = vector.multi_reduction <add>, %55, %cst_17 [2] : vector<2x8x8xf32> to vector<2x8xf32>
    %57 = vector.shape_cast %56 : vector<2x8xf32> to vector<2x8x1xf32>
    "tpu.trace_start"() <{level = 10 : i32, message = "bqk,bkd->bqd"}> : () -> ()
    %cst_18 = arith.constant dense<0.000000e+00> : vector<2x8x4xf32>
    %58 = tpu.matmul %55, %49, %cst_18 {dimension_numbers = #tpu.dot_dimension_numbers<[2], [1], [1], [2], [0, 0, 0, 1, 1, 2], [0], [0]>} : vector<2x8x8xf32>, vector<2x8x4xf32>, vector<2x8x4xf32> -> vector<2x8x4xf32>
    "tpu.trace_stop"() : () -> ()
    %59 = tpu.reciprocal %57 : vector<2x8x1xf32> -> vector<2x8x1xf32>
    %60 = vector.broadcast %59 : vector<2x8x1xf32> to vector<2x8x4xf32>
    %61 = arith.mulf %58, %60 : vector<2x8x4xf32>
    %62 = vector.shape_cast %61 : vector<2x8x4xf32> to vector<16x4xf32>
    %c0_19 = arith.constant 0 : index
    %c8 = arith.constant 8 : index
    %63 = vector.load %arg6[%c0_19, %c8] : memref<16x32xf32, #tpu.memory_space<vmem>>, vector<16x4xf32>
    tpu.vector_store %arg6[%c0_19, %c8], %62 {strides = array<i32>} : memref<16x32xf32, #tpu.memory_space<vmem>>, vector<16x4xf32>,
    %64 = vector.extract_strided_slice %3 {offsets = [0, 12], sizes = [16, 4], strides = [1, 1]} : vector<16x96xf32> to vector<16x4xf32>
    %65 = vector.shape_cast %64 : vector<16x4xf32> to vector<2x8x4xf32>
    %66 = vector.extract_strided_slice %3 {offsets = [0, 44], sizes = [16, 4], strides = [1, 1]} : vector<16x96xf32> to vector<16x4xf32>
    %67 = vector.shape_cast %66 : vector<16x4xf32> to vector<2x8x4xf32>
    %68 = vector.extract_strided_slice %3 {offsets = [0, 76], sizes = [16, 4], strides = [1, 1]} : vector<16x96xf32> to vector<16x4xf32>
    %69 = vector.shape_cast %68 : vector<16x4xf32> to vector<2x8x4xf32>
    "tpu.trace_start"() <{level = 10 : i32, message = "bqd,bkd->bqk"}> : () -> ()
    %cst_20 = arith.constant dense<0.000000e+00> : vector<2x8x8xf32>
    %70 = tpu.matmul %65, %67, %cst_20 {dimension_numbers = #tpu.dot_dimension_numbers<[2], [2], [1], [1], [0, 0, 0, 1, 1, 1], [0], [0]>} : vector<2x8x4xf32>, vector<2x8x4xf32>, vector<2x8x8xf32> -> vector<2x8x8xf32>
    "tpu.trace_stop"() : () -> ()
    %cst_21 = arith.constant dense<0xFF800000> : vector<2x8xf32>
    %71 = vector.multi_reduction <maximumf>, %70, %cst_21 [2] : vector<2x8x8xf32> to vector<2x8xf32>
    %72 = vector.shape_cast %71 : vector<2x8xf32> to vector<2x8x1xf32>
    %73 = vector.broadcast %72 : vector<2x8x1xf32> to vector<2x8x8xf32>
    %74 = arith.subf %70, %73 : vector<2x8x8xf32>
    %75 = math.exp %74 : vector<2x8x8xf32>
    %cst_22 = arith.constant dense<0.000000e+00> : vector<2x8xf32>
    %76 = vector.multi_reduction <add>, %75, %cst_22 [2] : vector<2x8x8xf32> to vector<2x8xf32>
    %77 = vector.shape_cast %76 : vector<2x8xf32> to vector<2x8x1xf32>
    "tpu.trace_start"() <{level = 10 : i32, message = "bqk,bkd->bqd"}> : () -> ()
    %cst_23 = arith.constant dense<0.000000e+00> : vector<2x8x4xf32>
    %78 = tpu.matmul %75, %69, %cst_23 {dimension_numbers = #tpu.dot_dimension_numbers<[2], [1], [1], [2], [0, 0, 0, 1, 1, 2], [0], [0]>} : vector<2x8x8xf32>, vector<2x8x4xf32>, vector<2x8x4xf32> -> vector<2x8x4xf32>
    "tpu.trace_stop"() : () -> ()
    %79 = tpu.reciprocal %77 : vector<2x8x1xf32> -> vector<2x8x1xf32>
    %80 = vector.broadcast %79 : vector<2x8x1xf32> to vector<2x8x4xf32>
    %81 = arith.mulf %78, %80 : vector<2x8x4xf32>
    %82 = vector.shape_cast %81 : vector<2x8x4xf32> to vector<16x4xf32>
    %c0_24 = arith.constant 0 : index
    %c12 = arith.constant 12 : index
    %83 = vector.load %arg6[%c0_24, %c12] : memref<16x32xf32, #tpu.memory_space<vmem>>, vector<16x4xf32>
    tpu.vector_store %arg6[%c0_24, %c12], %82 {strides = array<i32>} : memref<16x32xf32, #tpu.memory_space<vmem>>, vector<16x4xf32>,
    %84 = vector.extract_strided_slice %3 {offsets = [0, 16], sizes = [16, 4], strides = [1, 1]} : vector<16x96xf32> to vector<16x4xf32>
    %85 = vector.shape_cast %84 : vector<16x4xf32> to vector<2x8x4xf32>
    %86 = vector.extract_strided_slice %3 {offsets = [0, 48], sizes = [16, 4], strides = [1, 1]} : vector<16x96xf32> to vector<16x4xf32>
    %87 = vector.shape_cast %86 : vector<16x4xf32> to vector<2x8x4xf32>
    %88 = vector.extract_strided_slice %3 {offsets = [0, 80], sizes = [16, 4], strides = [1, 1]} : vector<16x96xf32> to vector<16x4xf32>
    %89 = vector.shape_cast %88 : vector<16x4xf32> to vector<2x8x4xf32>
    "tpu.trace_start"() <{level = 10 : i32, message = "bqd,bkd->bqk"}> : () -> ()
    %cst_25 = arith.constant dense<0.000000e+00> : vector<2x8x8xf32>
    %90 = tpu.matmul %85, %87, %cst_25 {dimension_numbers = #tpu.dot_dimension_numbers<[2], [2], [1], [1], [0, 0, 0, 1, 1, 1], [0], [0]>} : vector<2x8x4xf32>, vector<2x8x4xf32>, vector<2x8x8xf32> -> vector<2x8x8xf32>
    "tpu.trace_stop"() : () -> ()
    %cst_26 = arith.constant dense<0xFF800000> : vector<2x8xf32>
    %91 = vector.multi_reduction <maximumf>, %90, %cst_26 [2] : vector<2x8x8xf32> to vector<2x8xf32>
    %92 = vector.shape_cast %91 : vector<2x8xf32> to vector<2x8x1xf32>
    %93 = vector.broadcast %92 : vector<2x8x1xf32> to vector<2x8x8xf32>
    %94 = arith.subf %90, %93 : vector<2x8x8xf32>
    %95 = math.exp %94 : vector<2x8x8xf32>
    %cst_27 = arith.constant dense<0.000000e+00> : vector<2x8xf32>
    %96 = vector.multi_reduction <add>, %95, %cst_27 [2] : vector<2x8x8xf32> to vector<2x8xf32>
    %97 = vector.shape_cast %96 : vector<2x8xf32> to vector<2x8x1xf32>
    "tpu.trace_start"() <{level = 10 : i32, message = "bqk,bkd->bqd"}> : () -> ()
    %cst_28 = arith.constant dense<0.000000e+00> : vector<2x8x4xf32>
    %98 = tpu.matmul %95, %89, %cst_28 {dimension_numbers = #tpu.dot_dimension_numbers<[2], [1], [1], [2], [0, 0, 0, 1, 1, 2], [0], [0]>} : vector<2x8x8xf32>, vector<2x8x4xf32>, vector<2x8x4xf32> -> vector<2x8x4xf32>
    "tpu.trace_stop"() : () -> ()
    %99 = tpu.reciprocal %97 : vector<2x8x1xf32> -> vector<2x8x1xf32>
    %100 = vector.broadcast %99 : vector<2x8x1xf32> to vector<2x8x4xf32>
    %101 = arith.mulf %98, %100 : vector<2x8x4xf32>
    %102 = vector.shape_cast %101 : vector<2x8x4xf32> to vector<16x4xf32>
    %c0_29 = arith.constant 0 : index
    %c16 = arith.constant 16 : index
    %103 = vector.load %arg6[%c0_29, %c16] : memref<16x32xf32, #tpu.memory_space<vmem>>, vector<16x4xf32>
    tpu.vector_store %arg6[%c0_29, %c16], %102 {strides = array<i32>} : memref<16x32xf32, #tpu.memory_space<vmem>>, vector<16x4xf32>,
    %104 = vector.extract_strided_slice %3 {offsets = [0, 20], sizes = [16, 4], strides = [1, 1]} : vector<16x96xf32> to vector<16x4xf32>
    %105 = vector.shape_cast %104 : vector<16x4xf32> to vector<2x8x4xf32>
    %106 = vector.extract_strided_slice %3 {offsets = [0, 52], sizes = [16, 4], strides = [1, 1]} : vector<16x96xf32> to vector<16x4xf32>
    %107 = vector.shape_cast %106 : vector<16x4xf32> to vector<2x8x4xf32>
    %108 = vector.extract_strided_slice %3 {offsets = [0, 84], sizes = [16, 4], strides = [1, 1]} : vector<16x96xf32> to vector<16x4xf32>
    %109 = vector.shape_cast %108 : vector<16x4xf32> to vector<2x8x4xf32>
    "tpu.trace_start"() <{level = 10 : i32, message = "bqd,bkd->bqk"}> : () -> ()
    %cst_30 = arith.constant dense<0.000000e+00> : vector<2x8x8xf32>
    %110 = tpu.matmul %105, %107, %cst_30 {dimension_numbers = #tpu.dot_dimension_numbers<[2], [2], [1], [1], [0, 0, 0, 1, 1, 1], [0], [0]>} : vector<2x8x4xf32>, vector<2x8x4xf32>, vector<2x8x8xf32> -> vector<2x8x8xf32>
    "tpu.trace_stop"() : () -> ()
    %cst_31 = arith.constant dense<0xFF800000> : vector<2x8xf32>
    %111 = vector.multi_reduction <maximumf>, %110, %cst_31 [2] : vector<2x8x8xf32> to vector<2x8xf32>
    %112 = vector.shape_cast %111 : vector<2x8xf32> to vector<2x8x1xf32>
    %113 = vector.broadcast %112 : vector<2x8x1xf32> to vector<2x8x8xf32>
    %114 = arith.subf %110, %113 : vector<2x8x8xf32>
    %115 = math.exp %114 : vector<2x8x8xf32>
    %cst_32 = arith.constant dense<0.000000e+00> : vector<2x8xf32>
    %116 = vector.multi_reduction <add>, %115, %cst_32 [2] : vector<2x8x8xf32> to vector<2x8xf32>
    %117 = vector.shape_cast %116 : vector<2x8xf32> to vector<2x8x1xf32>
    "tpu.trace_start"() <{level = 10 : i32, message = "bqk,bkd->bqd"}> : () -> ()
    %cst_33 = arith.constant dense<0.000000e+00> : vector<2x8x4xf32>
    %118 = tpu.matmul %115, %109, %cst_33 {dimension_numbers = #tpu.dot_dimension_numbers<[2], [1], [1], [2], [0, 0, 0, 1, 1, 2], [0], [0]>} : vector<2x8x8xf32>, vector<2x8x4xf32>, vector<2x8x4xf32> -> vector<2x8x4xf32>
    "tpu.trace_stop"() : () -> ()
    %119 = tpu.reciprocal %117 : vector<2x8x1xf32> -> vector<2x8x1xf32>
    %120 = vector.broadcast %119 : vector<2x8x1xf32> to vector<2x8x4xf32>
    %121 = arith.mulf %118, %120 : vector<2x8x4xf32>
    %122 = vector.shape_cast %121 : vector<2x8x4xf32> to vector<16x4xf32>
    %c0_34 = arith.constant 0 : index
    %c20 = arith.constant 20 : index
    %123 = vector.load %arg6[%c0_34, %c20] : memref<16x32xf32, #tpu.memory_space<vmem>>, vector<16x4xf32>
    tpu.vector_store %arg6[%c0_34, %c20], %122 {strides = array<i32>} : memref<16x32xf32, #tpu.memory_space<vmem>>, vector<16x4xf32>,
    %124 = vector.extract_strided_slice %3 {offsets = [0, 24], sizes = [16, 4], strides = [1, 1]} : vector<16x96xf32> to vector<16x4xf32>
    %125 = vector.shape_cast %124 : vector<16x4xf32> to vector<2x8x4xf32>
    %126 = vector.extract_strided_slice %3 {offsets = [0, 56], sizes = [16, 4], strides = [1, 1]} : vector<16x96xf32> to vector<16x4xf32>
    %127 = vector.shape_cast %126 : vector<16x4xf32> to vector<2x8x4xf32>
    %128 = vector.extract_strided_slice %3 {offsets = [0, 88], sizes = [16, 4], strides = [1, 1]} : vector<16x96xf32> to vector<16x4xf32>
    %129 = vector.shape_cast %128 : vector<16x4xf32> to vector<2x8x4xf32>
    "tpu.trace_start"() <{level = 10 : i32, message = "bqd,bkd->bqk"}> : () -> ()
    %cst_35 = arith.constant dense<0.000000e+00> : vector<2x8x8xf32>
    %130 = tpu.matmul %125, %127, %cst_35 {dimension_numbers = #tpu.dot_dimension_numbers<[2], [2], [1], [1], [0, 0, 0, 1, 1, 1], [0], [0]>} : vector<2x8x4xf32>, vector<2x8x4xf32>, vector<2x8x8xf32> -> vector<2x8x8xf32>
    "tpu.trace_stop"() : () -> ()
    %cst_36 = arith.constant dense<0xFF800000> : vector<2x8xf32>
    %131 = vector.multi_reduction <maximumf>, %130, %cst_36 [2] : vector<2x8x8xf32> to vector<2x8xf32>
    %132 = vector.shape_cast %131 : vector<2x8xf32> to vector<2x8x1xf32>
    %133 = vector.broadcast %132 : vector<2x8x1xf32> to vector<2x8x8xf32>
    %134 = arith.subf %130, %133 : vector<2x8x8xf32>
    %135 = math.exp %134 : vector<2x8x8xf32>
    %cst_37 = arith.constant dense<0.000000e+00> : vector<2x8xf32>
    %136 = vector.multi_reduction <add>, %135, %cst_37 [2] : vector<2x8x8xf32> to vector<2x8xf32>
    %137 = vector.shape_cast %136 : vector<2x8xf32> to vector<2x8x1xf32>
    "tpu.trace_start"() <{level = 10 : i32, message = "bqk,bkd->bqd"}> : () -> ()
    %cst_38 = arith.constant dense<0.000000e+00> : vector<2x8x4xf32>
    %138 = tpu.matmul %135, %129, %cst_38 {dimension_numbers = #tpu.dot_dimension_numbers<[2], [1], [1], [2], [0, 0, 0, 1, 1, 2], [0], [0]>} : vector<2x8x8xf32>, vector<2x8x4xf32>, vector<2x8x4xf32> -> vector<2x8x4xf32>
    "tpu.trace_stop"() : () -> ()
    %139 = tpu.reciprocal %137 : vector<2x8x1xf32> -> vector<2x8x1xf32>
    %140 = vector.broadcast %139 : vector<2x8x1xf32> to vector<2x8x4xf32>
    %141 = arith.mulf %138, %140 : vector<2x8x4xf32>
    %142 = vector.shape_cast %141 : vector<2x8x4xf32> to vector<16x4xf32>
    %c0_39 = arith.constant 0 : index
    %c24 = arith.constant 24 : index
    %143 = vector.load %arg6[%c0_39, %c24] : memref<16x32xf32, #tpu.memory_space<vmem>>, vector<16x4xf32>
    tpu.vector_store %arg6[%c0_39, %c24], %142 {strides = array<i32>} : memref<16x32xf32, #tpu.memory_space<vmem>>, vector<16x4xf32>,
    %144 = vector.extract_strided_slice %3 {offsets = [0, 28], sizes = [16, 4], strides = [1, 1]} : vector<16x96xf32> to vector<16x4xf32>
    %145 = vector.shape_cast %144 : vector<16x4xf32> to vector<2x8x4xf32>
    %146 = vector.extract_strided_slice %3 {offsets = [0, 60], sizes = [16, 4], strides = [1, 1]} : vector<16x96xf32> to vector<16x4xf32>
    %147 = vector.shape_cast %146 : vector<16x4xf32> to vector<2x8x4xf32>
    %148 = vector.extract_strided_slice %3 {offsets = [0, 92], sizes = [16, 4], strides = [1, 1]} : vector<16x96xf32> to vector<16x4xf32>
    %149 = vector.shape_cast %148 : vector<16x4xf32> to vector<2x8x4xf32>
    "tpu.trace_start"() <{level = 10 : i32, message = "bqd,bkd->bqk"}> : () -> ()
    %cst_40 = arith.constant dense<0.000000e+00> : vector<2x8x8xf32>
    %150 = tpu.matmul %145, %147, %cst_40 {dimension_numbers = #tpu.dot_dimension_numbers<[2], [2], [1], [1], [0, 0, 0, 1, 1, 1], [0], [0]>} : vector<2x8x4xf32>, vector<2x8x4xf32>, vector<2x8x8xf32> -> vector<2x8x8xf32>
    "tpu.trace_stop"() : () -> ()
    %cst_41 = arith.constant dense<0xFF800000> : vector<2x8xf32>
    %151 = vector.multi_reduction <maximumf>, %150, %cst_41 [2] : vector<2x8x8xf32> to vector<2x8xf32>
    %152 = vector.shape_cast %151 : vector<2x8xf32> to vector<2x8x1xf32>
    %153 = vector.broadcast %152 : vector<2x8x1xf32> to vector<2x8x8xf32>
    %154 = arith.subf %150, %153 : vector<2x8x8xf32>
    %155 = math.exp %154 : vector<2x8x8xf32>
    %cst_42 = arith.constant dense<0.000000e+00> : vector<2x8xf32>
    %156 = vector.multi_reduction <add>, %155, %cst_42 [2] : vector<2x8x8xf32> to vector<2x8xf32>
    %157 = vector.shape_cast %156 : vector<2x8xf32> to vector<2x8x1xf32>
    "tpu.trace_start"() <{level = 10 : i32, message = "bqk,bkd->bqd"}> : () -> ()
    %cst_43 = arith.constant dense<0.000000e+00> : vector<2x8x4xf32>
    %158 = tpu.matmul %155, %149, %cst_43 {dimension_numbers = #tpu.dot_dimension_numbers<[2], [1], [1], [2], [0, 0, 0, 1, 1, 2], [0], [0]>} : vector<2x8x8xf32>, vector<2x8x4xf32>, vector<2x8x4xf32> -> vector<2x8x4xf32>
    "tpu.trace_stop"() : () -> ()
    %159 = tpu.reciprocal %157 : vector<2x8x1xf32> -> vector<2x8x1xf32>
    %160 = vector.broadcast %159 : vector<2x8x1xf32> to vector<2x8x4xf32>
    %161 = arith.mulf %158, %160 : vector<2x8x4xf32>
    %162 = vector.shape_cast %161 : vector<2x8x4xf32> to vector<16x4xf32>
    %c0_44 = arith.constant 0 : index
    %c28 = arith.constant 28 : index
    %163 = vector.load %arg6[%c0_44, %c28] : memref<16x32xf32, #tpu.memory_space<vmem>>, vector<16x4xf32>
    tpu.vector_store %arg6[%c0_44, %c28], %162 {strides = array<i32>} : memref<16x32xf32, #tpu.memory_space<vmem>>, vector<16x4xf32>,
    %c0_45 = arith.constant 0 : index
    %c0_46 = arith.constant 0 : index
    %164 = vector.load %arg6[%c0_45, %c0_46] : memref<16x32xf32, #tpu.memory_space<vmem>>, vector<16x32xf32>
    %c0_47 = arith.constant 0 : index
    %c0_48 = arith.constant 0 : index
    %165 = vector.load %arg3[%c0_47, %c0_48] : memref<32x32xf32, #tpu.memory_space<vmem>>, vector<32x32xf32>
    %cst_49 = arith.constant dense<0.000000e+00> : vector<16x32xf32>
    %166 = tpu.matmul %164, %165, %cst_49 {dimension_numbers = #tpu.dot_dimension_numbers<[1], [0], [0], [1], [0, 0, 1, 1], [], []>} : vector<16x32xf32>, vector<32x32xf32>, vector<16x32xf32> -> vector<16x32xf32>
    %c0_50 = arith.constant 0 : index
    %c0_51 = arith.constant 0 : index
    %167 = vector.load %arg4[%c0_50, %c0_51] : memref<1x32xf32, #tpu.memory_space<vmem>>, vector<1x32xf32>
    %168 = vector.broadcast %167 : vector<1x32xf32> to vector<16x32xf32>
    %169 = arith.addf %166, %168 : vector<16x32xf32>
    %170 = vector.shape_cast %169 : vector<16x32xf32> to vector<2x8x32xf32>
    %c0_52 = arith.constant 0 : index
    %c0_53 = arith.constant 0 : index
    %c0_54 = arith.constant 0 : index
    %171 = vector.load %arg5[%c0_52, %c0_53, %c0_54] : memref<2x8x32xf32, #tpu.memory_space<vmem>>, vector<2x8x32xf32>
    tpu.vector_store %arg5[%c0_52, %c0_53, %c0_54], %170 {strides = array<i32>} : memref<2x8x32xf32, #tpu.memory_space<vmem>>, vector<2x8x32xf32>,
    return
  }
  func.func @transform_0(%arg0: i32) -> (i32, i32, i32) {
    %c0_i32 = arith.constant 0 : i32
    %c0_i32_0 = arith.constant 0 : i32
    %c0_i32_1 = arith.constant 0 : i32
    return %arg0, %c0_i32, %c0_i32_0 : i32, i32, i32
  }
  func.func @transform_1(%arg0: i32) -> (i32, i32) {
    %c0_i32 = arith.constant 0 : i32
    %c0_i32_0 = arith.constant 0 : i32
    %c0_i32_1 = arith.constant 0 : i32
    return %c0_i32, %c0_i32_0 : i32, i32
  }
  func.func @transform_2(%arg0: i32) -> (i32, i32) {
    %c0_i32 = arith.constant 0 : i32
    %c0_i32_0 = arith.constant 0 : i32
    %c0_i32_1 = arith.constant 0 : i32
    return %c0_i32, %c0_i32_0 : i32, i32
  }
  func.func @transform_3(%arg0: i32) -> (i32, i32) {
    %c0_i32 = arith.constant 0 : i32
    %c0_i32_0 = arith.constant 0 : i32
    %c0_i32_1 = arith.constant 0 : i32
    return %c0_i32, %c0_i32_0 : i32, i32
  }
  func.func @transform_4(%arg0: i32) -> (i32, i32, i32) {
    %c0_i32 = arith.constant 0 : i32
    %c0_i32_0 = arith.constant 0 : i32
    %c0_i32_1 = arith.constant 0 : i32
    return %arg0, %c0_i32, %c0_i32_0 : i32, i32, i32
  }
}

module attributes {stable_mosaic.version = 11 : i64} {
  func.func @_pooling_attention_kernel(%arg0: i32, %arg1: memref<2x8x32xf32, #tpu.memory_space<vmem>>, %arg2: memref<32x96xf32, #tpu.memory_space<vmem>>, %arg3: memref<32x32xf32, #tpu.memory_space<vmem>>, %arg4: memref<1x32xf32, #tpu.memory_space<vmem>>, %arg5: memref<2x8x32xf32, #tpu.memory_space<vmem>>, %arg6: memref<16x32xf32, #tpu.memory_space<vmem>>) attributes {dimension_semantics = [#tpu.dimension_semantics<parallel>], iteration_bounds = array<i64: 1>, scalar_prefetch = 0 : i64, scratch_operands = 1 : i64, tpu.core_type = #tpu.core_type<tc>, window_params = [{transform_indices = @transform_0, window_bounds = array<i64: 2, 8, 32>}, {pipeline_mode = #tpu.pipeline_mode<synchronous>, transform_indices = @transform_1, window_bounds = array<i64: 32, 96>}, {pipeline_mode = #tpu.pipeline_mode<synchronous>, transform_indices = @transform_2, window_bounds = array<i64: 32, 32>}, {pipeline_mode = #tpu.pipeline_mode<synchronous>, transform_indices = @transform_3, window_bounds = array<i64: 1, 32>}, {transform_indices = @transform_4, window_bounds = array<i64: 2, 8, 32>}]} {
    %c0 = arith.constant 0 : index
    %c0_0 = arith.constant 0 : index
    %c0_1 = arith.constant 0 : index
    %0 = vector.load %arg1[%c0, %c0_0, %c0_1] : memref<2x8x32xf32, #tpu.memory_space<vmem>>, vector<2x8x32xf32>
    %1 = vector.shape_cast %0 : vector<2x8x32xf32> to vector<16x32xf32>
    %c0_2 = arith.constant 0 : index
    %c0_3 = arith.constant 0 : index
    %2 = vector.load %arg2[%c0_2, %c0_3] : memref<32x96xf32, #tpu.memory_space<vmem>>, vector<32x96xf32>
    %cst = arith.constant dense<0.000000e+00> : vector<16x96xf32>
    %3 = tpu.matmul %1, %2, %cst {dimension_numbers = #tpu.dot_dimension_numbers<[1], [0], [0], [1], [0, 0, 1, 1], [], []>} : vector<16x32xf32>, vector<32x96xf32>, vector<16x96xf32> -> vector<16x96xf32>
    %4 = vector.extract_strided_slice %3 {offsets = [0, 0], sizes = [16, 4], strides = [1, 1]} : vector<16x96xf32> to vector<16x4xf32>
    %5 = vector.shape_cast %4 : vector<16x4xf32> to vector<2x8x4xf32>
    %6 = vector.extract_strided_slice %3 {offsets = [0, 32], sizes = [16, 4], strides = [1, 1]} : vector<16x96xf32> to vector<16x4xf32>
    %7 = vector.shape_cast %6 : vector<16x4xf32> to vector<2x8x4xf32>
    %8 = vector.extract_strided_slice %3 {offsets = [0, 64], sizes = [16, 4], strides = [1, 1]} : vector<16x96xf32> to vector<16x4xf32>
    %9 = vector.shape_cast %8 : vector<16x4xf32> to vector<2x8x4xf32>
    "tpu.trace_start"() <{level = 10 : i32, message = "bqd,bkd->bqk"}> : () -> ()
    %cst_4 = arith.constant dense<0.000000e+00> : vector<2x8x8xf32>
    %10 = tpu.matmul %5, %7, %cst_4 {dimension_numbers = #tpu.dot_dimension_numbers<[2], [2], [1], [1], [0, 0, 0, 1, 1, 1], [0], [0]>} : vector<2x8x4xf32>, vector<2x8x4xf32>, vector<2x8x8xf32> -> vector<2x8x8xf32>
    "tpu.trace_stop"() : () -> ()
    %cst_5 = arith.constant dense<0xFF800000> : vector<2x8xf32>
    %11 = vector.multi_reduction <maximumf>, %10, %cst_5 [2] : vector<2x8x8xf32> to vector<2x8xf32>
    %12 = vector.shape_cast %11 : vector<2x8xf32> to vector<2x8x1xf32>
    %13 = vector.broadcast %12 : vector<2x8x1xf32> to vector<2x8x8xf32>
    %14 = arith.subf %10, %13 : vector<2x8x8xf32>
    %15 = math.exp %14 : vector<2x8x8xf32>
    %cst_6 = arith.constant dense<0.000000e+00> : vector<2x8xf32>
    %16 = vector.multi_reduction <add>, %15, %cst_6 [2] : vector<2x8x8xf32> to vector<2x8xf32>
    %17 = vector.shape_cast %16 : vector<2x8xf32> to vector<2x8x1xf32>
    "tpu.trace_start"() <{level = 10 : i32, message = "bqk,bkd->bqd"}> : () -> ()
    %cst_7 = arith.constant dense<0.000000e+00> : vector<2x8x4xf32>
    %18 = tpu.matmul %15, %9, %cst_7 {dimension_numbers = #tpu.dot_dimension_numbers<[2], [1], [1], [2], [0, 0, 0, 1, 1, 2], [0], [0]>} : vector<2x8x8xf32>, vector<2x8x4xf32>, vector<2x8x4xf32> -> vector<2x8x4xf32>
    "tpu.trace_stop"() : () -> ()
    %19 = tpu.reciprocal %17 : vector<2x8x1xf32> -> vector<2x8x1xf32>
    %20 = vector.broadcast %19 : vector<2x8x1xf32> to vector<2x8x4xf32>
    %21 = arith.mulf %18, %20 : vector<2x8x4xf32>
    %22 = vector.shape_cast %21 : vector<2x8x4xf32> to vector<16x4xf32>
    %c0_8 = arith.constant 0 : index
    %c0_9 = arith.constant 0 : index
    %23 = vector.load %arg6[%c0_8, %c0_9] : memref<16x32xf32, #tpu.memory_space<vmem>>, vector<16x4xf32>
    tpu.vector_store %arg6[%c0_8, %c0_9], %22 {strides = array<i32>} : memref<16x32xf32, #tpu.memory_space<vmem>>, vector<16x4xf32>,
    %24 = vector.extract_strided_slice %3 {offsets = [0, 4], sizes = [16, 4], strides = [1, 1]} : vector<16x96xf32> to vector<16x4xf32>
    %25 = vector.shape_cast %24 : vector<16x4xf32> to vector<2x8x4xf32>
    %26 = vector.extract_strided_slice %3 {offsets = [0, 36], sizes = [16, 4], strides = [1, 1]} : vector<16x96xf32> to vector<16x4xf32>
    %27 = vector.shape_cast %26 : vector<16x4xf32> to vector<2x8x4xf32>
    %28 = vector.extract_strided_slice %3 {offsets = [0, 68], sizes = [16, 4], strides = [1, 1]} : vector<16x96xf32> to vector<16x4xf32>
    %29 = vector.shape_cast %28 : vector<16x4xf32> to vector<2x8x4xf32>
    "tpu.trace_start"() <{level = 10 : i32, message = "bqd,bkd->bqk"}> : () -> ()
    %cst_10 = arith.constant dense<0.000000e+00> : vector<2x8x8xf32>
    %30 = tpu.matmul %25, %27, %cst_10 {dimension_numbers = #tpu.dot_dimension_numbers<[2], [2], [1], [1], [0, 0, 0, 1, 1, 1], [0], [0]>} : vector<2x8x4xf32>, vector<2x8x4xf32>, vector<2x8x8xf32> -> vector<2x8x8xf32>
    "tpu.trace_stop"() : () -> ()
    %cst_11 = arith.constant dense<0xFF800000> : vector<2x8xf32>
    %31 = vector.multi_reduction <maximumf>, %30, %cst_11 [2] : vector<2x8x8xf32> to vector<2x8xf32>
    %32 = vector.shape_cast %31 : vector<2x8xf32> to vector<2x8x1xf32>
    %33 = vector.broadcast %32 : vector<2x8x1xf32> to vector<2x8x8xf32>
    %34 = arith.subf %30, %33 : vector<2x8x8xf32>
    %35 = math.exp %34 : vector<2x8x8xf32>
    %cst_12 = arith.constant dense<0.000000e+00> : vector<2x8xf32>
    %36 = vector.multi_reduction <add>, %35, %cst_12 [2] : vector<2x8x8xf32> to vector<2x8xf32>
    %37 = vector.shape_cast %36 : vector<2x8xf32> to vector<2x8x1xf32>
    "tpu.trace_start"() <{level = 10 : i32, message = "bqk,bkd->bqd"}> : () -> ()
    %cst_13 = arith.constant dense<0.000000e+00> : vector<2x8x4xf32>
    %38 = tpu.matmul %35, %29, %cst_13 {dimension_numbers = #tpu.dot_dimension_numbers<[2], [1], [1], [2], [0, 0, 0, 1, 1, 2], [0], [0]>} : vector<2x8x8xf32>, vector<2x8x4xf32>, vector<2x8x4xf32> -> vector<2x8x4xf32>
    "tpu.trace_stop"() : () -> ()
    %39 = tpu.reciprocal %37 : vector<2x8x1xf32> -> vector<2x8x1xf32>
    %40 = vector.broadcast %39 : vector<2x8x1xf32> to vector<2x8x4xf32>
    %41 = arith.mulf %38, %40 : vector<2x8x4xf32>
    %42 = vector.shape_cast %41 : vector<2x8x4xf32> to vector<16x4xf32>
    %c0_14 = arith.constant 0 : index
    %c4 = arith.constant 4 : index
    %43 = vector.load %arg6[%c0_14, %c4] : memref<16x32xf32, #tpu.memory_space<vmem>>, vector<16x4xf32>
    tpu.vector_store %arg6[%c0_14, %c4], %42 {strides = array<i32>} : memref<16x32xf32, #tpu.memory_space<vmem>>, vector<16x4xf32>,
    %44 = vector.extract_strided_slice %3 {offsets = [0, 8], sizes = [16, 4], strides = [1, 1]} : vector<16x96xf32> to vector<16x4xf32>
    %45 = vector.shape_cast %44 : vector<16x4xf32> to vector<2x8x4xf32>
    %46 = vector.extract_strided_slice %3 {offsets = [0, 40], sizes = [16, 4], strides = [1, 1]} : vector<16x96xf32> to vector<16x4xf32>
    %47 = vector.shape_cast %46 : vector<16x4xf32> to vector<2x8x4xf32>
    %48 = vector.extract_strided_slice %3 {offsets = [0, 72], sizes = [16, 4], strides = [1, 1]} : vector<16x96xf32> to vector<16x4xf32>
    %49 = vector.shape_cast %48 : vector<16x4xf32> to vector<2x8x4xf32>
    "tpu.trace_start"() <{level = 10 : i32, message = "bqd,bkd->bqk"}> : () -> ()
    %cst_15 = arith.constant dense<0.000000e+00> : vector<2x8x8xf32>
    %50 = tpu.matmul %45, %47, %cst_15 {dimension_numbers = #tpu.dot_dimension_numbers<[2], [2], [1], [1], [0, 0, 0, 1, 1, 1], [0], [0]>} : vector<2x8x4xf32>, vector<2x8x4xf32>, vector<2x8x8xf32> -> vector<2x8x8xf32>
    "tpu.trace_stop"() : () -> ()
    %cst_16 = arith.constant dense<0xFF800000> : vector<2x8xf32>
    %51 = vector.multi_reduction <maximumf>, %50, %cst_16 [2] : vector<2x8x8xf32> to vector<2x8xf32>
    %52 = vector.shape_cast %51 : vector<2x8xf32> to vector<2x8x1xf32>
    %53 = vector.broadcast %52 : vector<2x8x1xf32> to vector<2x8x8xf32>
    %54 = arith.subf %50, %53 : vector<2x8x8xf32>
    %55 = math.exp %54 : vector<2x8x8xf32>
    %cst_17 = arith.constant dense<0.000000e+00> : vector<2x8xf32>
    %56 = vector.multi_reduction <add>, %55, %cst_17 [2] : vector<2x8x8xf32> to vector<2x8xf32>
    %57 = vector.shape_cast %56 : vector<2x8xf32> to vector<2x8x1xf32>
    "tpu.trace_start"() <{level = 10 : i32, message = "bqk,bkd->bqd"}> : () -> ()
    %cst_18 = arith.constant dense<0.000000e+00> : vector<2x8x4xf32>
    %58 = tpu.matmul %55, %49, %cst_18 {dimension_numbers = #tpu.dot_dimension_numbers<[2], [1], [1], [2], [0, 0, 0, 1, 1, 2], [0], [0]>} : vector<2x8x8xf32>, vector<2x8x4xf32>, vector<2x8x4xf32> -> vector<2x8x4xf32>
    "tpu.trace_stop"() : () -> ()
    %59 = tpu.reciprocal %57 : vector<2x8x1xf32> -> vector<2x8x1xf32>
    %60 = vector.broadcast %59 : vector<2x8x1xf32> to vector<2x8x4xf32>
    %61 = arith.mulf %58, %60 : vector<2x8x4xf32>
    %62 = vector.shape_cast %61 : vector<2x8x4xf32> to vector<16x4xf32>
    %c0_19 = arith.constant 0 : index
    %c8 = arith.constant 8 : index
    %63 = vector.load %arg6[%c0_19, %c8] : memref<16x32xf32, #tpu.memory_space<vmem>>, vector<16x4xf32>
    tpu.vector_store %arg6[%c0_19, %c8], %62 {strides = array<i32>} : memref<16x32xf32, #tpu.memory_space<vmem>>, vector<16x4xf32>,
    %64 = vector.extract_strided_slice %3 {offsets = [0, 12], sizes = [16, 4], strides = [1, 1]} : vector<16x96xf32> to vector<16x4xf32>
    %65 = vector.shape_cast %64 : vector<16x4xf32> to vector<2x8x4xf32>
    %66 = vector.extract_strided_slice %3 {offsets = [0, 44], sizes = [16, 4], strides = [1, 1]} : vector<16x96xf32> to vector<16x4xf32>
    %67 = vector.shape_cast %66 : vector<16x4xf32> to vector<2x8x4xf32>
    %68 = vector.extract_strided_slice %3 {offsets = [0, 76], sizes = [16, 4], strides = [1, 1]} : vector<16x96xf32> to vector<16x4xf32>
    %69 = vector.shape_cast %68 : vector<16x4xf32> to vector<2x8x4xf32>
    "tpu.trace_start"() <{level = 10 : i32, message = "bqd,bkd->bqk"}> : () -> ()
    %cst_20 = arith.constant dense<0.000000e+00> : vector<2x8x8xf32>
    %70 = tpu.matmul %65, %67, %cst_20 {dimension_numbers = #tpu.dot_dimension_numbers<[2], [2], [1], [1], [0, 0, 0, 1, 1, 1], [0], [0]>} : vector<2x8x4xf32>, vector<2x8x4xf32>, vector<2x8x8xf32> -> vector<2x8x8xf32>
    "tpu.trace_stop"() : () -> ()
    %cst_21 = arith.constant dense<0xFF800000> : vector<2x8xf32>
    %71 = vector.multi_reduction <maximumf>, %70, %cst_21 [2] : vector<2x8x8xf32> to vector<2x8xf32>
    %72 = vector.shape_cast %71 : vector<2x8xf32> to vector<2x8x1xf32>
    %73 = vector.broadcast %72 : vector<2x8x1xf32> to vector<2x8x8xf32>
    %74 = arith.subf %70, %73 : vector<2x8x8xf32>
    %75 = math.exp %74 : vector<2x8x8xf32>
    %cst_22 = arith.constant dense<0.000000e+00> : vector<2x8xf32>
    %76 = vector.multi_reduction <add>, %75, %cst_22 [2] : vector<2x8x8xf32> to vector<2x8xf32>
    %77 = vector.shape_cast %76 : vector<2x8xf32> to vector<2x8x1xf32>
    "tpu.trace_start"() <{level = 10 : i32, message = "bqk,bkd->bqd"}> : () -> ()
    %cst_23 = arith.constant dense<0.000000e+00> : vector<2x8x4xf32>
    %78 = tpu.matmul %75, %69, %cst_23 {dimension_numbers = #tpu.dot_dimension_numbers<[2], [1], [1], [2], [0, 0, 0, 1, 1, 2], [0], [0]>} : vector<2x8x8xf32>, vector<2x8x4xf32>, vector<2x8x4xf32> -> vector<2x8x4xf32>
    "tpu.trace_stop"() : () -> ()
    %79 = tpu.reciprocal %77 : vector<2x8x1xf32> -> vector<2x8x1xf32>
    %80 = vector.broadcast %79 : vector<2x8x1xf32> to vector<2x8x4xf32>
    %81 = arith.mulf %78, %80 : vector<2x8x4xf32>
    %82 = vector.shape_cast %81 : vector<2x8x4xf32> to vector<16x4xf32>
    %c0_24 = arith.constant 0 : index
    %c12 = arith.constant 12 : index
    %83 = vector.load %arg6[%c0_24, %c12] : memref<16x32xf32, #tpu.memory_space<vmem>>, vector<16x4xf32>
    tpu.vector_store %arg6[%c0_24, %c12], %82 {strides = array<i32>} : memref<16x32xf32, #tpu.memory_space<vmem>>, vector<16x4xf32>,
    %84 = vector.extract_strided_slice %3 {offsets = [0, 16], sizes = [16, 4], strides = [1, 1]} : vector<16x96xf32> to vector<16x4xf32>
    %85 = vector.shape_cast %84 : vector<16x4xf32> to vector<2x8x4xf32>
    %86 = vector.extract_strided_slice %3 {offsets = [0, 48], sizes = [16, 4], strides = [1, 1]} : vector<16x96xf32> to vector<16x4xf32>
    %87 = vector.shape_cast %86 : vector<16x4xf32> to vector<2x8x4xf32>
    %88 = vector.extract_strided_slice %3 {offsets = [0, 80], sizes = [16, 4], strides = [1, 1]} : vector<16x96xf32> to vector<16x4xf32>
    %89 = vector.shape_cast %88 : vector<16x4xf32> to vector<2x8x4xf32>
    "tpu.trace_start"() <{level = 10 : i32, message = "bqd,bkd->bqk"}> : () -> ()
    %cst_25 = arith.constant dense<0.000000e+00> : vector<2x8x8xf32>
    %90 = tpu.matmul %85, %87, %cst_25 {dimension_numbers = #tpu.dot_dimension_numbers<[2], [2], [1], [1], [0, 0, 0, 1, 1, 1], [0], [0]>} : vector<2x8x4xf32>, vector<2x8x4xf32>, vector<2x8x8xf32> -> vector<2x8x8xf32>
    "tpu.trace_stop"() : () -> ()
    %cst_26 = arith.constant dense<0xFF800000> : vector<2x8xf32>
    %91 = vector.multi_reduction <maximumf>, %90, %cst_26 [2] : vector<2x8x8xf32> to vector<2x8xf32>
    %92 = vector.shape_cast %91 : vector<2x8xf32> to vector<2x8x1xf32>
    %93 = vector.broadcast %92 : vector<2x8x1xf32> to vector<2x8x8xf32>
    %94 = arith.subf %90, %93 : vector<2x8x8xf32>
    %95 = math.exp %94 : vector<2x8x8xf32>
    %cst_27 = arith.constant dense<0.000000e+00> : vector<2x8xf32>
    %96 = vector.multi_reduction <add>, %95, %cst_27 [2] : vector<2x8x8xf32> to vector<2x8xf32>
    %97 = vector.shape_cast %96 : vector<2x8xf32> to vector<2x8x1xf32>
    "tpu.trace_start"() <{level = 10 : i32, message = "bqk,bkd->bqd"}> : () -> ()
    %cst_28 = arith.constant dense<0.000000e+00> : vector<2x8x4xf32>
    %98 = tpu.matmul %95, %89, %cst_28 {dimension_numbers = #tpu.dot_dimension_numbers<[2], [1], [1], [2], [0, 0, 0, 1, 1, 2], [0], [0]>} : vector<2x8x8xf32>, vector<2x8x4xf32>, vector<2x8x4xf32> -> vector<2x8x4xf32>
    "tpu.trace_stop"() : () -> ()
    %99 = tpu.reciprocal %97 : vector<2x8x1xf32> -> vector<2x8x1xf32>
    %100 = vector.broadcast %99 : vector<2x8x1xf32> to vector<2x8x4xf32>
    %101 = arith.mulf %98, %100 : vector<2x8x4xf32>
    %102 = vector.shape_cast %101 : vector<2x8x4xf32> to vector<16x4xf32>
    %c0_29 = arith.constant 0 : index
    %c16 = arith.constant 16 : index
    %103 = vector.load %arg6[%c0_29, %c16] : memref<16x32xf32, #tpu.memory_space<vmem>>, vector<16x4xf32>
    tpu.vector_store %arg6[%c0_29, %c16], %102 {strides = array<i32>} : memref<16x32xf32, #tpu.memory_space<vmem>>, vector<16x4xf32>,
    %104 = vector.extract_strided_slice %3 {offsets = [0, 20], sizes = [16, 4], strides = [1, 1]} : vector<16x96xf32> to vector<16x4xf32>
    %105 = vector.shape_cast %104 : vector<16x4xf32> to vector<2x8x4xf32>
    %106 = vector.extract_strided_slice %3 {offsets = [0, 52], sizes = [16, 4], strides = [1, 1]} : vector<16x96xf32> to vector<16x4xf32>
    %107 = vector.shape_cast %106 : vector<16x4xf32> to vector<2x8x4xf32>
    %108 = vector.extract_strided_slice %3 {offsets = [0, 84], sizes = [16, 4], strides = [1, 1]} : vector<16x96xf32> to vector<16x4xf32>
    %109 = vector.shape_cast %108 : vector<16x4xf32> to vector<2x8x4xf32>
    "tpu.trace_start"() <{level = 10 : i32, message = "bqd,bkd->bqk"}> : () -> ()
    %cst_30 = arith.constant dense<0.000000e+00> : vector<2x8x8xf32>
    %110 = tpu.matmul %105, %107, %cst_30 {dimension_numbers = #tpu.dot_dimension_numbers<[2], [2], [1], [1], [0, 0, 0, 1, 1, 1], [0], [0]>} : vector<2x8x4xf32>, vector<2x8x4xf32>, vector<2x8x8xf32> -> vector<2x8x8xf32>
    "tpu.trace_stop"() : () -> ()
    %cst_31 = arith.constant dense<0xFF800000> : vector<2x8xf32>
    %111 = vector.multi_reduction <maximumf>, %110, %cst_31 [2] : vector<2x8x8xf32> to vector<2x8xf32>
    %112 = vector.shape_cast %111 : vector<2x8xf32> to vector<2x8x1xf32>
    %113 = vector.broadcast %112 : vector<2x8x1xf32> to vector<2x8x8xf32>
    %114 = arith.subf %110, %113 : vector<2x8x8xf32>
    %115 = math.exp %114 : vector<2x8x8xf32>
    %cst_32 = arith.constant dense<0.000000e+00> : vector<2x8xf32>
    %116 = vector.multi_reduction <add>, %115, %cst_32 [2] : vector<2x8x8xf32> to vector<2x8xf32>
    %117 = vector.shape_cast %116 : vector<2x8xf32> to vector<2x8x1xf32>
    "tpu.trace_start"() <{level = 10 : i32, message = "bqk,bkd->bqd"}> : () -> ()
    %cst_33 = arith.constant dense<0.000000e+00> : vector<2x8x4xf32>
    %118 = tpu.matmul %115, %109, %cst_33 {dimension_numbers = #tpu.dot_dimension_numbers<[2], [1], [1], [2], [0, 0, 0, 1, 1, 2], [0], [0]>} : vector<2x8x8xf32>, vector<2x8x4xf32>, vector<2x8x4xf32> -> vector<2x8x4xf32>
    "tpu.trace_stop"() : () -> ()
    %119 = tpu.reciprocal %117 : vector<2x8x1xf32> -> vector<2x8x1xf32>
    %120 = vector.broadcast %119 : vector<2x8x1xf32> to vector<2x8x4xf32>
    %121 = arith.mulf %118, %120 : vector<2x8x4xf32>
    %122 = vector.shape_cast %121 : vector<2x8x4xf32> to vector<16x4xf32>
    %c0_34 = arith.constant 0 : index
    %c20 = arith.constant 20 : index
    %123 = vector.load %arg6[%c0_34, %c20] : memref<16x32xf32, #tpu.memory_space<vmem>>, vector<16x4xf32>
    tpu.vector_store %arg6[%c0_34, %c20], %122 {strides = array<i32>} : memref<16x32xf32, #tpu.memory_space<vmem>>, vector<16x4xf32>,
    %124 = vector.extract_strided_slice %3 {offsets = [0, 24], sizes = [16, 4], strides = [1, 1]} : vector<16x96xf32> to vector<16x4xf32>
    %125 = vector.shape_cast %124 : vector<16x4xf32> to vector<2x8x4xf32>
    %126 = vector.extract_strided_slice %3 {offsets = [0, 56], sizes = [16, 4], strides = [1, 1]} : vector<16x96xf32> to vector<16x4xf32>
    %127 = vector.shape_cast %126 : vector<16x4xf32> to vector<2x8x4xf32>
    %128 = vector.extract_strided_slice %3 {offsets = [0, 88], sizes = [16, 4], strides = [1, 1]} : vector<16x96xf32> to vector<16x4xf32>
    %129 = vector.shape_cast %128 : vector<16x4xf32> to vector<2x8x4xf32>
    "tpu.trace_start"() <{level = 10 : i32, message = "bqd,bkd->bqk"}> : () -> ()
    %cst_35 = arith.constant dense<0.000000e+00> : vector<2x8x8xf32>
    %130 = tpu.matmul %125, %127, %cst_35 {dimension_numbers = #tpu.dot_dimension_numbers<[2], [2], [1], [1], [0, 0, 0, 1, 1, 1], [0], [0]>} : vector<2x8x4xf32>, vector<2x8x4xf32>, vector<2x8x8xf32> -> vector<2x8x8xf32>
    "tpu.trace_stop"() : () -> ()
    %cst_36 = arith.constant dense<0xFF800000> : vector<2x8xf32>
    %131 = vector.multi_reduction <maximumf>, %130, %cst_36 [2] : vector<2x8x8xf32> to vector<2x8xf32>
    %132 = vector.shape_cast %131 : vector<2x8xf32> to vector<2x8x1xf32>
    %133 = vector.broadcast %132 : vector<2x8x1xf32> to vector<2x8x8xf32>
    %134 = arith.subf %130, %133 : vector<2x8x8xf32>
    %135 = math.exp %134 : vector<2x8x8xf32>
    %cst_37 = arith.constant dense<0.000000e+00> : vector<2x8xf32>
    %136 = vector.multi_reduction <add>, %135, %cst_37 [2] : vector<2x8x8xf32> to vector<2x8xf32>
    %137 = vector.shape_cast %136 : vector<2x8xf32> to vector<2x8x1xf32>
    "tpu.trace_start"() <{level = 10 : i32, message = "bqk,bkd->bqd"}> : () -> ()
    %cst_38 = arith.constant dense<0.000000e+00> : vector<2x8x4xf32>
    %138 = tpu.matmul %135, %129, %cst_38 {dimension_numbers = #tpu.dot_dimension_numbers<[2], [1], [1], [2], [0, 0, 0, 1, 1, 2], [0], [0]>} : vector<2x8x8xf32>, vector<2x8x4xf32>, vector<2x8x4xf32> -> vector<2x8x4xf32>
    "tpu.trace_stop"() : () -> ()
    %139 = tpu.reciprocal %137 : vector<2x8x1xf32> -> vector<2x8x1xf32>
    %140 = vector.broadcast %139 : vector<2x8x1xf32> to vector<2x8x4xf32>
    %141 = arith.mulf %138, %140 : vector<2x8x4xf32>
    %142 = vector.shape_cast %141 : vector<2x8x4xf32> to vector<16x4xf32>
    %c0_39 = arith.constant 0 : index
    %c24 = arith.constant 24 : index
    %143 = vector.load %arg6[%c0_39, %c24] : memref<16x32xf32, #tpu.memory_space<vmem>>, vector<16x4xf32>
    tpu.vector_store %arg6[%c0_39, %c24], %142 {strides = array<i32>} : memref<16x32xf32, #tpu.memory_space<vmem>>, vector<16x4xf32>,
    %144 = vector.extract_strided_slice %3 {offsets = [0, 28], sizes = [16, 4], strides = [1, 1]} : vector<16x96xf32> to vector<16x4xf32>
    %145 = vector.shape_cast %144 : vector<16x4xf32> to vector<2x8x4xf32>
    %146 = vector.extract_strided_slice %3 {offsets = [0, 60], sizes = [16, 4], strides = [1, 1]} : vector<16x96xf32> to vector<16x4xf32>
    %147 = vector.shape_cast %146 : vector<16x4xf32> to vector<2x8x4xf32>
    %148 = vector.extract_strided_slice %3 {offsets = [0, 92], sizes = [16, 4], strides = [1, 1]} : vector<16x96xf32> to vector<16x4xf32>
    %149 = vector.shape_cast %148 : vector<16x4xf32> to vector<2x8x4xf32>
    "tpu.trace_start"() <{level = 10 : i32, message = "bqd,bkd->bqk"}> : () -> ()
    %cst_40 = arith.constant dense<0.000000e+00> : vector<2x8x8xf32>
    %150 = tpu.matmul %145, %147, %cst_40 {dimension_numbers = #tpu.dot_dimension_numbers<[2], [2], [1], [1], [0, 0, 0, 1, 1, 1], [0], [0]>} : vector<2x8x4xf32>, vector<2x8x4xf32>, vector<2x8x8xf32> -> vector<2x8x8xf32>
    "tpu.trace_stop"() : () -> ()
    %cst_41 = arith.constant dense<0xFF800000> : vector<2x8xf32>
    %151 = vector.multi_reduction <maximumf>, %150, %cst_41 [2] : vector<2x8x8xf32> to vector<2x8xf32>
    %152 = vector.shape_cast %151 : vector<2x8xf32> to vector<2x8x1xf32>
    %153 = vector.broadcast %152 : vector<2x8x1xf32> to vector<2x8x8xf32>
    %154 = arith.subf %150, %153 : vector<2x8x8xf32>
    %155 = math.exp %154 : vector<2x8x8xf32>
    %cst_42 = arith.constant dense<0.000000e+00> : vector<2x8xf32>
    %156 = vector.multi_reduction <add>, %155, %cst_42 [2] : vector<2x8x8xf32> to vector<2x8xf32>
    %157 = vector.shape_cast %156 : vector<2x8xf32> to vector<2x8x1xf32>
    "tpu.trace_start"() <{level = 10 : i32, message = "bqk,bkd->bqd"}> : () -> ()
    %cst_43 = arith.constant dense<0.000000e+00> : vector<2x8x4xf32>
    %158 = tpu.matmul %155, %149, %cst_43 {dimension_numbers = #tpu.dot_dimension_numbers<[2], [1], [1], [2], [0, 0, 0, 1, 1, 2], [0], [0]>} : vector<2x8x8xf32>, vector<2x8x4xf32>, vector<2x8x4xf32> -> vector<2x8x4xf32>
    "tpu.trace_stop"() : () -> ()
    %159 = tpu.reciprocal %157 : vector<2x8x1xf32> -> vector<2x8x1xf32>
    %160 = vector.broadcast %159 : vector<2x8x1xf32> to vector<2x8x4xf32>
    %161 = arith.mulf %158, %160 : vector<2x8x4xf32>
    %162 = vector.shape_cast %161 : vector<2x8x4xf32> to vector<16x4xf32>
    %c0_44 = arith.constant 0 : index
    %c28 = arith.constant 28 : index
    %163 = vector.load %arg6[%c0_44, %c28] : memref<16x32xf32, #tpu.memory_space<vmem>>, vector<16x4xf32>
    tpu.vector_store %arg6[%c0_44, %c28], %162 {strides = array<i32>} : memref<16x32xf32, #tpu.memory_space<vmem>>, vector<16x4xf32>,
    %c0_45 = arith.constant 0 : index
    %c0_46 = arith.constant 0 : index
    %164 = vector.load %arg6[%c0_45, %c0_46] : memref<16x32xf32, #tpu.memory_space<vmem>>, vector<16x32xf32>
    %c0_47 = arith.constant 0 : index
    %c0_48 = arith.constant 0 : index
    %165 = vector.load %arg3[%c0_47, %c0_48] : memref<32x32xf32, #tpu.memory_space<vmem>>, vector<32x32xf32>
    %cst_49 = arith.constant dense<0.000000e+00> : vector<16x32xf32>
    %166 = tpu.matmul %164, %165, %cst_49 {dimension_numbers = #tpu.dot_dimension_numbers<[1], [0], [0], [1], [0, 0, 1, 1], [], []>} : vector<16x32xf32>, vector<32x32xf32>, vector<16x32xf32> -> vector<16x32xf32>
    %c0_50 = arith.constant 0 : index
    %c0_51 = arith.constant 0 : index
    %167 = vector.load %arg4[%c0_50, %c0_51] : memref<1x32xf32, #tpu.memory_space<vmem>>, vector<1x32xf32>
    %168 = vector.broadcast %167 : vector<1x32xf32> to vector<16x32xf32>
    %169 = arith.addf %166, %168 : vector<16x32xf32>
    %170 = vector.shape_cast %169 : vector<16x32xf32> to vector<2x8x32xf32>
    %c0_52 = arith.constant 0 : index
    %c0_53 = arith.constant 0 : index
    %c0_54 = arith.constant 0 : index
    %171 = vector.load %arg5[%c0_52, %c0_53, %c0_54] : memref<2x8x32xf32, #tpu.memory_space<vmem>>, vector<2x8x32xf32>
    tpu.vector_store %arg5[%c0_52, %c0_53, %c0_54], %170 {strides = array<i32>} : memref<2x8x32xf32, #tpu.memory_space<vmem>>, vector<2x8x32xf32>,
    return
  }
  func.func @transform_0(%arg0: i32) -> (i32, i32, i32) {
    %c0_i32 = arith.constant 0 : i32
    %c0_i32_0 = arith.constant 0 : i32
    %c0_i32_1 = arith.constant 0 : i32
    return %arg0, %c0_i32, %c0_i32_0 : i32, i32, i32
  }
  func.func @transform_1(%arg0: i32) -> (i32, i32) {
    %c0_i32 = arith.constant 0 : i32
    %c0_i32_0 = arith.constant 0 : i32
    %c0_i32_1 = arith.constant 0 : i32
    return %c0_i32, %c0_i32_0 : i32, i32
  }
  func.func @transform_2(%arg0: i32) -> (i32, i32) {
    %c0_i32 = arith.constant 0 : i32
    %c0_i32_0 = arith.constant 0 : i32
    %c0_i32_1 = arith.constant 0 : i32
    return %c0_i32, %c0_i32_0 : i32, i32
  }
  func.func @transform_3(%arg0: i32) -> (i32, i32) {
    %c0_i32 = arith.constant 0 : i32
    %c0_i32_0 = arith.constant 0 : i32
    %c0_i32_1 = arith.constant 0 : i32
    return %c0_i32, %c0_i32_0 : i32, i32
  }
  func.func @transform_4(%arg0: i32) -> (i32, i32, i32) {
    %c0_i32 = arith.constant 0 : i32
    %c0_i32_0 = arith.constant 0 : i32
    %c0_i32_1 = arith.constant 0 : i32
    return %arg0, %c0_i32, %c0_i32_0 : i32, i32, i32
  }
}

</mosaic_0001>

<llo_original>
// kernel: tpu_custom_call.1
$region0: #{tpu_custom_call.1}
  #allocation0 [shape = 'u32[]', space=smem, size = 0x4, offset = 0x4, fixed_abs, tag = 'smem constant byte address 0x4 - core index']
  #allocation1 [shape = 'u32[144,128]{1,0:T(1,128)}', space=vmem, size = 0x12000, scoped, tag = 'internal scratch']
  #allocation2 [shape = 'f32[16,32]{1,0:T(8,128)}', space=vmem, size = 0x2000, scoped, tag = 'scratch operand']
  %s0 = inlined_call_operand.hbm [shape: f32[2,8,32], index: 0, kind: input, shape index: {}]
  %s1 = inlined_call_operand.hbm [shape: f32[32,96], index: 1, kind: input, shape index: {}]
  %s2 = inlined_call_operand.hbm [shape: f32[32,32], index: 2, kind: input, shape index: {}]
  %s3 = inlined_call_operand.vmem [shape: f32[1,32], index: 3, kind: input, shape index: {}]
  %s4 = inlined_call_operand.hbm [shape: f32[2,8,32], index: 4, kind: output, shape index: {}]
  %s5 = sld [smem:[#allocation0]]
  $region38: #{tpu_custom_call.1} parent=0
    _
  %s7 = ssub.s32 1, %s5
  %s8 = scalar_select 0, %s7, %s5
  $region1: #{tpu_custom_call.1} parent=0
    #allocation3 [shape = 'u8[8192]{0}', space=vmem, size = 0x2000, scoped, tag = 'input window, operand 0, single buffered']
    #allocation4 [shape = 's32[1]{0}', space=sflag, size = 0x4, scoped, tag = 'scoped memory for tpu_custom_call.1']
    #allocation5 [shape = 's32[1]{0}', space=sflag, size = 0x4, scoped, tag = 'scoped memory for tpu_custom_call.1']
    #allocation6 [shape = 'u8[16384]{0}', space=vmem, size = 0x4000, scoped, tag = 'input window, operand 1, single buffered']
    #allocation7 [shape = 's32[1]{0}', space=sflag, size = 0x4, scoped, tag = 'scoped memory for tpu_custom_call.1']
    #allocation8 [shape = 'u8[16384]{0}', space=vmem, size = 0x4000, scoped, tag = 'input window, operand 2, single buffered']
    #allocation9 [shape = 'u8[8192]{0}', space=vmem, size = 0x2000, scoped, tag = 'output window, operand 0, single buffered']
    %9 = vsyncpa [#allocation4], 0
    %10 = vsyncpa [#allocation7], 0
    %11 = vsyncpa [#allocation5], 0
    // Predicated region
    $region2: #{tpu_custom_call.1} parent=1 // pred_check
      _
    $region3: #{tpu_custom_call.1} parent=1 // pred_check_branch
      %13 = sbr.rel (0) target = $region5
    $region4: #{tpu_custom_call.1} parent=1 // pred_region
      %s15 = ssub.s32 256, 256
      %16 = vsyncadd [#allocation4], %s15
      %s17 = sshll.u32 [#allocation3], 4
      %s18 = int_to_ptr.vmem [resolvable:$true] %s17
      %23 = dma.hbm_to_vmem [thread:$0]  %s0, 256, %s18, [#allocation4], 128, 128, 8
    $region5: #{tpu_custom_call.1} parent=1 // pred_fallthru
      _
    // Predicated region
    $region6: #{tpu_custom_call.1} parent=1 // pred_check
      _
    $region7: #{tpu_custom_call.1} parent=1 // pred_check_branch
      %25 = sbr.rel (0) target = $region9
    $region8: #{tpu_custom_call.1} parent=1 // pred_region
      %s27 = ssub.s32 512, 512
      %28 = vsyncadd [#allocation7], %s27
      %s29 = sshll.u32 [#allocation6], 4
      %s30 = int_to_ptr.vmem [resolvable:$true] %s29
      %35 = dma.hbm_to_vmem [thread:$0]  %s1, 512, %s30, [#allocation7], 128, 128, 8
    $region9: #{tpu_custom_call.1} parent=1 // pred_fallthru
      _
    // Predicated region
    $region10: #{tpu_custom_call.1} parent=1 // pred_check
      _
    $region11: #{tpu_custom_call.1} parent=1 // pred_check_branch
      %37 = sbr.rel (0) target = $region13
    $region12: #{tpu_custom_call.1} parent=1 // pred_region
      %s39 = ssub.s32 512, 512
      %40 = vsyncadd [#allocation7], %s39
      %s41 = sshll.u32 [#allocation8], 4
      %s42 = int_to_ptr.vmem [resolvable:$true] %s41
      %47 = dma.hbm_to_vmem [thread:$0]  %s2, 512, %s42, [#allocation7], 128, 128, 8
    $region13: #{tpu_custom_call.1} parent=1 // pred_fallthru
      _
    // Predicated region
    $region14: #{tpu_custom_call.1} parent=1 // pred_check
      _
    $region15: #{tpu_custom_call.1} parent=1 // pred_check_branch
      %49 = sbr.rel (0) target = $region17
    $region16: #{tpu_custom_call.1} parent=1 // pred_region
      _
    $region17: #{tpu_custom_call.1} parent=1 // pred_fallthru
      _
    // Predicated region
    $region18: #{tpu_custom_call.1} parent=1 // pred_check
      _
    $region19: #{tpu_custom_call.1} parent=1 // pred_check_branch
      %51 = sbr.rel (0) target = $region21
    $region20: #{tpu_custom_call.1} parent=1 // pred_region
      %52 = dma.done [#allocation4], 256
    $region21: #{tpu_custom_call.1} parent=1 // pred_fallthru
      _
    // Predicated region
    $region22: #{tpu_custom_call.1} parent=1 // pred_check
      _
    $region23: #{tpu_custom_call.1} parent=1 // pred_check_branch
      %54 = sbr.rel (0) target = $region25
    $region24: #{tpu_custom_call.1} parent=1 // pred_region
      %55 = dma.done [#allocation7], 512
    $region25: #{tpu_custom_call.1} parent=1 // pred_fallthru
      _
    // Predicated region
    $region26: #{tpu_custom_call.1} parent=1 // pred_check
      _
    $region27: #{tpu_custom_call.1} parent=1 // pred_check_branch
      %57 = sbr.rel (0) target = $region29
    $region28: #{tpu_custom_call.1} parent=1 // pred_region
      %58 = dma.done [#allocation7], 512
    $region29: #{tpu_custom_call.1} parent=1 // pred_fallthru
      _
    %v59 = vld [vmem:[#allocation3] sm:$0xff]
    %v60 = vld [vmem:[#allocation3 + $0x8] sm:$0xff]
    %v61 = vld [vmem:[#allocation6] sm:$0xff]
    %v62 = vld [vmem:[#allocation6 + $0x8] sm:$0xff]
    %v63 = vld [vmem:[#allocation6 + $0x10] sm:$0xff]
    %v64 = vld [vmem:[#allocation6 + $0x18] sm:$0xff]
    %vm65 = vcmask 261120
    %v67 = vsel %vm65, %v59, 0
    %v70 = vsel %vm65, %v60, 0
    %72 = vmatprep.subr.mxu0 0.0
    %73 = vmatpush1.msra.mxu0 %v61
    %74 = vmatprep.subr.mxu0 0.0
    %75 = vmatpush1.msra.mxu0 %v62
    %76 = vmatprep.subr.mxu0 0.0
    %77 = vmatpush1.msra.mxu0 %v63
    %78 = vmatprep.subr.mxu0 0.0
    %79 = vmatpush1.msra.mxu0 %v64
    %80 = vmatprep.subr.mxu0 0.0
    %81 = vmatpush1.msra.mxu0 0.0
    %82 = vmatprep.subr.mxu0 0.0
    %83 = vmatpush1.msra.mxu0 0.0
    %84 = vmatprep.subr.mxu0 0.0
    %85 = vmatpush1.msra.mxu0 0.0
    %86 = vmatprep.subr.mxu0 0.0
    %87 = vmatpush1.msra.mxu0 0.0
    %88 = vmatprep.subr.mxu0 0.0
    %89 = vmatpush1.msra.mxu0 0.0
    %90 = vmatprep.subr.mxu0 0.0
    %91 = vmatpush1.msra.mxu0 0.0
    %92 = vmatprep.subr.mxu0 0.0
    %93 = vmatpush1.msra.mxu0 0.0
    %94 = vmatprep.subr.mxu0 0.0
    %95 = vmatpush1.msra.mxu0 0.0
    %96 = vmatprep.subr.mxu0 0.0
    %97 = vmatpush1.msra.mxu0 0.0
    %98 = vmatprep.subr.mxu0 0.0
    %99 = vmatpush1.msra.mxu0 0.0
    %100 = vmatprep.subr.mxu0 0.0
    %101 = vmatpush1.msra.mxu0 0.0
    %102 = vmatprep.subr.mxu0 0.0
    %103 = vmatpush1.msra.mxu0 0.0
    %104 = vmatprep.subr.mxu0 0.0
    %105 = vmatpush1.msra.mxu0 0.0
    %106 = vmatprep.subr.mxu0 0.0
    %107 = vmatpush1.msra.mxu0 0.0
    %108 = vmatprep.subr.mxu0 0.0
    %109 = vmatpush1.msra.mxu0 0.0
    %110 = vmatprep.subr.mxu0 0.0
    %111 = vmatpush1.msra.mxu0 0.0
    %112 = vmatprep.subr.mxu0 0.0
    %113 = vmatpush1.msra.mxu0 0.0
    %114 = vmatprep.subr.mxu0 0.0
    %115 = vmatpush1.msra.mxu0 0.0
    %116 = vmatprep.subr.mxu0 0.0
    %117 = vmatpush1.msra.mxu0 0.0
    %118 = vmatprep.subr.mxu0 0.0
    %119 = vmatpush1.msra.mxu0 0.0
    %120 = vmatprep.subr.mxu0 0.0
    %121 = vmatpush1.msra.mxu0 0.0
    %122 = vmatprep.subr.mxu0 0.0
    %123 = vmatpush1.msra.mxu0 0.0
    %124 = vmatprep.subr.mxu0 0.0
    %125 = vmatpush1.msra.mxu0 0.0
    %126 = vmatprep.subr.mxu0 0.0
    %127 = vmatpush1.msra.mxu0 0.0
    %128 = vmatprep.subr.mxu0 0.0
    %129 = vmatpush1.msra.mxu0 0.0
    %130 = vmatprep.subr.mxu0 0.0
    %131 = vmatpush1.msra.mxu0 0.0
    %132 = vmatprep.subr.mxu0 0.0
    %133 = vmatpush1.msra.mxu0 0.0
    %134 = vmatprep.subr.mxu0 0.0
    %135 = vmatpush1.msra.mxu0 0.0
    %136 = vmatprep.mubr.f32.mxu0 0.0
    %137 = vmatmul.mubr.f32.gmra.mrb[0].mxu0 %v67
    %v138 = vpop.f32.mrb[0].mxu0
    %v139 = vadd.f32 0.0, %v138
    %v140 = vpop.f32.mrb[0].mxu0
    %141 = vmatprep.mubr.f32.mxu0 0.0
    %142 = vmatmul.mubr.f32.gmra.mrb[0].mxu0 %v70
    %v143 = vpop.f32.mrb[0].mxu0
    %v144 = vadd.f32 0.0, %v143
    %v145 = vpop.f32.mrb[0].mxu0
    %146 = vdwg.mxu0
    %148 = vrot.lane.b32.xlu0 %v139, 96
    %v149 = vpop.permute.xlu0 %148
    %vm150 = vcmask 31744
    %v151 = vsel %vm150, %v139, 0
    %v153 = vsel %vm150, %v149, 0
    %155 = vmatprep.subr.mxu0 0.0
    %156 = vmatpush1.xpose.msra.mxu0 %v153
    %157 = vmatprep.subr.mxu0 0.0
    %158 = vmatpush1.xpose.msra.mxu0 0.0
    %159 = vmatprep.subr.mxu0 0.0
    %160 = vmatpush1.xpose.msra.mxu0 0.0
    %161 = vmatprep.subr.mxu0 0.0
    %162 = vmatpush1.xpose.msra.mxu0 0.0
    %163 = vmatprep.subr.mxu0 0.0
    %164 = vmatpush1.xpose.msra.mxu0 0.0
    %165 = vmatprep.subr.mxu0 0.0
    %166 = vmatpush1.xpose.msra.mxu0 0.0
    %167 = vmatprep.subr.mxu0 0.0
    %168 = vmatpush1.xpose.msra.mxu0 0.0
    %169 = vmatprep.subr.mxu0 0.0
    %170 = vmatpush1.xpose.msra.mxu0 0.0
    %171 = vmatprep.subr.mxu0 0.0
    %172 = vmatpush1.xpose.msra.mxu0 0.0
    %173 = vmatprep.subr.mxu0 0.0
    %174 = vmatpush1.xpose.msra.mxu0 0.0
    %175 = vmatprep.subr.mxu0 0.0
    %176 = vmatpush1.xpose.msra.mxu0 0.0
    %177 = vmatprep.subr.mxu0 0.0
    %178 = vmatpush1.xpose.msra.mxu0 0.0
    %179 = vmatprep.subr.mxu0 0.0
    %180 = vmatpush1.xpose.msra.mxu0 0.0
    %181 = vmatprep.subr.mxu0 0.0
    %182 = vmatpush1.xpose.msra.mxu0 0.0
    %183 = vmatprep.subr.mxu0 0.0
    %184 = vmatpush1.xpose.msra.mxu0 0.0
    %185 = vmatprep.subr.mxu0 0.0
    %186 = vmatpush1.xpose.msra.mxu0 0.0
    %187 = vmatprep.subr.mxu0 0.0
    %188 = vmatpush1.xpose.msra.mxu0 0.0
    %189 = vmatprep.subr.mxu0 0.0
    %190 = vmatpush1.xpose.msra.mxu0 0.0
    %191 = vmatprep.subr.mxu0 0.0
    %192 = vmatpush1.xpose.msra.mxu0 0.0
    %193 = vmatprep.subr.mxu0 0.0
    %194 = vmatpush1.xpose.msra.mxu0 0.0
    %195 = vmatprep.subr.mxu0 0.0
    %196 = vmatpush1.xpose.msra.mxu0 0.0
    %197 = vmatprep.subr.mxu0 0.0
    %198 = vmatpush1.xpose.msra.mxu0 0.0
    %199 = vmatprep.subr.mxu0 0.0
    %200 = vmatpush1.xpose.msra.mxu0 0.0
    %201 = vmatprep.subr.mxu0 0.0
    %202 = vmatpush1.xpose.msra.mxu0 0.0
    %203 = vmatprep.subr.mxu0 0.0
    %204 = vmatpush1.xpose.msra.mxu0 0.0
    %205 = vmatprep.subr.mxu0 0.0
    %206 = vmatpush1.xpose.msra.mxu0 0.0
    %207 = vmatprep.subr.mxu0 0.0
    %208 = vmatpush1.xpose.msra.mxu0 0.0
    %209 = vmatprep.subr.mxu0 0.0
    %210 = vmatpush1.xpose.msra.mxu0 0.0
    %211 = vmatprep.subr.mxu0 0.0
    %212 = vmatpush1.xpose.msra.mxu0 0.0
    %213 = vmatprep.subr.mxu0 0.0
    %214 = vmatpush1.xpose.msra.mxu0 0.0
    %215 = vmatprep.subr.mxu0 0.0
    %216 = vmatpush1.xpose.msra.mxu0 0.0
    %217 = vmatprep.subr.mxu0 0.0
    %218 = vmatpush1.xpose.msra.mxu0 0.0
    %219 = vmatprep.mubr.f32.mxu0 0.0
    %220 = vmatmul.mubr.f32.gmra.mrb[0].mxu0 %v151
    %v221 = vpop.f32.mrb[0].mxu0
    %v222 = vadd.f32 0.0, %v221
    %v223 = vpop.f32.mrb[0].mxu0
    %224 = vdwg.mxu0
    %226 = vrot.lane.b32.xlu0 %v144, 96
    %v227 = vpop.permute.xlu0 %226
    %v228 = vsel %vm150, %v144, 0
    %v230 = vsel %vm150, %v227, 0
    %232 = vmatprep.subr.mxu0 0.0
    %233 = vmatpush1.xpose.msra.mxu0 %v230
    %234 = vmatprep.subr.mxu0 0.0
    %235 = vmatpush1.xpose.msra.mxu0 0.0
    %236 = vmatprep.subr.mxu0 0.0
    %237 = vmatpush1.xpose.msra.mxu0 0.0
    %238 = vmatprep.subr.mxu0 0.0
    %239 = vmatpush1.xpose.msra.mxu0 0.0
    %240 = vmatprep.subr.mxu0 0.0
    %241 = vmatpush1.xpose.msra.mxu0 0.0
    %242 = vmatprep.subr.mxu0 0.0
    %243 = vmatpush1.xpose.msra.mxu0 0.0
    %244 = vmatprep.subr.mxu0 0.0
    %245 = vmatpush1.xpose.msra.mxu0 0.0
    %246 = vmatprep.subr.mxu0 0.0
    %247 = vmatpush1.xpose.msra.mxu0 0.0
    %248 = vmatprep.subr.mxu0 0.0
    %249 = vmatpush1.xpose.msra.mxu0 0.0
    %250 = vmatprep.subr.mxu0 0.0
    %251 = vmatpush1.xpose.msra.mxu0 0.0
    %252 = vmatprep.subr.mxu0 0.0
    %253 = vmatpush1.xpose.msra.mxu0 0.0
    %254 = vmatprep.subr.mxu0 0.0
    %255 = vmatpush1.xpose.msra.mxu0 0.0
    %256 = vmatprep.subr.mxu0 0.0
    %257 = vmatpush1.xpose.msra.mxu0 0.0
    %258 = vmatprep.subr.mxu0 0.0
    %259 = vmatpush1.xpose.msra.mxu0 0.0
    %260 = vmatprep.subr.mxu0 0.0
    %261 = vmatpush1.xpose.msra.mxu0 0.0
    %262 = vmatprep.subr.mxu0 0.0
    %263 = vmatpush1.xpose.msra.mxu0 0.0
    %264 = vmatprep.subr.mxu0 0.0
    %265 = vmatpush1.xpose.msra.mxu0 0.0
    %266 = vmatprep.subr.mxu0 0.0
    %267 = vmatpush1.xpose.msra.mxu0 0.0
    %268 = vmatprep.subr.mxu0 0.0
    %269 = vmatpush1.xpose.msra.mxu0 0.0
    %270 = vmatprep.subr.mxu0 0.0
    %271 = vmatpush1.xpose.msra.mxu0 0.0
    %272 = vmatprep.subr.mxu0 0.0
    %273 = vmatpush1.xpose.msra.mxu0 0.0
    %274 = vmatprep.subr.mxu0 0.0
    %275 = vmatpush1.xpose.msra.mxu0 0.0
    %276 = vmatprep.subr.mxu0 0.0
    %277 = vmatpush1.xpose.msra.mxu0 0.0
    %278 = vmatprep.subr.mxu0 0.0
    %279 = vmatpush1.xpose.msra.mxu0 0.0
    %280 = vmatprep.subr.mxu0 0.0
    %281 = vmatpush1.xpose.msra.mxu0 0.0
    %282 = vmatprep.subr.mxu0 0.0
    %283 = vmatpush1.xpose.msra.mxu0 0.0
    %284 = vmatprep.subr.mxu0 0.0
    %285 = vmatpush1.xpose.msra.mxu0 0.0
    %286 = vmatprep.subr.mxu0 0.0
    %287 = vmatpush1.xpose.msra.mxu0 0.0
    %288 = vmatprep.subr.mxu0 0.0
    %289 = vmatpush1.xpose.msra.mxu0 0.0
    %290 = vmatprep.subr.mxu0 0.0
    %291 = vmatpush1.xpose.msra.mxu0 0.0
    %292 = vmatprep.subr.mxu0 0.0
    %293 = vmatpush1.xpose.msra.mxu0 0.0
    %294 = vmatprep.subr.mxu0 0.0
    %295 = vmatpush1.xpose.msra.mxu0 0.0
    %296 = vmatprep.mubr.f32.mxu0 0.0
    %297 = vmatmul.mubr.f32.gmra.mrb[0].mxu0 %v228
    %v298 = vpop.f32.mrb[0].mxu0
    %v299 = vadd.f32 0.0, %v298
    %v300 = vpop.f32.mrb[0].mxu0
    %301 = vdwg.mxu0
    %vm302 = vcmask 64512
    %v303 = vsel %vm302, %v222, -inf
    %304 = vmax.xlane.f32.xlu0 %v303
    %v305 = vpop.xlane.xlu0 %304
    %v306 = vsel %vm302, %v299, -inf
    %307 = vmax.xlane.f32.xlu0 %v306
    %v308 = vpop.xlane.xlu0 %307
    %v309 = vsub.f32 %v222, %v305
    %v310 = vsub.f32 %v299, %v308
    %v311 = vmul.f32 %v309, 1.442695
    %v312 = vpow.pop %v311
    %v313 = vmul.f32 %v310, 1.442695
    %v314 = vpow.pop %v313
    %v315 = vsel %vm302, %v312, 0.0
    %316 = vadd.xlane.f32.xlu0 %v315
    %v317 = vpop.xlane.xlu0 %316
    %v318 = vsel %vm302, %v314, 0.0
    %319 = vadd.xlane.f32.xlu0 %v318
    %v320 = vpop.xlane.xlu0 %319
    %321 = vrot.lane.b32.xlu0 %v139, 64
    %v322 = vpop.permute.xlu0 %321
    %v325 = vsel %vm302, %v312, 0
    %327 = vmatprep.subr.mxu0 0.0
    %328 = vmatpush1.msra.mxu0 %v322
    %329 = vmatprep.subr.mxu0 0.0
    %330 = vmatpush1.msra.mxu0 0.0
    %331 = vmatprep.subr.mxu0 0.0
    %332 = vmatpush1.msra.mxu0 0.0
    %333 = vmatprep.subr.mxu0 0.0
    %334 = vmatpush1.msra.mxu0 0.0
    %335 = vmatprep.subr.mxu0 0.0
    %336 = vmatpush1.msra.mxu0 0.0
    %337 = vmatprep.subr.mxu0 0.0
    %338 = vmatpush1.msra.mxu0 0.0
    %339 = vmatprep.subr.mxu0 0.0
    %340 = vmatpush1.msra.mxu0 0.0
    %341 = vmatprep.subr.mxu0 0.0
    %342 = vmatpush1.msra.mxu0 0.0
    %343 = vmatprep.subr.mxu0 0.0
    %344 = vmatpush1.msra.mxu0 0.0
    %345 = vmatprep.subr.mxu0 0.0
    %346 = vmatpush1.msra.mxu0 0.0
    %347 = vmatprep.subr.mxu0 0.0
    %348 = vmatpush1.msra.mxu0 0.0
    %349 = vmatprep.subr.mxu0 0.0
    %350 = vmatpush1.msra.mxu0 0.0
    %351 = vmatprep.subr.mxu0 0.0
    %352 = vmatpush1.msra.mxu0 0.0
    %353 = vmatprep.subr.mxu0 0.0
    %354 = vmatpush1.msra.mxu0 0.0
    %355 = vmatprep.subr.mxu0 0.0
    %356 = vmatpush1.msra.mxu0 0.0
    %357 = vmatprep.subr.mxu0 0.0
    %358 = vmatpush1.msra.mxu0 0.0
    %359 = vmatprep.subr.mxu0 0.0
    %360 = vmatpush1.msra.mxu0 0.0
    %361 = vmatprep.subr.mxu0 0.0
    %362 = vmatpush1.msra.mxu0 0.0
    %363 = vmatprep.subr.mxu0 0.0
    %364 = vmatpush1.msra.mxu0 0.0
    %365 = vmatprep.subr.mxu0 0.0
    %366 = vmatpush1.msra.mxu0 0.0
    %367 = vmatprep.subr.mxu0 0.0
    %368 = vmatpush1.msra.mxu0 0.0
    %369 = vmatprep.subr.mxu0 0.0
    %370 = vmatpush1.msra.mxu0 0.0
    %371 = vmatprep.subr.mxu0 0.0
    %372 = vmatpush1.msra.mxu0 0.0
    %373 = vmatprep.subr.mxu0 0.0
    %374 = vmatpush1.msra.mxu0 0.0
    %375 = vmatprep.subr.mxu0 0.0
    %376 = vmatpush1.msra.mxu0 0.0
    %377 = vmatprep.subr.mxu0 0.0
    %378 = vmatpush1.msra.mxu0 0.0
    %379 = vmatprep.subr.mxu0 0.0
    %380 = vmatpush1.msra.mxu0 0.0
    %381 = vmatprep.subr.mxu0 0.0
    %382 = vmatpush1.msra.mxu0 0.0
    %383 = vmatprep.subr.mxu0 0.0
    %384 = vmatpush1.msra.mxu0 0.0
    %385 = vmatprep.subr.mxu0 0.0
    %386 = vmatpush1.msra.mxu0 0.0
    %387 = vmatprep.subr.mxu0 0.0
    %388 = vmatpush1.msra.mxu0 0.0
    %389 = vmatprep.subr.mxu0 0.0
    %390 = vmatpush1.msra.mxu0 0.0
    %391 = vmatprep.mubr.f32.mxu0 0.0
    %392 = vmatmul.mubr.f32.gmra.mrb[0].mxu0 %v325
    %v393 = vpop.f32.mrb[0].mxu0
    %v394 = vadd.f32 0.0, %v393
    %v395 = vpop.f32.mrb[0].mxu0
    %396 = vdwg.mxu0
    %397 = vrot.lane.b32.xlu0 %v144, 64
    %v398 = vpop.permute.xlu0 %397
    %v401 = vsel %vm302, %v314, 0
    %403 = vmatprep.subr.mxu0 0.0
    %404 = vmatpush1.msra.mxu0 %v398
    %405 = vmatprep.subr.mxu0 0.0
    %406 = vmatpush1.msra.mxu0 0.0
    %407 = vmatprep.subr.mxu0 0.0
    %408 = vmatpush1.msra.mxu0 0.0
    %409 = vmatprep.subr.mxu0 0.0
    %410 = vmatpush1.msra.mxu0 0.0
    %411 = vmatprep.subr.mxu0 0.0
    %412 = vmatpush1.msra.mxu0 0.0
    %413 = vmatprep.subr.mxu0 0.0
    %414 = vmatpush1.msra.mxu0 0.0
    %415 = vmatprep.subr.mxu0 0.0
    %416 = vmatpush1.msra.mxu0 0.0
    %417 = vmatprep.subr.mxu0 0.0
    %418 = vmatpush1.msra.mxu0 0.0
    %419 = vmatprep.subr.mxu0 0.0
    %420 = vmatpush1.msra.mxu0 0.0
    %421 = vmatprep.subr.mxu0 0.0
    %422 = vmatpush1.msra.mxu0 0.0
    %423 = vmatprep.subr.mxu0 0.0
    %424 = vmatpush1.msra.mxu0 0.0
    %425 = vmatprep.subr.mxu0 0.0
    %426 = vmatpush1.msra.mxu0 0.0
    %427 = vmatprep.subr.mxu0 0.0
    %428 = vmatpush1.msra.mxu0 0.0
    %429 = vmatprep.subr.mxu0 0.0
    %430 = vmatpush1.msra.mxu0 0.0
    %431 = vmatprep.subr.mxu0 0.0
    %432 = vmatpush1.msra.mxu0 0.0
    %433 = vmatprep.subr.mxu0 0.0
    %434 = vmatpush1.msra.mxu0 0.0
    %435 = vmatprep.subr.mxu0 0.0
    %436 = vmatpush1.msra.mxu0 0.0
    %437 = vmatprep.subr.mxu0 0.0
    %438 = vmatpush1.msra.mxu0 0.0
    %439 = vmatprep.subr.mxu0 0.0
    %440 = vmatpush1.msra.mxu0 0.0
    %441 = vmatprep.subr.mxu0 0.0
    %442 = vmatpush1.msra.mxu0 0.0
    %443 = vmatprep.subr.mxu0 0.0
    %444 = vmatpush1.msra.mxu0 0.0
    %445 = vmatprep.subr.mxu0 0.0
    %446 = vmatpush1.msra.mxu0 0.0
    %447 = vmatprep.subr.mxu0 0.0
    %448 = vmatpush1.msra.mxu0 0.0
    %449 = vmatprep.subr.mxu0 0.0
    %450 = vmatpush1.msra.mxu0 0.0
    %451 = vmatprep.subr.mxu0 0.0
    %452 = vmatpush1.msra.mxu0 0.0
    %453 = vmatprep.subr.mxu0 0.0
    %454 = vmatpush1.msra.mxu0 0.0
    %455 = vmatprep.subr.mxu0 0.0
    %456 = vmatpush1.msra.mxu0 0.0
    %457 = vmatprep.subr.mxu0 0.0
    %458 = vmatpush1.msra.mxu0 0.0
    %459 = vmatprep.subr.mxu0 0.0
    %460 = vmatpush1.msra.mxu0 0.0
    %461 = vmatprep.subr.mxu0 0.0
    %462 = vmatpush1.msra.mxu0 0.0
    %463 = vmatprep.subr.mxu0 0.0
    %464 = vmatpush1.msra.mxu0 0.0
    %465 = vmatprep.subr.mxu0 0.0
    %466 = vmatpush1.msra.mxu0 0.0
    %467 = vmatprep.mubr.f32.mxu0 0.0
    %468 = vmatmul.mubr.f32.gmra.mrb[0].mxu0 %v401
    %v469 = vpop.f32.mrb[0].mxu0
    %v470 = vadd.f32 0.0, %v469
    %v471 = vpop.f32.mrb[0].mxu0
    %472 = vdwg.mxu0
    %v473 = vrcp.pop %v317
    %v474 = vrcp.pop %v320
    %v475 = vmul.f32 %v394, %v473
    %v476 = vmul.f32 %v470, %v474
    %477 = vst.msk [vmem:[#allocation2] sm:$0xff] %vm150, %v475
    %478 = vst.msk [vmem:[#allocation2 + $0x8] sm:$0xff] %vm150, %v476
    %479 = vrot.lane.b32.xlu0 %v139, 124
    %v480 = vpop.permute.xlu0 %479
    %481 = vrot.lane.b32.xlu0 %v139, 92
    %v482 = vpop.permute.xlu0 %481
    %v483 = vsel %vm150, %v480, 0
    %v485 = vsel %vm150, %v482, 0
    %487 = vmatprep.subr.mxu0 0.0
    %488 = vmatpush1.xpose.msra.mxu0 %v485
    %489 = vmatprep.subr.mxu0 0.0
    %490 = vmatpush1.xpose.msra.mxu0 0.0
    %491 = vmatprep.subr.mxu0 0.0
    %492 = vmatpush1.xpose.msra.mxu0 0.0
    %493 = vmatprep.subr.mxu0 0.0
    %494 = vmatpush1.xpose.msra.mxu0 0.0
    %495 = vmatprep.subr.mxu0 0.0
    %496 = vmatpush1.xpose.msra.mxu0 0.0
    %497 = vmatprep.subr.mxu0 0.0
    %498 = vmatpush1.xpose.msra.mxu0 0.0
    %499 = vmatprep.subr.mxu0 0.0
    %500 = vmatpush1.xpose.msra.mxu0 0.0
    %501 = vmatprep.subr.mxu0 0.0
    %502 = vmatpush1.xpose.msra.mxu0 0.0
    %503 = vmatprep.subr.mxu0 0.0
    %504 = vmatpush1.xpose.msra.mxu0 0.0
    %505 = vmatprep.subr.mxu0 0.0
    %506 = vmatpush1.xpose.msra.mxu0 0.0
    %507 = vmatprep.subr.mxu0 0.0
    %508 = vmatpush1.xpose.msra.mxu0 0.0
    %509 = vmatprep.subr.mxu0 0.0
    %510 = vmatpush1.xpose.msra.mxu0 0.0
    %511 = vmatprep.subr.mxu0 0.0
    %512 = vmatpush1.xpose.msra.mxu0 0.0
    %513 = vmatprep.subr.mxu0 0.0
    %514 = vmatpush1.xpose.msra.mxu0 0.0
    %515 = vmatprep.subr.mxu0 0.0
    %516 = vmatpush1.xpose.msra.mxu0 0.0
    %517 = vmatprep.subr.mxu0 0.0
    %518 = vmatpush1.xpose.msra.mxu0 0.0
    %519 = vmatprep.subr.mxu0 0.0
    %520 = vmatpush1.xpose.msra.mxu0 0.0
    %521 = vmatprep.subr.mxu0 0.0
    %522 = vmatpush1.xpose.msra.mxu0 0.0
    %523 = vmatprep.subr.mxu0 0.0
    %524 = vmatpush1.xpose.msra.mxu0 0.0
    %525 = vmatprep.subr.mxu0 0.0
    %526 = vmatpush1.xpose.msra.mxu0 0.0
    %527 = vmatprep.subr.mxu0 0.0
    %528 = vmatpush1.xpose.msra.mxu0 0.0
    %529 = vmatprep.subr.mxu0 0.0
    %530 = vmatpush1.xpose.msra.mxu0 0.0
    %531 = vmatprep.subr.mxu0 0.0
    %532 = vmatpush1.xpose.msra.mxu0 0.0
    %533 = vmatprep.subr.mxu0 0.0
    %534 = vmatpush1.xpose.msra.mxu0 0.0
    %535 = vmatprep.subr.mxu0 0.0
    %536 = vmatpush1.xpose.msra.mxu0 0.0
    %537 = vmatprep.subr.mxu0 0.0
    %538 = vmatpush1.xpose.msra.mxu0 0.0
    %539 = vmatprep.subr.mxu0 0.0
    %540 = vmatpush1.xpose.msra.mxu0 0.0
    %541 = vmatprep.subr.mxu0 0.0
    %542 = vmatpush1.xpose.msra.mxu0 0.0
    %543 = vmatprep.subr.mxu0 0.0
    %544 = vmatpush1.xpose.msra.mxu0 0.0
    %545 = vmatprep.subr.mxu0 0.0
    %546 = vmatpush1.xpose.msra.mxu0 0.0
    %547 = vmatprep.subr.mxu0 0.0
    %548 = vmatpush1.xpose.msra.mxu0 0.0
    %549 = vmatprep.subr.mxu0 0.0
    %550 = vmatpush1.xpose.msra.mxu0 0.0
    %551 = vmatprep.mubr.f32.mxu0 0.0
    %552 = vmatmul.mubr.f32.gmra.mrb[0].mxu0 %v483
    %v553 = vpop.f32.mrb[0].mxu0
    %v554 = vadd.f32 0.0, %v553
    %v555 = vpop.f32.mrb[0].mxu0
    %556 = vdwg.mxu0
    %557 = vrot.lane.b32.xlu0 %v144, 124
    %v558 = vpop.permute.xlu0 %557
    %559 = vrot.lane.b32.xlu0 %v144, 92
    %v560 = vpop.permute.xlu0 %559
    %v561 = vsel %vm150, %v558, 0
    %v563 = vsel %vm150, %v560, 0
    %565 = vmatprep.subr.mxu0 0.0
    %566 = vmatpush1.xpose.msra.mxu0 %v563
    %567 = vmatprep.subr.mxu0 0.0
    %568 = vmatpush1.xpose.msra.mxu0 0.0
    %569 = vmatprep.subr.mxu0 0.0
    %570 = vmatpush1.xpose.msra.mxu0 0.0
    %571 = vmatprep.subr.mxu0 0.0
    %572 = vmatpush1.xpose.msra.mxu0 0.0
    %573 = vmatprep.subr.mxu0 0.0
    %574 = vmatpush1.xpose.msra.mxu0 0.0
    %575 = vmatprep.subr.mxu0 0.0
    %576 = vmatpush1.xpose.msra.mxu0 0.0
    %577 = vmatprep.subr.mxu0 0.0
    %578 = vmatpush1.xpose.msra.mxu0 0.0
    %579 = vmatprep.subr.mxu0 0.0
    %580 = vmatpush1.xpose.msra.mxu0 0.0
    %581 = vmatprep.subr.mxu0 0.0
    %582 = vmatpush1.xpose.msra.mxu0 0.0
    %583 = vmatprep.subr.mxu0 0.0
    %584 = vmatpush1.xpose.msra.mxu0 0.0
    %585 = vmatprep.subr.mxu0 0.0
    %586 = vmatpush1.xpose.msra.mxu0 0.0
    %587 = vmatprep.subr.mxu0 0.0
    %588 = vmatpush1.xpose.msra.mxu0 0.0
    %589 = vmatprep.subr.mxu0 0.0
    %590 = vmatpush1.xpose.msra.mxu0 0.0
    %591 = vmatprep.subr.mxu0 0.0
    %592 = vmatpush1.xpose.msra.mxu0 0.0
    %593 = vmatprep.subr.mxu0 0.0
    %594 = vmatpush1.xpose.msra.mxu0 0.0
    %595 = vmatprep.subr.mxu0 0.0
    %596 = vmatpush1.xpose.msra.mxu0 0.0
    %597 = vmatprep.subr.mxu0 0.0
    %598 = vmatpush1.xpose.msra.mxu0 0.0
    %599 = vmatprep.subr.mxu0 0.0
    %600 = vmatpush1.xpose.msra.mxu0 0.0
    %601 = vmatprep.subr.mxu0 0.0
    %602 = vmatpush1.xpose.msra.mxu0 0.0
    %603 = vmatprep.subr.mxu0 0.0
    %604 = vmatpush1.xpose.msra.mxu0 0.0
    %605 = vmatprep.subr.mxu0 0.0
    %606 = vmatpush1.xpose.msra.mxu0 0.0
    %607 = vmatprep.subr.mxu0 0.0
    %608 = vmatpush1.xpose.msra.mxu0 0.0
    %609 = vmatprep.subr.mxu0 0.0
    %610 = vmatpush1.xpose.msra.mxu0 0.0
    %611 = vmatprep.subr.mxu0 0.0
    %612 = vmatpush1.xpose.msra.mxu0 0.0
    %613 = vmatprep.subr.mxu0 0.0
    %614 = vmatpush1.xpose.msra.mxu0 0.0
    %615 = vmatprep.subr.mxu0 0.0
    %616 = vmatpush1.xpose.msra.mxu0 0.0
    %617 = vmatprep.subr.mxu0 0.0
    %618 = vmatpush1.xpose.msra.mxu0 0.0
    %619 = vmatprep.subr.mxu0 0.0
    %620 = vmatpush1.xpose.msra.mxu0 0.0
    %621 = vmatprep.subr.mxu0 0.0
    %622 = vmatpush1.xpose.msra.mxu0 0.0
    %623 = vmatprep.subr.mxu0 0.0
    %624 = vmatpush1.xpose.msra.mxu0 0.0
    %625 = vmatprep.subr.mxu0 0.0
    %626 = vmatpush1.xpose.msra.mxu0 0.0
    %627 = vmatprep.subr.mxu0 0.0
    %628 = vmatpush1.xpose.msra.mxu0 0.0
    %629 = vmatprep.mubr.f32.mxu0 0.0
    %630 = vmatmul.mubr.f32.gmra.mrb[0].mxu0 %v561
    %v631 = vpop.f32.mrb[0].mxu0
    %v632 = vadd.f32 0.0, %v631
    %v633 = vpop.f32.mrb[0].mxu0
    %634 = vdwg.mxu0
    %v635 = vsel %vm302, %v554, -inf
    %636 = vmax.xlane.f32.xlu0 %v635
    %v637 = vpop.xlane.xlu0 %636
    %v638 = vsel %vm302, %v632, -inf
    %639 = vmax.xlane.f32.xlu0 %v638
    %v640 = vpop.xlane.xlu0 %639
    %v641 = vsub.f32 %v554, %v637
    %v642 = vsub.f32 %v632, %v640
    %v643 = vmul.f32 %v641, 1.442695
    %v644 = vpow.pop %v643
    %v645 = vmul.f32 %v642, 1.442695
    %v646 = vpow.pop %v645
    %v647 = vsel %vm302, %v644, 0.0
    %648 = vadd.xlane.f32.xlu0 %v647
    %v649 = vpop.xlane.xlu0 %648
    %v650 = vsel %vm302, %v646, 0.0
    %651 = vadd.xlane.f32.xlu0 %v650
    %v652 = vpop.xlane.xlu0 %651
    %653 = vrot.lane.b32.xlu0 %v139, 60
    %v654 = vpop.permute.xlu0 %653
    %v657 = vsel %vm302, %v644, 0
    %659 = vmatprep.subr.mxu0 0.0
    %660 = vmatpush1.msra.mxu0 %v654
    %661 = vmatprep.subr.mxu0 0.0
    %662 = vmatpush1.msra.mxu0 0.0
    %663 = vmatprep.subr.mxu0 0.0
    %664 = vmatpush1.msra.mxu0 0.0
    %665 = vmatprep.subr.mxu0 0.0
    %666 = vmatpush1.msra.mxu0 0.0
    %667 = vmatprep.subr.mxu0 0.0
    %668 = vmatpush1.msra.mxu0 0.0
    %669 = vmatprep.subr.mxu0 0.0
    %670 = vmatpush1.msra.mxu0 0.0
    %671 = vmatprep.subr.mxu0 0.0
    %672 = vmatpush1.msra.mxu0 0.0
    %673 = vmatprep.subr.mxu0 0.0
    %674 = vmatpush1.msra.mxu0 0.0
    %675 = vmatprep.subr.mxu0 0.0
    %676 = vmatpush1.msra.mxu0 0.0
    %677 = vmatprep.subr.mxu0 0.0
    %678 = vmatpush1.msra.mxu0 0.0
    %679 = vmatprep.subr.mxu0 0.0
    %680 = vmatpush1.msra.mxu0 0.0
    %681 = vmatprep.subr.mxu0 0.0
    %682 = vmatpush1.msra.mxu0 0.0
    %683 = vmatprep.subr.mxu0 0.0
    %684 = vmatpush1.msra.mxu0 0.0
    %685 = vmatprep.subr.mxu0 0.0
    %686 = vmatpush1.msra.mxu0 0.0
    %687 = vmatprep.subr.mxu0 0.0
    %688 = vmatpush1.msra.mxu0 0.0
    %689 = vmatprep.subr.mxu0 0.0
    %690 = vmatpush1.msra.mxu0 0.0
    %691 = vmatprep.subr.mxu0 0.0
    %692 = vmatpush1.msra.mxu0 0.0
    %693 = vmatprep.subr.mxu0 0.0
    %694 = vmatpush1.msra.mxu0 0.0
    %695 = vmatprep.subr.mxu0 0.0
    %696 = vmatpush1.msra.mxu0 0.0
    %697 = vmatprep.subr.mxu0 0.0
    %698 = vmatpush1.msra.mxu0 0.0
    %699 = vmatprep.subr.mxu0 0.0
    %700 = vmatpush1.msra.mxu0 0.0
    %701 = vmatprep.subr.mxu0 0.0
    %702 = vmatpush1.msra.mxu0 0.0
    %703 = vmatprep.subr.mxu0 0.0
    %704 = vmatpush1.msra.mxu0 0.0
    %705 = vmatprep.subr.mxu0 0.0
    %706 = vmatpush1.msra.mxu0 0.0
    %707 = vmatprep.subr.mxu0 0.0
    %708 = vmatpush1.msra.mxu0 0.0
    %709 = vmatprep.subr.mxu0 0.0
    %710 = vmatpush1.msra.mxu0 0.0
    %711 = vmatprep.subr.mxu0 0.0
    %712 = vmatpush1.msra.mxu0 0.0
    %713 = vmatprep.subr.mxu0 0.0
    %714 = vmatpush1.msra.mxu0 0.0
    %715 = vmatprep.subr.mxu0 0.0
    %716 = vmatpush1.msra.mxu0 0.0
    %717 = vmatprep.subr.mxu0 0.0
    %718 = vmatpush1.msra.mxu0 0.0
    %719 = vmatprep.subr.mxu0 0.0
    %720 = vmatpush1.msra.mxu0 0.0
    %721 = vmatprep.subr.mxu0 0.0
    %722 = vmatpush1.msra.mxu0 0.0
    %723 = vmatprep.mubr.f32.mxu0 0.0
    %724 = vmatmul.mubr.f32.gmra.mrb[0].mxu0 %v657
    %v725 = vpop.f32.mrb[0].mxu0
    %v726 = vadd.f32 0.0, %v725
    %v727 = vpop.f32.mrb[0].mxu0
    %728 = vdwg.mxu0
    %729 = vrot.lane.b32.xlu0 %v144, 60
    %v730 = vpop.permute.xlu0 %729
    %v733 = vsel %vm302, %v646, 0
    %735 = vmatprep.subr.mxu0 0.0
    %736 = vmatpush1.msra.mxu0 %v730
    %737 = vmatprep.subr.mxu0 0.0
    %738 = vmatpush1.msra.mxu0 0.0
    %739 = vmatprep.subr.mxu0 0.0
    %740 = vmatpush1.msra.mxu0 0.0
    %741 = vmatprep.subr.mxu0 0.0
    %742 = vmatpush1.msra.mxu0 0.0
    %743 = vmatprep.subr.mxu0 0.0
    %744 = vmatpush1.msra.mxu0 0.0
    %745 = vmatprep.subr.mxu0 0.0
    %746 = vmatpush1.msra.mxu0 0.0
    %747 = vmatprep.subr.mxu0 0.0
    %748 = vmatpush1.msra.mxu0 0.0
    %749 = vmatprep.subr.mxu0 0.0
    %750 = vmatpush1.msra.mxu0 0.0
    %751 = vmatprep.subr.mxu0 0.0
    %752 = vmatpush1.msra.mxu0 0.0
    %753 = vmatprep.subr.mxu0 0.0
    %754 = vmatpush1.msra.mxu0 0.0
    %755 = vmatprep.subr.mxu0 0.0
    %756 = vmatpush1.msra.mxu0 0.0
    %757 = vmatprep.subr.mxu0 0.0
    %758 = vmatpush1.msra.mxu0 0.0
    %759 = vmatprep.subr.mxu0 0.0
    %760 = vmatpush1.msra.mxu0 0.0
    %761 = vmatprep.subr.mxu0 0.0
    %762 = vmatpush1.msra.mxu0 0.0
    %763 = vmatprep.subr.mxu0 0.0
    %764 = vmatpush1.msra.mxu0 0.0
    %765 = vmatprep.subr.mxu0 0.0
    %766 = vmatpush1.msra.mxu0 0.0
    %767 = vmatprep.subr.mxu0 0.0
    %768 = vmatpush1.msra.mxu0 0.0
    %769 = vmatprep.subr.mxu0 0.0
    %770 = vmatpush1.msra.mxu0 0.0
    %771 = vmatprep.subr.mxu0 0.0
    %772 = vmatpush1.msra.mxu0 0.0
    %773 = vmatprep.subr.mxu0 0.0
    %774 = vmatpush1.msra.mxu0 0.0
    %775 = vmatprep.subr.mxu0 0.0
    %776 = vmatpush1.msra.mxu0 0.0
    %777 = vmatprep.subr.mxu0 0.0
    %778 = vmatpush1.msra.mxu0 0.0
    %779 = vmatprep.subr.mxu0 0.0
    %780 = vmatpush1.msra.mxu0 0.0
    %781 = vmatprep.subr.mxu0 0.0
    %782 = vmatpush1.msra.mxu0 0.0
    %783 = vmatprep.subr.mxu0 0.0
    %784 = vmatpush1.msra.mxu0 0.0
    %785 = vmatprep.subr.mxu0 0.0
    %786 = vmatpush1.msra.mxu0 0.0
    %787 = vmatprep.subr.mxu0 0.0
    %788 = vmatpush1.msra.mxu0 0.0
    %789 = vmatprep.subr.mxu0 0.0
    %790 = vmatpush1.msra.mxu0 0.0
    %791 = vmatprep.subr.mxu0 0.0
    %792 = vmatpush1.msra.mxu0 0.0
    %793 = vmatprep.subr.mxu0 0.0
    %794 = vmatpush1.msra.mxu0 0.0
    %795 = vmatprep.subr.mxu0 0.0
    %796 = vmatpush1.msra.mxu0 0.0
    %797 = vmatprep.subr.mxu0 0.0
    %798 = vmatpush1.msra.mxu0 0.0
    %799 = vmatprep.mubr.f32.mxu0 0.0
    %800 = vmatmul.mubr.f32.gmra.mrb[0].mxu0 %v733
    %v801 = vpop.f32.mrb[0].mxu0
    %v802 = vadd.f32 0.0, %v801
    %v803 = vpop.f32.mrb[0].mxu0
    %804 = vdwg.mxu0
    %v805 = vrcp.pop %v649
    %v806 = vrcp.pop %v652
    %v807 = vmul.f32 %v726, %v805
    %v808 = vmul.f32 %v802, %v806
    %811 = vrot.lane.b32.xlu0 %v807, 4
    %v812 = vpop.permute.xlu0 %811
    %813 = vrot.lane.b32.xlu0 %v808, 4
    %v814 = vpop.permute.xlu0 %813
    %vm817 = vcmask 64544
    %818 = vst.msk [vmem:[#allocation2] sm:$0xff] %vm817, %v812
    %819 = vst.msk [vmem:[#allocation2 + $0x8] sm:$0xff] %vm817, %v814
    %820 = vrot.lane.b32.xlu0 %v139, 120
    %v821 = vpop.permute.xlu0 %820
    %822 = vrot.lane.b32.xlu0 %v139, 88
    %v823 = vpop.permute.xlu0 %822
    %v824 = vsel %vm150, %v821, 0
    %v826 = vsel %vm150, %v823, 0
    %828 = vmatprep.subr.mxu0 0.0
    %829 = vmatpush1.xpose.msra.mxu0 %v826
    %830 = vmatprep.subr.mxu0 0.0
    %831 = vmatpush1.xpose.msra.mxu0 0.0
    %832 = vmatprep.subr.mxu0 0.0
    %833 = vmatpush1.xpose.msra.mxu0 0.0
    %834 = vmatprep.subr.mxu0 0.0
    %835 = vmatpush1.xpose.msra.mxu0 0.0
    %836 = vmatprep.subr.mxu0 0.0
    %837 = vmatpush1.xpose.msra.mxu0 0.0
    %838 = vmatprep.subr.mxu0 0.0
    %839 = vmatpush1.xpose.msra.mxu0 0.0
    %840 = vmatprep.subr.mxu0 0.0
    %841 = vmatpush1.xpose.msra.mxu0 0.0
    %842 = vmatprep.subr.mxu0 0.0
    %843 = vmatpush1.xpose.msra.mxu0 0.0
    %844 = vmatprep.subr.mxu0 0.0
    %845 = vmatpush1.xpose.msra.mxu0 0.0
    %846 = vmatprep.subr.mxu0 0.0
    %847 = vmatpush1.xpose.msra.mxu0 0.0
    %848 = vmatprep.subr.mxu0 0.0
    %849 = vmatpush1.xpose.msra.mxu0 0.0
    %850 = vmatprep.subr.mxu0 0.0
    %851 = vmatpush1.xpose.msra.mxu0 0.0
    %852 = vmatprep.subr.mxu0 0.0
    %853 = vmatpush1.xpose.msra.mxu0 0.0
    %854 = vmatprep.subr.mxu0 0.0
    %855 = vmatpush1.xpose.msra.mxu0 0.0
    %856 = vmatprep.subr.mxu0 0.0
    %857 = vmatpush1.xpose.msra.mxu0 0.0
    %858 = vmatprep.subr.mxu0 0.0
    %859 = vmatpush1.xpose.msra.mxu0 0.0
    %860 = vmatprep.subr.mxu0 0.0
    %861 = vmatpush1.xpose.msra.mxu0 0.0
    %862 = vmatprep.subr.mxu0 0.0
    %863 = vmatpush1.xpose.msra.mxu0 0.0
    %864 = vmatprep.subr.mxu0 0.0
    %865 = vmatpush1.xpose.msra.mxu0 0.0
    %866 = vmatprep.subr.mxu0 0.0
    %867 = vmatpush1.xpose.msra.mxu0 0.0
    %868 = vmatprep.subr.mxu0 0.0
    %869 = vmatpush1.xpose.msra.mxu0 0.0
    %870 = vmatprep.subr.mxu0 0.0
    %871 = vmatpush1.xpose.msra.mxu0 0.0
    %872 = vmatprep.subr.mxu0 0.0
    %873 = vmatpush1.xpose.msra.mxu0 0.0
    %874 = vmatprep.subr.mxu0 0.0
    %875 = vmatpush1.xpose.msra.mxu0 0.0
    %876 = vmatprep.subr.mxu0 0.0
    %877 = vmatpush1.xpose.msra.mxu0 0.0
    %878 = vmatprep.subr.mxu0 0.0
    %879 = vmatpush1.xpose.msra.mxu0 0.0
    %880 = vmatprep.subr.mxu0 0.0
    %881 = vmatpush1.xpose.msra.mxu0 0.0
    %882 = vmatprep.subr.mxu0 0.0
    %883 = vmatpush1.xpose.msra.mxu0 0.0
    %884 = vmatprep.subr.mxu0 0.0
    %885 = vmatpush1.xpose.msra.mxu0 0.0
    %886 = vmatprep.subr.mxu0 0.0
    %887 = vmatpush1.xpose.msra.mxu0 0.0
    %888 = vmatprep.subr.mxu0 0.0
    %889 = vmatpush1.xpose.msra.mxu0 0.0
    %890 = vmatprep.subr.mxu0 0.0
    %891 = vmatpush1.xpose.msra.mxu0 0.0
    %892 = vmatprep.mubr.f32.mxu0 0.0
    %893 = vmatmul.mubr.f32.gmra.mrb[0].mxu0 %v824
    %v894 = vpop.f32.mrb[0].mxu0
    %v895 = vadd.f32 0.0, %v894
    %v896 = vpop.f32.mrb[0].mxu0
    %897 = vdwg.mxu0
    %898 = vrot.lane.b32.xlu0 %v144, 120
    %v899 = vpop.permute.xlu0 %898
    %900 = vrot.lane.b32.xlu0 %v144, 88
    %v901 = vpop.permute.xlu0 %900
    %v902 = vsel %vm150, %v899, 0
    %v904 = vsel %vm150, %v901, 0
    %906 = vmatprep.subr.mxu0 0.0
    %907 = vmatpush1.xpose.msra.mxu0 %v904
    %908 = vmatprep.subr.mxu0 0.0
    %909 = vmatpush1.xpose.msra.mxu0 0.0
    %910 = vmatprep.subr.mxu0 0.0
    %911 = vmatpush1.xpose.msra.mxu0 0.0
    %912 = vmatprep.subr.mxu0 0.0
    %913 = vmatpush1.xpose.msra.mxu0 0.0
    %914 = vmatprep.subr.mxu0 0.0
    %915 = vmatpush1.xpose.msra.mxu0 0.0
    %916 = vmatprep.subr.mxu0 0.0
    %917 = vmatpush1.xpose.msra.mxu0 0.0
    %918 = vmatprep.subr.mxu0 0.0
    %919 = vmatpush1.xpose.msra.mxu0 0.0
    %920 = vmatprep.subr.mxu0 0.0
    %921 = vmatpush1.xpose.msra.mxu0 0.0
    %922 = vmatprep.subr.mxu0 0.0
    %923 = vmatpush1.xpose.msra.mxu0 0.0
    %924 = vmatprep.subr.mxu0 0.0
    %925 = vmatpush1.xpose.msra.mxu0 0.0
    %926 = vmatprep.subr.mxu0 0.0
    %927 = vmatpush1.xpose.msra.mxu0 0.0
    %928 = vmatprep.subr.mxu0 0.0
    %929 = vmatpush1.xpose.msra.mxu0 0.0
    %930 = vmatprep.subr.mxu0 0.0
    %931 = vmatpush1.xpose.msra.mxu0 0.0
    %932 = vmatprep.subr.mxu0 0.0
    %933 = vmatpush1.xpose.msra.mxu0 0.0
    %934 = vmatprep.subr.mxu0 0.0
    %935 = vmatpush1.xpose.msra.mxu0 0.0
    %936 = vmatprep.subr.mxu0 0.0
    %937 = vmatpush1.xpose.msra.mxu0 0.0
    %938 = vmatprep.subr.mxu0 0.0
    %939 = vmatpush1.xpose.msra.mxu0 0.0
    %940 = vmatprep.subr.mxu0 0.0
    %941 = vmatpush1.xpose.msra.mxu0 0.0
    %942 = vmatprep.subr.mxu0 0.0
    %943 = vmatpush1.xpose.msra.mxu0 0.0
    %944 = vmatprep.subr.mxu0 0.0
    %945 = vmatpush1.xpose.msra.mxu0 0.0
    %946 = vmatprep.subr.mxu0 0.0
    %947 = vmatpush1.xpose.msra.mxu0 0.0
    %948 = vmatprep.subr.mxu0 0.0
    %949 = vmatpush1.xpose.msra.mxu0 0.0
    %950 = vmatprep.subr.mxu0 0.0
    %951 = vmatpush1.xpose.msra.mxu0 0.0
    %952 = vmatprep.subr.mxu0 0.0
    %953 = vmatpush1.xpose.msra.mxu0 0.0
    %954 = vmatprep.subr.mxu0 0.0
    %955 = vmatpush1.xpose.msra.mxu0 0.0
    %956 = vmatprep.subr.mxu0 0.0
    %957 = vmatpush1.xpose.msra.mxu0 0.0
    %958 = vmatprep.subr.mxu0 0.0
    %959 = vmatpush1.xpose.msra.mxu0 0.0
    %960 = vmatprep.subr.mxu0 0.0
    %961 = vmatpush1.xpose.msra.mxu0 0.0
    %962 = vmatprep.subr.mxu0 0.0
    %963 = vmatpush1.xpose.msra.mxu0 0.0
    %964 = vmatprep.subr.mxu0 0.0
    %965 = vmatpush1.xpose.msra.mxu0 0.0
    %966 = vmatprep.subr.mxu0 0.0
    %967 = vmatpush1.xpose.msra.mxu0 0.0
    %968 = vmatprep.subr.mxu0 0.0
    %969 = vmatpush1.xpose.msra.mxu0 0.0
    %970 = vmatprep.mubr.f32.mxu0 0.0
    %971 = vmatmul.mubr.f32.gmra.mrb[0].mxu0 %v902
    %v972 = vpop.f32.mrb[0].mxu0
    %v973 = vadd.f32 0.0, %v972
    %v974 = vpop.f32.mrb[0].mxu0
    %975 = vdwg.mxu0
    %v976 = vsel %vm302, %v895, -inf
    %977 = vmax.xlane.f32.xlu0 %v976
    %v978 = vpop.xlane.xlu0 %977
    %v979 = vsel %vm302, %v973, -inf
    %980 = vmax.xlane.f32.xlu0 %v979
    %v981 = vpop.xlane.xlu0 %980
    %v982 = vsub.f32 %v895, %v978
    %v983 = vsub.f32 %v973, %v981
    %v984 = vmul.f32 %v982, 1.442695
    %v985 = vpow.pop %v984
    %v986 = vmul.f32 %v983, 1.442695
    %v987 = vpow.pop %v986
    %v988 = vsel %vm302, %v985, 0.0
    %989 = vadd.xlane.f32.xlu0 %v988
    %v990 = vpop.xlane.xlu0 %989
    %v991 = vsel %vm302, %v987, 0.0
    %992 = vadd.xlane.f32.xlu0 %v991
    %v993 = vpop.xlane.xlu0 %992
    %994 = vrot.lane.b32.xlu0 %v139, 56
    %v995 = vpop.permute.xlu0 %994
    %v998 = vsel %vm302, %v985, 0
    %1000 = vmatprep.subr.mxu0 0.0
    %1001 = vmatpush1.msra.mxu0 %v995
    %1002 = vmatprep.subr.mxu0 0.0
    %1003 = vmatpush1.msra.mxu0 0.0
    %1004 = vmatprep.subr.mxu0 0.0
    %1005 = vmatpush1.msra.mxu0 0.0
    %1006 = vmatprep.subr.mxu0 0.0
    %1007 = vmatpush1.msra.mxu0 0.0
    %1008 = vmatprep.subr.mxu0 0.0
    %1009 = vmatpush1.msra.mxu0 0.0
    %1010 = vmatprep.subr.mxu0 0.0
    %1011 = vmatpush1.msra.mxu0 0.0
    %1012 = vmatprep.subr.mxu0 0.0
    %1013 = vmatpush1.msra.mxu0 0.0
    %1014 = vmatprep.subr.mxu0 0.0
    %1015 = vmatpush1.msra.mxu0 0.0
    %1016 = vmatprep.subr.mxu0 0.0
    %1017 = vmatpush1.msra.mxu0 0.0
    %1018 = vmatprep.subr.mxu0 0.0
    %1019 = vmatpush1.msra.mxu0 0.0
    %1020 = vmatprep.subr.mxu0 0.0
    %1021 = vmatpush1.msra.mxu0 0.0
    %1022 = vmatprep.subr.mxu0 0.0
    %1023 = vmatpush1.msra.mxu0 0.0
    %1024 = vmatprep.subr.mxu0 0.0
    %1025 = vmatpush1.msra.mxu0 0.0
    %1026 = vmatprep.subr.mxu0 0.0
    %1027 = vmatpush1.msra.mxu0 0.0
    %1028 = vmatprep.subr.mxu0 0.0
    %1029 = vmatpush1.msra.mxu0 0.0
    %1030 = vmatprep.subr.mxu0 0.0
    %1031 = vmatpush1.msra.mxu0 0.0
    %1032 = vmatprep.subr.mxu0 0.0
    %1033 = vmatpush1.msra.mxu0 0.0
    %1034 = vmatprep.subr.mxu0 0.0
    %1035 = vmatpush1.msra.mxu0 0.0
    %1036 = vmatprep.subr.mxu0 0.0
    %1037 = vmatpush1.msra.mxu0 0.0
    %1038 = vmatprep.subr.mxu0 0.0
    %1039 = vmatpush1.msra.mxu0 0.0
    %1040 = vmatprep.subr.mxu0 0.0
    %1041 = vmatpush1.msra.mxu0 0.0
    %1042 = vmatprep.subr.mxu0 0.0
    %1043 = vmatpush1.msra.mxu0 0.0
    %1044 = vmatprep.subr.mxu0 0.0
    %1045 = vmatpush1.msra.mxu0 0.0
    %1046 = vmatprep.subr.mxu0 0.0
    %1047 = vmatpush1.msra.mxu0 0.0
    %1048 = vmatprep.subr.mxu0 0.0
    %1049 = vmatpush1.msra.mxu0 0.0
    %1050 = vmatprep.subr.mxu0 0.0
    %1051 = vmatpush1.msra.mxu0 0.0
    %1052 = vmatprep.subr.mxu0 0.0
    %1053 = vmatpush1.msra.mxu0 0.0
    %1054 = vmatprep.subr.mxu0 0.0
    %1055 = vmatpush1.msra.mxu0 0.0
    %1056 = vmatprep.subr.mxu0 0.0
    %1057 = vmatpush1.msra.mxu0 0.0
    %1058 = vmatprep.subr.mxu0 0.0
    %1059 = vmatpush1.msra.mxu0 0.0
    %1060 = vmatprep.subr.mxu0 0.0
    %1061 = vmatpush1.msra.mxu0 0.0
    %1062 = vmatprep.subr.mxu0 0.0
    %1063 = vmatpush1.msra.mxu0 0.0
    %1064 = vmatprep.mubr.f32.mxu0 0.0
    %1065 = vmatmul.mubr.f32.gmra.mrb[0].mxu0 %v998
    %v1066 = vpop.f32.mrb[0].mxu0
    %v1067 = vadd.f32 0.0, %v1066
    %v1068 = vpop.f32.mrb[0].mxu0
    %1069 = vdwg.mxu0
    %1070 = vrot.lane.b32.xlu0 %v144, 56
    %v1071 = vpop.permute.xlu0 %1070
    %v1074 = vsel %vm302, %v987, 0
    %1076 = vmatprep.subr.mxu0 0.0
    %1077 = vmatpush1.msra.mxu0 %v1071
    %1078 = vmatprep.subr.mxu0 0.0
    %1079 = vmatpush1.msra.mxu0 0.0
    %1080 = vmatprep.subr.mxu0 0.0
    %1081 = vmatpush1.msra.mxu0 0.0
    %1082 = vmatprep.subr.mxu0 0.0
    %1083 = vmatpush1.msra.mxu0 0.0
    %1084 = vmatprep.subr.mxu0 0.0
    %1085 = vmatpush1.msra.mxu0 0.0
    %1086 = vmatprep.subr.mxu0 0.0
    %1087 = vmatpush1.msra.mxu0 0.0
    %1088 = vmatprep.subr.mxu0 0.0
    %1089 = vmatpush1.msra.mxu0 0.0
    %1090 = vmatprep.subr.mxu0 0.0
    %1091 = vmatpush1.msra.mxu0 0.0
    %1092 = vmatprep.subr.mxu0 0.0
    %1093 = vmatpush1.msra.mxu0 0.0
    %1094 = vmatprep.subr.mxu0 0.0
    %1095 = vmatpush1.msra.mxu0 0.0
    %1096 = vmatprep.subr.mxu0 0.0
    %1097 = vmatpush1.msra.mxu0 0.0
    %1098 = vmatprep.subr.mxu0 0.0
    %1099 = vmatpush1.msra.mxu0 0.0
    %1100 = vmatprep.subr.mxu0 0.0
    %1101 = vmatpush1.msra.mxu0 0.0
    %1102 = vmatprep.subr.mxu0 0.0
    %1103 = vmatpush1.msra.mxu0 0.0
    %1104 = vmatprep.subr.mxu0 0.0
    %1105 = vmatpush1.msra.mxu0 0.0
    %1106 = vmatprep.subr.mxu0 0.0
    %1107 = vmatpush1.msra.mxu0 0.0
    %1108 = vmatprep.subr.mxu0 0.0
    %1109 = vmatpush1.msra.mxu0 0.0
    %1110 = vmatprep.subr.mxu0 0.0
    %1111 = vmatpush1.msra.mxu0 0.0
    %1112 = vmatprep.subr.mxu0 0.0
    %1113 = vmatpush1.msra.mxu0 0.0
    %1114 = vmatprep.subr.mxu0 0.0
    %1115 = vmatpush1.msra.mxu0 0.0
    %1116 = vmatprep.subr.mxu0 0.0
    %1117 = vmatpush1.msra.mxu0 0.0
    %1118 = vmatprep.subr.mxu0 0.0
    %1119 = vmatpush1.msra.mxu0 0.0
    %1120 = vmatprep.subr.mxu0 0.0
    %1121 = vmatpush1.msra.mxu0 0.0
    %1122 = vmatprep.subr.mxu0 0.0
    %1123 = vmatpush1.msra.mxu0 0.0
    %1124 = vmatprep.subr.mxu0 0.0
    %1125 = vmatpush1.msra.mxu0 0.0
    %1126 = vmatprep.subr.mxu0 0.0
    %1127 = vmatpush1.msra.mxu0 0.0
    %1128 = vmatprep.subr.mxu0 0.0
    %1129 = vmatpush1.msra.mxu0 0.0
    %1130 = vmatprep.subr.mxu0 0.0
    %1131 = vmatpush1.msra.mxu0 0.0
    %1132 = vmatprep.subr.mxu0 0.0
    %1133 = vmatpush1.msra.mxu0 0.0
    %1134 = vmatprep.subr.mxu0 0.0
    %1135 = vmatpush1.msra.mxu0 0.0
    %1136 = vmatprep.subr.mxu0 0.0
    %1137 = vmatpush1.msra.mxu0 0.0
    %1138 = vmatprep.subr.mxu0 0.0
    %1139 = vmatpush1.msra.mxu0 0.0
    %1140 = vmatprep.mubr.f32.mxu0 0.0
    %1141 = vmatmul.mubr.f32.gmra.mrb[0].mxu0 %v1074
    %v1142 = vpop.f32.mrb[0].mxu0
    %v1143 = vadd.f32 0.0, %v1142
    %v1144 = vpop.f32.mrb[0].mxu0
    %1145 = vdwg.mxu0
    %v1146 = vrcp.pop %v990
    %v1147 = vrcp.pop %v993
    %v1148 = vmul.f32 %v1067, %v1146
    %v1149 = vmul.f32 %v1143, %v1147
    %1152 = vrot.lane.b32.xlu0 %v1148, 8
    %v1153 = vpop.permute.xlu0 %1152
    %1154 = vrot.lane.b32.xlu0 %v1149, 8
    %v1155 = vpop.permute.xlu0 %1154
    %vm1158 = vcmask 97344
    %1159 = vst.msk [vmem:[#allocation2] sm:$0xff] %vm1158, %v1153
    %1160 = vst.msk [vmem:[#allocation2 + $0x8] sm:$0xff] %vm1158, %v1155
    %1161 = vrot.lane.b32.xlu0 %v139, 116
    %v1162 = vpop.permute.xlu0 %1161
    %1163 = vrot.lane.b32.xlu0 %v139, 84
    %v1164 = vpop.permute.xlu0 %1163
    %v1165 = vsel %vm150, %v1162, 0
    %v1167 = vsel %vm150, %v1164, 0
    %1169 = vmatprep.subr.mxu0 0.0
    %1170 = vmatpush1.xpose.msra.mxu0 %v1167
    %1171 = vmatprep.subr.mxu0 0.0
    %1172 = vmatpush1.xpose.msra.mxu0 0.0
    %1173 = vmatprep.subr.mxu0 0.0
    %1174 = vmatpush1.xpose.msra.mxu0 0.0
    %1175 = vmatprep.subr.mxu0 0.0
    %1176 = vmatpush1.xpose.msra.mxu0 0.0
    %1177 = vmatprep.subr.mxu0 0.0
    %1178 = vmatpush1.xpose.msra.mxu0 0.0
    %1179 = vmatprep.subr.mxu0 0.0
    %1180 = vmatpush1.xpose.msra.mxu0 0.0
    %1181 = vmatprep.subr.mxu0 0.0
    %1182 = vmatpush1.xpose.msra.mxu0 0.0
    %1183 = vmatprep.subr.mxu0 0.0
    %1184 = vmatpush1.xpose.msra.mxu0 0.0
    %1185 = vmatprep.subr.mxu0 0.0
    %1186 = vmatpush1.xpose.msra.mxu0 0.0
    %1187 = vmatprep.subr.mxu0 0.0
    %1188 = vmatpush1.xpose.msra.mxu0 0.0
    %1189 = vmatprep.subr.mxu0 0.0
    %1190 = vmatpush1.xpose.msra.mxu0 0.0
    %1191 = vmatprep.subr.mxu0 0.0
    %1192 = vmatpush1.xpose.msra.mxu0 0.0
    %1193 = vmatprep.subr.mxu0 0.0
    %1194 = vmatpush1.xpose.msra.mxu0 0.0
    %1195 = vmatprep.subr.mxu0 0.0
    %1196 = vmatpush1.xpose.msra.mxu0 0.0
    %1197 = vmatprep.subr.mxu0 0.0
    %1198 = vmatpush1.xpose.msra.mxu0 0.0
    %1199 = vmatprep.subr.mxu0 0.0
    %1200 = vmatpush1.xpose.msra.mxu0 0.0
    %1201 = vmatprep.subr.mxu0 0.0
    %1202 = vmatpush1.xpose.msra.mxu0 0.0
    %1203 = vmatprep.subr.mxu0 0.0
    %1204 = vmatpush1.xpose.msra.mxu0 0.0
    %1205 = vmatprep.subr.mxu0 0.0
    %1206 = vmatpush1.xpose.msra.mxu0 0.0
    %1207 = vmatprep.subr.mxu0 0.0
    %1208 = vmatpush1.xpose.msra.mxu0 0.0
    %1209 = vmatprep.subr.mxu0 0.0
    %1210 = vmatpush1.xpose.msra.mxu0 0.0
    %1211 = vmatprep.subr.mxu0 0.0
    %1212 = vmatpush1.xpose.msra.mxu0 0.0
    %1213 = vmatprep.subr.mxu0 0.0
    %1214 = vmatpush1.xpose.msra.mxu0 0.0
    %1215 = vmatprep.subr.mxu0 0.0
    %1216 = vmatpush1.xpose.msra.mxu0 0.0
    %1217 = vmatprep.subr.mxu0 0.0
    %1218 = vmatpush1.xpose.msra.mxu0 0.0
    %1219 = vmatprep.subr.mxu0 0.0
    %1220 = vmatpush1.xpose.msra.mxu0 0.0
    %1221 = vmatprep.subr.mxu0 0.0
    %1222 = vmatpush1.xpose.msra.mxu0 0.0
    %1223 = vmatprep.subr.mxu0 0.0
    %1224 = vmatpush1.xpose.msra.mxu0 0.0
    %1225 = vmatprep.subr.mxu0 0.0
    %1226 = vmatpush1.xpose.msra.mxu0 0.0
    %1227 = vmatprep.subr.mxu0 0.0
    %1228 = vmatpush1.xpose.msra.mxu0 0.0
    %1229 = vmatprep.subr.mxu0 0.0
    %1230 = vmatpush1.xpose.msra.mxu0 0.0
    %1231 = vmatprep.subr.mxu0 0.0
    %1232 = vmatpush1.xpose.msra.mxu0 0.0
    %1233 = vmatprep.mubr.f32.mxu0 0.0
    %1234 = vmatmul.mubr.f32.gmra.mrb[0].mxu0 %v1165
    %v1235 = vpop.f32.mrb[0].mxu0
    %v1236 = vadd.f32 0.0, %v1235
    %v1237 = vpop.f32.mrb[0].mxu0
    %1238 = vdwg.mxu0
    %1239 = vrot.lane.b32.xlu0 %v144, 116
    %v1240 = vpop.permute.xlu0 %1239
    %1241 = vrot.lane.b32.xlu0 %v144, 84
    %v1242 = vpop.permute.xlu0 %1241
    %v1243 = vsel %vm150, %v1240, 0
    %v1245 = vsel %vm150, %v1242, 0
    %1247 = vmatprep.subr.mxu0 0.0
    %1248 = vmatpush1.xpose.msra.mxu0 %v1245
    %1249 = vmatprep.subr.mxu0 0.0
    %1250 = vmatpush1.xpose.msra.mxu0 0.0
    %1251 = vmatprep.subr.mxu0 0.0
    %1252 = vmatpush1.xpose.msra.mxu0 0.0
    %1253 = vmatprep.subr.mxu0 0.0
    %1254 = vmatpush1.xpose.msra.mxu0 0.0
    %1255 = vmatprep.subr.mxu0 0.0
    %1256 = vmatpush1.xpose.msra.mxu0 0.0
    %1257 = vmatprep.subr.mxu0 0.0
    %1258 = vmatpush1.xpose.msra.mxu0 0.0
    %1259 = vmatprep.subr.mxu0 0.0
    %1260 = vmatpush1.xpose.msra.mxu0 0.0
    %1261 = vmatprep.subr.mxu0 0.0
    %1262 = vmatpush1.xpose.msra.mxu0 0.0
    %1263 = vmatprep.subr.mxu0 0.0
    %1264 = vmatpush1.xpose.msra.mxu0 0.0
    %1265 = vmatprep.subr.mxu0 0.0
    %1266 = vmatpush1.xpose.msra.mxu0 0.0
    %1267 = vmatprep.subr.mxu0 0.0
    %1268 = vmatpush1.xpose.msra.mxu0 0.0
    %1269 = vmatprep.subr.mxu0 0.0
    %1270 = vmatpush1.xpose.msra.mxu0 0.0
    %1271 = vmatprep.subr.mxu0 0.0
    %1272 = vmatpush1.xpose.msra.mxu0 0.0
    %1273 = vmatprep.subr.mxu0 0.0
    %1274 = vmatpush1.xpose.msra.mxu0 0.0
    %1275 = vmatprep.subr.mxu0 0.0
    %1276 = vmatpush1.xpose.msra.mxu0 0.0
    %1277 = vmatprep.subr.mxu0 0.0
    %1278 = vmatpush1.xpose.msra.mxu0 0.0
    %1279 = vmatprep.subr.mxu0 0.0
    %1280 = vmatpush1.xpose.msra.mxu0 0.0
    %1281 = vmatprep.subr.mxu0 0.0
    %1282 = vmatpush1.xpose.msra.mxu0 0.0
    %1283 = vmatprep.subr.mxu0 0.0
    %1284 = vmatpush1.xpose.msra.mxu0 0.0
    %1285 = vmatprep.subr.mxu0 0.0
    %1286 = vmatpush1.xpose.msra.mxu0 0.0
    %1287 = vmatprep.subr.mxu0 0.0
    %1288 = vmatpush1.xpose.msra.mxu0 0.0
    %1289 = vmatprep.subr.mxu0 0.0
    %1290 = vmatpush1.xpose.msra.mxu0 0.0
    %1291 = vmatprep.subr.mxu0 0.0
    %1292 = vmatpush1.xpose.msra.mxu0 0.0
    %1293 = vmatprep.subr.mxu0 0.0
    %1294 = vmatpush1.xpose.msra.mxu0 0.0
    %1295 = vmatprep.subr.mxu0 0.0
    %1296 = vmatpush1.xpose.msra.mxu0 0.0
    %1297 = vmatprep.subr.mxu0 0.0
    %1298 = vmatpush1.xpose.msra.mxu0 0.0
    %1299 = vmatprep.subr.mxu0 0.0
    %1300 = vmatpush1.xpose.msra.mxu0 0.0
    %1301 = vmatprep.subr.mxu0 0.0
    %1302 = vmatpush1.xpose.msra.mxu0 0.0
    %1303 = vmatprep.subr.mxu0 0.0
    %1304 = vmatpush1.xpose.msra.mxu0 0.0
    %1305 = vmatprep.subr.mxu0 0.0
    %1306 = vmatpush1.xpose.msra.mxu0 0.0
    %1307 = vmatprep.subr.mxu0 0.0
    %1308 = vmatpush1.xpose.msra.mxu0 0.0
    %1309 = vmatprep.subr.mxu0 0.0
    %1310 = vmatpush1.xpose.msra.mxu0 0.0
    %1311 = vmatprep.mubr.f32.mxu0 0.0
    %1312 = vmatmul.mubr.f32.gmra.mrb[0].mxu0 %v1243
    %v1313 = vpop.f32.mrb[0].mxu0
    %v1314 = vadd.f32 0.0, %v1313
    %v1315 = vpop.f32.mrb[0].mxu0
    %1316 = vdwg.mxu0
    %v1317 = vsel %vm302, %v1236, -inf
    %1318 = vmax.xlane.f32.xlu0 %v1317
    %v1319 = vpop.xlane.xlu0 %1318
    %v1320 = vsel %vm302, %v1314, -inf
    %1321 = vmax.xlane.f32.xlu0 %v1320
    %v1322 = vpop.xlane.xlu0 %1321
    %v1323 = vsub.f32 %v1236, %v1319
    %v1324 = vsub.f32 %v1314, %v1322
    %v1325 = vmul.f32 %v1323, 1.442695
    %v1326 = vpow.pop %v1325
    %v1327 = vmul.f32 %v1324, 1.442695
    %v1328 = vpow.pop %v1327
    %v1329 = vsel %vm302, %v1326, 0.0
    %1330 = vadd.xlane.f32.xlu0 %v1329
    %v1331 = vpop.xlane.xlu0 %1330
    %v1332 = vsel %vm302, %v1328, 0.0
    %1333 = vadd.xlane.f32.xlu0 %v1332
    %v1334 = vpop.xlane.xlu0 %1333
    %1335 = vrot.lane.b32.xlu0 %v139, 52
    %v1336 = vpop.permute.xlu0 %1335
    %v1339 = vsel %vm302, %v1326, 0
    %1341 = vmatprep.subr.mxu0 0.0
    %1342 = vmatpush1.msra.mxu0 %v1336
    %1343 = vmatprep.subr.mxu0 0.0
    %1344 = vmatpush1.msra.mxu0 0.0
    %1345 = vmatprep.subr.mxu0 0.0
    %1346 = vmatpush1.msra.mxu0 0.0
    %1347 = vmatprep.subr.mxu0 0.0
    %1348 = vmatpush1.msra.mxu0 0.0
    %1349 = vmatprep.subr.mxu0 0.0
    %1350 = vmatpush1.msra.mxu0 0.0
    %1351 = vmatprep.subr.mxu0 0.0
    %1352 = vmatpush1.msra.mxu0 0.0
    %1353 = vmatprep.subr.mxu0 0.0
    %1354 = vmatpush1.msra.mxu0 0.0
    %1355 = vmatprep.subr.mxu0 0.0
    %1356 = vmatpush1.msra.mxu0 0.0
    %1357 = vmatprep.subr.mxu0 0.0
    %1358 = vmatpush1.msra.mxu0 0.0
    %1359 = vmatprep.subr.mxu0 0.0
    %1360 = vmatpush1.msra.mxu0 0.0
    %1361 = vmatprep.subr.mxu0 0.0
    %1362 = vmatpush1.msra.mxu0 0.0
    %1363 = vmatprep.subr.mxu0 0.0
    %1364 = vmatpush1.msra.mxu0 0.0
    %1365 = vmatprep.subr.mxu0 0.0
    %1366 = vmatpush1.msra.mxu0 0.0
    %1367 = vmatprep.subr.mxu0 0.0
    %1368 = vmatpush1.msra.mxu0 0.0
    %1369 = vmatprep.subr.mxu0 0.0
    %1370 = vmatpush1.msra.mxu0 0.0
    %1371 = vmatprep.subr.mxu0 0.0
    %1372 = vmatpush1.msra.mxu0 0.0
    %1373 = vmatprep.subr.mxu0 0.0
    %1374 = vmatpush1.msra.mxu0 0.0
    %1375 = vmatprep.subr.mxu0 0.0
    %1376 = vmatpush1.msra.mxu0 0.0
    %1377 = vmatprep.subr.mxu0 0.0
    %1378 = vmatpush1.msra.mxu0 0.0
    %1379 = vmatprep.subr.mxu0 0.0
    %1380 = vmatpush1.msra.mxu0 0.0
    %1381 = vmatprep.subr.mxu0 0.0
    %1382 = vmatpush1.msra.mxu0 0.0
    %1383 = vmatprep.subr.mxu0 0.0
    %1384 = vmatpush1.msra.mxu0 0.0
    %1385 = vmatprep.subr.mxu0 0.0
    %1386 = vmatpush1.msra.mxu0 0.0
    %1387 = vmatprep.subr.mxu0 0.0
    %1388 = vmatpush1.msra.mxu0 0.0
    %1389 = vmatprep.subr.mxu0 0.0
    %1390 = vmatpush1.msra.mxu0 0.0
    %1391 = vmatprep.subr.mxu0 0.0
    %1392 = vmatpush1.msra.mxu0 0.0
    %1393 = vmatprep.subr.mxu0 0.0
    %1394 = vmatpush1.msra.mxu0 0.0
    %1395 = vmatprep.subr.mxu0 0.0
    %1396 = vmatpush1.msra.mxu0 0.0
    %1397 = vmatprep.subr.mxu0 0.0
    %1398 = vmatpush1.msra.mxu0 0.0
    %1399 = vmatprep.subr.mxu0 0.0
    %1400 = vmatpush1.msra.mxu0 0.0
    %1401 = vmatprep.subr.mxu0 0.0
    %1402 = vmatpush1.msra.mxu0 0.0
    %1403 = vmatprep.subr.mxu0 0.0
    %1404 = vmatpush1.msra.mxu0 0.0
    %1405 = vmatprep.mubr.f32.mxu0 0.0
    %1406 = vmatmul.mubr.f32.gmra.mrb[0].mxu0 %v1339
    %v1407 = vpop.f32.mrb[0].mxu0
    %v1408 = vadd.f32 0.0, %v1407
    %v1409 = vpop.f32.mrb[0].mxu0
    %1410 = vdwg.mxu0
    %1411 = vrot.lane.b32.xlu0 %v144, 52
    %v1412 = vpop.permute.xlu0 %1411
    %v1415 = vsel %vm302, %v1328, 0
    %1417 = vmatprep.subr.mxu0 0.0
    %1418 = vmatpush1.msra.mxu0 %v1412
    %1419 = vmatprep.subr.mxu0 0.0
    %1420 = vmatpush1.msra.mxu0 0.0
    %1421 = vmatprep.subr.mxu0 0.0
    %1422 = vmatpush1.msra.mxu0 0.0
    %1423 = vmatprep.subr.mxu0 0.0
    %1424 = vmatpush1.msra.mxu0 0.0
    %1425 = vmatprep.subr.mxu0 0.0
    %1426 = vmatpush1.msra.mxu0 0.0
    %1427 = vmatprep.subr.mxu0 0.0
    %1428 = vmatpush1.msra.mxu0 0.0
    %1429 = vmatprep.subr.mxu0 0.0
    %1430 = vmatpush1.msra.mxu0 0.0
    %1431 = vmatprep.subr.mxu0 0.0
    %1432 = vmatpush1.msra.mxu0 0.0
    %1433 = vmatprep.subr.mxu0 0.0
    %1434 = vmatpush1.msra.mxu0 0.0
    %1435 = vmatprep.subr.mxu0 0.0
    %1436 = vmatpush1.msra.mxu0 0.0
    %1437 = vmatprep.subr.mxu0 0.0
    %1438 = vmatpush1.msra.mxu0 0.0
    %1439 = vmatprep.subr.mxu0 0.0
    %1440 = vmatpush1.msra.mxu0 0.0
    %1441 = vmatprep.subr.mxu0 0.0
    %1442 = vmatpush1.msra.mxu0 0.0
    %1443 = vmatprep.subr.mxu0 0.0
    %1444 = vmatpush1.msra.mxu0 0.0
    %1445 = vmatprep.subr.mxu0 0.0
    %1446 = vmatpush1.msra.mxu0 0.0
    %1447 = vmatprep.subr.mxu0 0.0
    %1448 = vmatpush1.msra.mxu0 0.0
    %1449 = vmatprep.subr.mxu0 0.0
    %1450 = vmatpush1.msra.mxu0 0.0
    %1451 = vmatprep.subr.mxu0 0.0
    %1452 = vmatpush1.msra.mxu0 0.0
    %1453 = vmatprep.subr.mxu0 0.0
    %1454 = vmatpush1.msra.mxu0 0.0
    %1455 = vmatprep.subr.mxu0 0.0
    %1456 = vmatpush1.msra.mxu0 0.0
    %1457 = vmatprep.subr.mxu0 0.0
    %1458 = vmatpush1.msra.mxu0 0.0
    %1459 = vmatprep.subr.mxu0 0.0
    %1460 = vmatpush1.msra.mxu0 0.0
    %1461 = vmatprep.subr.mxu0 0.0
    %1462 = vmatpush1.msra.mxu0 0.0
    %1463 = vmatprep.subr.mxu0 0.0
    %1464 = vmatpush1.msra.mxu0 0.0
    %1465 = vmatprep.subr.mxu0 0.0
    %1466 = vmatpush1.msra.mxu0 0.0
    %1467 = vmatprep.subr.mxu0 0.0
    %1468 = vmatpush1.msra.mxu0 0.0
    %1469 = vmatprep.subr.mxu0 0.0
    %1470 = vmatpush1.msra.mxu0 0.0
    %1471 = vmatprep.subr.mxu0 0.0
    %1472 = vmatpush1.msra.mxu0 0.0
    %1473 = vmatprep.subr.mxu0 0.0
    %1474 = vmatpush1.msra.mxu0 0.0
    %1475 = vmatprep.subr.mxu0 0.0
    %1476 = vmatpush1.msra.mxu0 0.0
    %1477 = vmatprep.subr.mxu0 0.0
    %1478 = vmatpush1.msra.mxu0 0.0
    %1479 = vmatprep.subr.mxu0 0.0
    %1480 = vmatpush1.msra.mxu0 0.0
    %1481 = vmatprep.mubr.f32.mxu0 0.0
    %1482 = vmatmul.mubr.f32.gmra.mrb[0].mxu0 %v1415
    %v1483 = vpop.f32.mrb[0].mxu0
    %v1484 = vadd.f32 0.0, %v1483
    %v1485 = vpop.f32.mrb[0].mxu0
    %1486 = vdwg.mxu0
    %v1487 = vrcp.pop %v1331
    %v1488 = vrcp.pop %v1334
    %v1489 = vmul.f32 %v1408, %v1487
    %v1490 = vmul.f32 %v1484, %v1488
    %1493 = vrot.lane.b32.xlu0 %v1489, 12
    %v1494 = vpop.permute.xlu0 %1493
    %1495 = vrot.lane.b32.xlu0 %v1490, 12
    %v1496 = vpop.permute.xlu0 %1495
    %vm1499 = vcmask 130144
    %1500 = vst.msk [vmem:[#allocation2] sm:$0xff] %vm1499, %v1494
    %1501 = vst.msk [vmem:[#allocation2 + $0x8] sm:$0xff] %vm1499, %v1496
    %1502 = vrot.lane.b32.xlu0 %v139, 112
    %v1503 = vpop.permute.xlu0 %1502
    %1504 = vrot.lane.b32.xlu0 %v139, 80
    %v1505 = vpop.permute.xlu0 %1504
    %v1506 = vsel %vm150, %v1503, 0
    %v1508 = vsel %vm150, %v1505, 0
    %1510 = vmatprep.subr.mxu0 0.0
    %1511 = vmatpush1.xpose.msra.mxu0 %v1508
    %1512 = vmatprep.subr.mxu0 0.0
    %1513 = vmatpush1.xpose.msra.mxu0 0.0
    %1514 = vmatprep.subr.mxu0 0.0
    %1515 = vmatpush1.xpose.msra.mxu0 0.0
    %1516 = vmatprep.subr.mxu0 0.0
    %1517 = vmatpush1.xpose.msra.mxu0 0.0
    %1518 = vmatprep.subr.mxu0 0.0
    %1519 = vmatpush1.xpose.msra.mxu0 0.0
    %1520 = vmatprep.subr.mxu0 0.0
    %1521 = vmatpush1.xpose.msra.mxu0 0.0
    %1522 = vmatprep.subr.mxu0 0.0
    %1523 = vmatpush1.xpose.msra.mxu0 0.0
    %1524 = vmatprep.subr.mxu0 0.0
    %1525 = vmatpush1.xpose.msra.mxu0 0.0
    %1526 = vmatprep.subr.mxu0 0.0
    %1527 = vmatpush1.xpose.msra.mxu0 0.0
    %1528 = vmatprep.subr.mxu0 0.0
    %1529 = vmatpush1.xpose.msra.mxu0 0.0
    %1530 = vmatprep.subr.mxu0 0.0
    %1531 = vmatpush1.xpose.msra.mxu0 0.0
    %1532 = vmatprep.subr.mxu0 0.0
    %1533 = vmatpush1.xpose.msra.mxu0 0.0
    %1534 = vmatprep.subr.mxu0 0.0
    %1535 = vmatpush1.xpose.msra.mxu0 0.0
    %1536 = vmatprep.subr.mxu0 0.0
    %1537 = vmatpush1.xpose.msra.mxu0 0.0
    %1538 = vmatprep.subr.mxu0 0.0
    %1539 = vmatpush1.xpose.msra.mxu0 0.0
    %1540 = vmatprep.subr.mxu0 0.0
    %1541 = vmatpush1.xpose.msra.mxu0 0.0
    %1542 = vmatprep.subr.mxu0 0.0
    %1543 = vmatpush1.xpose.msra.mxu0 0.0
    %1544 = vmatprep.subr.mxu0 0.0
    %1545 = vmatpush1.xpose.msra.mxu0 0.0
    %1546 = vmatprep.subr.mxu0 0.0
    %1547 = vmatpush1.xpose.msra.mxu0 0.0
    %1548 = vmatprep.subr.mxu0 0.0
    %1549 = vmatpush1.xpose.msra.mxu0 0.0
    %1550 = vmatprep.subr.mxu0 0.0
    %1551 = vmatpush1.xpose.msra.mxu0 0.0
    %1552 = vmatprep.subr.mxu0 0.0
    %1553 = vmatpush1.xpose.msra.mxu0 0.0
    %1554 = vmatprep.subr.mxu0 0.0
    %1555 = vmatpush1.xpose.msra.mxu0 0.0
    %1556 = vmatprep.subr.mxu0 0.0
    %1557 = vmatpush1.xpose.msra.mxu0 0.0
    %1558 = vmatprep.subr.mxu0 0.0
    %1559 = vmatpush1.xpose.msra.mxu0 0.0
    %1560 = vmatprep.subr.mxu0 0.0
    %1561 = vmatpush1.xpose.msra.mxu0 0.0
    %1562 = vmatprep.subr.mxu0 0.0
    %1563 = vmatpush1.xpose.msra.mxu0 0.0
    %1564 = vmatprep.subr.mxu0 0.0
    %1565 = vmatpush1.xpose.msra.mxu0 0.0
    %1566 = vmatprep.subr.mxu0 0.0
    %1567 = vmatpush1.xpose.msra.mxu0 0.0
    %1568 = vmatprep.subr.mxu0 0.0
    %1569 = vmatpush1.xpose.msra.mxu0 0.0
    %1570 = vmatprep.subr.mxu0 0.0
    %1571 = vmatpush1.xpose.msra.mxu0 0.0
    %1572 = vmatprep.subr.mxu0 0.0
    %1573 = vmatpush1.xpose.msra.mxu0 0.0
    %1574 = vmatprep.mubr.f32.mxu0 0.0
    %1575 = vmatmul.mubr.f32.gmra.mrb[0].mxu0 %v1506
    %v1576 = vpop.f32.mrb[0].mxu0
    %v1577 = vadd.f32 0.0, %v1576
    %v1578 = vpop.f32.mrb[0].mxu0
    %1579 = vdwg.mxu0
    %1580 = vrot.lane.b32.xlu0 %v144, 112
    %v1581 = vpop.permute.xlu0 %1580
    %1582 = vrot.lane.b32.xlu0 %v144, 80
    %v1583 = vpop.permute.xlu0 %1582
    %v1584 = vsel %vm150, %v1581, 0
    %v1586 = vsel %vm150, %v1583, 0
    %1588 = vmatprep.subr.mxu0 0.0
    %1589 = vmatpush1.xpose.msra.mxu0 %v1586
    %1590 = vmatprep.subr.mxu0 0.0
    %1591 = vmatpush1.xpose.msra.mxu0 0.0
    %1592 = vmatprep.subr.mxu0 0.0
    %1593 = vmatpush1.xpose.msra.mxu0 0.0
    %1594 = vmatprep.subr.mxu0 0.0
    %1595 = vmatpush1.xpose.msra.mxu0 0.0
    %1596 = vmatprep.subr.mxu0 0.0
    %1597 = vmatpush1.xpose.msra.mxu0 0.0
    %1598 = vmatprep.subr.mxu0 0.0
    %1599 = vmatpush1.xpose.msra.mxu0 0.0
    %1600 = vmatprep.subr.mxu0 0.0
    %1601 = vmatpush1.xpose.msra.mxu0 0.0
    %1602 = vmatprep.subr.mxu0 0.0
    %1603 = vmatpush1.xpose.msra.mxu0 0.0
    %1604 = vmatprep.subr.mxu0 0.0
    %1605 = vmatpush1.xpose.msra.mxu0 0.0
    %1606 = vmatprep.subr.mxu0 0.0
    %1607 = vmatpush1.xpose.msra.mxu0 0.0
    %1608 = vmatprep.subr.mxu0 0.0
    %1609 = vmatpush1.xpose.msra.mxu0 0.0
    %1610 = vmatprep.subr.mxu0 0.0
    %1611 = vmatpush1.xpose.msra.mxu0 0.0
    %1612 = vmatprep.subr.mxu0 0.0
    %1613 = vmatpush1.xpose.msra.mxu0 0.0
    %1614 = vmatprep.subr.mxu0 0.0
    %1615 = vmatpush1.xpose.msra.mxu0 0.0
    %1616 = vmatprep.subr.mxu0 0.0
    %1617 = vmatpush1.xpose.msra.mxu0 0.0
    %1618 = vmatprep.subr.mxu0 0.0
    %1619 = vmatpush1.xpose.msra.mxu0 0.0
    %1620 = vmatprep.subr.mxu0 0.0
    %1621 = vmatpush1.xpose.msra.mxu0 0.0
    %1622 = vmatprep.subr.mxu0 0.0
    %1623 = vmatpush1.xpose.msra.mxu0 0.0
    %1624 = vmatprep.subr.mxu0 0.0
    %1625 = vmatpush1.xpose.msra.mxu0 0.0
    %1626 = vmatprep.subr.mxu0 0.0
    %1627 = vmatpush1.xpose.msra.mxu0 0.0
    %1628 = vmatprep.subr.mxu0 0.0
    %1629 = vmatpush1.xpose.msra.mxu0 0.0
    %1630 = vmatprep.subr.mxu0 0.0
    %1631 = vmatpush1.xpose.msra.mxu0 0.0
    %1632 = vmatprep.subr.mxu0 0.0
    %1633 = vmatpush1.xpose.msra.mxu0 0.0
    %1634 = vmatprep.subr.mxu0 0.0
    %1635 = vmatpush1.xpose.msra.mxu0 0.0
    %1636 = vmatprep.subr.mxu0 0.0
    %1637 = vmatpush1.xpose.msra.mxu0 0.0
    %1638 = vmatprep.subr.mxu0 0.0
    %1639 = vmatpush1.xpose.msra.mxu0 0.0
    %1640 = vmatprep.subr.mxu0 0.0
    %1641 = vmatpush1.xpose.msra.mxu0 0.0
    %1642 = vmatprep.subr.mxu0 0.0
    %1643 = vmatpush1.xpose.msra.mxu0 0.0
    %1644 = vmatprep.subr.mxu0 0.0
    %1645 = vmatpush1.xpose.msra.mxu0 0.0
    %1646 = vmatprep.subr.mxu0 0.0
    %1647 = vmatpush1.xpose.msra.mxu0 0.0
    %1648 = vmatprep.subr.mxu0 0.0
    %1649 = vmatpush1.xpose.msra.mxu0 0.0
    %1650 = vmatprep.subr.mxu0 0.0
    %1651 = vmatpush1.xpose.msra.mxu0 0.0
    %1652 = vmatprep.mubr.f32.mxu0 0.0
    %1653 = vmatmul.mubr.f32.gmra.mrb[0].mxu0 %v1584
    %v1654 = vpop.f32.mrb[0].mxu0
    %v1655 = vadd.f32 0.0, %v1654
    %v1656 = vpop.f32.mrb[0].mxu0
    %1657 = vdwg.mxu0
    %v1658 = vsel %vm302, %v1577, -inf
    %1659 = vmax.xlane.f32.xlu0 %v1658
    %v1660 = vpop.xlane.xlu0 %1659
    %v1661 = vsel %vm302, %v1655, -inf
    %1662 = vmax.xlane.f32.xlu0 %v1661
    %v1663 = vpop.xlane.xlu0 %1662
    %v1664 = vsub.f32 %v1577, %v1660
    %v1665 = vsub.f32 %v1655, %v1663
    %v1666 = vmul.f32 %v1664, 1.442695
    %v1667 = vpow.pop %v1666
    %v1668 = vmul.f32 %v1665, 1.442695
    %v1669 = vpow.pop %v1668
    %v1670 = vsel %vm302, %v1667, 0.0
    %1671 = vadd.xlane.f32.xlu0 %v1670
    %v1672 = vpop.xlane.xlu0 %1671
    %v1673 = vsel %vm302, %v1669, 0.0
    %1674 = vadd.xlane.f32.xlu0 %v1673
    %v1675 = vpop.xlane.xlu0 %1674
    %1676 = vrot.lane.b32.xlu0 %v139, 48
    %v1677 = vpop.permute.xlu0 %1676
    %v1680 = vsel %vm302, %v1667, 0
    %1682 = vmatprep.subr.mxu0 0.0
    %1683 = vmatpush1.msra.mxu0 %v1677
    %1684 = vmatprep.subr.mxu0 0.0
    %1685 = vmatpush1.msra.mxu0 0.0
    %1686 = vmatprep.subr.mxu0 0.0
    %1687 = vmatpush1.msra.mxu0 0.0
    %1688 = vmatprep.subr.mxu0 0.0
    %1689 = vmatpush1.msra.mxu0 0.0
    %1690 = vmatprep.subr.mxu0 0.0
    %1691 = vmatpush1.msra.mxu0 0.0
    %1692 = vmatprep.subr.mxu0 0.0
    %1693 = vmatpush1.msra.mxu0 0.0
    %1694 = vmatprep.subr.mxu0 0.0
    %1695 = vmatpush1.msra.mxu0 0.0
    %1696 = vmatprep.subr.mxu0 0.0
    %1697 = vmatpush1.msra.mxu0 0.0
    %1698 = vmatprep.subr.mxu0 0.0
    %1699 = vmatpush1.msra.mxu0 0.0
    %1700 = vmatprep.subr.mxu0 0.0
    %1701 = vmatpush1.msra.mxu0 0.0
    %1702 = vmatprep.subr.mxu0 0.0
    %1703 = vmatpush1.msra.mxu0 0.0
    %1704 = vmatprep.subr.mxu0 0.0
    %1705 = vmatpush1.msra.mxu0 0.0
    %1706 = vmatprep.subr.mxu0 0.0
    %1707 = vmatpush1.msra.mxu0 0.0
    %1708 = vmatprep.subr.mxu0 0.0
    %1709 = vmatpush1.msra.mxu0 0.0
    %1710 = vmatprep.subr.mxu0 0.0
    %1711 = vmatpush1.msra.mxu0 0.0
    %1712 = vmatprep.subr.mxu0 0.0
    %1713 = vmatpush1.msra.mxu0 0.0
    %1714 = vmatprep.subr.mxu0 0.0
    %1715 = vmatpush1.msra.mxu0 0.0
    %1716 = vmatprep.subr.mxu0 0.0
    %1717 = vmatpush1.msra.mxu0 0.0
    %1718 = vmatprep.subr.mxu0 0.0
    %1719 = vmatpush1.msra.mxu0 0.0
    %1720 = vmatprep.subr.mxu0 0.0
    %1721 = vmatpush1.msra.mxu0 0.0
    %1722 = vmatprep.subr.mxu0 0.0
    %1723 = vmatpush1.msra.mxu0 0.0
    %1724 = vmatprep.subr.mxu0 0.0
    %1725 = vmatpush1.msra.mxu0 0.0
    %1726 = vmatprep.subr.mxu0 0.0
    %1727 = vmatpush1.msra.mxu0 0.0
    %1728 = vmatprep.subr.mxu0 0.0
    %1729 = vmatpush1.msra.mxu0 0.0
    %1730 = vmatprep.subr.mxu0 0.0
    %1731 = vmatpush1.msra.mxu0 0.0
    %1732 = vmatprep.subr.mxu0 0.0
    %1733 = vmatpush1.msra.mxu0 0.0
    %1734 = vmatprep.subr.mxu0 0.0
    %1735 = vmatpush1.msra.mxu0 0.0
    %1736 = vmatprep.subr.mxu0 0.0
    %1737 = vmatpush1.msra.mxu0 0.0
    %1738 = vmatprep.subr.mxu0 0.0
    %1739 = vmatpush1.msra.mxu0 0.0
    %1740 = vmatprep.subr.mxu0 0.0
    %1741 = vmatpush1.msra.mxu0 0.0
    %1742 = vmatprep.subr.mxu0 0.0
    %1743 = vmatpush1.msra.mxu0 0.0
    %1744 = vmatprep.subr.mxu0 0.0
    %1745 = vmatpush1.msra.mxu0 0.0
    %1746 = vmatprep.mubr.f32.mxu0 0.0
    %1747 = vmatmul.mubr.f32.gmra.mrb[0].mxu0 %v1680
    %v1748 = vpop.f32.mrb[0].mxu0
    %v1749 = vadd.f32 0.0, %v1748
    %v1750 = vpop.f32.mrb[0].mxu0
    %1751 = vdwg.mxu0
    %1752 = vrot.lane.b32.xlu0 %v144, 48
    %v1753 = vpop.permute.xlu0 %1752
    %v1756 = vsel %vm302, %v1669, 0
    %1758 = vmatprep.subr.mxu0 0.0
    %1759 = vmatpush1.msra.mxu0 %v1753
    %1760 = vmatprep.subr.mxu0 0.0
    %1761 = vmatpush1.msra.mxu0 0.0
    %1762 = vmatprep.subr.mxu0 0.0
    %1763 = vmatpush1.msra.mxu0 0.0
    %1764 = vmatprep.subr.mxu0 0.0
    %1765 = vmatpush1.msra.mxu0 0.0
    %1766 = vmatprep.subr.mxu0 0.0
    %1767 = vmatpush1.msra.mxu0 0.0
    %1768 = vmatprep.subr.mxu0 0.0
    %1769 = vmatpush1.msra.mxu0 0.0
    %1770 = vmatprep.subr.mxu0 0.0
    %1771 = vmatpush1.msra.mxu0 0.0
    %1772 = vmatprep.subr.mxu0 0.0
    %1773 = vmatpush1.msra.mxu0 0.0
    %1774 = vmatprep.subr.mxu0 0.0
    %1775 = vmatpush1.msra.mxu0 0.0
    %1776 = vmatprep.subr.mxu0 0.0
    %1777 = vmatpush1.msra.mxu0 0.0
    %1778 = vmatprep.subr.mxu0 0.0
    %1779 = vmatpush1.msra.mxu0 0.0
    %1780 = vmatprep.subr.mxu0 0.0
    %1781 = vmatpush1.msra.mxu0 0.0
    %1782 = vmatprep.subr.mxu0 0.0
    %1783 = vmatpush1.msra.mxu0 0.0
    %1784 = vmatprep.subr.mxu0 0.0
    %1785 = vmatpush1.msra.mxu0 0.0
    %1786 = vmatprep.subr.mxu0 0.0
    %1787 = vmatpush1.msra.mxu0 0.0
    %1788 = vmatprep.subr.mxu0 0.0
    %1789 = vmatpush1.msra.mxu0 0.0
    %1790 = vmatprep.subr.mxu0 0.0
    %1791 = vmatpush1.msra.mxu0 0.0
    %1792 = vmatprep.subr.mxu0 0.0
    %1793 = vmatpush1.msra.mxu0 0.0
    %1794 = vmatprep.subr.mxu0 0.0
    %1795 = vmatpush1.msra.mxu0 0.0
    %1796 = vmatprep.subr.mxu0 0.0
    %1797 = vmatpush1.msra.mxu0 0.0
    %1798 = vmatprep.subr.mxu0 0.0
    %1799 = vmatpush1.msra.mxu0 0.0
    %1800 = vmatprep.subr.mxu0 0.0
    %1801 = vmatpush1.msra.mxu0 0.0
    %1802 = vmatprep.subr.mxu0 0.0
    %1803 = vmatpush1.msra.mxu0 0.0
    %1804 = vmatprep.subr.mxu0 0.0
    %1805 = vmatpush1.msra.mxu0 0.0
    %1806 = vmatprep.subr.mxu0 0.0
    %1807 = vmatpush1.msra.mxu0 0.0
    %1808 = vmatprep.subr.mxu0 0.0
    %1809 = vmatpush1.msra.mxu0 0.0
    %1810 = vmatprep.subr.mxu0 0.0
    %1811 = vmatpush1.msra.mxu0 0.0
    %1812 = vmatprep.subr.mxu0 0.0
    %1813 = vmatpush1.msra.mxu0 0.0
    %1814 = vmatprep.subr.mxu0 0.0
    %1815 = vmatpush1.msra.mxu0 0.0
    %1816 = vmatprep.subr.mxu0 0.0
    %1817 = vmatpush1.msra.mxu0 0.0
    %1818 = vmatprep.subr.mxu0 0.0
    %1819 = vmatpush1.msra.mxu0 0.0
    %1820 = vmatprep.subr.mxu0 0.0
    %1821 = vmatpush1.msra.mxu0 0.0
    %1822 = vmatprep.mubr.f32.mxu0 0.0
    %1823 = vmatmul.mubr.f32.gmra.mrb[0].mxu0 %v1756
    %v1824 = vpop.f32.mrb[0].mxu0
    %v1825 = vadd.f32 0.0, %v1824
    %v1826 = vpop.f32.mrb[0].mxu0
    %1827 = vdwg.mxu0
    %v1828 = vrcp.pop %v1672
    %v1829 = vrcp.pop %v1675
    %v1830 = vmul.f32 %v1749, %v1828
    %v1831 = vmul.f32 %v1825, %v1829
    %1834 = vrot.lane.b32.xlu0 %v1830, 16
    %v1835 = vpop.permute.xlu0 %1834
    %1836 = vrot.lane.b32.xlu0 %v1831, 16
    %v1837 = vpop.permute.xlu0 %1836
    %vm1840 = vcmask 162944
    %1841 = vst.msk [vmem:[#allocation2] sm:$0xff] %vm1840, %v1835
    %1842 = vst.msk [vmem:[#allocation2 + $0x8] sm:$0xff] %vm1840, %v1837
    %1843 = vrot.lane.b32.xlu0 %v139, 108
    %v1844 = vpop.permute.xlu0 %1843
    %1845 = vrot.lane.b32.xlu0 %v139, 76
    %v1846 = vpop.permute.xlu0 %1845
    %v1847 = vsel %vm150, %v1844, 0
    %v1849 = vsel %vm150, %v1846, 0
    %1851 = vmatprep.subr.mxu0 0.0
    %1852 = vmatpush1.xpose.msra.mxu0 %v1849
    %1853 = vmatprep.subr.mxu0 0.0
    %1854 = vmatpush1.xpose.msra.mxu0 0.0
    %1855 = vmatprep.subr.mxu0 0.0
    %1856 = vmatpush1.xpose.msra.mxu0 0.0
    %1857 = vmatprep.subr.mxu0 0.0
    %1858 = vmatpush1.xpose.msra.mxu0 0.0
    %1859 = vmatprep.subr.mxu0 0.0
    %1860 = vmatpush1.xpose.msra.mxu0 0.0
    %1861 = vmatprep.subr.mxu0 0.0
    %1862 = vmatpush1.xpose.msra.mxu0 0.0
    %1863 = vmatprep.subr.mxu0 0.0
    %1864 = vmatpush1.xpose.msra.mxu0 0.0
    %1865 = vmatprep.subr.mxu0 0.0
    %1866 = vmatpush1.xpose.msra.mxu0 0.0
    %1867 = vmatprep.subr.mxu0 0.0
    %1868 = vmatpush1.xpose.msra.mxu0 0.0
    %1869 = vmatprep.subr.mxu0 0.0
    %1870 = vmatpush1.xpose.msra.mxu0 0.0
    %1871 = vmatprep.subr.mxu0 0.0
    %1872 = vmatpush1.xpose.msra.mxu0 0.0
    %1873 = vmatprep.subr.mxu0 0.0
    %1874 = vmatpush1.xpose.msra.mxu0 0.0
    %1875 = vmatprep.subr.mxu0 0.0
    %1876 = vmatpush1.xpose.msra.mxu0 0.0
    %1877 = vmatprep.subr.mxu0 0.0
    %1878 = vmatpush1.xpose.msra.mxu0 0.0
    %1879 = vmatprep.subr.mxu0 0.0
    %1880 = vmatpush1.xpose.msra.mxu0 0.0
    %1881 = vmatprep.subr.mxu0 0.0
    %1882 = vmatpush1.xpose.msra.mxu0 0.0
    %1883 = vmatprep.subr.mxu0 0.0
    %1884 = vmatpush1.xpose.msra.mxu0 0.0
    %1885 = vmatprep.subr.mxu0 0.0
    %1886 = vmatpush1.xpose.msra.mxu0 0.0
    %1887 = vmatprep.subr.mxu0 0.0
    %1888 = vmatpush1.xpose.msra.mxu0 0.0
    %1889 = vmatprep.subr.mxu0 0.0
    %1890 = vmatpush1.xpose.msra.mxu0 0.0
    %1891 = vmatprep.subr.mxu0 0.0
    %1892 = vmatpush1.xpose.msra.mxu0 0.0
    %1893 = vmatprep.subr.mxu0 0.0
    %1894 = vmatpush1.xpose.msra.mxu0 0.0
    %1895 = vmatprep.subr.mxu0 0.0
    %1896 = vmatpush1.xpose.msra.mxu0 0.0
    %1897 = vmatprep.subr.mxu0 0.0
    %1898 = vmatpush1.xpose.msra.mxu0 0.0
    %1899 = vmatprep.subr.mxu0 0.0
    %1900 = vmatpush1.xpose.msra.mxu0 0.0
    %1901 = vmatprep.subr.mxu0 0.0
    %1902 = vmatpush1.xpose.msra.mxu0 0.0
    %1903 = vmatprep.subr.mxu0 0.0
    %1904 = vmatpush1.xpose.msra.mxu0 0.0
    %1905 = vmatprep.subr.mxu0 0.0
    %1906 = vmatpush1.xpose.msra.mxu0 0.0
    %1907 = vmatprep.subr.mxu0 0.0
    %1908 = vmatpush1.xpose.msra.mxu0 0.0
    %1909 = vmatprep.subr.mxu0 0.0
    %1910 = vmatpush1.xpose.msra.mxu0 0.0
    %1911 = vmatprep.subr.mxu0 0.0
    %1912 = vmatpush1.xpose.msra.mxu0 0.0
    %1913 = vmatprep.subr.mxu0 0.0
    %1914 = vmatpush1.xpose.msra.mxu0 0.0
    %1915 = vmatprep.mubr.f32.mxu0 0.0
    %1916 = vmatmul.mubr.f32.gmra.mrb[0].mxu0 %v1847
    %v1917 = vpop.f32.mrb[0].mxu0
    %v1918 = vadd.f32 0.0, %v1917
    %v1919 = vpop.f32.mrb[0].mxu0
    %1920 = vdwg.mxu0
    %1921 = vrot.lane.b32.xlu0 %v144, 108
    %v1922 = vpop.permute.xlu0 %1921
    %1923 = vrot.lane.b32.xlu0 %v144, 76
    %v1924 = vpop.permute.xlu0 %1923
    %v1925 = vsel %vm150, %v1922, 0
    %v1927 = vsel %vm150, %v1924, 0
    %1929 = vmatprep.subr.mxu0 0.0
    %1930 = vmatpush1.xpose.msra.mxu0 %v1927
    %1931 = vmatprep.subr.mxu0 0.0
    %1932 = vmatpush1.xpose.msra.mxu0 0.0
    %1933 = vmatprep.subr.mxu0 0.0
    %1934 = vmatpush1.xpose.msra.mxu0 0.0
    %1935 = vmatprep.subr.mxu0 0.0
    %1936 = vmatpush1.xpose.msra.mxu0 0.0
    %1937 = vmatprep.subr.mxu0 0.0
    %1938 = vmatpush1.xpose.msra.mxu0 0.0
    %1939 = vmatprep.subr.mxu0 0.0
    %1940 = vmatpush1.xpose.msra.mxu0 0.0
    %1941 = vmatprep.subr.mxu0 0.0
    %1942 = vmatpush1.xpose.msra.mxu0 0.0
    %1943 = vmatprep.subr.mxu0 0.0
    %1944 = vmatpush1.xpose.msra.mxu0 0.0
    %1945 = vmatprep.subr.mxu0 0.0
    %1946 = vmatpush1.xpose.msra.mxu0 0.0
    %1947 = vmatprep.subr.mxu0 0.0
    %1948 = vmatpush1.xpose.msra.mxu0 0.0
    %1949 = vmatprep.subr.mxu0 0.0
    %1950 = vmatpush1.xpose.msra.mxu0 0.0
    %1951 = vmatprep.subr.mxu0 0.0
    %1952 = vmatpush1.xpose.msra.mxu0 0.0
    %1953 = vmatprep.subr.mxu0 0.0
    %1954 = vmatpush1.xpose.msra.mxu0 0.0
    %1955 = vmatprep.subr.mxu0 0.0
    %1956 = vmatpush1.xpose.msra.mxu0 0.0
    %1957 = vmatprep.subr.mxu0 0.0
    %1958 = vmatpush1.xpose.msra.mxu0 0.0
    %1959 = vmatprep.subr.mxu0 0.0
    %1960 = vmatpush1.xpose.msra.mxu0 0.0
    %1961 = vmatprep.subr.mxu0 0.0
    %1962 = vmatpush1.xpose.msra.mxu0 0.0
    %1963 = vmatprep.subr.mxu0 0.0
    %1964 = vmatpush1.xpose.msra.mxu0 0.0
    %1965 = vmatprep.subr.mxu0 0.0
    %1966 = vmatpush1.xpose.msra.mxu0 0.0
    %1967 = vmatprep.subr.mxu0 0.0
    %1968 = vmatpush1.xpose.msra.mxu0 0.0
    %1969 = vmatprep.subr.mxu0 0.0
    %1970 = vmatpush1.xpose.msra.mxu0 0.0
    %1971 = vmatprep.subr.mxu0 0.0
    %1972 = vmatpush1.xpose.msra.mxu0 0.0
    %1973 = vmatprep.subr.mxu0 0.0
    %1974 = vmatpush1.xpose.msra.mxu0 0.0
    %1975 = vmatprep.subr.mxu0 0.0
    %1976 = vmatpush1.xpose.msra.mxu0 0.0
    %1977 = vmatprep.subr.mxu0 0.0
    %1978 = vmatpush1.xpose.msra.mxu0 0.0
    %1979 = vmatprep.subr.mxu0 0.0
    %1980 = vmatpush1.xpose.msra.mxu0 0.0
    %1981 = vmatprep.subr.mxu0 0.0
    %1982 = vmatpush1.xpose.msra.mxu0 0.0
    %1983 = vmatprep.subr.mxu0 0.0
    %1984 = vmatpush1.xpose.msra.mxu0 0.0
    %1985 = vmatprep.subr.mxu0 0.0
    %1986 = vmatpush1.xpose.msra.mxu0 0.0
    %1987 = vmatprep.subr.mxu0 0.0
    %1988 = vmatpush1.xpose.msra.mxu0 0.0
    %1989 = vmatprep.subr.mxu0 0.0
    %1990 = vmatpush1.xpose.msra.mxu0 0.0
    %1991 = vmatprep.subr.mxu0 0.0
    %1992 = vmatpush1.xpose.msra.mxu0 0.0
    %1993 = vmatprep.mubr.f32.mxu0 0.0
    %1994 = vmatmul.mubr.f32.gmra.mrb[0].mxu0 %v1925
    %v1995 = vpop.f32.mrb[0].mxu0
    %v1996 = vadd.f32 0.0, %v1995
    %v1997 = vpop.f32.mrb[0].mxu0
    %1998 = vdwg.mxu0
    %v1999 = vsel %vm302, %v1918, -inf
    %2000 = vmax.xlane.f32.xlu0 %v1999
    %v2001 = vpop.xlane.xlu0 %2000
    %v2002 = vsel %vm302, %v1996, -inf
    %2003 = vmax.xlane.f32.xlu0 %v2002
    %v2004 = vpop.xlane.xlu0 %2003
    %v2005 = vsub.f32 %v1918, %v2001
    %v2006 = vsub.f32 %v1996, %v2004
    %v2007 = vmul.f32 %v2005, 1.442695
    %v2008 = vpow.pop %v2007
    %v2009 = vmul.f32 %v2006, 1.442695
    %v2010 = vpow.pop %v2009
    %v2011 = vsel %vm302, %v2008, 0.0
    %2012 = vadd.xlane.f32.xlu0 %v2011
    %v2013 = vpop.xlane.xlu0 %2012
    %v2014 = vsel %vm302, %v2010, 0.0
    %2015 = vadd.xlane.f32.xlu0 %v2014
    %v2016 = vpop.xlane.xlu0 %2015
    %2017 = vrot.lane.b32.xlu0 %v139, 44
    %v2018 = vpop.permute.xlu0 %2017
    %v2021 = vsel %vm302, %v2008, 0
    %2023 = vmatprep.subr.mxu0 0.0
    %2024 = vmatpush1.msra.mxu0 %v2018
    %2025 = vmatprep.subr.mxu0 0.0
    %2026 = vmatpush1.msra.mxu0 0.0
    %2027 = vmatprep.subr.mxu0 0.0
    %2028 = vmatpush1.msra.mxu0 0.0
    %2029 = vmatprep.subr.mxu0 0.0
    %2030 = vmatpush1.msra.mxu0 0.0
    %2031 = vmatprep.subr.mxu0 0.0
    %2032 = vmatpush1.msra.mxu0 0.0
    %2033 = vmatprep.subr.mxu0 0.0
    %2034 = vmatpush1.msra.mxu0 0.0
    %2035 = vmatprep.subr.mxu0 0.0
    %2036 = vmatpush1.msra.mxu0 0.0
    %2037 = vmatprep.subr.mxu0 0.0
    %2038 = vmatpush1.msra.mxu0 0.0
    %2039 = vmatprep.subr.mxu0 0.0
    %2040 = vmatpush1.msra.mxu0 0.0
    %2041 = vmatprep.subr.mxu0 0.0
    %2042 = vmatpush1.msra.mxu0 0.0
    %2043 = vmatprep.subr.mxu0 0.0
    %2044 = vmatpush1.msra.mxu0 0.0
    %2045 = vmatprep.subr.mxu0 0.0
    %2046 = vmatpush1.msra.mxu0 0.0
    %2047 = vmatprep.subr.mxu0 0.0
    %2048 = vmatpush1.msra.mxu0 0.0
    %2049 = vmatprep.subr.mxu0 0.0
    %2050 = vmatpush1.msra.mxu0 0.0
    %2051 = vmatprep.subr.mxu0 0.0
    %2052 = vmatpush1.msra.mxu0 0.0
    %2053 = vmatprep.subr.mxu0 0.0
    %2054 = vmatpush1.msra.mxu0 0.0
    %2055 = vmatprep.subr.mxu0 0.0
    %2056 = vmatpush1.msra.mxu0 0.0
    %2057 = vmatprep.subr.mxu0 0.0
    %2058 = vmatpush1.msra.mxu0 0.0
    %2059 = vmatprep.subr.mxu0 0.0
    %2060 = vmatpush1.msra.mxu0 0.0
    %2061 = vmatprep.subr.mxu0 0.0
    %2062 = vmatpush1.msra.mxu0 0.0
    %2063 = vmatprep.subr.mxu0 0.0
    %2064 = vmatpush1.msra.mxu0 0.0
    %2065 = vmatprep.subr.mxu0 0.0
    %2066 = vmatpush1.msra.mxu0 0.0
    %2067 = vmatprep.subr.mxu0 0.0
    %2068 = vmatpush1.msra.mxu0 0.0
    %2069 = vmatprep.subr.mxu0 0.0
    %2070 = vmatpush1.msra.mxu0 0.0
    %2071 = vmatprep.subr.mxu0 0.0
    %2072 = vmatpush1.msra.mxu0 0.0
    %2073 = vmatprep.subr.mxu0 0.0
    %2074 = vmatpush1.msra.mxu0 0.0
    %2075 = vmatprep.subr.mxu0 0.0
    %2076 = vmatpush1.msra.mxu0 0.0
    %2077 = vmatprep.subr.mxu0 0.0
    %2078 = vmatpush1.msra.mxu0 0.0
    %2079 = vmatprep.subr.mxu0 0.0
    %2080 = vmatpush1.msra.mxu0 0.0
    %2081 = vmatprep.subr.mxu0 0.0
    %2082 = vmatpush1.msra.mxu0 0.0
    %2083 = vmatprep.subr.mxu0 0.0
    %2084 = vmatpush1.msra.mxu0 0.0
    %2085 = vmatprep.subr.mxu0 0.0
    %2086 = vmatpush1.msra.mxu0 0.0
    %2087 = vmatprep.mubr.f32.mxu0 0.0
    %2088 = vmatmul.mubr.f32.gmra.mrb[0].mxu0 %v2021
    %v2089 = vpop.f32.mrb[0].mxu0
    %v2090 = vadd.f32 0.0, %v2089
    %v2091 = vpop.f32.mrb[0].mxu0
    %2092 = vdwg.mxu0
    %2093 = vrot.lane.b32.xlu0 %v144, 44
    %v2094 = vpop.permute.xlu0 %2093
    %v2097 = vsel %vm302, %v2010, 0
    %2099 = vmatprep.subr.mxu0 0.0
    %2100 = vmatpush1.msra.mxu0 %v2094
    %2101 = vmatprep.subr.mxu0 0.0
    %2102 = vmatpush1.msra.mxu0 0.0
    %2103 = vmatprep.subr.mxu0 0.0
    %2104 = vmatpush1.msra.mxu0 0.0
    %2105 = vmatprep.subr.mxu0 0.0
    %2106 = vmatpush1.msra.mxu0 0.0
    %2107 = vmatprep.subr.mxu0 0.0
    %2108 = vmatpush1.msra.mxu0 0.0
    %2109 = vmatprep.subr.mxu0 0.0
    %2110 = vmatpush1.msra.mxu0 0.0
    %2111 = vmatprep.subr.mxu0 0.0
    %2112 = vmatpush1.msra.mxu0 0.0
    %2113 = vmatprep.subr.mxu0 0.0
    %2114 = vmatpush1.msra.mxu0 0.0
    %2115 = vmatprep.subr.mxu0 0.0
    %2116 = vmatpush1.msra.mxu0 0.0
    %2117 = vmatprep.subr.mxu0 0.0
    %2118 = vmatpush1.msra.mxu0 0.0
    %2119 = vmatprep.subr.mxu0 0.0
    %2120 = vmatpush1.msra.mxu0 0.0
    %2121 = vmatprep.subr.mxu0 0.0
    %2122 = vmatpush1.msra.mxu0 0.0
    %2123 = vmatprep.subr.mxu0 0.0
    %2124 = vmatpush1.msra.mxu0 0.0
    %2125 = vmatprep.subr.mxu0 0.0
    %2126 = vmatpush1.msra.mxu0 0.0
    %2127 = vmatprep.subr.mxu0 0.0
    %2128 = vmatpush1.msra.mxu0 0.0
    %2129 = vmatprep.subr.mxu0 0.0
    %2130 = vmatpush1.msra.mxu0 0.0
    %2131 = vmatprep.subr.mxu0 0.0
    %2132 = vmatpush1.msra.mxu0 0.0
    %2133 = vmatprep.subr.mxu0 0.0
    %2134 = vmatpush1.msra.mxu0 0.0
    %2135 = vmatprep.subr.mxu0 0.0
    %2136 = vmatpush1.msra.mxu0 0.0
    %2137 = vmatprep.subr.mxu0 0.0
    %2138 = vmatpush1.msra.mxu0 0.0
    %2139 = vmatprep.subr.mxu0 0.0
    %2140 = vmatpush1.msra.mxu0 0.0
    %2141 = vmatprep.subr.mxu0 0.0
    %2142 = vmatpush1.msra.mxu0 0.0
    %2143 = vmatprep.subr.mxu0 0.0
    %2144 = vmatpush1.msra.mxu0 0.0
    %2145 = vmatprep.subr.mxu0 0.0
    %2146 = vmatpush1.msra.mxu0 0.0
    %2147 = vmatprep.subr.mxu0 0.0
    %2148 = vmatpush1.msra.mxu0 0.0
    %2149 = vmatprep.subr.mxu0 0.0
    %2150 = vmatpush1.msra.mxu0 0.0
    %2151 = vmatprep.subr.mxu0 0.0
    %2152 = vmatpush1.msra.mxu0 0.0
    %2153 = vmatprep.subr.mxu0 0.0
    %2154 = vmatpush1.msra.mxu0 0.0
    %2155 = vmatprep.subr.mxu0 0.0
    %2156 = vmatpush1.msra.mxu0 0.0
    %2157 = vmatprep.subr.mxu0 0.0
    %2158 = vmatpush1.msra.mxu0 0.0
    %2159 = vmatprep.subr.mxu0 0.0
    %2160 = vmatpush1.msra.mxu0 0.0
    %2161 = vmatprep.subr.mxu0 0.0
    %2162 = vmatpush1.msra.mxu0 0.0
    %2163 = vmatprep.mubr.f32.mxu0 0.0
    %2164 = vmatmul.mubr.f32.gmra.mrb[0].mxu0 %v2097
    %v2165 = vpop.f32.mrb[0].mxu0
    %v2166 = vadd.f32 0.0, %v2165
    %v2167 = vpop.f32.mrb[0].mxu0
    %2168 = vdwg.mxu0
    %v2169 = vrcp.pop %v2013
    %v2170 = vrcp.pop %v2016
    %v2171 = vmul.f32 %v2090, %v2169
    %v2172 = vmul.f32 %v2166, %v2170
    %2175 = vrot.lane.b32.xlu0 %v2171, 20
    %v2176 = vpop.permute.xlu0 %2175
    %2177 = vrot.lane.b32.xlu0 %v2172, 20
    %v2178 = vpop.permute.xlu0 %2177
    %vm2181 = vcmask 195744
    %2182 = vst.msk [vmem:[#allocation2] sm:$0xff] %vm2181, %v2176
    %2183 = vst.msk [vmem:[#allocation2 + $0x8] sm:$0xff] %vm2181, %v2178
    %2184 = vrot.lane.b32.xlu0 %v139, 104
    %v2185 = vpop.permute.xlu0 %2184
    %2186 = vrot.lane.b32.xlu0 %v139, 72
    %v2187 = vpop.permute.xlu0 %2186
    %v2188 = vsel %vm150, %v2185, 0
    %v2190 = vsel %vm150, %v2187, 0
    %2192 = vmatprep.subr.mxu0 0.0
    %2193 = vmatpush1.xpose.msra.mxu0 %v2190
    %2194 = vmatprep.subr.mxu0 0.0
    %2195 = vmatpush1.xpose.msra.mxu0 0.0
    %2196 = vmatprep.subr.mxu0 0.0
    %2197 = vmatpush1.xpose.msra.mxu0 0.0
    %2198 = vmatprep.subr.mxu0 0.0
    %2199 = vmatpush1.xpose.msra.mxu0 0.0
    %2200 = vmatprep.subr.mxu0 0.0
    %2201 = vmatpush1.xpose.msra.mxu0 0.0
    %2202 = vmatprep.subr.mxu0 0.0
    %2203 = vmatpush1.xpose.msra.mxu0 0.0
    %2204 = vmatprep.subr.mxu0 0.0
    %2205 = vmatpush1.xpose.msra.mxu0 0.0
    %2206 = vmatprep.subr.mxu0 0.0
    %2207 = vmatpush1.xpose.msra.mxu0 0.0
    %2208 = vmatprep.subr.mxu0 0.0
    %2209 = vmatpush1.xpose.msra.mxu0 0.0
    %2210 = vmatprep.subr.mxu0 0.0
    %2211 = vmatpush1.xpose.msra.mxu0 0.0
    %2212 = vmatprep.subr.mxu0 0.0
    %2213 = vmatpush1.xpose.msra.mxu0 0.0
    %2214 = vmatprep.subr.mxu0 0.0
    %2215 = vmatpush1.xpose.msra.mxu0 0.0
    %2216 = vmatprep.subr.mxu0 0.0
    %2217 = vmatpush1.xpose.msra.mxu0 0.0
    %2218 = vmatprep.subr.mxu0 0.0
    %2219 = vmatpush1.xpose.msra.mxu0 0.0
    %2220 = vmatprep.subr.mxu0 0.0
    %2221 = vmatpush1.xpose.msra.mxu0 0.0
    %2222 = vmatprep.subr.mxu0 0.0
    %2223 = vmatpush1.xpose.msra.mxu0 0.0
    %2224 = vmatprep.subr.mxu0 0.0
    %2225 = vmatpush1.xpose.msra.mxu0 0.0
    %2226 = vmatprep.subr.mxu0 0.0
    %2227 = vmatpush1.xpose.msra.mxu0 0.0
    %2228 = vmatprep.subr.mxu0 0.0
    %2229 = vmatpush1.xpose.msra.mxu0 0.0
    %2230 = vmatprep.subr.mxu0 0.0
    %2231 = vmatpush1.xpose.msra.mxu0 0.0
    %2232 = vmatprep.subr.mxu0 0.0
    %2233 = vmatpush1.xpose.msra.mxu0 0.0
    %2234 = vmatprep.subr.mxu0 0.0
    %2235 = vmatpush1.xpose.msra.mxu0 0.0
    %2236 = vmatprep.subr.mxu0 0.0
    %2237 = vmatpush1.xpose.msra.mxu0 0.0
    %2238 = vmatprep.subr.mxu0 0.0
    %2239 = vmatpush1.xpose.msra.mxu0 0.0
    %2240 = vmatprep.subr.mxu0 0.0
    %2241 = vmatpush1.xpose.msra.mxu0 0.0
    %2242 = vmatprep.subr.mxu0 0.0
    %2243 = vmatpush1.xpose.msra.mxu0 0.0
    %2244 = vmatprep.subr.mxu0 0.0
    %2245 = vmatpush1.xpose.msra.mxu0 0.0
    %2246 = vmatprep.subr.mxu0 0.0
    %2247 = vmatpush1.xpose.msra.mxu0 0.0
    %2248 = vmatprep.subr.mxu0 0.0
    %2249 = vmatpush1.xpose.msra.mxu0 0.0
    %2250 = vmatprep.subr.mxu0 0.0
    %2251 = vmatpush1.xpose.msra.mxu0 0.0
    %2252 = vmatprep.subr.mxu0 0.0
    %2253 = vmatpush1.xpose.msra.mxu0 0.0
    %2254 = vmatprep.subr.mxu0 0.0
    %2255 = vmatpush1.xpose.msra.mxu0 0.0
    %2256 = vmatprep.mubr.f32.mxu0 0.0
    %2257 = vmatmul.mubr.f32.gmra.mrb[0].mxu0 %v2188
    %v2258 = vpop.f32.mrb[0].mxu0
    %v2259 = vadd.f32 0.0, %v2258
    %v2260 = vpop.f32.mrb[0].mxu0
    %2261 = vdwg.mxu0
    %2262 = vrot.lane.b32.xlu0 %v144, 104
    %v2263 = vpop.permute.xlu0 %2262
    %2264 = vrot.lane.b32.xlu0 %v144, 72
    %v2265 = vpop.permute.xlu0 %2264
    %v2266 = vsel %vm150, %v2263, 0
    %v2268 = vsel %vm150, %v2265, 0
    %2270 = vmatprep.subr.mxu0 0.0
    %2271 = vmatpush1.xpose.msra.mxu0 %v2268
    %2272 = vmatprep.subr.mxu0 0.0
    %2273 = vmatpush1.xpose.msra.mxu0 0.0
    %2274 = vmatprep.subr.mxu0 0.0
    %2275 = vmatpush1.xpose.msra.mxu0 0.0
    %2276 = vmatprep.subr.mxu0 0.0
    %2277 = vmatpush1.xpose.msra.mxu0 0.0
    %2278 = vmatprep.subr.mxu0 0.0
    %2279 = vmatpush1.xpose.msra.mxu0 0.0
    %2280 = vmatprep.subr.mxu0 0.0
    %2281 = vmatpush1.xpose.msra.mxu0 0.0
    %2282 = vmatprep.subr.mxu0 0.0
    %2283 = vmatpush1.xpose.msra.mxu0 0.0
    %2284 = vmatprep.subr.mxu0 0.0
    %2285 = vmatpush1.xpose.msra.mxu0 0.0
    %2286 = vmatprep.subr.mxu0 0.0
    %2287 = vmatpush1.xpose.msra.mxu0 0.0
    %2288 = vmatprep.subr.mxu0 0.0
    %2289 = vmatpush1.xpose.msra.mxu0 0.0
    %2290 = vmatprep.subr.mxu0 0.0
    %2291 = vmatpush1.xpose.msra.mxu0 0.0
    %2292 = vmatprep.subr.mxu0 0.0
    %2293 = vmatpush1.xpose.msra.mxu0 0.0
    %2294 = vmatprep.subr.mxu0 0.0
    %2295 = vmatpush1.xpose.msra.mxu0 0.0
    %2296 = vmatprep.subr.mxu0 0.0
    %2297 = vmatpush1.xpose.msra.mxu0 0.0
    %2298 = vmatprep.subr.mxu0 0.0
    %2299 = vmatpush1.xpose.msra.mxu0 0.0
    %2300 = vmatprep.subr.mxu0 0.0
    %2301 = vmatpush1.xpose.msra.mxu0 0.0
    %2302 = vmatprep.subr.mxu0 0.0
    %2303 = vmatpush1.xpose.msra.mxu0 0.0
    %2304 = vmatprep.subr.mxu0 0.0
    %2305 = vmatpush1.xpose.msra.mxu0 0.0
    %2306 = vmatprep.subr.mxu0 0.0
    %2307 = vmatpush1.xpose.msra.mxu0 0.0
    %2308 = vmatprep.subr.mxu0 0.0
    %2309 = vmatpush1.xpose.msra.mxu0 0.0
    %2310 = vmatprep.subr.mxu0 0.0
    %2311 = vmatpush1.xpose.msra.mxu0 0.0
    %2312 = vmatprep.subr.mxu0 0.0
    %2313 = vmatpush1.xpose.msra.mxu0 0.0
    %2314 = vmatprep.subr.mxu0 0.0
    %2315 = vmatpush1.xpose.msra.mxu0 0.0
    %2316 = vmatprep.subr.mxu0 0.0
    %2317 = vmatpush1.xpose.msra.mxu0 0.0
    %2318 = vmatprep.subr.mxu0 0.0
    %2319 = vmatpush1.xpose.msra.mxu0 0.0
    %2320 = vmatprep.subr.mxu0 0.0
    %2321 = vmatpush1.xpose.msra.mxu0 0.0
    %2322 = vmatprep.subr.mxu0 0.0
    %2323 = vmatpush1.xpose.msra.mxu0 0.0
    %2324 = vmatprep.subr.mxu0 0.0
    %2325 = vmatpush1.xpose.msra.mxu0 0.0
    %2326 = vmatprep.subr.mxu0 0.0
    %2327 = vmatpush1.xpose.msra.mxu0 0.0
    %2328 = vmatprep.subr.mxu0 0.0
    %2329 = vmatpush1.xpose.msra.mxu0 0.0
    %2330 = vmatprep.subr.mxu0 0.0
    %2331 = vmatpush1.xpose.msra.mxu0 0.0
    %2332 = vmatprep.subr.mxu0 0.0
    %2333 = vmatpush1.xpose.msra.mxu0 0.0
    %2334 = vmatprep.mubr.f32.mxu0 0.0
    %2335 = vmatmul.mubr.f32.gmra.mrb[0].mxu0 %v2266
    %v2336 = vpop.f32.mrb[0].mxu0
    %v2337 = vadd.f32 0.0, %v2336
    %v2338 = vpop.f32.mrb[0].mxu0
    %2339 = vdwg.mxu0
    %v2340 = vsel %vm302, %v2259, -inf
    %2341 = vmax.xlane.f32.xlu0 %v2340
    %v2342 = vpop.xlane.xlu0 %2341
    %v2343 = vsel %vm302, %v2337, -inf
    %2344 = vmax.xlane.f32.xlu0 %v2343
    %v2345 = vpop.xlane.xlu0 %2344
    %v2346 = vsub.f32 %v2259, %v2342
    %v2347 = vsub.f32 %v2337, %v2345
    %v2348 = vmul.f32 %v2346, 1.442695
    %v2349 = vpow.pop %v2348
    %v2350 = vmul.f32 %v2347, 1.442695
    %v2351 = vpow.pop %v2350
    %v2352 = vsel %vm302, %v2349, 0.0
    %2353 = vadd.xlane.f32.xlu0 %v2352
    %v2354 = vpop.xlane.xlu0 %2353
    %v2355 = vsel %vm302, %v2351, 0.0
    %2356 = vadd.xlane.f32.xlu0 %v2355
    %v2357 = vpop.xlane.xlu0 %2356
    %2358 = vrot.lane.b32.xlu0 %v139, 40
    %v2359 = vpop.permute.xlu0 %2358
    %v2362 = vsel %vm302, %v2349, 0
    %2364 = vmatprep.subr.mxu0 0.0
    %2365 = vmatpush1.msra.mxu0 %v2359
    %2366 = vmatprep.subr.mxu0 0.0
    %2367 = vmatpush1.msra.mxu0 0.0
    %2368 = vmatprep.subr.mxu0 0.0
    %2369 = vmatpush1.msra.mxu0 0.0
    %2370 = vmatprep.subr.mxu0 0.0
    %2371 = vmatpush1.msra.mxu0 0.0
    %2372 = vmatprep.subr.mxu0 0.0
    %2373 = vmatpush1.msra.mxu0 0.0
    %2374 = vmatprep.subr.mxu0 0.0
    %2375 = vmatpush1.msra.mxu0 0.0
    %2376 = vmatprep.subr.mxu0 0.0
    %2377 = vmatpush1.msra.mxu0 0.0
    %2378 = vmatprep.subr.mxu0 0.0
    %2379 = vmatpush1.msra.mxu0 0.0
    %2380 = vmatprep.subr.mxu0 0.0
    %2381 = vmatpush1.msra.mxu0 0.0
    %2382 = vmatprep.subr.mxu0 0.0
    %2383 = vmatpush1.msra.mxu0 0.0
    %2384 = vmatprep.subr.mxu0 0.0
    %2385 = vmatpush1.msra.mxu0 0.0
    %2386 = vmatprep.subr.mxu0 0.0
    %2387 = vmatpush1.msra.mxu0 0.0
    %2388 = vmatprep.subr.mxu0 0.0
    %2389 = vmatpush1.msra.mxu0 0.0
    %2390 = vmatprep.subr.mxu0 0.0
    %2391 = vmatpush1.msra.mxu0 0.0
    %2392 = vmatprep.subr.mxu0 0.0
    %2393 = vmatpush1.msra.mxu0 0.0
    %2394 = vmatprep.subr.mxu0 0.0
    %2395 = vmatpush1.msra.mxu0 0.0
    %2396 = vmatprep.subr.mxu0 0.0
    %2397 = vmatpush1.msra.mxu0 0.0
    %2398 = vmatprep.subr.mxu0 0.0
    %2399 = vmatpush1.msra.mxu0 0.0
    %2400 = vmatprep.subr.mxu0 0.0
    %2401 = vmatpush1.msra.mxu0 0.0
    %2402 = vmatprep.subr.mxu0 0.0
    %2403 = vmatpush1.msra.mxu0 0.0
    %2404 = vmatprep.subr.mxu0 0.0
    %2405 = vmatpush1.msra.mxu0 0.0
    %2406 = vmatprep.subr.mxu0 0.0
    %2407 = vmatpush1.msra.mxu0 0.0
    %2408 = vmatprep.subr.mxu0 0.0
    %2409 = vmatpush1.msra.mxu0 0.0
    %2410 = vmatprep.subr.mxu0 0.0
    %2411 = vmatpush1.msra.mxu0 0.0
    %2412 = vmatprep.subr.mxu0 0.0
    %2413 = vmatpush1.msra.mxu0 0.0
    %2414 = vmatprep.subr.mxu0 0.0
    %2415 = vmatpush1.msra.mxu0 0.0
    %2416 = vmatprep.subr.mxu0 0.0
    %2417 = vmatpush1.msra.mxu0 0.0
    %2418 = vmatprep.subr.mxu0 0.0
    %2419 = vmatpush1.msra.mxu0 0.0
    %2420 = vmatprep.subr.mxu0 0.0
    %2421 = vmatpush1.msra.mxu0 0.0
    %2422 = vmatprep.subr.mxu0 0.0
    %2423 = vmatpush1.msra.mxu0 0.0
    %2424 = vmatprep.subr.mxu0 0.0
    %2425 = vmatpush1.msra.mxu0 0.0
    %2426 = vmatprep.subr.mxu0 0.0
    %2427 = vmatpush1.msra.mxu0 0.0
    %2428 = vmatprep.mubr.f32.mxu0 0.0
    %2429 = vmatmul.mubr.f32.gmra.mrb[0].mxu0 %v2362
    %v2430 = vpop.f32.mrb[0].mxu0
    %v2431 = vadd.f32 0.0, %v2430
    %v2432 = vpop.f32.mrb[0].mxu0
    %2433 = vdwg.mxu0
    %2434 = vrot.lane.b32.xlu0 %v144, 40
    %v2435 = vpop.permute.xlu0 %2434
    %v2438 = vsel %vm302, %v2351, 0
    %2440 = vmatprep.subr.mxu0 0.0
    %2441 = vmatpush1.msra.mxu0 %v2435
    %2442 = vmatprep.subr.mxu0 0.0
    %2443 = vmatpush1.msra.mxu0 0.0
    %2444 = vmatprep.subr.mxu0 0.0
    %2445 = vmatpush1.msra.mxu0 0.0
    %2446 = vmatprep.subr.mxu0 0.0
    %2447 = vmatpush1.msra.mxu0 0.0
    %2448 = vmatprep.subr.mxu0 0.0
    %2449 = vmatpush1.msra.mxu0 0.0
    %2450 = vmatprep.subr.mxu0 0.0
    %2451 = vmatpush1.msra.mxu0 0.0
    %2452 = vmatprep.subr.mxu0 0.0
    %2453 = vmatpush1.msra.mxu0 0.0
    %2454 = vmatprep.subr.mxu0 0.0
    %2455 = vmatpush1.msra.mxu0 0.0
    %2456 = vmatprep.subr.mxu0 0.0
    %2457 = vmatpush1.msra.mxu0 0.0
    %2458 = vmatprep.subr.mxu0 0.0
    %2459 = vmatpush1.msra.mxu0 0.0
    %2460 = vmatprep.subr.mxu0 0.0
    %2461 = vmatpush1.msra.mxu0 0.0
    %2462 = vmatprep.subr.mxu0 0.0
    %2463 = vmatpush1.msra.mxu0 0.0
    %2464 = vmatprep.subr.mxu0 0.0
    %2465 = vmatpush1.msra.mxu0 0.0
    %2466 = vmatprep.subr.mxu0 0.0
    %2467 = vmatpush1.msra.mxu0 0.0
    %2468 = vmatprep.subr.mxu0 0.0
    %2469 = vmatpush1.msra.mxu0 0.0
    %2470 = vmatprep.subr.mxu0 0.0
    %2471 = vmatpush1.msra.mxu0 0.0
    %2472 = vmatprep.subr.mxu0 0.0
    %2473 = vmatpush1.msra.mxu0 0.0
    %2474 = vmatprep.subr.mxu0 0.0
    %2475 = vmatpush1.msra.mxu0 0.0
    %2476 = vmatprep.subr.mxu0 0.0
    %2477 = vmatpush1.msra.mxu0 0.0
    %2478 = vmatprep.subr.mxu0 0.0
    %2479 = vmatpush1.msra.mxu0 0.0
    %2480 = vmatprep.subr.mxu0 0.0
    %2481 = vmatpush1.msra.mxu0 0.0
    %2482 = vmatprep.subr.mxu0 0.0
    %2483 = vmatpush1.msra.mxu0 0.0
    %2484 = vmatprep.subr.mxu0 0.0
    %2485 = vmatpush1.msra.mxu0 0.0
    %2486 = vmatprep.subr.mxu0 0.0
    %2487 = vmatpush1.msra.mxu0 0.0
    %2488 = vmatprep.subr.mxu0 0.0
    %2489 = vmatpush1.msra.mxu0 0.0
    %2490 = vmatprep.subr.mxu0 0.0
    %2491 = vmatpush1.msra.mxu0 0.0
    %2492 = vmatprep.subr.mxu0 0.0
    %2493 = vmatpush1.msra.mxu0 0.0
    %2494 = vmatprep.subr.mxu0 0.0
    %2495 = vmatpush1.msra.mxu0 0.0
    %2496 = vmatprep.subr.mxu0 0.0
    %2497 = vmatpush1.msra.mxu0 0.0
    %2498 = vmatprep.subr.mxu0 0.0
    %2499 = vmatpush1.msra.mxu0 0.0
    %2500 = vmatprep.subr.mxu0 0.0
    %2501 = vmatpush1.msra.mxu0 0.0
    %2502 = vmatprep.subr.mxu0 0.0
    %2503 = vmatpush1.msra.mxu0 0.0
    %2504 = vmatprep.mubr.f32.mxu0 0.0
    %2505 = vmatmul.mubr.f32.gmra.mrb[0].mxu0 %v2438
    %v2506 = vpop.f32.mrb[0].mxu0
    %v2507 = vadd.f32 0.0, %v2506
    %v2508 = vpop.f32.mrb[0].mxu0
    %2509 = vdwg.mxu0
    %v2510 = vrcp.pop %v2354
    %v2511 = vrcp.pop %v2357
    %v2512 = vmul.f32 %v2431, %v2510
    %v2513 = vmul.f32 %v2507, %v2511
    %2516 = vrot.lane.b32.xlu0 %v2512, 24
    %v2517 = vpop.permute.xlu0 %2516
    %2518 = vrot.lane.b32.xlu0 %v2513, 24
    %v2519 = vpop.permute.xlu0 %2518
    %vm2522 = vcmask 228544
    %2523 = vst.msk [vmem:[#allocation2] sm:$0xff] %vm2522, %v2517
    %2524 = vst.msk [vmem:[#allocation2 + $0x8] sm:$0xff] %vm2522, %v2519
    %2525 = vrot.lane.b32.xlu0 %v139, 100
    %v2526 = vpop.permute.xlu0 %2525
    %2527 = vrot.lane.b32.xlu0 %v139, 68
    %v2528 = vpop.permute.xlu0 %2527
    %v2529 = vsel %vm150, %v2526, 0
    %v2531 = vsel %vm150, %v2528, 0
    %2533 = vmatprep.subr.mxu0 0.0
    %2534 = vmatpush1.xpose.msra.mxu0 %v2531
    %2535 = vmatprep.subr.mxu0 0.0
    %2536 = vmatpush1.xpose.msra.mxu0 0.0
    %2537 = vmatprep.subr.mxu0 0.0
    %2538 = vmatpush1.xpose.msra.mxu0 0.0
    %2539 = vmatprep.subr.mxu0 0.0
    %2540 = vmatpush1.xpose.msra.mxu0 0.0
    %2541 = vmatprep.subr.mxu0 0.0
    %2542 = vmatpush1.xpose.msra.mxu0 0.0
    %2543 = vmatprep.subr.mxu0 0.0
    %2544 = vmatpush1.xpose.msra.mxu0 0.0
    %2545 = vmatprep.subr.mxu0 0.0
    %2546 = vmatpush1.xpose.msra.mxu0 0.0
    %2547 = vmatprep.subr.mxu0 0.0
    %2548 = vmatpush1.xpose.msra.mxu0 0.0
    %2549 = vmatprep.subr.mxu0 0.0
    %2550 = vmatpush1.xpose.msra.mxu0 0.0
    %2551 = vmatprep.subr.mxu0 0.0
    %2552 = vmatpush1.xpose.msra.mxu0 0.0
    %2553 = vmatprep.subr.mxu0 0.0
    %2554 = vmatpush1.xpose.msra.mxu0 0.0
    %2555 = vmatprep.subr.mxu0 0.0
    %2556 = vmatpush1.xpose.msra.mxu0 0.0
    %2557 = vmatprep.subr.mxu0 0.0
    %2558 = vmatpush1.xpose.msra.mxu0 0.0
    %2559 = vmatprep.subr.mxu0 0.0
    %2560 = vmatpush1.xpose.msra.mxu0 0.0
    %2561 = vmatprep.subr.mxu0 0.0
    %2562 = vmatpush1.xpose.msra.mxu0 0.0
    %2563 = vmatprep.subr.mxu0 0.0
    %2564 = vmatpush1.xpose.msra.mxu0 0.0
    %2565 = vmatprep.subr.mxu0 0.0
    %2566 = vmatpush1.xpose.msra.mxu0 0.0
    %2567 = vmatprep.subr.mxu0 0.0
    %2568 = vmatpush1.xpose.msra.mxu0 0.0
    %2569 = vmatprep.subr.mxu0 0.0
    %2570 = vmatpush1.xpose.msra.mxu0 0.0
    %2571 = vmatprep.subr.mxu0 0.0
    %2572 = vmatpush1.xpose.msra.mxu0 0.0
    %2573 = vmatprep.subr.mxu0 0.0
    %2574 = vmatpush1.xpose.msra.mxu0 0.0
    %2575 = vmatprep.subr.mxu0 0.0
    %2576 = vmatpush1.xpose.msra.mxu0 0.0
    %2577 = vmatprep.subr.mxu0 0.0
    %2578 = vmatpush1.xpose.msra.mxu0 0.0
    %2579 = vmatprep.subr.mxu0 0.0
    %2580 = vmatpush1.xpose.msra.mxu0 0.0
    %2581 = vmatprep.subr.mxu0 0.0
    %2582 = vmatpush1.xpose.msra.mxu0 0.0
    %2583 = vmatprep.subr.mxu0 0.0
    %2584 = vmatpush1.xpose.msra.mxu0 0.0
    %2585 = vmatprep.subr.mxu0 0.0
    %2586 = vmatpush1.xpose.msra.mxu0 0.0
    %2587 = vmatprep.subr.mxu0 0.0
    %2588 = vmatpush1.xpose.msra.mxu0 0.0
    %2589 = vmatprep.subr.mxu0 0.0
    %2590 = vmatpush1.xpose.msra.mxu0 0.0
    %2591 = vmatprep.subr.mxu0 0.0
    %2592 = vmatpush1.xpose.msra.mxu0 0.0
    %2593 = vmatprep.subr.mxu0 0.0
    %2594 = vmatpush1.xpose.msra.mxu0 0.0
    %2595 = vmatprep.subr.mxu0 0.0
    %2596 = vmatpush1.xpose.msra.mxu0 0.0
    %2597 = vmatprep.mubr.f32.mxu0 0.0
    %2598 = vmatmul.mubr.f32.gmra.mrb[0].mxu0 %v2529
    %v2599 = vpop.f32.mrb[0].mxu0
    %v2600 = vadd.f32 0.0, %v2599
    %v2601 = vpop.f32.mrb[0].mxu0
    %2602 = vdwg.mxu0
    %2603 = vrot.lane.b32.xlu0 %v144, 100
    %v2604 = vpop.permute.xlu0 %2603
    %2605 = vrot.lane.b32.xlu0 %v144, 68
    %v2606 = vpop.permute.xlu0 %2605
    %v2607 = vsel %vm150, %v2604, 0
    %v2609 = vsel %vm150, %v2606, 0
    %2611 = vmatprep.subr.mxu0 0.0
    %2612 = vmatpush1.xpose.msra.mxu0 %v2609
    %2613 = vmatprep.subr.mxu0 0.0
    %2614 = vmatpush1.xpose.msra.mxu0 0.0
    %2615 = vmatprep.subr.mxu0 0.0
    %2616 = vmatpush1.xpose.msra.mxu0 0.0
    %2617 = vmatprep.subr.mxu0 0.0
    %2618 = vmatpush1.xpose.msra.mxu0 0.0
    %2619 = vmatprep.subr.mxu0 0.0
    %2620 = vmatpush1.xpose.msra.mxu0 0.0
    %2621 = vmatprep.subr.mxu0 0.0
    %2622 = vmatpush1.xpose.msra.mxu0 0.0
    %2623 = vmatprep.subr.mxu0 0.0
    %2624 = vmatpush1.xpose.msra.mxu0 0.0
    %2625 = vmatprep.subr.mxu0 0.0
    %2626 = vmatpush1.xpose.msra.mxu0 0.0
    %2627 = vmatprep.subr.mxu0 0.0
    %2628 = vmatpush1.xpose.msra.mxu0 0.0
    %2629 = vmatprep.subr.mxu0 0.0
    %2630 = vmatpush1.xpose.msra.mxu0 0.0
    %2631 = vmatprep.subr.mxu0 0.0
    %2632 = vmatpush1.xpose.msra.mxu0 0.0
    %2633 = vmatprep.subr.mxu0 0.0
    %2634 = vmatpush1.xpose.msra.mxu0 0.0
    %2635 = vmatprep.subr.mxu0 0.0
    %2636 = vmatpush1.xpose.msra.mxu0 0.0
    %2637 = vmatprep.subr.mxu0 0.0
    %2638 = vmatpush1.xpose.msra.mxu0 0.0
    %2639 = vmatprep.subr.mxu0 0.0
    %2640 = vmatpush1.xpose.msra.mxu0 0.0
    %2641 = vmatprep.subr.mxu0 0.0
    %2642 = vmatpush1.xpose.msra.mxu0 0.0
    %2643 = vmatprep.subr.mxu0 0.0
    %2644 = vmatpush1.xpose.msra.mxu0 0.0
    %2645 = vmatprep.subr.mxu0 0.0
    %2646 = vmatpush1.xpose.msra.mxu0 0.0
    %2647 = vmatprep.subr.mxu0 0.0
    %2648 = vmatpush1.xpose.msra.mxu0 0.0
    %2649 = vmatprep.subr.mxu0 0.0
    %2650 = vmatpush1.xpose.msra.mxu0 0.0
    %2651 = vmatprep.subr.mxu0 0.0
    %2652 = vmatpush1.xpose.msra.mxu0 0.0
    %2653 = vmatprep.subr.mxu0 0.0
    %2654 = vmatpush1.xpose.msra.mxu0 0.0
    %2655 = vmatprep.subr.mxu0 0.0
    %2656 = vmatpush1.xpose.msra.mxu0 0.0
    %2657 = vmatprep.subr.mxu0 0.0
    %2658 = vmatpush1.xpose.msra.mxu0 0.0
    %2659 = vmatprep.subr.mxu0 0.0
    %2660 = vmatpush1.xpose.msra.mxu0 0.0
    %2661 = vmatprep.subr.mxu0 0.0
    %2662 = vmatpush1.xpose.msra.mxu0 0.0
    %2663 = vmatprep.subr.mxu0 0.0
    %2664 = vmatpush1.xpose.msra.mxu0 0.0
    %2665 = vmatprep.subr.mxu0 0.0
    %2666 = vmatpush1.xpose.msra.mxu0 0.0
    %2667 = vmatprep.subr.mxu0 0.0
    %2668 = vmatpush1.xpose.msra.mxu0 0.0
    %2669 = vmatprep.subr.mxu0 0.0
    %2670 = vmatpush1.xpose.msra.mxu0 0.0
    %2671 = vmatprep.subr.mxu0 0.0
    %2672 = vmatpush1.xpose.msra.mxu0 0.0
    %2673 = vmatprep.subr.mxu0 0.0
    %2674 = vmatpush1.xpose.msra.mxu0 0.0
    %2675 = vmatprep.mubr.f32.mxu0 0.0
    %2676 = vmatmul.mubr.f32.gmra.mrb[0].mxu0 %v2607
    %v2677 = vpop.f32.mrb[0].mxu0
    %v2678 = vadd.f32 0.0, %v2677
    %v2679 = vpop.f32.mrb[0].mxu0
    %2680 = vdwg.mxu0
    %v2681 = vsel %vm302, %v2600, -inf
    %2682 = vmax.xlane.f32.xlu0 %v2681
    %v2683 = vpop.xlane.xlu0 %2682
    %v2684 = vsel %vm302, %v2678, -inf
    %2685 = vmax.xlane.f32.xlu0 %v2684
    %v2686 = vpop.xlane.xlu0 %2685
    %v2687 = vsub.f32 %v2600, %v2683
    %v2688 = vsub.f32 %v2678, %v2686
    %v2689 = vmul.f32 %v2687, 1.442695
    %v2690 = vpow.pop %v2689
    %v2691 = vmul.f32 %v2688, 1.442695
    %v2692 = vpow.pop %v2691
    %v2693 = vsel %vm302, %v2690, 0.0
    %2694 = vadd.xlane.f32.xlu0 %v2693
    %v2695 = vpop.xlane.xlu0 %2694
    %v2696 = vsel %vm302, %v2692, 0.0
    %2697 = vadd.xlane.f32.xlu0 %v2696
    %v2698 = vpop.xlane.xlu0 %2697
    %2699 = vrot.lane.b32.xlu0 %v139, 36
    %v2700 = vpop.permute.xlu0 %2699
    %v2703 = vsel %vm302, %v2690, 0
    %2705 = vmatprep.subr.mxu0 0.0
    %2706 = vmatpush1.msra.mxu0 %v2700
    %2707 = vmatprep.subr.mxu0 0.0
    %2708 = vmatpush1.msra.mxu0 0.0
    %2709 = vmatprep.subr.mxu0 0.0
    %2710 = vmatpush1.msra.mxu0 0.0
    %2711 = vmatprep.subr.mxu0 0.0
    %2712 = vmatpush1.msra.mxu0 0.0
    %2713 = vmatprep.subr.mxu0 0.0
    %2714 = vmatpush1.msra.mxu0 0.0
    %2715 = vmatprep.subr.mxu0 0.0
    %2716 = vmatpush1.msra.mxu0 0.0
    %2717 = vmatprep.subr.mxu0 0.0
    %2718 = vmatpush1.msra.mxu0 0.0
    %2719 = vmatprep.subr.mxu0 0.0
    %2720 = vmatpush1.msra.mxu0 0.0
    %2721 = vmatprep.subr.mxu0 0.0
    %2722 = vmatpush1.msra.mxu0 0.0
    %2723 = vmatprep.subr.mxu0 0.0
    %2724 = vmatpush1.msra.mxu0 0.0
    %2725 = vmatprep.subr.mxu0 0.0
    %2726 = vmatpush1.msra.mxu0 0.0
    %2727 = vmatprep.subr.mxu0 0.0
    %2728 = vmatpush1.msra.mxu0 0.0
    %2729 = vmatprep.subr.mxu0 0.0
    %2730 = vmatpush1.msra.mxu0 0.0
    %2731 = vmatprep.subr.mxu0 0.0
    %2732 = vmatpush1.msra.mxu0 0.0
    %2733 = vmatprep.subr.mxu0 0.0
    %2734 = vmatpush1.msra.mxu0 0.0
    %2735 = vmatprep.subr.mxu0 0.0
    %2736 = vmatpush1.msra.mxu0 0.0
    %2737 = vmatprep.subr.mxu0 0.0
    %2738 = vmatpush1.msra.mxu0 0.0
    %2739 = vmatprep.subr.mxu0 0.0
    %2740 = vmatpush1.msra.mxu0 0.0
    %2741 = vmatprep.subr.mxu0 0.0
    %2742 = vmatpush1.msra.mxu0 0.0
    %2743 = vmatprep.subr.mxu0 0.0
    %2744 = vmatpush1.msra.mxu0 0.0
    %2745 = vmatprep.subr.mxu0 0.0
    %2746 = vmatpush1.msra.mxu0 0.0
    %2747 = vmatprep.subr.mxu0 0.0
    %2748 = vmatpush1.msra.mxu0 0.0
    %2749 = vmatprep.subr.mxu0 0.0
    %2750 = vmatpush1.msra.mxu0 0.0
    %2751 = vmatprep.subr.mxu0 0.0
    %2752 = vmatpush1.msra.mxu0 0.0
    %2753 = vmatprep.subr.mxu0 0.0
    %2754 = vmatpush1.msra.mxu0 0.0
    %2755 = vmatprep.subr.mxu0 0.0
    %2756 = vmatpush1.msra.mxu0 0.0
    %2757 = vmatprep.subr.mxu0 0.0
    %2758 = vmatpush1.msra.mxu0 0.0
    %2759 = vmatprep.subr.mxu0 0.0
    %2760 = vmatpush1.msra.mxu0 0.0
    %2761 = vmatprep.subr.mxu0 0.0
    %2762 = vmatpush1.msra.mxu0 0.0
    %2763 = vmatprep.subr.mxu0 0.0
    %2764 = vmatpush1.msra.mxu0 0.0
    %2765 = vmatprep.subr.mxu0 0.0
    %2766 = vmatpush1.msra.mxu0 0.0
    %2767 = vmatprep.subr.mxu0 0.0
    %2768 = vmatpush1.msra.mxu0 0.0
    %2769 = vmatprep.mubr.f32.mxu0 0.0
    %2770 = vmatmul.mubr.f32.gmra.mrb[0].mxu0 %v2703
    %v2771 = vpop.f32.mrb[0].mxu0
    %v2772 = vadd.f32 0.0, %v2771
    %v2773 = vpop.f32.mrb[0].mxu0
    %2774 = vdwg.mxu0
    %2775 = vrot.lane.b32.xlu0 %v144, 36
    %v2776 = vpop.permute.xlu0 %2775
    %v2779 = vsel %vm302, %v2692, 0
    %2781 = vmatprep.subr.mxu0 0.0
    %2782 = vmatpush1.msra.mxu0 %v2776
    %2783 = vmatprep.subr.mxu0 0.0
    %2784 = vmatpush1.msra.mxu0 0.0
    %2785 = vmatprep.subr.mxu0 0.0
    %2786 = vmatpush1.msra.mxu0 0.0
    %2787 = vmatprep.subr.mxu0 0.0
    %2788 = vmatpush1.msra.mxu0 0.0
    %2789 = vmatprep.subr.mxu0 0.0
    %2790 = vmatpush1.msra.mxu0 0.0
    %2791 = vmatprep.subr.mxu0 0.0
    %2792 = vmatpush1.msra.mxu0 0.0
    %2793 = vmatprep.subr.mxu0 0.0
    %2794 = vmatpush1.msra.mxu0 0.0
    %2795 = vmatprep.subr.mxu0 0.0
    %2796 = vmatpush1.msra.mxu0 0.0
    %2797 = vmatprep.subr.mxu0 0.0
    %2798 = vmatpush1.msra.mxu0 0.0
    %2799 = vmatprep.subr.mxu0 0.0
    %2800 = vmatpush1.msra.mxu0 0.0
    %2801 = vmatprep.subr.mxu0 0.0
    %2802 = vmatpush1.msra.mxu0 0.0
    %2803 = vmatprep.subr.mxu0 0.0
    %2804 = vmatpush1.msra.mxu0 0.0
    %2805 = vmatprep.subr.mxu0 0.0
    %2806 = vmatpush1.msra.mxu0 0.0
    %2807 = vmatprep.subr.mxu0 0.0
    %2808 = vmatpush1.msra.mxu0 0.0
    %2809 = vmatprep.subr.mxu0 0.0
    %2810 = vmatpush1.msra.mxu0 0.0
    %2811 = vmatprep.subr.mxu0 0.0
    %2812 = vmatpush1.msra.mxu0 0.0
    %2813 = vmatprep.subr.mxu0 0.0
    %2814 = vmatpush1.msra.mxu0 0.0
    %2815 = vmatprep.subr.mxu0 0.0
    %2816 = vmatpush1.msra.mxu0 0.0
    %2817 = vmatprep.subr.mxu0 0.0
    %2818 = vmatpush1.msra.mxu0 0.0
    %2819 = vmatprep.subr.mxu0 0.0
    %2820 = vmatpush1.msra.mxu0 0.0
    %2821 = vmatprep.subr.mxu0 0.0
    %2822 = vmatpush1.msra.mxu0 0.0
    %2823 = vmatprep.subr.mxu0 0.0
    %2824 = vmatpush1.msra.mxu0 0.0
    %2825 = vmatprep.subr.mxu0 0.0
    %2826 = vmatpush1.msra.mxu0 0.0
    %2827 = vmatprep.subr.mxu0 0.0
    %2828 = vmatpush1.msra.mxu0 0.0
    %2829 = vmatprep.subr.mxu0 0.0
    %2830 = vmatpush1.msra.mxu0 0.0
    %2831 = vmatprep.subr.mxu0 0.0
    %2832 = vmatpush1.msra.mxu0 0.0
    %2833 = vmatprep.subr.mxu0 0.0
    %2834 = vmatpush1.msra.mxu0 0.0
    %2835 = vmatprep.subr.mxu0 0.0
    %2836 = vmatpush1.msra.mxu0 0.0
    %2837 = vmatprep.subr.mxu0 0.0
    %2838 = vmatpush1.msra.mxu0 0.0
    %2839 = vmatprep.subr.mxu0 0.0
    %2840 = vmatpush1.msra.mxu0 0.0
    %2841 = vmatprep.subr.mxu0 0.0
    %2842 = vmatpush1.msra.mxu0 0.0
    %2843 = vmatprep.subr.mxu0 0.0
    %2844 = vmatpush1.msra.mxu0 0.0
    %2845 = vmatprep.mubr.f32.mxu0 0.0
    %2846 = vmatmul.mubr.f32.gmra.mrb[0].mxu0 %v2779
    %v2847 = vpop.f32.mrb[0].mxu0
    %v2848 = vadd.f32 0.0, %v2847
    %v2849 = vpop.f32.mrb[0].mxu0
    %2850 = vdwg.mxu0
    %v2851 = vrcp.pop %v2695
    %v2852 = vrcp.pop %v2698
    %v2853 = vmul.f32 %v2772, %v2851
    %v2854 = vmul.f32 %v2848, %v2852
    %2857 = vrot.lane.b32.xlu0 %v2853, 28
    %v2858 = vpop.permute.xlu0 %2857
    %2859 = vrot.lane.b32.xlu0 %v2854, 28
    %v2860 = vpop.permute.xlu0 %2859
    %vm2863 = vcmask 261344
    %2864 = vst.msk [vmem:[#allocation2] sm:$0xff] %vm2863, %v2858
    %2865 = vst.msk [vmem:[#allocation2 + $0x8] sm:$0xff] %vm2863, %v2860
    %v2866 = vld [vmem:[#allocation2] sm:$0xff]
    %v2867 = vld [vmem:[#allocation2 + $0x8] sm:$0xff]
    %v2868 = vld [vmem:[#allocation8] sm:$0xff]
    %v2869 = vld [vmem:[#allocation8 + $0x8] sm:$0xff]
    %v2870 = vld [vmem:[#allocation8 + $0x10] sm:$0xff]
    %v2871 = vld [vmem:[#allocation8 + $0x18] sm:$0xff]
    %v2872 = vld [vmem:[%s3] sm:$0x1]
    %v2874 = vlaneseq
    %v2875 = vshrl.u32 %v2874, 7
    %v2876 = vsub.s32 0, %v2875
    %v2877 = vrot.slane %v2872, %v2876
    %v2880 = vsel %vm65, %v2866, 0
    %v2883 = vsel %vm65, %v2867, 0
    %2885 = vmatprep.subr.mxu0 0.0
    %2886 = vmatpush1.msra.mxu0 %v2868
    %2887 = vmatprep.subr.mxu0 0.0
    %2888 = vmatpush1.msra.mxu0 %v2869
    %2889 = vmatprep.subr.mxu0 0.0
    %2890 = vmatpush1.msra.mxu0 %v2870
    %2891 = vmatprep.subr.mxu0 0.0
    %2892 = vmatpush1.msra.mxu0 %v2871
    %2893 = vmatprep.subr.mxu0 0.0
    %2894 = vmatpush1.msra.mxu0 0.0
    %2895 = vmatprep.subr.mxu0 0.0
    %2896 = vmatpush1.msra.mxu0 0.0
    %2897 = vmatprep.subr.mxu0 0.0
    %2898 = vmatpush1.msra.mxu0 0.0
    %2899 = vmatprep.subr.mxu0 0.0
    %2900 = vmatpush1.msra.mxu0 0.0
    %2901 = vmatprep.subr.mxu0 0.0
    %2902 = vmatpush1.msra.mxu0 0.0
    %2903 = vmatprep.subr.mxu0 0.0
    %2904 = vmatpush1.msra.mxu0 0.0
    %2905 = vmatprep.subr.mxu0 0.0
    %2906 = vmatpush1.msra.mxu0 0.0
    %2907 = vmatprep.subr.mxu0 0.0
    %2908 = vmatpush1.msra.mxu0 0.0
    %2909 = vmatprep.subr.mxu0 0.0
    %2910 = vmatpush1.msra.mxu0 0.0
    %2911 = vmatprep.subr.mxu0 0.0
    %2912 = vmatpush1.msra.mxu0 0.0
    %2913 = vmatprep.subr.mxu0 0.0
    %2914 = vmatpush1.msra.mxu0 0.0
    %2915 = vmatprep.subr.mxu0 0.0
    %2916 = vmatpush1.msra.mxu0 0.0
    %2917 = vmatprep.subr.mxu0 0.0
    %2918 = vmatpush1.msra.mxu0 0.0
    %2919 = vmatprep.subr.mxu0 0.0
    %2920 = vmatpush1.msra.mxu0 0.0
    %2921 = vmatprep.subr.mxu0 0.0
    %2922 = vmatpush1.msra.mxu0 0.0
    %2923 = vmatprep.subr.mxu0 0.0
    %2924 = vmatpush1.msra.mxu0 0.0
    %2925 = vmatprep.subr.mxu0 0.0
    %2926 = vmatpush1.msra.mxu0 0.0
    %2927 = vmatprep.subr.mxu0 0.0
    %2928 = vmatpush1.msra.mxu0 0.0
    %2929 = vmatprep.subr.mxu0 0.0
    %2930 = vmatpush1.msra.mxu0 0.0
    %2931 = vmatprep.subr.mxu0 0.0
    %2932 = vmatpush1.msra.mxu0 0.0
    %2933 = vmatprep.subr.mxu0 0.0
    %2934 = vmatpush1.msra.mxu0 0.0
    %2935 = vmatprep.subr.mxu0 0.0
    %2936 = vmatpush1.msra.mxu0 0.0
    %2937 = vmatprep.subr.mxu0 0.0
    %2938 = vmatpush1.msra.mxu0 0.0
    %2939 = vmatprep.subr.mxu0 0.0
    %2940 = vmatpush1.msra.mxu0 0.0
    %2941 = vmatprep.subr.mxu0 0.0
    %2942 = vmatpush1.msra.mxu0 0.0
    %2943 = vmatprep.subr.mxu0 0.0
    %2944 = vmatpush1.msra.mxu0 0.0
    %2945 = vmatprep.subr.mxu0 0.0
    %2946 = vmatpush1.msra.mxu0 0.0
    %2947 = vmatprep.subr.mxu0 0.0
    %2948 = vmatpush1.msra.mxu0 0.0
    %2949 = vmatprep.mubr.f32.mxu0 0.0
    %2950 = vmatmul.mubr.f32.gmra.mrb[0].mxu0 %v2880
    %v2951 = vpop.f32.mrb[0].mxu0
    %v2952 = vadd.f32 %v2877, %v2951
    %v2953 = vpop.f32.mrb[0].mxu0
    %2954 = vmatprep.mubr.f32.mxu0 0.0
    %2955 = vmatmul.mubr.f32.gmra.mrb[0].mxu0 %v2883
    %v2956 = vpop.f32.mrb[0].mxu0
    %v2957 = vadd.f32 %v2877, %v2956
    %v2958 = vpop.f32.mrb[0].mxu0
    %2959 = vdwg.mxu0
    %2960 = vst.msk [vmem:[#allocation9] sm:$0xff] %vm65, %v2952
    %2961 = vst.msk [vmem:[#allocation9 + $0x8] sm:$0xff] %vm65, %v2957
    // Predicated region
    $region30: #{tpu_custom_call.1} parent=1 // pred_check
      _
    $region31: #{tpu_custom_call.1} parent=1 // pred_check_branch
      %2963 = sbr.rel (0) target = $region33
    $region32: #{tpu_custom_call.1} parent=1 // pred_region
      %s2965 = ssub.s32 256, 256
      %2966 = vsyncadd [#allocation5], %s2965
      %s2967 = sshll.u32 [#allocation9], 4
      %s2968 = int_to_ptr.vmem [resolvable:$true] %s2967
      %2973 = dma.vmem_to_hbm [thread:$0]  %s2968, 256, %s4, [#allocation5], 128, 128, 8
    $region33: #{tpu_custom_call.1} parent=1 // pred_fallthru
      _
    // Predicated region
    $region34: #{tpu_custom_call.1} parent=1 // pred_check
      _
    $region35: #{tpu_custom_call.1} parent=1 // pred_check_branch
      %2975 = sbr.rel (0) target = $region37
    $region36: #{tpu_custom_call.1} parent=1 // pred_region
      %2976 = dma.done [#allocation5], 256
    $region37: #{tpu_custom_call.1} parent=1 // pred_fallthru
      _
    %2977 = vsyncpa [#allocation4], 1
    %2978 = vsyncpa [#allocation7], 1
    %2979 = vsyncpa [#allocation5], 1

// kernel: tpu_custom_call.1
$region0: #{tpu_custom_call.1}
  #allocation0 [shape = 'u32[]', space=smem, size = 0x4, offset = 0x4, fixed_abs, tag = 'smem constant byte address 0x4 - core index']
  #allocation1 [shape = 'u32[144,128]{1,0:T(1,128)}', space=vmem, size = 0x12000, scoped, tag = 'internal scratch']
  #allocation2 [shape = 'f32[16,32]{1,0:T(8,128)}', space=vmem, size = 0x2000, scoped, tag = 'scratch operand']
  %s0 = inlined_call_operand.hbm [shape: f32[2,8,32], index: 0, kind: input, shape index: {}]
  %s1 = inlined_call_operand.hbm [shape: f32[32,96], index: 1, kind: input, shape index: {}]
  %s2 = inlined_call_operand.hbm [shape: f32[32,32], index: 2, kind: input, shape index: {}]
  %s3 = inlined_call_operand.vmem [shape: f32[1,32], index: 3, kind: input, shape index: {}]
  %s4 = inlined_call_operand.hbm [shape: f32[2,8,32], index: 4, kind: output, shape index: {}]
  %s5 = sld [smem:[#allocation0]]
  $region38: #{tpu_custom_call.1} parent=0
    _
  %s7 = ssub.s32 1, %s5
  %s8 = scalar_select 0, %s7, %s5
  $region1: #{tpu_custom_call.1} parent=0
    #allocation3 [shape = 'u8[8192]{0}', space=vmem, size = 0x2000, scoped, tag = 'input window, operand 0, single buffered']
    #allocation4 [shape = 's32[1]{0}', space=sflag, size = 0x4, scoped, tag = 'scoped memory for tpu_custom_call.1']
    #allocation5 [shape = 's32[1]{0}', space=sflag, size = 0x4, scoped, tag = 'scoped memory for tpu_custom_call.1']
    #allocation6 [shape = 'u8[16384]{0}', space=vmem, size = 0x4000, scoped, tag = 'input window, operand 1, single buffered']
    #allocation7 [shape = 's32[1]{0}', space=sflag, size = 0x4, scoped, tag = 'scoped memory for tpu_custom_call.1']
    #allocation8 [shape = 'u8[16384]{0}', space=vmem, size = 0x4000, scoped, tag = 'input window, operand 2, single buffered']
    #allocation9 [shape = 'u8[8192]{0}', space=vmem, size = 0x2000, scoped, tag = 'output window, operand 0, single buffered']
    %9 = vsyncpa [#allocation4], 0
    %10 = vsyncpa [#allocation7], 0
    %11 = vsyncpa [#allocation5], 0
    // Predicated region
    $region2: #{tpu_custom_call.1} parent=1 // pred_check
      _
    $region3: #{tpu_custom_call.1} parent=1 // pred_check_branch
      %13 = sbr.rel (0) target = $region5
    $region4: #{tpu_custom_call.1} parent=1 // pred_region
      %s15 = ssub.s32 256, 256
      %16 = vsyncadd [#allocation4], %s15
      %s17 = sshll.u32 [#allocation3], 4
      %s18 = int_to_ptr.vmem [resolvable:$true] %s17
      %23 = dma.hbm_to_vmem [thread:$0]  %s0, 256, %s18, [#allocation4], 128, 128, 8
    $region5: #{tpu_custom_call.1} parent=1 // pred_fallthru
      _
    // Predicated region
    $region6: #{tpu_custom_call.1} parent=1 // pred_check
      _
    $region7: #{tpu_custom_call.1} parent=1 // pred_check_branch
      %25 = sbr.rel (0) target = $region9
    $region8: #{tpu_custom_call.1} parent=1 // pred_region
      %s27 = ssub.s32 512, 512
      %28 = vsyncadd [#allocation7], %s27
      %s29 = sshll.u32 [#allocation6], 4
      %s30 = int_to_ptr.vmem [resolvable:$true] %s29
      %35 = dma.hbm_to_vmem [thread:$0]  %s1, 512, %s30, [#allocation7], 128, 128, 8
    $region9: #{tpu_custom_call.1} parent=1 // pred_fallthru
      _
    // Predicated region
    $region10: #{tpu_custom_call.1} parent=1 // pred_check
      _
    $region11: #{tpu_custom_call.1} parent=1 // pred_check_branch
      %37 = sbr.rel (0) target = $region13
    $region12: #{tpu_custom_call.1} parent=1 // pred_region
      %s39 = ssub.s32 512, 512
      %40 = vsyncadd [#allocation7], %s39
      %s41 = sshll.u32 [#allocation8], 4
      %s42 = int_to_ptr.vmem [resolvable:$true] %s41
      %47 = dma.hbm_to_vmem [thread:$0]  %s2, 512, %s42, [#allocation7], 128, 128, 8
    $region13: #{tpu_custom_call.1} parent=1 // pred_fallthru
      _
    // Predicated region
    $region14: #{tpu_custom_call.1} parent=1 // pred_check
      _
    $region15: #{tpu_custom_call.1} parent=1 // pred_check_branch
      %49 = sbr.rel (0) target = $region17
    $region16: #{tpu_custom_call.1} parent=1 // pred_region
      _
    $region17: #{tpu_custom_call.1} parent=1 // pred_fallthru
      _
    // Predicated region
    $region18: #{tpu_custom_call.1} parent=1 // pred_check
      _
    $region19: #{tpu_custom_call.1} parent=1 // pred_check_branch
      %51 = sbr.rel (0) target = $region21
    $region20: #{tpu_custom_call.1} parent=1 // pred_region
      %52 = dma.done [#allocation4], 256
    $region21: #{tpu_custom_call.1} parent=1 // pred_fallthru
      _
    // Predicated region
    $region22: #{tpu_custom_call.1} parent=1 // pred_check
      _
    $region23: #{tpu_custom_call.1} parent=1 // pred_check_branch
      %54 = sbr.rel (0) target = $region25
    $region24: #{tpu_custom_call.1} parent=1 // pred_region
      %55 = dma.done [#allocation7], 512
    $region25: #{tpu_custom_call.1} parent=1 // pred_fallthru
      _
    // Predicated region
    $region26: #{tpu_custom_call.1} parent=1 // pred_check
      _
    $region27: #{tpu_custom_call.1} parent=1 // pred_check_branch
      %57 = sbr.rel (0) target = $region29
    $region28: #{tpu_custom_call.1} parent=1 // pred_region
      %58 = dma.done [#allocation7], 512
    $region29: #{tpu_custom_call.1} parent=1 // pred_fallthru
      _
    %v59 = vld [vmem:[#allocation3] sm:$0xff]
    %v60 = vld [vmem:[#allocation3 + $0x8] sm:$0xff]
    %v61 = vld [vmem:[#allocation6] sm:$0xff]
    %v62 = vld [vmem:[#allocation6 + $0x8] sm:$0xff]
    %v63 = vld [vmem:[#allocation6 + $0x10] sm:$0xff]
    %v64 = vld [vmem:[#allocation6 + $0x18] sm:$0xff]
    %vm65 = vcmask 261120
    %v67 = vsel %vm65, %v59, 0
    %v70 = vsel %vm65, %v60, 0
    %72 = vmatprep.subr.mxu0 0.0
    %73 = vmatpush1.msra.mxu0 %v61
    %74 = vmatprep.subr.mxu0 0.0
    %75 = vmatpush1.msra.mxu0 %v62
    %76 = vmatprep.subr.mxu0 0.0
    %77 = vmatpush1.msra.mxu0 %v63
    %78 = vmatprep.subr.mxu0 0.0
    %79 = vmatpush1.msra.mxu0 %v64
    %80 = vmatprep.subr.mxu0 0.0
    %81 = vmatpush1.msra.mxu0 0.0
    %82 = vmatprep.subr.mxu0 0.0
    %83 = vmatpush1.msra.mxu0 0.0
    %84 = vmatprep.subr.mxu0 0.0
    %85 = vmatpush1.msra.mxu0 0.0
    %86 = vmatprep.subr.mxu0 0.0
    %87 = vmatpush1.msra.mxu0 0.0
    %88 = vmatprep.subr.mxu0 0.0
    %89 = vmatpush1.msra.mxu0 0.0
    %90 = vmatprep.subr.mxu0 0.0
    %91 = vmatpush1.msra.mxu0 0.0
    %92 = vmatprep.subr.mxu0 0.0
    %93 = vmatpush1.msra.mxu0 0.0
    %94 = vmatprep.subr.mxu0 0.0
    %95 = vmatpush1.msra.mxu0 0.0
    %96 = vmatprep.subr.mxu0 0.0
    %97 = vmatpush1.msra.mxu0 0.0
    %98 = vmatprep.subr.mxu0 0.0
    %99 = vmatpush1.msra.mxu0 0.0
    %100 = vmatprep.subr.mxu0 0.0
    %101 = vmatpush1.msra.mxu0 0.0
    %102 = vmatprep.subr.mxu0 0.0
    %103 = vmatpush1.msra.mxu0 0.0
    %104 = vmatprep.subr.mxu0 0.0
    %105 = vmatpush1.msra.mxu0 0.0
    %106 = vmatprep.subr.mxu0 0.0
    %107 = vmatpush1.msra.mxu0 0.0
    %108 = vmatprep.subr.mxu0 0.0
    %109 = vmatpush1.msra.mxu0 0.0
    %110 = vmatprep.subr.mxu0 0.0
    %111 = vmatpush1.msra.mxu0 0.0
    %112 = vmatprep.subr.mxu0 0.0
    %113 = vmatpush1.msra.mxu0 0.0
    %114 = vmatprep.subr.mxu0 0.0
    %115 = vmatpush1.msra.mxu0 0.0
    %116 = vmatprep.subr.mxu0 0.0
    %117 = vmatpush1.msra.mxu0 0.0
    %118 = vmatprep.subr.mxu0 0.0
    %119 = vmatpush1.msra.mxu0 0.0
    %120 = vmatprep.subr.mxu0 0.0
    %121 = vmatpush1.msra.mxu0 0.0
    %122 = vmatprep.subr.mxu0 0.0
    %123 = vmatpush1.msra.mxu0 0.0
    %124 = vmatprep.subr.mxu0 0.0
    %125 = vmatpush1.msra.mxu0 0.0
    %126 = vmatprep.subr.mxu0 0.0
    %127 = vmatpush1.msra.mxu0 0.0
    %128 = vmatprep.subr.mxu0 0.0
    %129 = vmatpush1.msra.mxu0 0.0
    %130 = vmatprep.subr.mxu0 0.0
    %131 = vmatpush1.msra.mxu0 0.0
    %132 = vmatprep.subr.mxu0 0.0
    %133 = vmatpush1.msra.mxu0 0.0
    %134 = vmatprep.subr.mxu0 0.0
    %135 = vmatpush1.msra.mxu0 0.0
    %136 = vmatprep.mubr.f32.mxu0 0.0
    %137 = vmatmul.mubr.f32.gmra.mrb[0].mxu0 %v67
    %v138 = vpop.f32.mrb[0].mxu0
    %v139 = vadd.f32 0.0, %v138
    %v140 = vpop.f32.mrb[0].mxu0
    %141 = vmatprep.mubr.f32.mxu0 0.0
    %142 = vmatmul.mubr.f32.gmra.mrb[0].mxu0 %v70
    %v143 = vpop.f32.mrb[0].mxu0
    %v144 = vadd.f32 0.0, %v143
    %v145 = vpop.f32.mrb[0].mxu0
    %146 = vdwg.mxu0
    %148 = vrot.lane.b32.xlu0 %v139, 96
    %v149 = vpop.permute.xlu0 %148
    %vm150 = vcmask 31744
    %v151 = vsel %vm150, %v139, 0
    %v153 = vsel %vm150, %v149, 0
    %155 = vmatprep.subr.mxu0 0.0
    %156 = vmatpush1.xpose.msra.mxu0 %v153
    %157 = vmatprep.subr.mxu0 0.0
    %158 = vmatpush1.xpose.msra.mxu0 0.0
    %159 = vmatprep.subr.mxu0 0.0
    %160 = vmatpush1.xpose.msra.mxu0 0.0
    %161 = vmatprep.subr.mxu0 0.0
    %162 = vmatpush1.xpose.msra.mxu0 0.0
    %163 = vmatprep.subr.mxu0 0.0
    %164 = vmatpush1.xpose.msra.mxu0 0.0
    %165 = vmatprep.subr.mxu0 0.0
    %166 = vmatpush1.xpose.msra.mxu0 0.0
    %167 = vmatprep.subr.mxu0 0.0
    %168 = vmatpush1.xpose.msra.mxu0 0.0
    %169 = vmatprep.subr.mxu0 0.0
    %170 = vmatpush1.xpose.msra.mxu0 0.0
    %171 = vmatprep.subr.mxu0 0.0
    %172 = vmatpush1.xpose.msra.mxu0 0.0
    %173 = vmatprep.subr.mxu0 0.0
    %174 = vmatpush1.xpose.msra.mxu0 0.0
    %175 = vmatprep.subr.mxu0 0.0
    %176 = vmatpush1.xpose.msra.mxu0 0.0
    %177 = vmatprep.subr.mxu0 0.0
    %178 = vmatpush1.xpose.msra.mxu0 0.0
    %179 = vmatprep.subr.mxu0 0.0
    %180 = vmatpush1.xpose.msra.mxu0 0.0
    %181 = vmatprep.subr.mxu0 0.0
    %182 = vmatpush1.xpose.msra.mxu0 0.0
    %183 = vmatprep.subr.mxu0 0.0
    %184 = vmatpush1.xpose.msra.mxu0 0.0
    %185 = vmatprep.subr.mxu0 0.0
    %186 = vmatpush1.xpose.msra.mxu0 0.0
    %187 = vmatprep.subr.mxu0 0.0
    %188 = vmatpush1.xpose.msra.mxu0 0.0
    %189 = vmatprep.subr.mxu0 0.0
    %190 = vmatpush1.xpose.msra.mxu0 0.0
    %191 = vmatprep.subr.mxu0 0.0
    %192 = vmatpush1.xpose.msra.mxu0 0.0
    %193 = vmatprep.subr.mxu0 0.0
    %194 = vmatpush1.xpose.msra.mxu0 0.0
    %195 = vmatprep.subr.mxu0 0.0
    %196 = vmatpush1.xpose.msra.mxu0 0.0
    %197 = vmatprep.subr.mxu0 0.0
    %198 = vmatpush1.xpose.msra.mxu0 0.0
    %199 = vmatprep.subr.mxu0 0.0
    %200 = vmatpush1.xpose.msra.mxu0 0.0
    %201 = vmatprep.subr.mxu0 0.0
    %202 = vmatpush1.xpose.msra.mxu0 0.0
    %203 = vmatprep.subr.mxu0 0.0
    %204 = vmatpush1.xpose.msra.mxu0 0.0
    %205 = vmatprep.subr.mxu0 0.0
    %206 = vmatpush1.xpose.msra.mxu0 0.0
    %207 = vmatprep.subr.mxu0 0.0
    %208 = vmatpush1.xpose.msra.mxu0 0.0
    %209 = vmatprep.subr.mxu0 0.0
    %210 = vmatpush1.xpose.msra.mxu0 0.0
    %211 = vmatprep.subr.mxu0 0.0
    %212 = vmatpush1.xpose.msra.mxu0 0.0
    %213 = vmatprep.subr.mxu0 0.0
    %214 = vmatpush1.xpose.msra.mxu0 0.0
    %215 = vmatprep.subr.mxu0 0.0
    %216 = vmatpush1.xpose.msra.mxu0 0.0
    %217 = vmatprep.subr.mxu0 0.0
    %218 = vmatpush1.xpose.msra.mxu0 0.0
    %219 = vmatprep.mubr.f32.mxu0 0.0
    %220 = vmatmul.mubr.f32.gmra.mrb[0].mxu0 %v151
    %v221 = vpop.f32.mrb[0].mxu0
    %v222 = vadd.f32 0.0, %v221
    %v223 = vpop.f32.mrb[0].mxu0
    %224 = vdwg.mxu0
    %226 = vrot.lane.b32.xlu0 %v144, 96
    %v227 = vpop.permute.xlu0 %226
    %v228 = vsel %vm150, %v144, 0
    %v230 = vsel %vm150, %v227, 0
    %232 = vmatprep.subr.mxu0 0.0
    %233 = vmatpush1.xpose.msra.mxu0 %v230
    %234 = vmatprep.subr.mxu0 0.0
    %235 = vmatpush1.xpose.msra.mxu0 0.0
    %236 = vmatprep.subr.mxu0 0.0
    %237 = vmatpush1.xpose.msra.mxu0 0.0
    %238 = vmatprep.subr.mxu0 0.0
    %239 = vmatpush1.xpose.msra.mxu0 0.0
    %240 = vmatprep.subr.mxu0 0.0
    %241 = vmatpush1.xpose.msra.mxu0 0.0
    %242 = vmatprep.subr.mxu0 0.0
    %243 = vmatpush1.xpose.msra.mxu0 0.0
    %244 = vmatprep.subr.mxu0 0.0
    %245 = vmatpush1.xpose.msra.mxu0 0.0
    %246 = vmatprep.subr.mxu0 0.0
    %247 = vmatpush1.xpose.msra.mxu0 0.0
    %248 = vmatprep.subr.mxu0 0.0
    %249 = vmatpush1.xpose.msra.mxu0 0.0
    %250 = vmatprep.subr.mxu0 0.0
    %251 = vmatpush1.xpose.msra.mxu0 0.0
    %252 = vmatprep.subr.mxu0 0.0
    %253 = vmatpush1.xpose.msra.mxu0 0.0
    %254 = vmatprep.subr.mxu0 0.0
    %255 = vmatpush1.xpose.msra.mxu0 0.0
    %256 = vmatprep.subr.mxu0 0.0
    %257 = vmatpush1.xpose.msra.mxu0 0.0
    %258 = vmatprep.subr.mxu0 0.0
    %259 = vmatpush1.xpose.msra.mxu0 0.0
    %260 = vmatprep.subr.mxu0 0.0
    %261 = vmatpush1.xpose.msra.mxu0 0.0
    %262 = vmatprep.subr.mxu0 0.0
    %263 = vmatpush1.xpose.msra.mxu0 0.0
    %264 = vmatprep.subr.mxu0 0.0
    %265 = vmatpush1.xpose.msra.mxu0 0.0
    %266 = vmatprep.subr.mxu0 0.0
    %267 = vmatpush1.xpose.msra.mxu0 0.0
    %268 = vmatprep.subr.mxu0 0.0
    %269 = vmatpush1.xpose.msra.mxu0 0.0
    %270 = vmatprep.subr.mxu0 0.0
    %271 = vmatpush1.xpose.msra.mxu0 0.0
    %272 = vmatprep.subr.mxu0 0.0
    %273 = vmatpush1.xpose.msra.mxu0 0.0
    %274 = vmatprep.subr.mxu0 0.0
    %275 = vmatpush1.xpose.msra.mxu0 0.0
    %276 = vmatprep.subr.mxu0 0.0
    %277 = vmatpush1.xpose.msra.mxu0 0.0
    %278 = vmatprep.subr.mxu0 0.0
    %279 = vmatpush1.xpose.msra.mxu0 0.0
    %280 = vmatprep.subr.mxu0 0.0
    %281 = vmatpush1.xpose.msra.mxu0 0.0
    %282 = vmatprep.subr.mxu0 0.0
    %283 = vmatpush1.xpose.msra.mxu0 0.0
    %284 = vmatprep.subr.mxu0 0.0
    %285 = vmatpush1.xpose.msra.mxu0 0.0
    %286 = vmatprep.subr.mxu0 0.0
    %287 = vmatpush1.xpose.msra.mxu0 0.0
    %288 = vmatprep.subr.mxu0 0.0
    %289 = vmatpush1.xpose.msra.mxu0 0.0
    %290 = vmatprep.subr.mxu0 0.0
    %291 = vmatpush1.xpose.msra.mxu0 0.0
    %292 = vmatprep.subr.mxu0 0.0
    %293 = vmatpush1.xpose.msra.mxu0 0.0
    %294 = vmatprep.subr.mxu0 0.0
    %295 = vmatpush1.xpose.msra.mxu0 0.0
    %296 = vmatprep.mubr.f32.mxu0 0.0
    %297 = vmatmul.mubr.f32.gmra.mrb[0].mxu0 %v228
    %v298 = vpop.f32.mrb[0].mxu0
    %v299 = vadd.f32 0.0, %v298
    %v300 = vpop.f32.mrb[0].mxu0
    %301 = vdwg.mxu0
    %vm302 = vcmask 64512
    %v303 = vsel %vm302, %v222, -inf
    %304 = vmax.xlane.f32.xlu0 %v303
    %v305 = vpop.xlane.xlu0 %304
    %v306 = vsel %vm302, %v299, -inf
    %307 = vmax.xlane.f32.xlu0 %v306
    %v308 = vpop.xlane.xlu0 %307
    %v309 = vsub.f32 %v222, %v305
    %v310 = vsub.f32 %v299, %v308
    %v311 = vmul.f32 %v309, 1.442695
    %v312 = vpow.pop %v311
    %v313 = vmul.f32 %v310, 1.442695
    %v314 = vpow.pop %v313
    %v315 = vsel %vm302, %v312, 0.0
    %316 = vadd.xlane.f32.xlu0 %v315
    %v317 = vpop.xlane.xlu0 %316
    %v318 = vsel %vm302, %v314, 0.0
    %319 = vadd.xlane.f32.xlu0 %v318
    %v320 = vpop.xlane.xlu0 %319
    %321 = vrot.lane.b32.xlu0 %v139, 64
    %v322 = vpop.permute.xlu0 %321
    %v325 = vsel %vm302, %v312, 0
    %327 = vmatprep.subr.mxu0 0.0
    %328 = vmatpush1.msra.mxu0 %v322
    %329 = vmatprep.subr.mxu0 0.0
    %330 = vmatpush1.msra.mxu0 0.0
    %331 = vmatprep.subr.mxu0 0.0
    %332 = vmatpush1.msra.mxu0 0.0
    %333 = vmatprep.subr.mxu0 0.0
    %334 = vmatpush1.msra.mxu0 0.0
    %335 = vmatprep.subr.mxu0 0.0
    %336 = vmatpush1.msra.mxu0 0.0
    %337 = vmatprep.subr.mxu0 0.0
    %338 = vmatpush1.msra.mxu0 0.0
    %339 = vmatprep.subr.mxu0 0.0
    %340 = vmatpush1.msra.mxu0 0.0
    %341 = vmatprep.subr.mxu0 0.0
    %342 = vmatpush1.msra.mxu0 0.0
    %343 = vmatprep.subr.mxu0 0.0
    %344 = vmatpush1.msra.mxu0 0.0
    %345 = vmatprep.subr.mxu0 0.0
    %346 = vmatpush1.msra.mxu0 0.0
    %347 = vmatprep.subr.mxu0 0.0
    %348 = vmatpush1.msra.mxu0 0.0
    %349 = vmatprep.subr.mxu0 0.0
    %350 = vmatpush1.msra.mxu0 0.0
    %351 = vmatprep.subr.mxu0 0.0
    %352 = vmatpush1.msra.mxu0 0.0
    %353 = vmatprep.subr.mxu0 0.0
    %354 = vmatpush1.msra.mxu0 0.0
    %355 = vmatprep.subr.mxu0 0.0
    %356 = vmatpush1.msra.mxu0 0.0
    %357 = vmatprep.subr.mxu0 0.0
    %358 = vmatpush1.msra.mxu0 0.0
    %359 = vmatprep.subr.mxu0 0.0
    %360 = vmatpush1.msra.mxu0 0.0
    %361 = vmatprep.subr.mxu0 0.0
    %362 = vmatpush1.msra.mxu0 0.0
    %363 = vmatprep.subr.mxu0 0.0
    %364 = vmatpush1.msra.mxu0 0.0
    %365 = vmatprep.subr.mxu0 0.0
    %366 = vmatpush1.msra.mxu0 0.0
    %367 = vmatprep.subr.mxu0 0.0
    %368 = vmatpush1.msra.mxu0 0.0
    %369 = vmatprep.subr.mxu0 0.0
    %370 = vmatpush1.msra.mxu0 0.0
    %371 = vmatprep.subr.mxu0 0.0
    %372 = vmatpush1.msra.mxu0 0.0
    %373 = vmatprep.subr.mxu0 0.0
    %374 = vmatpush1.msra.mxu0 0.0
    %375 = vmatprep.subr.mxu0 0.0
    %376 = vmatpush1.msra.mxu0 0.0
    %377 = vmatprep.subr.mxu0 0.0
    %378 = vmatpush1.msra.mxu0 0.0
    %379 = vmatprep.subr.mxu0 0.0
    %380 = vmatpush1.msra.mxu0 0.0
    %381 = vmatprep.subr.mxu0 0.0
    %382 = vmatpush1.msra.mxu0 0.0
    %383 = vmatprep.subr.mxu0 0.0
    %384 = vmatpush1.msra.mxu0 0.0
    %385 = vmatprep.subr.mxu0 0.0
    %386 = vmatpush1.msra.mxu0 0.0
    %387 = vmatprep.subr.mxu0 0.0
    %388 = vmatpush1.msra.mxu0 0.0
    %389 = vmatprep.subr.mxu0 0.0
    %390 = vmatpush1.msra.mxu0 0.0
    %391 = vmatprep.mubr.f32.mxu0 0.0
    %392 = vmatmul.mubr.f32.gmra.mrb[0].mxu0 %v325
    %v393 = vpop.f32.mrb[0].mxu0
    %v394 = vadd.f32 0.0, %v393
    %v395 = vpop.f32.mrb[0].mxu0
    %396 = vdwg.mxu0
    %397 = vrot.lane.b32.xlu0 %v144, 64
    %v398 = vpop.permute.xlu0 %397
    %v401 = vsel %vm302, %v314, 0
    %403 = vmatprep.subr.mxu0 0.0
    %404 = vmatpush1.msra.mxu0 %v398
    %405 = vmatprep.subr.mxu0 0.0
    %406 = vmatpush1.msra.mxu0 0.0
    %407 = vmatprep.subr.mxu0 0.0
    %408 = vmatpush1.msra.mxu0 0.0
    %409 = vmatprep.subr.mxu0 0.0
    %410 = vmatpush1.msra.mxu0 0.0
    %411 = vmatprep.subr.mxu0 0.0
    %412 = vmatpush1.msra.mxu0 0.0
    %413 = vmatprep.subr.mxu0 0.0
    %414 = vmatpush1.msra.mxu0 0.0
    %415 = vmatprep.subr.mxu0 0.0
    %416 = vmatpush1.msra.mxu0 0.0
    %417 = vmatprep.subr.mxu0 0.0
    %418 = vmatpush1.msra.mxu0 0.0
    %419 = vmatprep.subr.mxu0 0.0
    %420 = vmatpush1.msra.mxu0 0.0
    %421 = vmatprep.subr.mxu0 0.0
    %422 = vmatpush1.msra.mxu0 0.0
    %423 = vmatprep.subr.mxu0 0.0
    %424 = vmatpush1.msra.mxu0 0.0
    %425 = vmatprep.subr.mxu0 0.0
    %426 = vmatpush1.msra.mxu0 0.0
    %427 = vmatprep.subr.mxu0 0.0
    %428 = vmatpush1.msra.mxu0 0.0
    %429 = vmatprep.subr.mxu0 0.0
    %430 = vmatpush1.msra.mxu0 0.0
    %431 = vmatprep.subr.mxu0 0.0
    %432 = vmatpush1.msra.mxu0 0.0
    %433 = vmatprep.subr.mxu0 0.0
    %434 = vmatpush1.msra.mxu0 0.0
    %435 = vmatprep.subr.mxu0 0.0
    %436 = vmatpush1.msra.mxu0 0.0
    %437 = vmatprep.subr.mxu0 0.0
    %438 = vmatpush1.msra.mxu0 0.0
    %439 = vmatprep.subr.mxu0 0.0
    %440 = vmatpush1.msra.mxu0 0.0
    %441 = vmatprep.subr.mxu0 0.0
    %442 = vmatpush1.msra.mxu0 0.0
    %443 = vmatprep.subr.mxu0 0.0
    %444 = vmatpush1.msra.mxu0 0.0
    %445 = vmatprep.subr.mxu0 0.0
    %446 = vmatpush1.msra.mxu0 0.0
    %447 = vmatprep.subr.mxu0 0.0
    %448 = vmatpush1.msra.mxu0 0.0
    %449 = vmatprep.subr.mxu0 0.0
    %450 = vmatpush1.msra.mxu0 0.0
    %451 = vmatprep.subr.mxu0 0.0
    %452 = vmatpush1.msra.mxu0 0.0
    %453 = vmatprep.subr.mxu0 0.0
    %454 = vmatpush1.msra.mxu0 0.0
    %455 = vmatprep.subr.mxu0 0.0
    %456 = vmatpush1.msra.mxu0 0.0
    %457 = vmatprep.subr.mxu0 0.0
    %458 = vmatpush1.msra.mxu0 0.0
    %459 = vmatprep.subr.mxu0 0.0
    %460 = vmatpush1.msra.mxu0 0.0
    %461 = vmatprep.subr.mxu0 0.0
    %462 = vmatpush1.msra.mxu0 0.0
    %463 = vmatprep.subr.mxu0 0.0
    %464 = vmatpush1.msra.mxu0 0.0
    %465 = vmatprep.subr.mxu0 0.0
    %466 = vmatpush1.msra.mxu0 0.0
    %467 = vmatprep.mubr.f32.mxu0 0.0
    %468 = vmatmul.mubr.f32.gmra.mrb[0].mxu0 %v401
    %v469 = vpop.f32.mrb[0].mxu0
    %v470 = vadd.f32 0.0, %v469
    %v471 = vpop.f32.mrb[0].mxu0
    %472 = vdwg.mxu0
    %v473 = vrcp.pop %v317
    %v474 = vrcp.pop %v320
    %v475 = vmul.f32 %v394, %v473
    %v476 = vmul.f32 %v470, %v474
    %477 = vst.msk [vmem:[#allocation2] sm:$0xff] %vm150, %v475
    %478 = vst.msk [vmem:[#allocation2 + $0x8] sm:$0xff] %vm150, %v476
    %479 = vrot.lane.b32.xlu0 %v139, 124
    %v480 = vpop.permute.xlu0 %479
    %481 = vrot.lane.b32.xlu0 %v139, 92
    %v482 = vpop.permute.xlu0 %481
    %v483 = vsel %vm150, %v480, 0
    %v485 = vsel %vm150, %v482, 0
    %487 = vmatprep.subr.mxu0 0.0
    %488 = vmatpush1.xpose.msra.mxu0 %v485
    %489 = vmatprep.subr.mxu0 0.0
    %490 = vmatpush1.xpose.msra.mxu0 0.0
    %491 = vmatprep.subr.mxu0 0.0
    %492 = vmatpush1.xpose.msra.mxu0 0.0
    %493 = vmatprep.subr.mxu0 0.0
    %494 = vmatpush1.xpose.msra.mxu0 0.0
    %495 = vmatprep.subr.mxu0 0.0
    %496 = vmatpush1.xpose.msra.mxu0 0.0
    %497 = vmatprep.subr.mxu0 0.0
    %498 = vmatpush1.xpose.msra.mxu0 0.0
    %499 = vmatprep.subr.mxu0 0.0
    %500 = vmatpush1.xpose.msra.mxu0 0.0
    %501 = vmatprep.subr.mxu0 0.0
    %502 = vmatpush1.xpose.msra.mxu0 0.0
    %503 = vmatprep.subr.mxu0 0.0
    %504 = vmatpush1.xpose.msra.mxu0 0.0
    %505 = vmatprep.subr.mxu0 0.0
    %506 = vmatpush1.xpose.msra.mxu0 0.0
    %507 = vmatprep.subr.mxu0 0.0
    %508 = vmatpush1.xpose.msra.mxu0 0.0
    %509 = vmatprep.subr.mxu0 0.0
    %510 = vmatpush1.xpose.msra.mxu0 0.0
    %511 = vmatprep.subr.mxu0 0.0
    %512 = vmatpush1.xpose.msra.mxu0 0.0
    %513 = vmatprep.subr.mxu0 0.0
    %514 = vmatpush1.xpose.msra.mxu0 0.0
    %515 = vmatprep.subr.mxu0 0.0
    %516 = vmatpush1.xpose.msra.mxu0 0.0
    %517 = vmatprep.subr.mxu0 0.0
    %518 = vmatpush1.xpose.msra.mxu0 0.0
    %519 = vmatprep.subr.mxu0 0.0
    %520 = vmatpush1.xpose.msra.mxu0 0.0
    %521 = vmatprep.subr.mxu0 0.0
    %522 = vmatpush1.xpose.msra.mxu0 0.0
    %523 = vmatprep.subr.mxu0 0.0
    %524 = vmatpush1.xpose.msra.mxu0 0.0
    %525 = vmatprep.subr.mxu0 0.0
    %526 = vmatpush1.xpose.msra.mxu0 0.0
    %527 = vmatprep.subr.mxu0 0.0
    %528 = vmatpush1.xpose.msra.mxu0 0.0
    %529 = vmatprep.subr.mxu0 0.0
    %530 = vmatpush1.xpose.msra.mxu0 0.0
    %531 = vmatprep.subr.mxu0 0.0
    %532 = vmatpush1.xpose.msra.mxu0 0.0
    %533 = vmatprep.subr.mxu0 0.0
    %534 = vmatpush1.xpose.msra.mxu0 0.0
    %535 = vmatprep.subr.mxu0 0.0
    %536 = vmatpush1.xpose.msra.mxu0 0.0
    %537 = vmatprep.subr.mxu0 0.0
    %538 = vmatpush1.xpose.msra.mxu0 0.0
    %539 = vmatprep.subr.mxu0 0.0
    %540 = vmatpush1.xpose.msra.mxu0 0.0
    %541 = vmatprep.subr.mxu0 0.0
    %542 = vmatpush1.xpose.msra.mxu0 0.0
    %543 = vmatprep.subr.mxu0 0.0
    %544 = vmatpush1.xpose.msra.mxu0 0.0
    %545 = vmatprep.subr.mxu0 0.0
    %546 = vmatpush1.xpose.msra.mxu0 0.0
    %547 = vmatprep.subr.mxu0 0.0
    %548 = vmatpush1.xpose.msra.mxu0 0.0
    %549 = vmatprep.subr.mxu0 0.0
    %550 = vmatpush1.xpose.msra.mxu0 0.0
    %551 = vmatprep.mubr.f32.mxu0 0.0
    %552 = vmatmul.mubr.f32.gmra.mrb[0].mxu0 %v483
    %v553 = vpop.f32.mrb[0].mxu0
    %v554 = vadd.f32 0.0, %v553
    %v555 = vpop.f32.mrb[0].mxu0
    %556 = vdwg.mxu0
    %557 = vrot.lane.b32.xlu0 %v144, 124
    %v558 = vpop.permute.xlu0 %557
    %559 = vrot.lane.b32.xlu0 %v144, 92
    %v560 = vpop.permute.xlu0 %559
    %v561 = vsel %vm150, %v558, 0
    %v563 = vsel %vm150, %v560, 0
    %565 = vmatprep.subr.mxu0 0.0
    %566 = vmatpush1.xpose.msra.mxu0 %v563
    %567 = vmatprep.subr.mxu0 0.0
    %568 = vmatpush1.xpose.msra.mxu0 0.0
    %569 = vmatprep.subr.mxu0 0.0
    %570 = vmatpush1.xpose.msra.mxu0 0.0
    %571 = vmatprep.subr.mxu0 0.0
    %572 = vmatpush1.xpose.msra.mxu0 0.0
    %573 = vmatprep.subr.mxu0 0.0
    %574 = vmatpush1.xpose.msra.mxu0 0.0
    %575 = vmatprep.subr.mxu0 0.0
    %576 = vmatpush1.xpose.msra.mxu0 0.0
    %577 = vmatprep.subr.mxu0 0.0
    %578 = vmatpush1.xpose.msra.mxu0 0.0
    %579 = vmatprep.subr.mxu0 0.0
    %580 = vmatpush1.xpose.msra.mxu0 0.0
    %581 = vmatprep.subr.mxu0 0.0
    %582 = vmatpush1.xpose.msra.mxu0 0.0
    %583 = vmatprep.subr.mxu0 0.0
    %584 = vmatpush1.xpose.msra.mxu0 0.0
    %585 = vmatprep.subr.mxu0 0.0
    %586 = vmatpush1.xpose.msra.mxu0 0.0
    %587 = vmatprep.subr.mxu0 0.0
    %588 = vmatpush1.xpose.msra.mxu0 0.0
    %589 = vmatprep.subr.mxu0 0.0
    %590 = vmatpush1.xpose.msra.mxu0 0.0
    %591 = vmatprep.subr.mxu0 0.0
    %592 = vmatpush1.xpose.msra.mxu0 0.0
    %593 = vmatprep.subr.mxu0 0.0
    %594 = vmatpush1.xpose.msra.mxu0 0.0
    %595 = vmatprep.subr.mxu0 0.0
    %596 = vmatpush1.xpose.msra.mxu0 0.0
    %597 = vmatprep.subr.mxu0 0.0
    %598 = vmatpush1.xpose.msra.mxu0 0.0
    %599 = vmatprep.subr.mxu0 0.0
    %600 = vmatpush1.xpose.msra.mxu0 0.0
    %601 = vmatprep.subr.mxu0 0.0
    %602 = vmatpush1.xpose.msra.mxu0 0.0
    %603 = vmatprep.subr.mxu0 0.0
    %604 = vmatpush1.xpose.msra.mxu0 0.0
    %605 = vmatprep.subr.mxu0 0.0
    %606 = vmatpush1.xpose.msra.mxu0 0.0
    %607 = vmatprep.subr.mxu0 0.0
    %608 = vmatpush1.xpose.msra.mxu0 0.0
    %609 = vmatprep.subr.mxu0 0.0
    %610 = vmatpush1.xpose.msra.mxu0 0.0
    %611 = vmatprep.subr.mxu0 0.0
    %612 = vmatpush1.xpose.msra.mxu0 0.0
    %613 = vmatprep.subr.mxu0 0.0
    %614 = vmatpush1.xpose.msra.mxu0 0.0
    %615 = vmatprep.subr.mxu0 0.0
    %616 = vmatpush1.xpose.msra.mxu0 0.0
    %617 = vmatprep.subr.mxu0 0.0
    %618 = vmatpush1.xpose.msra.mxu0 0.0
    %619 = vmatprep.subr.mxu0 0.0
    %620 = vmatpush1.xpose.msra.mxu0 0.0
    %621 = vmatprep.subr.mxu0 0.0
    %622 = vmatpush1.xpose.msra.mxu0 0.0
    %623 = vmatprep.subr.mxu0 0.0
    %624 = vmatpush1.xpose.msra.mxu0 0.0
    %625 = vmatprep.subr.mxu0 0.0
    %626 = vmatpush1.xpose.msra.mxu0 0.0
    %627 = vmatprep.subr.mxu0 0.0
    %628 = vmatpush1.xpose.msra.mxu0 0.0
    %629 = vmatprep.mubr.f32.mxu0 0.0
    %630 = vmatmul.mubr.f32.gmra.mrb[0].mxu0 %v561
    %v631 = vpop.f32.mrb[0].mxu0
    %v632 = vadd.f32 0.0, %v631
    %v633 = vpop.f32.mrb[0].mxu0
    %634 = vdwg.mxu0
    %v635 = vsel %vm302, %v554, -inf
    %636 = vmax.xlane.f32.xlu0 %v635
    %v637 = vpop.xlane.xlu0 %636
    %v638 = vsel %vm302, %v632, -inf
    %639 = vmax.xlane.f32.xlu0 %v638
    %v640 = vpop.xlane.xlu0 %639
    %v641 = vsub.f32 %v554, %v637
    %v642 = vsub.f32 %v632, %v640
    %v643 = vmul.f32 %v641, 1.442695
    %v644 = vpow.pop %v643
    %v645 = vmul.f32 %v642, 1.442695
    %v646 = vpow.pop %v645
    %v647 = vsel %vm302, %v644, 0.0
    %648 = vadd.xlane.f32.xlu0 %v647
    %v649 = vpop.xlane.xlu0 %648
    %v650 = vsel %vm302, %v646, 0.0
    %651 = vadd.xlane.f32.xlu0 %v650
    %v652 = vpop.xlane.xlu0 %651
    %653 = vrot.lane.b32.xlu0 %v139, 60
    %v654 = vpop.permute.xlu0 %653
    %v657 = vsel %vm302, %v644, 0
    %659 = vmatprep.subr.mxu0 0.0
    %660 = vmatpush1.msra.mxu0 %v654
    %661 = vmatprep.subr.mxu0 0.0
    %662 = vmatpush1.msra.mxu0 0.0
    %663 = vmatprep.subr.mxu0 0.0
    %664 = vmatpush1.msra.mxu0 0.0
    %665 = vmatprep.subr.mxu0 0.0
    %666 = vmatpush1.msra.mxu0 0.0
    %667 = vmatprep.subr.mxu0 0.0
    %668 = vmatpush1.msra.mxu0 0.0
    %669 = vmatprep.subr.mxu0 0.0
    %670 = vmatpush1.msra.mxu0 0.0
    %671 = vmatprep.subr.mxu0 0.0
    %672 = vmatpush1.msra.mxu0 0.0
    %673 = vmatprep.subr.mxu0 0.0
    %674 = vmatpush1.msra.mxu0 0.0
    %675 = vmatprep.subr.mxu0 0.0
    %676 = vmatpush1.msra.mxu0 0.0
    %677 = vmatprep.subr.mxu0 0.0
    %678 = vmatpush1.msra.mxu0 0.0
    %679 = vmatprep.subr.mxu0 0.0
    %680 = vmatpush1.msra.mxu0 0.0
    %681 = vmatprep.subr.mxu0 0.0
    %682 = vmatpush1.msra.mxu0 0.0
    %683 = vmatprep.subr.mxu0 0.0
    %684 = vmatpush1.msra.mxu0 0.0
    %685 = vmatprep.subr.mxu0 0.0
    %686 = vmatpush1.msra.mxu0 0.0
    %687 = vmatprep.subr.mxu0 0.0
    %688 = vmatpush1.msra.mxu0 0.0
    %689 = vmatprep.subr.mxu0 0.0
    %690 = vmatpush1.msra.mxu0 0.0
    %691 = vmatprep.subr.mxu0 0.0
    %692 = vmatpush1.msra.mxu0 0.0
    %693 = vmatprep.subr.mxu0 0.0
    %694 = vmatpush1.msra.mxu0 0.0
    %695 = vmatprep.subr.mxu0 0.0
    %696 = vmatpush1.msra.mxu0 0.0
    %697 = vmatprep.subr.mxu0 0.0
    %698 = vmatpush1.msra.mxu0 0.0
    %699 = vmatprep.subr.mxu0 0.0
    %700 = vmatpush1.msra.mxu0 0.0
    %701 = vmatprep.subr.mxu0 0.0
    %702 = vmatpush1.msra.mxu0 0.0
    %703 = vmatprep.subr.mxu0 0.0
    %704 = vmatpush1.msra.mxu0 0.0
    %705 = vmatprep.subr.mxu0 0.0
    %706 = vmatpush1.msra.mxu0 0.0
    %707 = vmatprep.subr.mxu0 0.0
    %708 = vmatpush1.msra.mxu0 0.0
    %709 = vmatprep.subr.mxu0 0.0
    %710 = vmatpush1.msra.mxu0 0.0
    %711 = vmatprep.subr.mxu0 0.0
    %712 = vmatpush1.msra.mxu0 0.0
    %713 = vmatprep.subr.mxu0 0.0
    %714 = vmatpush1.msra.mxu0 0.0
    %715 = vmatprep.subr.mxu0 0.0
    %716 = vmatpush1.msra.mxu0 0.0
    %717 = vmatprep.subr.mxu0 0.0
    %718 = vmatpush1.msra.mxu0 0.0
    %719 = vmatprep.subr.mxu0 0.0
    %720 = vmatpush1.msra.mxu0 0.0
    %721 = vmatprep.subr.mxu0 0.0
    %722 = vmatpush1.msra.mxu0 0.0
    %723 = vmatprep.mubr.f32.mxu0 0.0
    %724 = vmatmul.mubr.f32.gmra.mrb[0].mxu0 %v657
    %v725 = vpop.f32.mrb[0].mxu0
    %v726 = vadd.f32 0.0, %v725
    %v727 = vpop.f32.mrb[0].mxu0
    %728 = vdwg.mxu0
    %729 = vrot.lane.b32.xlu0 %v144, 60
    %v730 = vpop.permute.xlu0 %729
    %v733 = vsel %vm302, %v646, 0
    %735 = vmatprep.subr.mxu0 0.0
    %736 = vmatpush1.msra.mxu0 %v730
    %737 = vmatprep.subr.mxu0 0.0
    %738 = vmatpush1.msra.mxu0 0.0
    %739 = vmatprep.subr.mxu0 0.0
    %740 = vmatpush1.msra.mxu0 0.0
    %741 = vmatprep.subr.mxu0 0.0
    %742 = vmatpush1.msra.mxu0 0.0
    %743 = vmatprep.subr.mxu0 0.0
    %744 = vmatpush1.msra.mxu0 0.0
    %745 = vmatprep.subr.mxu0 0.0
    %746 = vmatpush1.msra.mxu0 0.0
    %747 = vmatprep.subr.mxu0 0.0
    %748 = vmatpush1.msra.mxu0 0.0
    %749 = vmatprep.subr.mxu0 0.0
    %750 = vmatpush1.msra.mxu0 0.0
    %751 = vmatprep.subr.mxu0 0.0
    %752 = vmatpush1.msra.mxu0 0.0
    %753 = vmatprep.subr.mxu0 0.0
    %754 = vmatpush1.msra.mxu0 0.0
    %755 = vmatprep.subr.mxu0 0.0
    %756 = vmatpush1.msra.mxu0 0.0
    %757 = vmatprep.subr.mxu0 0.0
    %758 = vmatpush1.msra.mxu0 0.0
    %759 = vmatprep.subr.mxu0 0.0
    %760 = vmatpush1.msra.mxu0 0.0
    %761 = vmatprep.subr.mxu0 0.0
    %762 = vmatpush1.msra.mxu0 0.0
    %763 = vmatprep.subr.mxu0 0.0
    %764 = vmatpush1.msra.mxu0 0.0
    %765 = vmatprep.subr.mxu0 0.0
    %766 = vmatpush1.msra.mxu0 0.0
    %767 = vmatprep.subr.mxu0 0.0
    %768 = vmatpush1.msra.mxu0 0.0
    %769 = vmatprep.subr.mxu0 0.0
    %770 = vmatpush1.msra.mxu0 0.0
    %771 = vmatprep.subr.mxu0 0.0
    %772 = vmatpush1.msra.mxu0 0.0
    %773 = vmatprep.subr.mxu0 0.0
    %774 = vmatpush1.msra.mxu0 0.0
    %775 = vmatprep.subr.mxu0 0.0
    %776 = vmatpush1.msra.mxu0 0.0
    %777 = vmatprep.subr.mxu0 0.0
    %778 = vmatpush1.msra.mxu0 0.0
    %779 = vmatprep.subr.mxu0 0.0
    %780 = vmatpush1.msra.mxu0 0.0
    %781 = vmatprep.subr.mxu0 0.0
    %782 = vmatpush1.msra.mxu0 0.0
    %783 = vmatprep.subr.mxu0 0.0
    %784 = vmatpush1.msra.mxu0 0.0
    %785 = vmatprep.subr.mxu0 0.0
    %786 = vmatpush1.msra.mxu0 0.0
    %787 = vmatprep.subr.mxu0 0.0
    %788 = vmatpush1.msra.mxu0 0.0
    %789 = vmatprep.subr.mxu0 0.0
    %790 = vmatpush1.msra.mxu0 0.0
    %791 = vmatprep.subr.mxu0 0.0
    %792 = vmatpush1.msra.mxu0 0.0
    %793 = vmatprep.subr.mxu0 0.0
    %794 = vmatpush1.msra.mxu0 0.0
    %795 = vmatprep.subr.mxu0 0.0
    %796 = vmatpush1.msra.mxu0 0.0
    %797 = vmatprep.subr.mxu0 0.0
    %798 = vmatpush1.msra.mxu0 0.0
    %799 = vmatprep.mubr.f32.mxu0 0.0
    %800 = vmatmul.mubr.f32.gmra.mrb[0].mxu0 %v733
    %v801 = vpop.f32.mrb[0].mxu0
    %v802 = vadd.f32 0.0, %v801
    %v803 = vpop.f32.mrb[0].mxu0
    %804 = vdwg.mxu0
    %v805 = vrcp.pop %v649
    %v806 = vrcp.pop %v652
    %v807 = vmul.f32 %v726, %v805
    %v808 = vmul.f32 %v802, %v806
    %811 = vrot.lane.b32.xlu0 %v807, 4
    %v812 = vpop.permute.xlu0 %811
    %813 = vrot.lane.b32.xlu0 %v808, 4
    %v814 = vpop.permute.xlu0 %813
    %vm817 = vcmask 64544
    %818 = vst.msk [vmem:[#allocation2] sm:$0xff] %vm817, %v812
    %819 = vst.msk [vmem:[#allocation2 + $0x8] sm:$0xff] %vm817, %v814
    %820 = vrot.lane.b32.xlu0 %v139, 120
    %v821 = vpop.permute.xlu0 %820
    %822 = vrot.lane.b32.xlu0 %v139, 88
    %v823 = vpop.permute.xlu0 %822
    %v824 = vsel %vm150, %v821, 0
    %v826 = vsel %vm150, %v823, 0
    %828 = vmatprep.subr.mxu0 0.0
    %829 = vmatpush1.xpose.msra.mxu0 %v826
    %830 = vmatprep.subr.mxu0 0.0
    %831 = vmatpush1.xpose.msra.mxu0 0.0
    %832 = vmatprep.subr.mxu0 0.0
    %833 = vmatpush1.xpose.msra.mxu0 0.0
    %834 = vmatprep.subr.mxu0 0.0
    %835 = vmatpush1.xpose.msra.mxu0 0.0
    %836 = vmatprep.subr.mxu0 0.0
    %837 = vmatpush1.xpose.msra.mxu0 0.0
    %838 = vmatprep.subr.mxu0 0.0
    %839 = vmatpush1.xpose.msra.mxu0 0.0
    %840 = vmatprep.subr.mxu0 0.0
    %841 = vmatpush1.xpose.msra.mxu0 0.0
    %842 = vmatprep.subr.mxu0 0.0
    %843 = vmatpush1.xpose.msra.mxu0 0.0
    %844 = vmatprep.subr.mxu0 0.0
    %845 = vmatpush1.xpose.msra.mxu0 0.0
    %846 = vmatprep.subr.mxu0 0.0
    %847 = vmatpush1.xpose.msra.mxu0 0.0
    %848 = vmatprep.subr.mxu0 0.0
    %849 = vmatpush1.xpose.msra.mxu0 0.0
    %850 = vmatprep.subr.mxu0 0.0
    %851 = vmatpush1.xpose.msra.mxu0 0.0
    %852 = vmatprep.subr.mxu0 0.0
    %853 = vmatpush1.xpose.msra.mxu0 0.0
    %854 = vmatprep.subr.mxu0 0.0
    %855 = vmatpush1.xpose.msra.mxu0 0.0
    %856 = vmatprep.subr.mxu0 0.0
    %857 = vmatpush1.xpose.msra.mxu0 0.0
    %858 = vmatprep.subr.mxu0 0.0
    %859 = vmatpush1.xpose.msra.mxu0 0.0
    %860 = vmatprep.subr.mxu0 0.0
    %861 = vmatpush1.xpose.msra.mxu0 0.0
    %862 = vmatprep.subr.mxu0 0.0
    %863 = vmatpush1.xpose.msra.mxu0 0.0
    %864 = vmatprep.subr.mxu0 0.0
    %865 = vmatpush1.xpose.msra.mxu0 0.0
    %866 = vmatprep.subr.mxu0 0.0
    %867 = vmatpush1.xpose.msra.mxu0 0.0
    %868 = vmatprep.subr.mxu0 0.0
    %869 = vmatpush1.xpose.msra.mxu0 0.0
    %870 = vmatprep.subr.mxu0 0.0
    %871 = vmatpush1.xpose.msra.mxu0 0.0
    %872 = vmatprep.subr.mxu0 0.0
    %873 = vmatpush1.xpose.msra.mxu0 0.0
    %874 = vmatprep.subr.mxu0 0.0
    %875 = vmatpush1.xpose.msra.mxu0 0.0
    %876 = vmatprep.subr.mxu0 0.0
    %877 = vmatpush1.xpose.msra.mxu0 0.0
    %878 = vmatprep.subr.mxu0 0.0
    %879 = vmatpush1.xpose.msra.mxu0 0.0
    %880 = vmatprep.subr.mxu0 0.0
    %881 = vmatpush1.xpose.msra.mxu0 0.0
    %882 = vmatprep.subr.mxu0 0.0
    %883 = vmatpush1.xpose.msra.mxu0 0.0
    %884 = vmatprep.subr.mxu0 0.0
    %885 = vmatpush1.xpose.msra.mxu0 0.0
    %886 = vmatprep.subr.mxu0 0.0
    %887 = vmatpush1.xpose.msra.mxu0 0.0
    %888 = vmatprep.subr.mxu0 0.0
    %889 = vmatpush1.xpose.msra.mxu0 0.0
    %890 = vmatprep.subr.mxu0 0.0
    %891 = vmatpush1.xpose.msra.mxu0 0.0
    %892 = vmatprep.mubr.f32.mxu0 0.0
    %893 = vmatmul.mubr.f32.gmra.mrb[0].mxu0 %v824
    %v894 = vpop.f32.mrb[0].mxu0
    %v895 = vadd.f32 0.0, %v894
    %v896 = vpop.f32.mrb[0].mxu0
    %897 = vdwg.mxu0
    %898 = vrot.lane.b32.xlu0 %v144, 120
    %v899 = vpop.permute.xlu0 %898
    %900 = vrot.lane.b32.xlu0 %v144, 88
    %v901 = vpop.permute.xlu0 %900
    %v902 = vsel %vm150, %v899, 0
    %v904 = vsel %vm150, %v901, 0
    %906 = vmatprep.subr.mxu0 0.0
    %907 = vmatpush1.xpose.msra.mxu0 %v904
    %908 = vmatprep.subr.mxu0 0.0
    %909 = vmatpush1.xpose.msra.mxu0 0.0
    %910 = vmatprep.subr.mxu0 0.0
    %911 = vmatpush1.xpose.msra.mxu0 0.0
    %912 = vmatprep.subr.mxu0 0.0
    %913 = vmatpush1.xpose.msra.mxu0 0.0
    %914 = vmatprep.subr.mxu0 0.0
    %915 = vmatpush1.xpose.msra.mxu0 0.0
    %916 = vmatprep.subr.mxu0 0.0
    %917 = vmatpush1.xpose.msra.mxu0 0.0
    %918 = vmatprep.subr.mxu0 0.0
    %919 = vmatpush1.xpose.msra.mxu0 0.0
    %920 = vmatprep.subr.mxu0 0.0
    %921 = vmatpush1.xpose.msra.mxu0 0.0
    %922 = vmatprep.subr.mxu0 0.0
    %923 = vmatpush1.xpose.msra.mxu0 0.0
    %924 = vmatprep.subr.mxu0 0.0
    %925 = vmatpush1.xpose.msra.mxu0 0.0
    %926 = vmatprep.subr.mxu0 0.0
    %927 = vmatpush1.xpose.msra.mxu0 0.0
    %928 = vmatprep.subr.mxu0 0.0
    %929 = vmatpush1.xpose.msra.mxu0 0.0
    %930 = vmatprep.subr.mxu0 0.0
    %931 = vmatpush1.xpose.msra.mxu0 0.0
    %932 = vmatprep.subr.mxu0 0.0
    %933 = vmatpush1.xpose.msra.mxu0 0.0
    %934 = vmatprep.subr.mxu0 0.0
    %935 = vmatpush1.xpose.msra.mxu0 0.0
    %936 = vmatprep.subr.mxu0 0.0
    %937 = vmatpush1.xpose.msra.mxu0 0.0
    %938 = vmatprep.subr.mxu0 0.0
    %939 = vmatpush1.xpose.msra.mxu0 0.0
    %940 = vmatprep.subr.mxu0 0.0
    %941 = vmatpush1.xpose.msra.mxu0 0.0
    %942 = vmatprep.subr.mxu0 0.0
    %943 = vmatpush1.xpose.msra.mxu0 0.0
    %944 = vmatprep.subr.mxu0 0.0
    %945 = vmatpush1.xpose.msra.mxu0 0.0
    %946 = vmatprep.subr.mxu0 0.0
    %947 = vmatpush1.xpose.msra.mxu0 0.0
    %948 = vmatprep.subr.mxu0 0.0
    %949 = vmatpush1.xpose.msra.mxu0 0.0
    %950 = vmatprep.subr.mxu0 0.0
    %951 = vmatpush1.xpose.msra.mxu0 0.0
    %952 = vmatprep.subr.mxu0 0.0
    %953 = vmatpush1.xpose.msra.mxu0 0.0
    %954 = vmatprep.subr.mxu0 0.0
    %955 = vmatpush1.xpose.msra.mxu0 0.0
    %956 = vmatprep.subr.mxu0 0.0
    %957 = vmatpush1.xpose.msra.mxu0 0.0
    %958 = vmatprep.subr.mxu0 0.0
    %959 = vmatpush1.xpose.msra.mxu0 0.0
    %960 = vmatprep.subr.mxu0 0.0
    %961 = vmatpush1.xpose.msra.mxu0 0.0
    %962 = vmatprep.subr.mxu0 0.0
    %963 = vmatpush1.xpose.msra.mxu0 0.0
    %964 = vmatprep.subr.mxu0 0.0
    %965 = vmatpush1.xpose.msra.mxu0 0.0
    %966 = vmatprep.subr.mxu0 0.0
    %967 = vmatpush1.xpose.msra.mxu0 0.0
    %968 = vmatprep.subr.mxu0 0.0
    %969 = vmatpush1.xpose.msra.mxu0 0.0
    %970 = vmatprep.mubr.f32.mxu0 0.0
    %971 = vmatmul.mubr.f32.gmra.mrb[0].mxu0 %v902
    %v972 = vpop.f32.mrb[0].mxu0
    %v973 = vadd.f32 0.0, %v972
    %v974 = vpop.f32.mrb[0].mxu0
    %975 = vdwg.mxu0
    %v976 = vsel %vm302, %v895, -inf
    %977 = vmax.xlane.f32.xlu0 %v976
    %v978 = vpop.xlane.xlu0 %977
    %v979 = vsel %vm302, %v973, -inf
    %980 = vmax.xlane.f32.xlu0 %v979
    %v981 = vpop.xlane.xlu0 %980
    %v982 = vsub.f32 %v895, %v978
    %v983 = vsub.f32 %v973, %v981
    %v984 = vmul.f32 %v982, 1.442695
    %v985 = vpow.pop %v984
    %v986 = vmul.f32 %v983, 1.442695
    %v987 = vpow.pop %v986
    %v988 = vsel %vm302, %v985, 0.0
    %989 = vadd.xlane.f32.xlu0 %v988
    %v990 = vpop.xlane.xlu0 %989
    %v991 = vsel %vm302, %v987, 0.0
    %992 = vadd.xlane.f32.xlu0 %v991
    %v993 = vpop.xlane.xlu0 %992
    %994 = vrot.lane.b32.xlu0 %v139, 56
    %v995 = vpop.permute.xlu0 %994
    %v998 = vsel %vm302, %v985, 0
    %1000 = vmatprep.subr.mxu0 0.0
    %1001 = vmatpush1.msra.mxu0 %v995
    %1002 = vmatprep.subr.mxu0 0.0
    %1003 = vmatpush1.msra.mxu0 0.0
    %1004 = vmatprep.subr.mxu0 0.0
    %1005 = vmatpush1.msra.mxu0 0.0
    %1006 = vmatprep.subr.mxu0 0.0
    %1007 = vmatpush1.msra.mxu0 0.0
    %1008 = vmatprep.subr.mxu0 0.0
    %1009 = vmatpush1.msra.mxu0 0.0
    %1010 = vmatprep.subr.mxu0 0.0
    %1011 = vmatpush1.msra.mxu0 0.0
    %1012 = vmatprep.subr.mxu0 0.0
    %1013 = vmatpush1.msra.mxu0 0.0
    %1014 = vmatprep.subr.mxu0 0.0
    %1015 = vmatpush1.msra.mxu0 0.0
    %1016 = vmatprep.subr.mxu0 0.0
    %1017 = vmatpush1.msra.mxu0 0.0
    %1018 = vmatprep.subr.mxu0 0.0
    %1019 = vmatpush1.msra.mxu0 0.0
    %1020 = vmatprep.subr.mxu0 0.0
    %1021 = vmatpush1.msra.mxu0 0.0
    %1022 = vmatprep.subr.mxu0 0.0
    %1023 = vmatpush1.msra.mxu0 0.0
    %1024 = vmatprep.subr.mxu0 0.0
    %1025 = vmatpush1.msra.mxu0 0.0
    %1026 = vmatprep.subr.mxu0 0.0
    %1027 = vmatpush1.msra.mxu0 0.0
    %1028 = vmatprep.subr.mxu0 0.0
    %1029 = vmatpush1.msra.mxu0 0.0
    %1030 = vmatprep.subr.mxu0 0.0
    %1031 = vmatpush1.msra.mxu0 0.0
    %1032 = vmatprep.subr.mxu0 0.0
    %1033 = vmatpush1.msra.mxu0 0.0
    %1034 = vmatprep.subr.mxu0 0.0
    %1035 = vmatpush1.msra.mxu0 0.0
    %1036 = vmatprep.subr.mxu0 0.0
    %1037 = vmatpush1.msra.mxu0 0.0
    %1038 = vmatprep.subr.mxu0 0.0
    %1039 = vmatpush1.msra.mxu0 0.0
    %1040 = vmatprep.subr.mxu0 0.0
    %1041 = vmatpush1.msra.mxu0 0.0
    %1042 = vmatprep.subr.mxu0 0.0
    %1043 = vmatpush1.msra.mxu0 0.0
    %1044 = vmatprep.subr.mxu0 0.0
    %1045 = vmatpush1.msra.mxu0 0.0
    %1046 = vmatprep.subr.mxu0 0.0
    %1047 = vmatpush1.msra.mxu0 0.0
    %1048 = vmatprep.subr.mxu0 0.0
    %1049 = vmatpush1.msra.mxu0 0.0
    %1050 = vmatprep.subr.mxu0 0.0
    %1051 = vmatpush1.msra.mxu0 0.0
    %1052 = vmatprep.subr.mxu0 0.0
    %1053 = vmatpush1.msra.mxu0 0.0
    %1054 = vmatprep.subr.mxu0 0.0
    %1055 = vmatpush1.msra.mxu0 0.0
    %1056 = vmatprep.subr.mxu0 0.0
    %1057 = vmatpush1.msra.mxu0 0.0
    %1058 = vmatprep.subr.mxu0 0.0
    %1059 = vmatpush1.msra.mxu0 0.0
    %1060 = vmatprep.subr.mxu0 0.0
    %1061 = vmatpush1.msra.mxu0 0.0
    %1062 = vmatprep.subr.mxu0 0.0
    %1063 = vmatpush1.msra.mxu0 0.0
    %1064 = vmatprep.mubr.f32.mxu0 0.0
    %1065 = vmatmul.mubr.f32.gmra.mrb[0].mxu0 %v998
    %v1066 = vpop.f32.mrb[0].mxu0
    %v1067 = vadd.f32 0.0, %v1066
    %v1068 = vpop.f32.mrb[0].mxu0
    %1069 = vdwg.mxu0
    %1070 = vrot.lane.b32.xlu0 %v144, 56
    %v1071 = vpop.permute.xlu0 %1070
    %v1074 = vsel %vm302, %v987, 0
    %1076 = vmatprep.subr.mxu0 0.0
    %1077 = vmatpush1.msra.mxu0 %v1071
    %1078 = vmatprep.subr.mxu0 0.0
    %1079 = vmatpush1.msra.mxu0 0.0
    %1080 = vmatprep.subr.mxu0 0.0
    %1081 = vmatpush1.msra.mxu0 0.0
    %1082 = vmatprep.subr.mxu0 0.0
    %1083 = vmatpush1.msra.mxu0 0.0
    %1084 = vmatprep.subr.mxu0 0.0
    %1085 = vmatpush1.msra.mxu0 0.0
    %1086 = vmatprep.subr.mxu0 0.0
    %1087 = vmatpush1.msra.mxu0 0.0
    %1088 = vmatprep.subr.mxu0 0.0
    %1089 = vmatpush1.msra.mxu0 0.0
    %1090 = vmatprep.subr.mxu0 0.0
    %1091 = vmatpush1.msra.mxu0 0.0
    %1092 = vmatprep.subr.mxu0 0.0
    %1093 = vmatpush1.msra.mxu0 0.0
    %1094 = vmatprep.subr.mxu0 0.0
    %1095 = vmatpush1.msra.mxu0 0.0
    %1096 = vmatprep.subr.mxu0 0.0
    %1097 = vmatpush1.msra.mxu0 0.0
    %1098 = vmatprep.subr.mxu0 0.0
    %1099 = vmatpush1.msra.mxu0 0.0
    %1100 = vmatprep.subr.mxu0 0.0
    %1101 = vmatpush1.msra.mxu0 0.0
    %1102 = vmatprep.subr.mxu0 0.0
    %1103 = vmatpush1.msra.mxu0 0.0
    %1104 = vmatprep.subr.mxu0 0.0
    %1105 = vmatpush1.msra.mxu0 0.0
    %1106 = vmatprep.subr.mxu0 0.0
    %1107 = vmatpush1.msra.mxu0 0.0
    %1108 = vmatprep.subr.mxu0 0.0
    %1109 = vmatpush1.msra.mxu0 0.0
    %1110 = vmatprep.subr.mxu0 0.0
    %1111 = vmatpush1.msra.mxu0 0.0
    %1112 = vmatprep.subr.mxu0 0.0
    %1113 = vmatpush1.msra.mxu0 0.0
    %1114 = vmatprep.subr.mxu0 0.0
    %1115 = vmatpush1.msra.mxu0 0.0
    %1116 = vmatprep.subr.mxu0 0.0
    %1117 = vmatpush1.msra.mxu0 0.0
    %1118 = vmatprep.subr.mxu0 0.0
    %1119 = vmatpush1.msra.mxu0 0.0
    %1120 = vmatprep.subr.mxu0 0.0
    %1121 = vmatpush1.msra.mxu0 0.0
    %1122 = vmatprep.subr.mxu0 0.0
    %1123 = vmatpush1.msra.mxu0 0.0
    %1124 = vmatprep.subr.mxu0 0.0
    %1125 = vmatpush1.msra.mxu0 0.0
    %1126 = vmatprep.subr.mxu0 0.0
    %1127 = vmatpush1.msra.mxu0 0.0
    %1128 = vmatprep.subr.mxu0 0.0
    %1129 = vmatpush1.msra.mxu0 0.0
    %1130 = vmatprep.subr.mxu0 0.0
    %1131 = vmatpush1.msra.mxu0 0.0
    %1132 = vmatprep.subr.mxu0 0.0
    %1133 = vmatpush1.msra.mxu0 0.0
    %1134 = vmatprep.subr.mxu0 0.0
    %1135 = vmatpush1.msra.mxu0 0.0
    %1136 = vmatprep.subr.mxu0 0.0
    %1137 = vmatpush1.msra.mxu0 0.0
    %1138 = vmatprep.subr.mxu0 0.0
    %1139 = vmatpush1.msra.mxu0 0.0
    %1140 = vmatprep.mubr.f32.mxu0 0.0
    %1141 = vmatmul.mubr.f32.gmra.mrb[0].mxu0 %v1074
    %v1142 = vpop.f32.mrb[0].mxu0
    %v1143 = vadd.f32 0.0, %v1142
    %v1144 = vpop.f32.mrb[0].mxu0
    %1145 = vdwg.mxu0
    %v1146 = vrcp.pop %v990
    %v1147 = vrcp.pop %v993
    %v1148 = vmul.f32 %v1067, %v1146
    %v1149 = vmul.f32 %v1143, %v1147
    %1152 = vrot.lane.b32.xlu0 %v1148, 8
    %v1153 = vpop.permute.xlu0 %1152
    %1154 = vrot.lane.b32.xlu0 %v1149, 8
    %v1155 = vpop.permute.xlu0 %1154
    %vm1158 = vcmask 97344
    %1159 = vst.msk [vmem:[#allocation2] sm:$0xff] %vm1158, %v1153
    %1160 = vst.msk [vmem:[#allocation2 + $0x8] sm:$0xff] %vm1158, %v1155
    %1161 = vrot.lane.b32.xlu0 %v139, 116
    %v1162 = vpop.permute.xlu0 %1161
    %1163 = vrot.lane.b32.xlu0 %v139, 84
    %v1164 = vpop.permute.xlu0 %1163
    %v1165 = vsel %vm150, %v1162, 0
    %v1167 = vsel %vm150, %v1164, 0
    %1169 = vmatprep.subr.mxu0 0.0
    %1170 = vmatpush1.xpose.msra.mxu0 %v1167
    %1171 = vmatprep.subr.mxu0 0.0
    %1172 = vmatpush1.xpose.msra.mxu0 0.0
    %1173 = vmatprep.subr.mxu0 0.0
    %1174 = vmatpush1.xpose.msra.mxu0 0.0
    %1175 = vmatprep.subr.mxu0 0.0
    %1176 = vmatpush1.xpose.msra.mxu0 0.0
    %1177 = vmatprep.subr.mxu0 0.0
    %1178 = vmatpush1.xpose.msra.mxu0 0.0
    %1179 = vmatprep.subr.mxu0 0.0
    %1180 = vmatpush1.xpose.msra.mxu0 0.0
    %1181 = vmatprep.subr.mxu0 0.0
    %1182 = vmatpush1.xpose.msra.mxu0 0.0
    %1183 = vmatprep.subr.mxu0 0.0
    %1184 = vmatpush1.xpose.msra.mxu0 0.0
    %1185 = vmatprep.subr.mxu0 0.0
    %1186 = vmatpush1.xpose.msra.mxu0 0.0
    %1187 = vmatprep.subr.mxu0 0.0
    %1188 = vmatpush1.xpose.msra.mxu0 0.0
    %1189 = vmatprep.subr.mxu0 0.0
    %1190 = vmatpush1.xpose.msra.mxu0 0.0
    %1191 = vmatprep.subr.mxu0 0.0
    %1192 = vmatpush1.xpose.msra.mxu0 0.0
    %1193 = vmatprep.subr.mxu0 0.0
    %1194 = vmatpush1.xpose.msra.mxu0 0.0
    %1195 = vmatprep.subr.mxu0 0.0
    %1196 = vmatpush1.xpose.msra.mxu0 0.0
    %1197 = vmatprep.subr.mxu0 0.0
    %1198 = vmatpush1.xpose.msra.mxu0 0.0
    %1199 = vmatprep.subr.mxu0 0.0
    %1200 = vmatpush1.xpose.msra.mxu0 0.0
    %1201 = vmatprep.subr.mxu0 0.0
    %1202 = vmatpush1.xpose.msra.mxu0 0.0
    %1203 = vmatprep.subr.mxu0 0.0
    %1204 = vmatpush1.xpose.msra.mxu0 0.0
    %1205 = vmatprep.subr.mxu0 0.0
    %1206 = vmatpush1.xpose.msra.mxu0 0.0
    %1207 = vmatprep.subr.mxu0 0.0
    %1208 = vmatpush1.xpose.msra.mxu0 0.0
    %1209 = vmatprep.subr.mxu0 0.0
    %1210 = vmatpush1.xpose.msra.mxu0 0.0
    %1211 = vmatprep.subr.mxu0 0.0
    %1212 = vmatpush1.xpose.msra.mxu0 0.0
    %1213 = vmatprep.subr.mxu0 0.0
    %1214 = vmatpush1.xpose.msra.mxu0 0.0
    %1215 = vmatprep.subr.mxu0 0.0
    %1216 = vmatpush1.xpose.msra.mxu0 0.0
    %1217 = vmatprep.subr.mxu0 0.0
    %1218 = vmatpush1.xpose.msra.mxu0 0.0
    %1219 = vmatprep.subr.mxu0 0.0
    %1220 = vmatpush1.xpose.msra.mxu0 0.0
    %1221 = vmatprep.subr.mxu0 0.0
    %1222 = vmatpush1.xpose.msra.mxu0 0.0
    %1223 = vmatprep.subr.mxu0 0.0
    %1224 = vmatpush1.xpose.msra.mxu0 0.0
    %1225 = vmatprep.subr.mxu0 0.0
    %1226 = vmatpush1.xpose.msra.mxu0 0.0
    %1227 = vmatprep.subr.mxu0 0.0
    %1228 = vmatpush1.xpose.msra.mxu0 0.0
    %1229 = vmatprep.subr.mxu0 0.0
    %1230 = vmatpush1.xpose.msra.mxu0 0.0
    %1231 = vmatprep.subr.mxu0 0.0
    %1232 = vmatpush1.xpose.msra.mxu0 0.0
    %1233 = vmatprep.mubr.f32.mxu0 0.0
    %1234 = vmatmul.mubr.f32.gmra.mrb[0].mxu0 %v1165
    %v1235 = vpop.f32.mrb[0].mxu0
    %v1236 = vadd.f32 0.0, %v1235
    %v1237 = vpop.f32.mrb[0].mxu0
    %1238 = vdwg.mxu0
    %1239 = vrot.lane.b32.xlu0 %v144, 116
    %v1240 = vpop.permute.xlu0 %1239
    %1241 = vrot.lane.b32.xlu0 %v144, 84
    %v1242 = vpop.permute.xlu0 %1241
    %v1243 = vsel %vm150, %v1240, 0
    %v1245 = vsel %vm150, %v1242, 0
    %1247 = vmatprep.subr.mxu0 0.0
    %1248 = vmatpush1.xpose.msra.mxu0 %v1245
    %1249 = vmatprep.subr.mxu0 0.0
    %1250 = vmatpush1.xpose.msra.mxu0 0.0
    %1251 = vmatprep.subr.mxu0 0.0
    %1252 = vmatpush1.xpose.msra.mxu0 0.0
    %1253 = vmatprep.subr.mxu0 0.0
    %1254 = vmatpush1.xpose.msra.mxu0 0.0
    %1255 = vmatprep.subr.mxu0 0.0
    %1256 = vmatpush1.xpose.msra.mxu0 0.0
    %1257 = vmatprep.subr.mxu0 0.0
    %1258 = vmatpush1.xpose.msra.mxu0 0.0
    %1259 = vmatprep.subr.mxu0 0.0
    %1260 = vmatpush1.xpose.msra.mxu0 0.0
    %1261 = vmatprep.subr.mxu0 0.0
    %1262 = vmatpush1.xpose.msra.mxu0 0.0
    %1263 = vmatprep.subr.mxu0 0.0
    %1264 = vmatpush1.xpose.msra.mxu0 0.0
    %1265 = vmatprep.subr.mxu0 0.0
    %1266 = vmatpush1.xpose.msra.mxu0 0.0
    %1267 = vmatprep.subr.mxu0 0.0
    %1268 = vmatpush1.xpose.msra.mxu0 0.0
    %1269 = vmatprep.subr.mxu0 0.0
    %1270 = vmatpush1.xpose.msra.mxu0 0.0
    %1271 = vmatprep.subr.mxu0 0.0
    %1272 = vmatpush1.xpose.msra.mxu0 0.0
    %1273 = vmatprep.subr.mxu0 0.0
    %1274 = vmatpush1.xpose.msra.mxu0 0.0
    %1275 = vmatprep.subr.mxu0 0.0
    %1276 = vmatpush1.xpose.msra.mxu0 0.0
    %1277 = vmatprep.subr.mxu0 0.0
    %1278 = vmatpush1.xpose.msra.mxu0 0.0
    %1279 = vmatprep.subr.mxu0 0.0
    %1280 = vmatpush1.xpose.msra.mxu0 0.0
    %1281 = vmatprep.subr.mxu0 0.0
    %1282 = vmatpush1.xpose.msra.mxu0 0.0
    %1283 = vmatprep.subr.mxu0 0.0
    %1284 = vmatpush1.xpose.msra.mxu0 0.0
    %1285 = vmatprep.subr.mxu0 0.0
    %1286 = vmatpush1.xpose.msra.mxu0 0.0
    %1287 = vmatprep.subr.mxu0 0.0
    %1288 = vmatpush1.xpose.msra.mxu0 0.0
    %1289 = vmatprep.subr.mxu0 0.0
    %1290 = vmatpush1.xpose.msra.mxu0 0.0
    %1291 = vmatprep.subr.mxu0 0.0
    %1292 = vmatpush1.xpose.msra.mxu0 0.0
    %1293 = vmatprep.subr.mxu0 0.0
    %1294 = vmatpush1.xpose.msra.mxu0 0.0
    %1295 = vmatprep.subr.mxu0 0.0
    %1296 = vmatpush1.xpose.msra.mxu0 0.0
    %1297 = vmatprep.subr.mxu0 0.0
    %1298 = vmatpush1.xpose.msra.mxu0 0.0
    %1299 = vmatprep.subr.mxu0 0.0
    %1300 = vmatpush1.xpose.msra.mxu0 0.0
    %1301 = vmatprep.subr.mxu0 0.0
    %1302 = vmatpush1.xpose.msra.mxu0 0.0
    %1303 = vmatprep.subr.mxu0 0.0
    %1304 = vmatpush1.xpose.msra.mxu0 0.0
    %1305 = vmatprep.subr.mxu0 0.0
    %1306 = vmatpush1.xpose.msra.mxu0 0.0
    %1307 = vmatprep.subr.mxu0 0.0
    %1308 = vmatpush1.xpose.msra.mxu0 0.0
    %1309 = vmatprep.subr.mxu0 0.0
    %1310 = vmatpush1.xpose.msra.mxu0 0.0
    %1311 = vmatprep.mubr.f32.mxu0 0.0
    %1312 = vmatmul.mubr.f32.gmra.mrb[0].mxu0 %v1243
    %v1313 = vpop.f32.mrb[0].mxu0
    %v1314 = vadd.f32 0.0, %v1313
    %v1315 = vpop.f32.mrb[0].mxu0
    %1316 = vdwg.mxu0
    %v1317 = vsel %vm302, %v1236, -inf
    %1318 = vmax.xlane.f32.xlu0 %v1317
    %v1319 = vpop.xlane.xlu0 %1318
    %v1320 = vsel %vm302, %v1314, -inf
    %1321 = vmax.xlane.f32.xlu0 %v1320
    %v1322 = vpop.xlane.xlu0 %1321
    %v1323 = vsub.f32 %v1236, %v1319
    %v1324 = vsub.f32 %v1314, %v1322
    %v1325 = vmul.f32 %v1323, 1.442695
    %v1326 = vpow.pop %v1325
    %v1327 = vmul.f32 %v1324, 1.442695
    %v1328 = vpow.pop %v1327
    %v1329 = vsel %vm302, %v1326, 0.0
    %1330 = vadd.xlane.f32.xlu0 %v1329
    %v1331 = vpop.xlane.xlu0 %1330
    %v1332 = vsel %vm302, %v1328, 0.0
    %1333 = vadd.xlane.f32.xlu0 %v1332
    %v1334 = vpop.xlane.xlu0 %1333
    %1335 = vrot.lane.b32.xlu0 %v139, 52
    %v1336 = vpop.permute.xlu0 %1335
    %v1339 = vsel %vm302, %v1326, 0
    %1341 = vmatprep.subr.mxu0 0.0
    %1342 = vmatpush1.msra.mxu0 %v1336
    %1343 = vmatprep.subr.mxu0 0.0
    %1344 = vmatpush1.msra.mxu0 0.0
    %1345 = vmatprep.subr.mxu0 0.0
    %1346 = vmatpush1.msra.mxu0 0.0
    %1347 = vmatprep.subr.mxu0 0.0
    %1348 = vmatpush1.msra.mxu0 0.0
    %1349 = vmatprep.subr.mxu0 0.0
    %1350 = vmatpush1.msra.mxu0 0.0
    %1351 = vmatprep.subr.mxu0 0.0
    %1352 = vmatpush1.msra.mxu0 0.0
    %1353 = vmatprep.subr.mxu0 0.0
    %1354 = vmatpush1.msra.mxu0 0.0
    %1355 = vmatprep.subr.mxu0 0.0
    %1356 = vmatpush1.msra.mxu0 0.0
    %1357 = vmatprep.subr.mxu0 0.0
    %1358 = vmatpush1.msra.mxu0 0.0
    %1359 = vmatprep.subr.mxu0 0.0
    %1360 = vmatpush1.msra.mxu0 0.0
    %1361 = vmatprep.subr.mxu0 0.0
    %1362 = vmatpush1.msra.mxu0 0.0
    %1363 = vmatprep.subr.mxu0 0.0
    %1364 = vmatpush1.msra.mxu0 0.0
    %1365 = vmatprep.subr.mxu0 0.0
    %1366 = vmatpush1.msra.mxu0 0.0
    %1367 = vmatprep.subr.mxu0 0.0
    %1368 = vmatpush1.msra.mxu0 0.0
    %1369 = vmatprep.subr.mxu0 0.0
    %1370 = vmatpush1.msra.mxu0 0.0
    %1371 = vmatprep.subr.mxu0 0.0
    %1372 = vmatpush1.msra.mxu0 0.0
    %1373 = vmatprep.subr.mxu0 0.0
    %1374 = vmatpush1.msra.mxu0 0.0
    %1375 = vmatprep.subr.mxu0 0.0
    %1376 = vmatpush1.msra.mxu0 0.0
    %1377 = vmatprep.subr.mxu0 0.0
    %1378 = vmatpush1.msra.mxu0 0.0
    %1379 = vmatprep.subr.mxu0 0.0
    %1380 = vmatpush1.msra.mxu0 0.0
    %1381 = vmatprep.subr.mxu0 0.0
    %1382 = vmatpush1.msra.mxu0 0.0
    %1383 = vmatprep.subr.mxu0 0.0
    %1384 = vmatpush1.msra.mxu0 0.0
    %1385 = vmatprep.subr.mxu0 0.0
    %1386 = vmatpush1.msra.mxu0 0.0
    %1387 = vmatprep.subr.mxu0 0.0
    %1388 = vmatpush1.msra.mxu0 0.0
    %1389 = vmatprep.subr.mxu0 0.0
    %1390 = vmatpush1.msra.mxu0 0.0
    %1391 = vmatprep.subr.mxu0 0.0
    %1392 = vmatpush1.msra.mxu0 0.0
    %1393 = vmatprep.subr.mxu0 0.0
    %1394 = vmatpush1.msra.mxu0 0.0
    %1395 = vmatprep.subr.mxu0 0.0
    %1396 = vmatpush1.msra.mxu0 0.0
    %1397 = vmatprep.subr.mxu0 0.0
    %1398 = vmatpush1.msra.mxu0 0.0
    %1399 = vmatprep.subr.mxu0 0.0
    %1400 = vmatpush1.msra.mxu0 0.0
    %1401 = vmatprep.subr.mxu0 0.0
    %1402 = vmatpush1.msra.mxu0 0.0
    %1403 = vmatprep.subr.mxu0 0.0
    %1404 = vmatpush1.msra.mxu0 0.0
    %1405 = vmatprep.mubr.f32.mxu0 0.0
    %1406 = vmatmul.mubr.f32.gmra.mrb[0].mxu0 %v1339
    %v1407 = vpop.f32.mrb[0].mxu0
    %v1408 = vadd.f32 0.0, %v1407
    %v1409 = vpop.f32.mrb[0].mxu0
    %1410 = vdwg.mxu0
    %1411 = vrot.lane.b32.xlu0 %v144, 52
    %v1412 = vpop.permute.xlu0 %1411
    %v1415 = vsel %vm302, %v1328, 0
    %1417 = vmatprep.subr.mxu0 0.0
    %1418 = vmatpush1.msra.mxu0 %v1412
    %1419 = vmatprep.subr.mxu0 0.0
    %1420 = vmatpush1.msra.mxu0 0.0
    %1421 = vmatprep.subr.mxu0 0.0
    %1422 = vmatpush1.msra.mxu0 0.0
    %1423 = vmatprep.subr.mxu0 0.0
    %1424 = vmatpush1.msra.mxu0 0.0
    %1425 = vmatprep.subr.mxu0 0.0
    %1426 = vmatpush1.msra.mxu0 0.0
    %1427 = vmatprep.subr.mxu0 0.0
    %1428 = vmatpush1.msra.mxu0 0.0
    %1429 = vmatprep.subr.mxu0 0.0
    %1430 = vmatpush1.msra.mxu0 0.0
    %1431 = vmatprep.subr.mxu0 0.0
    %1432 = vmatpush1.msra.mxu0 0.0
    %1433 = vmatprep.subr.mxu0 0.0
    %1434 = vmatpush1.msra.mxu0 0.0
    %1435 = vmatprep.subr.mxu0 0.0
    %1436 = vmatpush1.msra.mxu0 0.0
    %1437 = vmatprep.subr.mxu0 0.0
    %1438 = vmatpush1.msra.mxu0 0.0
    %1439 = vmatprep.subr.mxu0 0.0
    %1440 = vmatpush1.msra.mxu0 0.0
    %1441 = vmatprep.subr.mxu0 0.0
    %1442 = vmatpush1.msra.mxu0 0.0
    %1443 = vmatprep.subr.mxu0 0.0
    %1444 = vmatpush1.msra.mxu0 0.0
    %1445 = vmatprep.subr.mxu0 0.0
    %1446 = vmatpush1.msra.mxu0 0.0
    %1447 = vmatprep.subr.mxu0 0.0
    %1448 = vmatpush1.msra.mxu0 0.0
    %1449 = vmatprep.subr.mxu0 0.0
    %1450 = vmatpush1.msra.mxu0 0.0
    %1451 = vmatprep.subr.mxu0 0.0
    %1452 = vmatpush1.msra.mxu0 0.0
    %1453 = vmatprep.subr.mxu0 0.0
    %1454 = vmatpush1.msra.mxu0 0.0
    %1455 = vmatprep.subr.mxu0 0.0
    %1456 = vmatpush1.msra.mxu0 0.0
    %1457 = vmatprep.subr.mxu0 0.0
    %1458 = vmatpush1.msra.mxu0 0.0
    %1459 = vmatprep.subr.mxu0 0.0
    %1460 = vmatpush1.msra.mxu0 0.0
    %1461 = vmatprep.subr.mxu0 0.0
    %1462 = vmatpush1.msra.mxu0 0.0
    %1463 = vmatprep.subr.mxu0 0.0
    %1464 = vmatpush1.msra.mxu0 0.0
    %1465 = vmatprep.subr.mxu0 0.0
    %1466 = vmatpush1.msra.mxu0 0.0
    %1467 = vmatprep.subr.mxu0 0.0
    %1468 = vmatpush1.msra.mxu0 0.0
    %1469 = vmatprep.subr.mxu0 0.0
    %1470 = vmatpush1.msra.mxu0 0.0
    %1471 = vmatprep.subr.mxu0 0.0
    %1472 = vmatpush1.msra.mxu0 0.0
    %1473 = vmatprep.subr.mxu0 0.0
    %1474 = vmatpush1.msra.mxu0 0.0
    %1475 = vmatprep.subr.mxu0 0.0
    %1476 = vmatpush1.msra.mxu0 0.0
    %1477 = vmatprep.subr.mxu0 0.0
    %1478 = vmatpush1.msra.mxu0 0.0
    %1479 = vmatprep.subr.mxu0 0.0
    %1480 = vmatpush1.msra.mxu0 0.0
    %1481 = vmatprep.mubr.f32.mxu0 0.0
    %1482 = vmatmul.mubr.f32.gmra.mrb[0].mxu0 %v1415
    %v1483 = vpop.f32.mrb[0].mxu0
    %v1484 = vadd.f32 0.0, %v1483
    %v1485 = vpop.f32.mrb[0].mxu0
    %1486 = vdwg.mxu0
    %v1487 = vrcp.pop %v1331
    %v1488 = vrcp.pop %v1334
    %v1489 = vmul.f32 %v1408, %v1487
    %v1490 = vmul.f32 %v1484, %v1488
    %1493 = vrot.lane.b32.xlu0 %v1489, 12
    %v1494 = vpop.permute.xlu0 %1493
    %1495 = vrot.lane.b32.xlu0 %v1490, 12
    %v1496 = vpop.permute.xlu0 %1495
    %vm1499 = vcmask 130144
    %1500 = vst.msk [vmem:[#allocation2] sm:$0xff] %vm1499, %v1494
    %1501 = vst.msk [vmem:[#allocation2 + $0x8] sm:$0xff] %vm1499, %v1496
    %1502 = vrot.lane.b32.xlu0 %v139, 112
    %v1503 = vpop.permute.xlu0 %1502
    %1504 = vrot.lane.b32.xlu0 %v139, 80
    %v1505 = vpop.permute.xlu0 %1504
    %v1506 = vsel %vm150, %v1503, 0
    %v1508 = vsel %vm150, %v1505, 0
    %1510 = vmatprep.subr.mxu0 0.0
    %1511 = vmatpush1.xpose.msra.mxu0 %v1508
    %1512 = vmatprep.subr.mxu0 0.0
    %1513 = vmatpush1.xpose.msra.mxu0 0.0
    %1514 = vmatprep.subr.mxu0 0.0
    %1515 = vmatpush1.xpose.msra.mxu0 0.0
    %1516 = vmatprep.subr.mxu0 0.0
    %1517 = vmatpush1.xpose.msra.mxu0 0.0
    %1518 = vmatprep.subr.mxu0 0.0
    %1519 = vmatpush1.xpose.msra.mxu0 0.0
    %1520 = vmatprep.subr.mxu0 0.0
    %1521 = vmatpush1.xpose.msra.mxu0 0.0
    %1522 = vmatprep.subr.mxu0 0.0
    %1523 = vmatpush1.xpose.msra.mxu0 0.0
    %1524 = vmatprep.subr.mxu0 0.0
    %1525 = vmatpush1.xpose.msra.mxu0 0.0
    %1526 = vmatprep.subr.mxu0 0.0
    %1527 = vmatpush1.xpose.msra.mxu0 0.0
    %1528 = vmatprep.subr.mxu0 0.0
    %1529 = vmatpush1.xpose.msra.mxu0 0.0
    %1530 = vmatprep.subr.mxu0 0.0
    %1531 = vmatpush1.xpose.msra.mxu0 0.0
    %1532 = vmatprep.subr.mxu0 0.0
    %1533 = vmatpush1.xpose.msra.mxu0 0.0
    %1534 = vmatprep.subr.mxu0 0.0
    %1535 = vmatpush1.xpose.msra.mxu0 0.0
    %1536 = vmatprep.subr.mxu0 0.0
    %1537 = vmatpush1.xpose.msra.mxu0 0.0
    %1538 = vmatprep.subr.mxu0 0.0
    %1539 = vmatpush1.xpose.msra.mxu0 0.0
    %1540 = vmatprep.subr.mxu0 0.0
    %1541 = vmatpush1.xpose.msra.mxu0 0.0
    %1542 = vmatprep.subr.mxu0 0.0
    %1543 = vmatpush1.xpose.msra.mxu0 0.0
    %1544 = vmatprep.subr.mxu0 0.0
    %1545 = vmatpush1.xpose.msra.mxu0 0.0
    %1546 = vmatprep.subr.mxu0 0.0
    %1547 = vmatpush1.xpose.msra.mxu0 0.0
    %1548 = vmatprep.subr.mxu0 0.0
    %1549 = vmatpush1.xpose.msra.mxu0 0.0
    %1550 = vmatprep.subr.mxu0 0.0
    %1551 = vmatpush1.xpose.msra.mxu0 0.0
    %1552 = vmatprep.subr.mxu0 0.0
    %1553 = vmatpush1.xpose.msra.mxu0 0.0
    %1554 = vmatprep.subr.mxu0 0.0
    %1555 = vmatpush1.xpose.msra.mxu0 0.0
    %1556 = vmatprep.subr.mxu0 0.0
    %1557 = vmatpush1.xpose.msra.mxu0 0.0
    %1558 = vmatprep.subr.mxu0 0.0
    %1559 = vmatpush1.xpose.msra.mxu0 0.0
    %1560 = vmatprep.subr.mxu0 0.0
    %1561 = vmatpush1.xpose.msra.mxu0 0.0
    %1562 = vmatprep.subr.mxu0 0.0
    %1563 = vmatpush1.xpose.msra.mxu0 0.0
    %1564 = vmatprep.subr.mxu0 0.0
    %1565 = vmatpush1.xpose.msra.mxu0 0.0
    %1566 = vmatprep.subr.mxu0 0.0
    %1567 = vmatpush1.xpose.msra.mxu0 0.0
    %1568 = vmatprep.subr.mxu0 0.0
    %1569 = vmatpush1.xpose.msra.mxu0 0.0
    %1570 = vmatprep.subr.mxu0 0.0
    %1571 = vmatpush1.xpose.msra.mxu0 0.0
    %1572 = vmatprep.subr.mxu0 0.0
    %1573 = vmatpush1.xpose.msra.mxu0 0.0
    %1574 = vmatprep.mubr.f32.mxu0 0.0
    %1575 = vmatmul.mubr.f32.gmra.mrb[0].mxu0 %v1506
    %v1576 = vpop.f32.mrb[0].mxu0
    %v1577 = vadd.f32 0.0, %v1576
    %v1578 = vpop.f32.mrb[0].mxu0
    %1579 = vdwg.mxu0
    %1580 = vrot.lane.b32.xlu0 %v144, 112
    %v1581 = vpop.permute.xlu0 %1580
    %1582 = vrot.lane.b32.xlu0 %v144, 80
    %v1583 = vpop.permute.xlu0 %1582
    %v1584 = vsel %vm150, %v1581, 0
    %v1586 = vsel %vm150, %v1583, 0
    %1588 = vmatprep.subr.mxu0 0.0
    %1589 = vmatpush1.xpose.msra.mxu0 %v1586
    %1590 = vmatprep.subr.mxu0 0.0
    %1591 = vmatpush1.xpose.msra.mxu0 0.0
    %1592 = vmatprep.subr.mxu0 0.0
    %1593 = vmatpush1.xpose.msra.mxu0 0.0
    %1594 = vmatprep.subr.mxu0 0.0
    %1595 = vmatpush1.xpose.msra.mxu0 0.0
    %1596 = vmatprep.subr.mxu0 0.0
    %1597 = vmatpush1.xpose.msra.mxu0 0.0
    %1598 = vmatprep.subr.mxu0 0.0
    %1599 = vmatpush1.xpose.msra.mxu0 0.0
    %1600 = vmatprep.subr.mxu0 0.0
    %1601 = vmatpush1.xpose.msra.mxu0 0.0
    %1602 = vmatprep.subr.mxu0 0.0
    %1603 = vmatpush1.xpose.msra.mxu0 0.0
    %1604 = vmatprep.subr.mxu0 0.0
    %1605 = vmatpush1.xpose.msra.mxu0 0.0
    %1606 = vmatprep.subr.mxu0 0.0
    %1607 = vmatpush1.xpose.msra.mxu0 0.0
    %1608 = vmatprep.subr.mxu0 0.0
    %1609 = vmatpush1.xpose.msra.mxu0 0.0
    %1610 = vmatprep.subr.mxu0 0.0
    %1611 = vmatpush1.xpose.msra.mxu0 0.0
    %1612 = vmatprep.subr.mxu0 0.0
    %1613 = vmatpush1.xpose.msra.mxu0 0.0
    %1614 = vmatprep.subr.mxu0 0.0
    %1615 = vmatpush1.xpose.msra.mxu0 0.0
    %1616 = vmatprep.subr.mxu0 0.0
    %1617 = vmatpush1.xpose.msra.mxu0 0.0
    %1618 = vmatprep.subr.mxu0 0.0
    %1619 = vmatpush1.xpose.msra.mxu0 0.0
    %1620 = vmatprep.subr.mxu0 0.0
    %1621 = vmatpush1.xpose.msra.mxu0 0.0
    %1622 = vmatprep.subr.mxu0 0.0
    %1623 = vmatpush1.xpose.msra.mxu0 0.0
    %1624 = vmatprep.subr.mxu0 0.0
    %1625 = vmatpush1.xpose.msra.mxu0 0.0
    %1626 = vmatprep.subr.mxu0 0.0
    %1627 = vmatpush1.xpose.msra.mxu0 0.0
    %1628 = vmatprep.subr.mxu0 0.0
    %1629 = vmatpush1.xpose.msra.mxu0 0.0
    %1630 = vmatprep.subr.mxu0 0.0
    %1631 = vmatpush1.xpose.msra.mxu0 0.0
    %1632 = vmatprep.subr.mxu0 0.0
    %1633 = vmatpush1.xpose.msra.mxu0 0.0
    %1634 = vmatprep.subr.mxu0 0.0
    %1635 = vmatpush1.xpose.msra.mxu0 0.0
    %1636 = vmatprep.subr.mxu0 0.0
    %1637 = vmatpush1.xpose.msra.mxu0 0.0
    %1638 = vmatprep.subr.mxu0 0.0
    %1639 = vmatpush1.xpose.msra.mxu0 0.0
    %1640 = vmatprep.subr.mxu0 0.0
    %1641 = vmatpush1.xpose.msra.mxu0 0.0
    %1642 = vmatprep.subr.mxu0 0.0
    %1643 = vmatpush1.xpose.msra.mxu0 0.0
    %1644 = vmatprep.subr.mxu0 0.0
    %1645 = vmatpush1.xpose.msra.mxu0 0.0
    %1646 = vmatprep.subr.mxu0 0.0
    %1647 = vmatpush1.xpose.msra.mxu0 0.0
    %1648 = vmatprep.subr.mxu0 0.0
    %1649 = vmatpush1.xpose.msra.mxu0 0.0
    %1650 = vmatprep.subr.mxu0 0.0
    %1651 = vmatpush1.xpose.msra.mxu0 0.0
    %1652 = vmatprep.mubr.f32.mxu0 0.0
    %1653 = vmatmul.mubr.f32.gmra.mrb[0].mxu0 %v1584
    %v1654 = vpop.f32.mrb[0].mxu0
    %v1655 = vadd.f32 0.0, %v1654
    %v1656 = vpop.f32.mrb[0].mxu0
    %1657 = vdwg.mxu0
    %v1658 = vsel %vm302, %v1577, -inf
    %1659 = vmax.xlane.f32.xlu0 %v1658
    %v1660 = vpop.xlane.xlu0 %1659
    %v1661 = vsel %vm302, %v1655, -inf
    %1662 = vmax.xlane.f32.xlu0 %v1661
    %v1663 = vpop.xlane.xlu0 %1662
    %v1664 = vsub.f32 %v1577, %v1660
    %v1665 = vsub.f32 %v1655, %v1663
    %v1666 = vmul.f32 %v1664, 1.442695
    %v1667 = vpow.pop %v1666
    %v1668 = vmul.f32 %v1665, 1.442695
    %v1669 = vpow.pop %v1668
    %v1670 = vsel %vm302, %v1667, 0.0
    %1671 = vadd.xlane.f32.xlu0 %v1670
    %v1672 = vpop.xlane.xlu0 %1671
    %v1673 = vsel %vm302, %v1669, 0.0
    %1674 = vadd.xlane.f32.xlu0 %v1673
    %v1675 = vpop.xlane.xlu0 %1674
    %1676 = vrot.lane.b32.xlu0 %v139, 48
    %v1677 = vpop.permute.xlu0 %1676
    %v1680 = vsel %vm302, %v1667, 0
    %1682 = vmatprep.subr.mxu0 0.0
    %1683 = vmatpush1.msra.mxu0 %v1677
    %1684 = vmatprep.subr.mxu0 0.0
    %1685 = vmatpush1.msra.mxu0 0.0
    %1686 = vmatprep.subr.mxu0 0.0
    %1687 = vmatpush1.msra.mxu0 0.0
    %1688 = vmatprep.subr.mxu0 0.0
    %1689 = vmatpush1.msra.mxu0 0.0
    %1690 = vmatprep.subr.mxu0 0.0
    %1691 = vmatpush1.msra.mxu0 0.0
    %1692 = vmatprep.subr.mxu0 0.0
    %1693 = vmatpush1.msra.mxu0 0.0
    %1694 = vmatprep.subr.mxu0 0.0
    %1695 = vmatpush1.msra.mxu0 0.0
    %1696 = vmatprep.subr.mxu0 0.0
    %1697 = vmatpush1.msra.mxu0 0.0
    %1698 = vmatprep.subr.mxu0 0.0
    %1699 = vmatpush1.msra.mxu0 0.0
    %1700 = vmatprep.subr.mxu0 0.0
    %1701 = vmatpush1.msra.mxu0 0.0
    %1702 = vmatprep.subr.mxu0 0.0
    %1703 = vmatpush1.msra.mxu0 0.0
    %1704 = vmatprep.subr.mxu0 0.0
    %1705 = vmatpush1.msra.mxu0 0.0
    %1706 = vmatprep.subr.mxu0 0.0
    %1707 = vmatpush1.msra.mxu0 0.0
    %1708 = vmatprep.subr.mxu0 0.0
    %1709 = vmatpush1.msra.mxu0 0.0
    %1710 = vmatprep.subr.mxu0 0.0
    %1711 = vmatpush1.msra.mxu0 0.0
    %1712 = vmatprep.subr.mxu0 0.0
    %1713 = vmatpush1.msra.mxu0 0.0
    %1714 = vmatprep.subr.mxu0 0.0
    %1715 = vmatpush1.msra.mxu0 0.0
    %1716 = vmatprep.subr.mxu0 0.0
    %1717 = vmatpush1.msra.mxu0 0.0
    %1718 = vmatprep.subr.mxu0 0.0
    %1719 = vmatpush1.msra.mxu0 0.0
    %1720 = vmatprep.subr.mxu0 0.0
    %1721 = vmatpush1.msra.mxu0 0.0
    %1722 = vmatprep.subr.mxu0 0.0
    %1723 = vmatpush1.msra.mxu0 0.0
    %1724 = vmatprep.subr.mxu0 0.0
    %1725 = vmatpush1.msra.mxu0 0.0
    %1726 = vmatprep.subr.mxu0 0.0
    %1727 = vmatpush1.msra.mxu0 0.0
    %1728 = vmatprep.subr.mxu0 0.0
    %1729 = vmatpush1.msra.mxu0 0.0
    %1730 = vmatprep.subr.mxu0 0.0
    %1731 = vmatpush1.msra.mxu0 0.0
    %1732 = vmatprep.subr.mxu0 0.0
    %1733 = vmatpush1.msra.mxu0 0.0
    %1734 = vmatprep.subr.mxu0 0.0
    %1735 = vmatpush1.msra.mxu0 0.0
    %1736 = vmatprep.subr.mxu0 0.0
    %1737 = vmatpush1.msra.mxu0 0.0
    %1738 = vmatprep.subr.mxu0 0.0
    %1739 = vmatpush1.msra.mxu0 0.0
    %1740 = vmatprep.subr.mxu0 0.0
    %1741 = vmatpush1.msra.mxu0 0.0
    %1742 = vmatprep.subr.mxu0 0.0
    %1743 = vmatpush1.msra.mxu0 0.0
    %1744 = vmatprep.subr.mxu0 0.0
    %1745 = vmatpush1.msra.mxu0 0.0
    %1746 = vmatprep.mubr.f32.mxu0 0.0
    %1747 = vmatmul.mubr.f32.gmra.mrb[0].mxu0 %v1680
    %v1748 = vpop.f32.mrb[0].mxu0
    %v1749 = vadd.f32 0.0, %v1748
    %v1750 = vpop.f32.mrb[0].mxu0
    %1751 = vdwg.mxu0
    %1752 = vrot.lane.b32.xlu0 %v144, 48
    %v1753 = vpop.permute.xlu0 %1752
    %v1756 = vsel %vm302, %v1669, 0
    %1758 = vmatprep.subr.mxu0 0.0
    %1759 = vmatpush1.msra.mxu0 %v1753
    %1760 = vmatprep.subr.mxu0 0.0
    %1761 = vmatpush1.msra.mxu0 0.0
    %1762 = vmatprep.subr.mxu0 0.0
    %1763 = vmatpush1.msra.mxu0 0.0
    %1764 = vmatprep.subr.mxu0 0.0
    %1765 = vmatpush1.msra.mxu0 0.0
    %1766 = vmatprep.subr.mxu0 0.0
    %1767 = vmatpush1.msra.mxu0 0.0
    %1768 = vmatprep.subr.mxu0 0.0
    %1769 = vmatpush1.msra.mxu0 0.0
    %1770 = vmatprep.subr.mxu0 0.0
    %1771 = vmatpush1.msra.mxu0 0.0
    %1772 = vmatprep.subr.mxu0 0.0
    %1773 = vmatpush1.msra.mxu0 0.0
    %1774 = vmatprep.subr.mxu0 0.0
    %1775 = vmatpush1.msra.mxu0 0.0
    %1776 = vmatprep.subr.mxu0 0.0
    %1777 = vmatpush1.msra.mxu0 0.0
    %1778 = vmatprep.subr.mxu0 0.0
    %1779 = vmatpush1.msra.mxu0 0.0
    %1780 = vmatprep.subr.mxu0 0.0
    %1781 = vmatpush1.msra.mxu0 0.0
    %1782 = vmatprep.subr.mxu0 0.0
    %1783 = vmatpush1.msra.mxu0 0.0
    %1784 = vmatprep.subr.mxu0 0.0
    %1785 = vmatpush1.msra.mxu0 0.0
    %1786 = vmatprep.subr.mxu0 0.0
    %1787 = vmatpush1.msra.mxu0 0.0
    %1788 = vmatprep.subr.mxu0 0.0
    %1789 = vmatpush1.msra.mxu0 0.0
    %1790 = vmatprep.subr.mxu0 0.0
    %1791 = vmatpush1.msra.mxu0 0.0
    %1792 = vmatprep.subr.mxu0 0.0
    %1793 = vmatpush1.msra.mxu0 0.0
    %1794 = vmatprep.subr.mxu0 0.0
    %1795 = vmatpush1.msra.mxu0 0.0
    %1796 = vmatprep.subr.mxu0 0.0
    %1797 = vmatpush1.msra.mxu0 0.0
    %1798 = vmatprep.subr.mxu0 0.0
    %1799 = vmatpush1.msra.mxu0 0.0
    %1800 = vmatprep.subr.mxu0 0.0
    %1801 = vmatpush1.msra.mxu0 0.0
    %1802 = vmatprep.subr.mxu0 0.0
    %1803 = vmatpush1.msra.mxu0 0.0
    %1804 = vmatprep.subr.mxu0 0.0
    %1805 = vmatpush1.msra.mxu0 0.0
    %1806 = vmatprep.subr.mxu0 0.0
    %1807 = vmatpush1.msra.mxu0 0.0
    %1808 = vmatprep.subr.mxu0 0.0
    %1809 = vmatpush1.msra.mxu0 0.0
    %1810 = vmatprep.subr.mxu0 0.0
    %1811 = vmatpush1.msra.mxu0 0.0
    %1812 = vmatprep.subr.mxu0 0.0
    %1813 = vmatpush1.msra.mxu0 0.0
    %1814 = vmatprep.subr.mxu0 0.0
    %1815 = vmatpush1.msra.mxu0 0.0
    %1816 = vmatprep.subr.mxu0 0.0
    %1817 = vmatpush1.msra.mxu0 0.0
    %1818 = vmatprep.subr.mxu0 0.0
    %1819 = vmatpush1.msra.mxu0 0.0
    %1820 = vmatprep.subr.mxu0 0.0
    %1821 = vmatpush1.msra.mxu0 0.0
    %1822 = vmatprep.mubr.f32.mxu0 0.0
    %1823 = vmatmul.mubr.f32.gmra.mrb[0].mxu0 %v1756
    %v1824 = vpop.f32.mrb[0].mxu0
    %v1825 = vadd.f32 0.0, %v1824
    %v1826 = vpop.f32.mrb[0].mxu0
    %1827 = vdwg.mxu0
    %v1828 = vrcp.pop %v1672
    %v1829 = vrcp.pop %v1675
    %v1830 = vmul.f32 %v1749, %v1828
    %v1831 = vmul.f32 %v1825, %v1829
    %1834 = vrot.lane.b32.xlu0 %v1830, 16
    %v1835 = vpop.permute.xlu0 %1834
    %1836 = vrot.lane.b32.xlu0 %v1831, 16
    %v1837 = vpop.permute.xlu0 %1836
    %vm1840 = vcmask 162944
    %1841 = vst.msk [vmem:[#allocation2] sm:$0xff] %vm1840, %v1835
    %1842 = vst.msk [vmem:[#allocation2 + $0x8] sm:$0xff] %vm1840, %v1837
    %1843 = vrot.lane.b32.xlu0 %v139, 108
    %v1844 = vpop.permute.xlu0 %1843
    %1845 = vrot.lane.b32.xlu0 %v139, 76
    %v1846 = vpop.permute.xlu0 %1845
    %v1847 = vsel %vm150, %v1844, 0
    %v1849 = vsel %vm150, %v1846, 0
    %1851 = vmatprep.subr.mxu0 0.0
    %1852 = vmatpush1.xpose.msra.mxu0 %v1849
    %1853 = vmatprep.subr.mxu0 0.0
    %1854 = vmatpush1.xpose.msra.mxu0 0.0
    %1855 = vmatprep.subr.mxu0 0.0
    %1856 = vmatpush1.xpose.msra.mxu0 0.0
    %1857 = vmatprep.subr.mxu0 0.0
    %1858 = vmatpush1.xpose.msra.mxu0 0.0
    %1859 = vmatprep.subr.mxu0 0.0
    %1860 = vmatpush1.xpose.msra.mxu0 0.0
    %1861 = vmatprep.subr.mxu0 0.0
    %1862 = vmatpush1.xpose.msra.mxu0 0.0
    %1863 = vmatprep.subr.mxu0 0.0
    %1864 = vmatpush1.xpose.msra.mxu0 0.0
    %1865 = vmatprep.subr.mxu0 0.0
    %1866 = vmatpush1.xpose.msra.mxu0 0.0
    %1867 = vmatprep.subr.mxu0 0.0
    %1868 = vmatpush1.xpose.msra.mxu0 0.0
    %1869 = vmatprep.subr.mxu0 0.0
    %1870 = vmatpush1.xpose.msra.mxu0 0.0
    %1871 = vmatprep.subr.mxu0 0.0
    %1872 = vmatpush1.xpose.msra.mxu0 0.0
    %1873 = vmatprep.subr.mxu0 0.0
    %1874 = vmatpush1.xpose.msra.mxu0 0.0
    %1875 = vmatprep.subr.mxu0 0.0
    %1876 = vmatpush1.xpose.msra.mxu0 0.0
    %1877 = vmatprep.subr.mxu0 0.0
    %1878 = vmatpush1.xpose.msra.mxu0 0.0
    %1879 = vmatprep.subr.mxu0 0.0
    %1880 = vmatpush1.xpose.msra.mxu0 0.0
    %1881 = vmatprep.subr.mxu0 0.0
    %1882 = vmatpush1.xpose.msra.mxu0 0.0
    %1883 = vmatprep.subr.mxu0 0.0
    %1884 = vmatpush1.xpose.msra.mxu0 0.0
    %1885 = vmatprep.subr.mxu0 0.0
    %1886 = vmatpush1.xpose.msra.mxu0 0.0
    %1887 = vmatprep.subr.mxu0 0.0
    %1888 = vmatpush1.xpose.msra.mxu0 0.0
    %1889 = vmatprep.subr.mxu0 0.0
    %1890 = vmatpush1.xpose.msra.mxu0 0.0
    %1891 = vmatprep.subr.mxu0 0.0
    %1892 = vmatpush1.xpose.msra.mxu0 0.0
    %1893 = vmatprep.subr.mxu0 0.0
    %1894 = vmatpush1.xpose.msra.mxu0 0.0
    %1895 = vmatprep.subr.mxu0 0.0
    %1896 = vmatpush1.xpose.msra.mxu0 0.0
    %1897 = vmatprep.subr.mxu0 0.0
    %1898 = vmatpush1.xpose.msra.mxu0 0.0
    %1899 = vmatprep.subr.mxu0 0.0
    %1900 = vmatpush1.xpose.msra.mxu0 0.0
    %1901 = vmatprep.subr.mxu0 0.0
    %1902 = vmatpush1.xpose.msra.mxu0 0.0
    %1903 = vmatprep.subr.mxu0 0.0
    %1904 = vmatpush1.xpose.msra.mxu0 0.0
    %1905 = vmatprep.subr.mxu0 0.0
    %1906 = vmatpush1.xpose.msra.mxu0 0.0
    %1907 = vmatprep.subr.mxu0 0.0
    %1908 = vmatpush1.xpose.msra.mxu0 0.0
    %1909 = vmatprep.subr.mxu0 0.0
    %1910 = vmatpush1.xpose.msra.mxu0 0.0
    %1911 = vmatprep.subr.mxu0 0.0
    %1912 = vmatpush1.xpose.msra.mxu0 0.0
    %1913 = vmatprep.subr.mxu0 0.0
    %1914 = vmatpush1.xpose.msra.mxu0 0.0
    %1915 = vmatprep.mubr.f32.mxu0 0.0
    %1916 = vmatmul.mubr.f32.gmra.mrb[0].mxu0 %v1847
    %v1917 = vpop.f32.mrb[0].mxu0
    %v1918 = vadd.f32 0.0, %v1917
    %v1919 = vpop.f32.mrb[0].mxu0
    %1920 = vdwg.mxu0
    %1921 = vrot.lane.b32.xlu0 %v144, 108
    %v1922 = vpop.permute.xlu0 %1921
    %1923 = vrot.lane.b32.xlu0 %v144, 76
    %v1924 = vpop.permute.xlu0 %1923
    %v1925 = vsel %vm150, %v1922, 0
    %v1927 = vsel %vm150, %v1924, 0
    %1929 = vmatprep.subr.mxu0 0.0
    %1930 = vmatpush1.xpose.msra.mxu0 %v1927
    %1931 = vmatprep.subr.mxu0 0.0
    %1932 = vmatpush1.xpose.msra.mxu0 0.0
    %1933 = vmatprep.subr.mxu0 0.0
    %1934 = vmatpush1.xpose.msra.mxu0 0.0
    %1935 = vmatprep.subr.mxu0 0.0
    %1936 = vmatpush1.xpose.msra.mxu0 0.0
    %1937 = vmatprep.subr.mxu0 0.0
    %1938 = vmatpush1.xpose.msra.mxu0 0.0
    %1939 = vmatprep.subr.mxu0 0.0
    %1940 = vmatpush1.xpose.msra.mxu0 0.0
    %1941 = vmatprep.subr.mxu0 0.0
    %1942 = vmatpush1.xpose.msra.mxu0 0.0
    %1943 = vmatprep.subr.mxu0 0.0
    %1944 = vmatpush1.xpose.msra.mxu0 0.0
    %1945 = vmatprep.subr.mxu0 0.0
    %1946 = vmatpush1.xpose.msra.mxu0 0.0
    %1947 = vmatprep.subr.mxu0 0.0
    %1948 = vmatpush1.xpose.msra.mxu0 0.0
    %1949 = vmatprep.subr.mxu0 0.0
    %1950 = vmatpush1.xpose.msra.mxu0 0.0
    %1951 = vmatprep.subr.mxu0 0.0
    %1952 = vmatpush1.xpose.msra.mxu0 0.0
    %1953 = vmatprep.subr.mxu0 0.0
    %1954 = vmatpush1.xpose.msra.mxu0 0.0
    %1955 = vmatprep.subr.mxu0 0.0
    %1956 = vmatpush1.xpose.msra.mxu0 0.0
    %1957 = vmatprep.subr.mxu0 0.0
    %1958 = vmatpush1.xpose.msra.mxu0 0.0
    %1959 = vmatprep.subr.mxu0 0.0
    %1960 = vmatpush1.xpose.msra.mxu0 0.0
    %1961 = vmatprep.subr.mxu0 0.0
    %1962 = vmatpush1.xpose.msra.mxu0 0.0
    %1963 = vmatprep.subr.mxu0 0.0
    %1964 = vmatpush1.xpose.msra.mxu0 0.0
    %1965 = vmatprep.subr.mxu0 0.0
    %1966 = vmatpush1.xpose.msra.mxu0 0.0
    %1967 = vmatprep.subr.mxu0 0.0
    %1968 = vmatpush1.xpose.msra.mxu0 0.0
    %1969 = vmatprep.subr.mxu0 0.0
    %1970 = vmatpush1.xpose.msra.mxu0 0.0
    %1971 = vmatprep.subr.mxu0 0.0
    %1972 = vmatpush1.xpose.msra.mxu0 0.0
    %1973 = vmatprep.subr.mxu0 0.0
    %1974 = vmatpush1.xpose.msra.mxu0 0.0
    %1975 = vmatprep.subr.mxu0 0.0
    %1976 = vmatpush1.xpose.msra.mxu0 0.0
    %1977 = vmatprep.subr.mxu0 0.0
    %1978 = vmatpush1.xpose.msra.mxu0 0.0
    %1979 = vmatprep.subr.mxu0 0.0
    %1980 = vmatpush1.xpose.msra.mxu0 0.0
    %1981 = vmatprep.subr.mxu0 0.0
    %1982 = vmatpush1.xpose.msra.mxu0 0.0
    %1983 = vmatprep.subr.mxu0 0.0
    %1984 = vmatpush1.xpose.msra.mxu0 0.0
    %1985 = vmatprep.subr.mxu0 0.0
    %1986 = vmatpush1.xpose.msra.mxu0 0.0
    %1987 = vmatprep.subr.mxu0 0.0
    %1988 = vmatpush1.xpose.msra.mxu0 0.0
    %1989 = vmatprep.subr.mxu0 0.0
    %1990 = vmatpush1.xpose.msra.mxu0 0.0
    %1991 = vmatprep.subr.mxu0 0.0
    %1992 = vmatpush1.xpose.msra.mxu0 0.0
    %1993 = vmatprep.mubr.f32.mxu0 0.0
    %1994 = vmatmul.mubr.f32.gmra.mrb[0].mxu0 %v1925
    %v1995 = vpop.f32.mrb[0].mxu0
    %v1996 = vadd.f32 0.0, %v1995
    %v1997 = vpop.f32.mrb[0].mxu0
    %1998 = vdwg.mxu0
    %v1999 = vsel %vm302, %v1918, -inf
    %2000 = vmax.xlane.f32.xlu0 %v1999
    %v2001 = vpop.xlane.xlu0 %2000
    %v2002 = vsel %vm302, %v1996, -inf
    %2003 = vmax.xlane.f32.xlu0 %v2002
    %v2004 = vpop.xlane.xlu0 %2003
    %v2005 = vsub.f32 %v1918, %v2001
    %v2006 = vsub.f32 %v1996, %v2004
    %v2007 = vmul.f32 %v2005, 1.442695
    %v2008 = vpow.pop %v2007
    %v2009 = vmul.f32 %v2006, 1.442695
    %v2010 = vpow.pop %v2009
    %v2011 = vsel %vm302, %v2008, 0.0
    %2012 = vadd.xlane.f32.xlu0 %v2011
    %v2013 = vpop.xlane.xlu0 %2012
    %v2014 = vsel %vm302, %v2010, 0.0
    %2015 = vadd.xlane.f32.xlu0 %v2014
    %v2016 = vpop.xlane.xlu0 %2015
    %2017 = vrot.lane.b32.xlu0 %v139, 44
    %v2018 = vpop.permute.xlu0 %2017
    %v2021 = vsel %vm302, %v2008, 0
    %2023 = vmatprep.subr.mxu0 0.0
    %2024 = vmatpush1.msra.mxu0 %v2018
    %2025 = vmatprep.subr.mxu0 0.0
    %2026 = vmatpush1.msra.mxu0 0.0
    %2027 = vmatprep.subr.mxu0 0.0
    %2028 = vmatpush1.msra.mxu0 0.0
    %2029 = vmatprep.subr.mxu0 0.0
    %2030 = vmatpush1.msra.mxu0 0.0
    %2031 = vmatprep.subr.mxu0 0.0
    %2032 = vmatpush1.msra.mxu0 0.0
    %2033 = vmatprep.subr.mxu0 0.0
    %2034 = vmatpush1.msra.mxu0 0.0
    %2035 = vmatprep.subr.mxu0 0.0
    %2036 = vmatpush1.msra.mxu0 0.0
    %2037 = vmatprep.subr.mxu0 0.0
    %2038 = vmatpush1.msra.mxu0 0.0
    %2039 = vmatprep.subr.mxu0 0.0
    %2040 = vmatpush1.msra.mxu0 0.0
    %2041 = vmatprep.subr.mxu0 0.0
    %2042 = vmatpush1.msra.mxu0 0.0
    %2043 = vmatprep.subr.mxu0 0.0
    %2044 = vmatpush1.msra.mxu0 0.0
    %2045 = vmatprep.subr.mxu0 0.0
    %2046 = vmatpush1.msra.mxu0 0.0
    %2047 = vmatprep.subr.mxu0 0.0
    %2048 = vmatpush1.msra.mxu0 0.0
    %2049 = vmatprep.subr.mxu0 0.0
    %2050 = vmatpush1.msra.mxu0 0.0
    %2051 = vmatprep.subr.mxu0 0.0
    %2052 = vmatpush1.msra.mxu0 0.0
    %2053 = vmatprep.subr.mxu0 0.0
    %2054 = vmatpush1.msra.mxu0 0.0
    %2055 = vmatprep.subr.mxu0 0.0
    %2056 = vmatpush1.msra.mxu0 0.0
    %2057 = vmatprep.subr.mxu0 0.0
    %2058 = vmatpush1.msra.mxu0 0.0
    %2059 = vmatprep.subr.mxu0 0.0
    %2060 = vmatpush1.msra.mxu0 0.0
    %2061 = vmatprep.subr.mxu0 0.0
    %2062 = vmatpush1.msra.mxu0 0.0
    %2063 = vmatprep.subr.mxu0 0.0
    %2064 = vmatpush1.msra.mxu0 0.0
    %2065 = vmatprep.subr.mxu0 0.0
    %2066 = vmatpush1.msra.mxu0 0.0
    %2067 = vmatprep.subr.mxu0 0.0
    %2068 = vmatpush1.msra.mxu0 0.0
    %2069 = vmatprep.subr.mxu0 0.0
    %2070 = vmatpush1.msra.mxu0 0.0
    %2071 = vmatprep.subr.mxu0 0.0
    %2072 = vmatpush1.msra.mxu0 0.0
    %2073 = vmatprep.subr.mxu0 0.0
    %2074 = vmatpush1.msra.mxu0 0.0
    %2075 = vmatprep.subr.mxu0 0.0
    %2076 = vmatpush1.msra.mxu0 0.0
    %2077 = vmatprep.subr.mxu0 0.0
    %2078 = vmatpush1.msra.mxu0 0.0
    %2079 = vmatprep.subr.mxu0 0.0
    %2080 = vmatpush1.msra.mxu0 0.0
    %2081 = vmatprep.subr.mxu0 0.0
    %2082 = vmatpush1.msra.mxu0 0.0
    %2083 = vmatprep.subr.mxu0 0.0
    %2084 = vmatpush1.msra.mxu0 0.0
    %2085 = vmatprep.subr.mxu0 0.0
    %2086 = vmatpush1.msra.mxu0 0.0
    %2087 = vmatprep.mubr.f32.mxu0 0.0
    %2088 = vmatmul.mubr.f32.gmra.mrb[0].mxu0 %v2021
    %v2089 = vpop.f32.mrb[0].mxu0
    %v2090 = vadd.f32 0.0, %v2089
    %v2091 = vpop.f32.mrb[0].mxu0
    %2092 = vdwg.mxu0
    %2093 = vrot.lane.b32.xlu0 %v144, 44
    %v2094 = vpop.permute.xlu0 %2093
    %v2097 = vsel %vm302, %v2010, 0
    %2099 = vmatprep.subr.mxu0 0.0
    %2100 = vmatpush1.msra.mxu0 %v2094
    %2101 = vmatprep.subr.mxu0 0.0
    %2102 = vmatpush1.msra.mxu0 0.0
    %2103 = vmatprep.subr.mxu0 0.0
    %2104 = vmatpush1.msra.mxu0 0.0
    %2105 = vmatprep.subr.mxu0 0.0
    %2106 = vmatpush1.msra.mxu0 0.0
    %2107 = vmatprep.subr.mxu0 0.0
    %2108 = vmatpush1.msra.mxu0 0.0
    %2109 = vmatprep.subr.mxu0 0.0
    %2110 = vmatpush1.msra.mxu0 0.0
    %2111 = vmatprep.subr.mxu0 0.0
    %2112 = vmatpush1.msra.mxu0 0.0
    %2113 = vmatprep.subr.mxu0 0.0
    %2114 = vmatpush1.msra.mxu0 0.0
    %2115 = vmatprep.subr.mxu0 0.0
    %2116 = vmatpush1.msra.mxu0 0.0
    %2117 = vmatprep.subr.mxu0 0.0
    %2118 = vmatpush1.msra.mxu0 0.0
    %2119 = vmatprep.subr.mxu0 0.0
    %2120 = vmatpush1.msra.mxu0 0.0
    %2121 = vmatprep.subr.mxu0 0.0
    %2122 = vmatpush1.msra.mxu0 0.0
    %2123 = vmatprep.subr.mxu0 0.0
    %2124 = vmatpush1.msra.mxu0 0.0
    %2125 = vmatprep.subr.mxu0 0.0
    %2126 = vmatpush1.msra.mxu0 0.0
    %2127 = vmatprep.subr.mxu0 0.0
    %2128 = vmatpush1.msra.mxu0 0.0
    %2129 = vmatprep.subr.mxu0 0.0
    %2130 = vmatpush1.msra.mxu0 0.0
    %2131 = vmatprep.subr.mxu0 0.0
    %2132 = vmatpush1.msra.mxu0 0.0
    %2133 = vmatprep.subr.mxu0 0.0
    %2134 = vmatpush1.msra.mxu0 0.0
    %2135 = vmatprep.subr.mxu0 0.0
    %2136 = vmatpush1.msra.mxu0 0.0
    %2137 = vmatprep.subr.mxu0 0.0
    %2138 = vmatpush1.msra.mxu0 0.0
    %2139 = vmatprep.subr.mxu0 0.0
    %2140 = vmatpush1.msra.mxu0 0.0
    %2141 = vmatprep.subr.mxu0 0.0
    %2142 = vmatpush1.msra.mxu0 0.0
    %2143 = vmatprep.subr.mxu0 0.0
    %2144 = vmatpush1.msra.mxu0 0.0
    %2145 = vmatprep.subr.mxu0 0.0
    %2146 = vmatpush1.msra.mxu0 0.0
    %2147 = vmatprep.subr.mxu0 0.0
    %2148 = vmatpush1.msra.mxu0 0.0
    %2149 = vmatprep.subr.mxu0 0.0
    %2150 = vmatpush1.msra.mxu0 0.0
    %2151 = vmatprep.subr.mxu0 0.0
    %2152 = vmatpush1.msra.mxu0 0.0
    %2153 = vmatprep.subr.mxu0 0.0
    %2154 = vmatpush1.msra.mxu0 0.0
    %2155 = vmatprep.subr.mxu0 0.0
    %2156 = vmatpush1.msra.mxu0 0.0
    %2157 = vmatprep.subr.mxu0 0.0
    %2158 = vmatpush1.msra.mxu0 0.0
    %2159 = vmatprep.subr.mxu0 0.0
    %2160 = vmatpush1.msra.mxu0 0.0
    %2161 = vmatprep.subr.mxu0 0.0
    %2162 = vmatpush1.msra.mxu0 0.0
    %2163 = vmatprep.mubr.f32.mxu0 0.0
    %2164 = vmatmul.mubr.f32.gmra.mrb[0].mxu0 %v2097
    %v2165 = vpop.f32.mrb[0].mxu0
    %v2166 = vadd.f32 0.0, %v2165
    %v2167 = vpop.f32.mrb[0].mxu0
    %2168 = vdwg.mxu0
    %v2169 = vrcp.pop %v2013
    %v2170 = vrcp.pop %v2016
    %v2171 = vmul.f32 %v2090, %v2169
    %v2172 = vmul.f32 %v2166, %v2170
    %2175 = vrot.lane.b32.xlu0 %v2171, 20
    %v2176 = vpop.permute.xlu0 %2175
    %2177 = vrot.lane.b32.xlu0 %v2172, 20
    %v2178 = vpop.permute.xlu0 %2177
    %vm2181 = vcmask 195744
    %2182 = vst.msk [vmem:[#allocation2] sm:$0xff] %vm2181, %v2176
    %2183 = vst.msk [vmem:[#allocation2 + $0x8] sm:$0xff] %vm2181, %v2178
    %2184 = vrot.lane.b32.xlu0 %v139, 104
    %v2185 = vpop.permute.xlu0 %2184
    %2186 = vrot.lane.b32.xlu0 %v139, 72
    %v2187 = vpop.permute.xlu0 %2186
    %v2188 = vsel %vm150, %v2185, 0
    %v2190 = vsel %vm150, %v2187, 0
    %2192 = vmatprep.subr.mxu0 0.0
    %2193 = vmatpush1.xpose.msra.mxu0 %v2190
    %2194 = vmatprep.subr.mxu0 0.0
    %2195 = vmatpush1.xpose.msra.mxu0 0.0
    %2196 = vmatprep.subr.mxu0 0.0
    %2197 = vmatpush1.xpose.msra.mxu0 0.0
    %2198 = vmatprep.subr.mxu0 0.0
    %2199 = vmatpush1.xpose.msra.mxu0 0.0
    %2200 = vmatprep.subr.mxu0 0.0
    %2201 = vmatpush1.xpose.msra.mxu0 0.0
    %2202 = vmatprep.subr.mxu0 0.0
    %2203 = vmatpush1.xpose.msra.mxu0 0.0
    %2204 = vmatprep.subr.mxu0 0.0
    %2205 = vmatpush1.xpose.msra.mxu0 0.0
    %2206 = vmatprep.subr.mxu0 0.0
    %2207 = vmatpush1.xpose.msra.mxu0 0.0
    %2208 = vmatprep.subr.mxu0 0.0
    %2209 = vmatpush1.xpose.msra.mxu0 0.0
    %2210 = vmatprep.subr.mxu0 0.0
    %2211 = vmatpush1.xpose.msra.mxu0 0.0
    %2212 = vmatprep.subr.mxu0 0.0
    %2213 = vmatpush1.xpose.msra.mxu0 0.0
    %2214 = vmatprep.subr.mxu0 0.0
    %2215 = vmatpush1.xpose.msra.mxu0 0.0
    %2216 = vmatprep.subr.mxu0 0.0
    %2217 = vmatpush1.xpose.msra.mxu0 0.0
    %2218 = vmatprep.subr.mxu0 0.0
    %2219 = vmatpush1.xpose.msra.mxu0 0.0
    %2220 = vmatprep.subr.mxu0 0.0
    %2221 = vmatpush1.xpose.msra.mxu0 0.0
    %2222 = vmatprep.subr.mxu0 0.0
    %2223 = vmatpush1.xpose.msra.mxu0 0.0
    %2224 = vmatprep.subr.mxu0 0.0
    %2225 = vmatpush1.xpose.msra.mxu0 0.0
    %2226 = vmatprep.subr.mxu0 0.0
    %2227 = vmatpush1.xpose.msra.mxu0 0.0
    %2228 = vmatprep.subr.mxu0 0.0
    %2229 = vmatpush1.xpose.msra.mxu0 0.0
    %2230 = vmatprep.subr.mxu0 0.0
    %2231 = vmatpush1.xpose.msra.mxu0 0.0
    %2232 = vmatprep.subr.mxu0 0.0
    %2233 = vmatpush1.xpose.msra.mxu0 0.0
    %2234 = vmatprep.subr.mxu0 0.0
    %2235 = vmatpush1.xpose.msra.mxu0 0.0
    %2236 = vmatprep.subr.mxu0 0.0
    %2237 = vmatpush1.xpose.msra.mxu0 0.0
    %2238 = vmatprep.subr.mxu0 0.0
    %2239 = vmatpush1.xpose.msra.mxu0 0.0
    %2240 = vmatprep.subr.mxu0 0.0
    %2241 = vmatpush1.xpose.msra.mxu0 0.0
    %2242 = vmatprep.subr.mxu0 0.0
    %2243 = vmatpush1.xpose.msra.mxu0 0.0
    %2244 = vmatprep.subr.mxu0 0.0
    %2245 = vmatpush1.xpose.msra.mxu0 0.0
    %2246 = vmatprep.subr.mxu0 0.0
    %2247 = vmatpush1.xpose.msra.mxu0 0.0
    %2248 = vmatprep.subr.mxu0 0.0
    %2249 = vmatpush1.xpose.msra.mxu0 0.0
    %2250 = vmatprep.subr.mxu0 0.0
    %2251 = vmatpush1.xpose.msra.mxu0 0.0
    %2252 = vmatprep.subr.mxu0 0.0
    %2253 = vmatpush1.xpose.msra.mxu0 0.0
    %2254 = vmatprep.subr.mxu0 0.0
    %2255 = vmatpush1.xpose.msra.mxu0 0.0
    %2256 = vmatprep.mubr.f32.mxu0 0.0
    %2257 = vmatmul.mubr.f32.gmra.mrb[0].mxu0 %v2188
    %v2258 = vpop.f32.mrb[0].mxu0
    %v2259 = vadd.f32 0.0, %v2258
    %v2260 = vpop.f32.mrb[0].mxu0
    %2261 = vdwg.mxu0
    %2262 = vrot.lane.b32.xlu0 %v144, 104
    %v2263 = vpop.permute.xlu0 %2262
    %2264 = vrot.lane.b32.xlu0 %v144, 72
    %v2265 = vpop.permute.xlu0 %2264
    %v2266 = vsel %vm150, %v2263, 0
    %v2268 = vsel %vm150, %v2265, 0
    %2270 = vmatprep.subr.mxu0 0.0
    %2271 = vmatpush1.xpose.msra.mxu0 %v2268
    %2272 = vmatprep.subr.mxu0 0.0
    %2273 = vmatpush1.xpose.msra.mxu0 0.0
    %2274 = vmatprep.subr.mxu0 0.0
    %2275 = vmatpush1.xpose.msra.mxu0 0.0
    %2276 = vmatprep.subr.mxu0 0.0
    %2277 = vmatpush1.xpose.msra.mxu0 0.0
    %2278 = vmatprep.subr.mxu0 0.0
    %2279 = vmatpush1.xpose.msra.mxu0 0.0
    %2280 = vmatprep.subr.mxu0 0.0
    %2281 = vmatpush1.xpose.msra.mxu0 0.0
    %2282 = vmatprep.subr.mxu0 0.0
    %2283 = vmatpush1.xpose.msra.mxu0 0.0
    %2284 = vmatprep.subr.mxu0 0.0
    %2285 = vmatpush1.xpose.msra.mxu0 0.0
    %2286 = vmatprep.subr.mxu0 0.0
    %2287 = vmatpush1.xpose.msra.mxu0 0.0
    %2288 = vmatprep.subr.mxu0 0.0
    %2289 = vmatpush1.xpose.msra.mxu0 0.0
    %2290 = vmatprep.subr.mxu0 0.0
    %2291 = vmatpush1.xpose.msra.mxu0 0.0
    %2292 = vmatprep.subr.mxu0 0.0
    %2293 = vmatpush1.xpose.msra.mxu0 0.0
    %2294 = vmatprep.subr.mxu0 0.0
    %2295 = vmatpush1.xpose.msra.mxu0 0.0
    %2296 = vmatprep.subr.mxu0 0.0
    %2297 = vmatpush1.xpose.msra.mxu0 0.0
    %2298 = vmatprep.subr.mxu0 0.0
    %2299 = vmatpush1.xpose.msra.mxu0 0.0
    %2300 = vmatprep.subr.mxu0 0.0
    %2301 = vmatpush1.xpose.msra.mxu0 0.0
    %2302 = vmatprep.subr.mxu0 0.0
    %2303 = vmatpush1.xpose.msra.mxu0 0.0
    %2304 = vmatprep.subr.mxu0 0.0
    %2305 = vmatpush1.xpose.msra.mxu0 0.0
    %2306 = vmatprep.subr.mxu0 0.0
    %2307 = vmatpush1.xpose.msra.mxu0 0.0
    %2308 = vmatprep.subr.mxu0 0.0
    %2309 = vmatpush1.xpose.msra.mxu0 0.0
    %2310 = vmatprep.subr.mxu0 0.0
    %2311 = vmatpush1.xpose.msra.mxu0 0.0
    %2312 = vmatprep.subr.mxu0 0.0
    %2313 = vmatpush1.xpose.msra.mxu0 0.0
    %2314 = vmatprep.subr.mxu0 0.0
    %2315 = vmatpush1.xpose.msra.mxu0 0.0
    %2316 = vmatprep.subr.mxu0 0.0
    %2317 = vmatpush1.xpose.msra.mxu0 0.0
    %2318 = vmatprep.subr.mxu0 0.0
    %2319 = vmatpush1.xpose.msra.mxu0 0.0
    %2320 = vmatprep.subr.mxu0 0.0
    %2321 = vmatpush1.xpose.msra.mxu0 0.0
    %2322 = vmatprep.subr.mxu0 0.0
    %2323 = vmatpush1.xpose.msra.mxu0 0.0
    %2324 = vmatprep.subr.mxu0 0.0
    %2325 = vmatpush1.xpose.msra.mxu0 0.0
    %2326 = vmatprep.subr.mxu0 0.0
    %2327 = vmatpush1.xpose.msra.mxu0 0.0
    %2328 = vmatprep.subr.mxu0 0.0
    %2329 = vmatpush1.xpose.msra.mxu0 0.0
    %2330 = vmatprep.subr.mxu0 0.0
    %2331 = vmatpush1.xpose.msra.mxu0 0.0
    %2332 = vmatprep.subr.mxu0 0.0
    %2333 = vmatpush1.xpose.msra.mxu0 0.0
    %2334 = vmatprep.mubr.f32.mxu0 0.0
    %2335 = vmatmul.mubr.f32.gmra.mrb[0].mxu0 %v2266
    %v2336 = vpop.f32.mrb[0].mxu0
    %v2337 = vadd.f32 0.0, %v2336
    %v2338 = vpop.f32.mrb[0].mxu0
    %2339 = vdwg.mxu0
    %v2340 = vsel %vm302, %v2259, -inf
    %2341 = vmax.xlane.f32.xlu0 %v2340
    %v2342 = vpop.xlane.xlu0 %2341
    %v2343 = vsel %vm302, %v2337, -inf
    %2344 = vmax.xlane.f32.xlu0 %v2343
    %v2345 = vpop.xlane.xlu0 %2344
    %v2346 = vsub.f32 %v2259, %v2342
    %v2347 = vsub.f32 %v2337, %v2345
    %v2348 = vmul.f32 %v2346, 1.442695
    %v2349 = vpow.pop %v2348
    %v2350 = vmul.f32 %v2347, 1.442695
    %v2351 = vpow.pop %v2350
    %v2352 = vsel %vm302, %v2349, 0.0
    %2353 = vadd.xlane.f32.xlu0 %v2352
    %v2354 = vpop.xlane.xlu0 %2353
    %v2355 = vsel %vm302, %v2351, 0.0
    %2356 = vadd.xlane.f32.xlu0 %v2355
    %v2357 = vpop.xlane.xlu0 %2356
    %2358 = vrot.lane.b32.xlu0 %v139, 40
    %v2359 = vpop.permute.xlu0 %2358
    %v2362 = vsel %vm302, %v2349, 0
    %2364 = vmatprep.subr.mxu0 0.0
    %2365 = vmatpush1.msra.mxu0 %v2359
    %2366 = vmatprep.subr.mxu0 0.0
    %2367 = vmatpush1.msra.mxu0 0.0
    %2368 = vmatprep.subr.mxu0 0.0
    %2369 = vmatpush1.msra.mxu0 0.0
    %2370 = vmatprep.subr.mxu0 0.0
    %2371 = vmatpush1.msra.mxu0 0.0
    %2372 = vmatprep.subr.mxu0 0.0
    %2373 = vmatpush1.msra.mxu0 0.0
    %2374 = vmatprep.subr.mxu0 0.0
    %2375 = vmatpush1.msra.mxu0 0.0
    %2376 = vmatprep.subr.mxu0 0.0
    %2377 = vmatpush1.msra.mxu0 0.0
    %2378 = vmatprep.subr.mxu0 0.0
    %2379 = vmatpush1.msra.mxu0 0.0
    %2380 = vmatprep.subr.mxu0 0.0
    %2381 = vmatpush1.msra.mxu0 0.0
    %2382 = vmatprep.subr.mxu0 0.0
    %2383 = vmatpush1.msra.mxu0 0.0
    %2384 = vmatprep.subr.mxu0 0.0
    %2385 = vmatpush1.msra.mxu0 0.0
    %2386 = vmatprep.subr.mxu0 0.0
    %2387 = vmatpush1.msra.mxu0 0.0
    %2388 = vmatprep.subr.mxu0 0.0
    %2389 = vmatpush1.msra.mxu0 0.0
    %2390 = vmatprep.subr.mxu0 0.0
    %2391 = vmatpush1.msra.mxu0 0.0
    %2392 = vmatprep.subr.mxu0 0.0
    %2393 = vmatpush1.msra.mxu0 0.0
    %2394 = vmatprep.subr.mxu0 0.0
    %2395 = vmatpush1.msra.mxu0 0.0
    %2396 = vmatprep.subr.mxu0 0.0
    %2397 = vmatpush1.msra.mxu0 0.0
    %2398 = vmatprep.subr.mxu0 0.0
    %2399 = vmatpush1.msra.mxu0 0.0
    %2400 = vmatprep.subr.mxu0 0.0
    %2401 = vmatpush1.msra.mxu0 0.0
    %2402 = vmatprep.subr.mxu0 0.0
    %2403 = vmatpush1.msra.mxu0 0.0
    %2404 = vmatprep.subr.mxu0 0.0
    %2405 = vmatpush1.msra.mxu0 0.0
    %2406 = vmatprep.subr.mxu0 0.0
    %2407 = vmatpush1.msra.mxu0 0.0
    %2408 = vmatprep.subr.mxu0 0.0
    %2409 = vmatpush1.msra.mxu0 0.0
    %2410 = vmatprep.subr.mxu0 0.0
    %2411 = vmatpush1.msra.mxu0 0.0
    %2412 = vmatprep.subr.mxu0 0.0
    %2413 = vmatpush1.msra.mxu0 0.0
    %2414 = vmatprep.subr.mxu0 0.0
    %2415 = vmatpush1.msra.mxu0 0.0
    %2416 = vmatprep.subr.mxu0 0.0
    %2417 = vmatpush1.msra.mxu0 0.0
    %2418 = vmatprep.subr.mxu0 0.0
    %2419 = vmatpush1.msra.mxu0 0.0
    %2420 = vmatprep.subr.mxu0 0.0
    %2421 = vmatpush1.msra.mxu0 0.0
    %2422 = vmatprep.subr.mxu0 0.0
    %2423 = vmatpush1.msra.mxu0 0.0
    %2424 = vmatprep.subr.mxu0 0.0
    %2425 = vmatpush1.msra.mxu0 0.0
    %2426 = vmatprep.subr.mxu0 0.0
    %2427 = vmatpush1.msra.mxu0 0.0
    %2428 = vmatprep.mubr.f32.mxu0 0.0
    %2429 = vmatmul.mubr.f32.gmra.mrb[0].mxu0 %v2362
    %v2430 = vpop.f32.mrb[0].mxu0
    %v2431 = vadd.f32 0.0, %v2430
    %v2432 = vpop.f32.mrb[0].mxu0
    %2433 = vdwg.mxu0
    %2434 = vrot.lane.b32.xlu0 %v144, 40
    %v2435 = vpop.permute.xlu0 %2434
    %v2438 = vsel %vm302, %v2351, 0
    %2440 = vmatprep.subr.mxu0 0.0
    %2441 = vmatpush1.msra.mxu0 %v2435
    %2442 = vmatprep.subr.mxu0 0.0
    %2443 = vmatpush1.msra.mxu0 0.0
    %2444 = vmatprep.subr.mxu0 0.0
    %2445 = vmatpush1.msra.mxu0 0.0
    %2446 = vmatprep.subr.mxu0 0.0
    %2447 = vmatpush1.msra.mxu0 0.0
    %2448 = vmatprep.subr.mxu0 0.0
    %2449 = vmatpush1.msra.mxu0 0.0
    %2450 = vmatprep.subr.mxu0 0.0
    %2451 = vmatpush1.msra.mxu0 0.0
    %2452 = vmatprep.subr.mxu0 0.0
    %2453 = vmatpush1.msra.mxu0 0.0
    %2454 = vmatprep.subr.mxu0 0.0
    %2455 = vmatpush1.msra.mxu0 0.0
    %2456 = vmatprep.subr.mxu0 0.0
    %2457 = vmatpush1.msra.mxu0 0.0
    %2458 = vmatprep.subr.mxu0 0.0
    %2459 = vmatpush1.msra.mxu0 0.0
    %2460 = vmatprep.subr.mxu0 0.0
    %2461 = vmatpush1.msra.mxu0 0.0
    %2462 = vmatprep.subr.mxu0 0.0
    %2463 = vmatpush1.msra.mxu0 0.0
    %2464 = vmatprep.subr.mxu0 0.0
    %2465 = vmatpush1.msra.mxu0 0.0
    %2466 = vmatprep.subr.mxu0 0.0
    %2467 = vmatpush1.msra.mxu0 0.0
    %2468 = vmatprep.subr.mxu0 0.0
    %2469 = vmatpush1.msra.mxu0 0.0
    %2470 = vmatprep.subr.mxu0 0.0
    %2471 = vmatpush1.msra.mxu0 0.0
    %2472 = vmatprep.subr.mxu0 0.0
    %2473 = vmatpush1.msra.mxu0 0.0
    %2474 = vmatprep.subr.mxu0 0.0
    %2475 = vmatpush1.msra.mxu0 0.0
    %2476 = vmatprep.subr.mxu0 0.0
    %2477 = vmatpush1.msra.mxu0 0.0
    %2478 = vmatprep.subr.mxu0 0.0
    %2479 = vmatpush1.msra.mxu0 0.0
    %2480 = vmatprep.subr.mxu0 0.0
    %2481 = vmatpush1.msra.mxu0 0.0
    %2482 = vmatprep.subr.mxu0 0.0
    %2483 = vmatpush1.msra.mxu0 0.0
    %2484 = vmatprep.subr.mxu0 0.0
    %2485 = vmatpush1.msra.mxu0 0.0
    %2486 = vmatprep.subr.mxu0 0.0
    %2487 = vmatpush1.msra.mxu0 0.0
    %2488 = vmatprep.subr.mxu0 0.0
    %2489 = vmatpush1.msra.mxu0 0.0
    %2490 = vmatprep.subr.mxu0 0.0
    %2491 = vmatpush1.msra.mxu0 0.0
    %2492 = vmatprep.subr.mxu0 0.0
    %2493 = vmatpush1.msra.mxu0 0.0
    %2494 = vmatprep.subr.mxu0 0.0
    %2495 = vmatpush1.msra.mxu0 0.0
    %2496 = vmatprep.subr.mxu0 0.0
    %2497 = vmatpush1.msra.mxu0 0.0
    %2498 = vmatprep.subr.mxu0 0.0
    %2499 = vmatpush1.msra.mxu0 0.0
    %2500 = vmatprep.subr.mxu0 0.0
    %2501 = vmatpush1.msra.mxu0 0.0
    %2502 = vmatprep.subr.mxu0 0.0
    %2503 = vmatpush1.msra.mxu0 0.0
    %2504 = vmatprep.mubr.f32.mxu0 0.0
    %2505 = vmatmul.mubr.f32.gmra.mrb[0].mxu0 %v2438
    %v2506 = vpop.f32.mrb[0].mxu0
    %v2507 = vadd.f32 0.0, %v2506
    %v2508 = vpop.f32.mrb[0].mxu0
    %2509 = vdwg.mxu0
    %v2510 = vrcp.pop %v2354
    %v2511 = vrcp.pop %v2357
    %v2512 = vmul.f32 %v2431, %v2510
    %v2513 = vmul.f32 %v2507, %v2511
    %2516 = vrot.lane.b32.xlu0 %v2512, 24
    %v2517 = vpop.permute.xlu0 %2516
    %2518 = vrot.lane.b32.xlu0 %v2513, 24
    %v2519 = vpop.permute.xlu0 %2518
    %vm2522 = vcmask 228544
    %2523 = vst.msk [vmem:[#allocation2] sm:$0xff] %vm2522, %v2517
    %2524 = vst.msk [vmem:[#allocation2 + $0x8] sm:$0xff] %vm2522, %v2519
    %2525 = vrot.lane.b32.xlu0 %v139, 100
    %v2526 = vpop.permute.xlu0 %2525
    %2527 = vrot.lane.b32.xlu0 %v139, 68
    %v2528 = vpop.permute.xlu0 %2527
    %v2529 = vsel %vm150, %v2526, 0
    %v2531 = vsel %vm150, %v2528, 0
    %2533 = vmatprep.subr.mxu0 0.0
    %2534 = vmatpush1.xpose.msra.mxu0 %v2531
    %2535 = vmatprep.subr.mxu0 0.0
    %2536 = vmatpush1.xpose.msra.mxu0 0.0
    %2537 = vmatprep.subr.mxu0 0.0
    %2538 = vmatpush1.xpose.msra.mxu0 0.0
    %2539 = vmatprep.subr.mxu0 0.0
    %2540 = vmatpush1.xpose.msra.mxu0 0.0
    %2541 = vmatprep.subr.mxu0 0.0
    %2542 = vmatpush1.xpose.msra.mxu0 0.0
    %2543 = vmatprep.subr.mxu0 0.0
    %2544 = vmatpush1.xpose.msra.mxu0 0.0
    %2545 = vmatprep.subr.mxu0 0.0
    %2546 = vmatpush1.xpose.msra.mxu0 0.0
    %2547 = vmatprep.subr.mxu0 0.0
    %2548 = vmatpush1.xpose.msra.mxu0 0.0
    %2549 = vmatprep.subr.mxu0 0.0
    %2550 = vmatpush1.xpose.msra.mxu0 0.0
    %2551 = vmatprep.subr.mxu0 0.0
    %2552 = vmatpush1.xpose.msra.mxu0 0.0
    %2553 = vmatprep.subr.mxu0 0.0
    %2554 = vmatpush1.xpose.msra.mxu0 0.0
    %2555 = vmatprep.subr.mxu0 0.0
    %2556 = vmatpush1.xpose.msra.mxu0 0.0
    %2557 = vmatprep.subr.mxu0 0.0
    %2558 = vmatpush1.xpose.msra.mxu0 0.0
    %2559 = vmatprep.subr.mxu0 0.0
    %2560 = vmatpush1.xpose.msra.mxu0 0.0
    %2561 = vmatprep.subr.mxu0 0.0
    %2562 = vmatpush1.xpose.msra.mxu0 0.0
    %2563 = vmatprep.subr.mxu0 0.0
    %2564 = vmatpush1.xpose.msra.mxu0 0.0
    %2565 = vmatprep.subr.mxu0 0.0
    %2566 = vmatpush1.xpose.msra.mxu0 0.0
    %2567 = vmatprep.subr.mxu0 0.0
    %2568 = vmatpush1.xpose.msra.mxu0 0.0
    %2569 = vmatprep.subr.mxu0 0.0
    %2570 = vmatpush1.xpose.msra.mxu0 0.0
    %2571 = vmatprep.subr.mxu0 0.0
    %2572 = vmatpush1.xpose.msra.mxu0 0.0
    %2573 = vmatprep.subr.mxu0 0.0
    %2574 = vmatpush1.xpose.msra.mxu0 0.0
    %2575 = vmatprep.subr.mxu0 0.0
    %2576 = vmatpush1.xpose.msra.mxu0 0.0
    %2577 = vmatprep.subr.mxu0 0.0
    %2578 = vmatpush1.xpose.msra.mxu0 0.0
    %2579 = vmatprep.subr.mxu0 0.0
    %2580 = vmatpush1.xpose.msra.mxu0 0.0
    %2581 = vmatprep.subr.mxu0 0.0
    %2582 = vmatpush1.xpose.msra.mxu0 0.0
    %2583 = vmatprep.subr.mxu0 0.0
    %2584 = vmatpush1.xpose.msra.mxu0 0.0
    %2585 = vmatprep.subr.mxu0 0.0
    %2586 = vmatpush1.xpose.msra.mxu0 0.0
    %2587 = vmatprep.subr.mxu0 0.0
    %2588 = vmatpush1.xpose.msra.mxu0 0.0
    %2589 = vmatprep.subr.mxu0 0.0
    %2590 = vmatpush1.xpose.msra.mxu0 0.0
    %2591 = vmatprep.subr.mxu0 0.0
    %2592 = vmatpush1.xpose.msra.mxu0 0.0
    %2593 = vmatprep.subr.mxu0 0.0
    %2594 = vmatpush1.xpose.msra.mxu0 0.0
    %2595 = vmatprep.subr.mxu0 0.0
    %2596 = vmatpush1.xpose.msra.mxu0 0.0
    %2597 = vmatprep.mubr.f32.mxu0 0.0
    %2598 = vmatmul.mubr.f32.gmra.mrb[0].mxu0 %v2529
    %v2599 = vpop.f32.mrb[0].mxu0
    %v2600 = vadd.f32 0.0, %v2599
    %v2601 = vpop.f32.mrb[0].mxu0
    %2602 = vdwg.mxu0
    %2603 = vrot.lane.b32.xlu0 %v144, 100
    %v2604 = vpop.permute.xlu0 %2603
    %2605 = vrot.lane.b32.xlu0 %v144, 68
    %v2606 = vpop.permute.xlu0 %2605
    %v2607 = vsel %vm150, %v2604, 0
    %v2609 = vsel %vm150, %v2606, 0
    %2611 = vmatprep.subr.mxu0 0.0
    %2612 = vmatpush1.xpose.msra.mxu0 %v2609
    %2613 = vmatprep.subr.mxu0 0.0
    %2614 = vmatpush1.xpose.msra.mxu0 0.0
    %2615 = vmatprep.subr.mxu0 0.0
    %2616 = vmatpush1.xpose.msra.mxu0 0.0
    %2617 = vmatprep.subr.mxu0 0.0
    %2618 = vmatpush1.xpose.msra.mxu0 0.0
    %2619 = vmatprep.subr.mxu0 0.0
    %2620 = vmatpush1.xpose.msra.mxu0 0.0
    %2621 = vmatprep.subr.mxu0 0.0
    %2622 = vmatpush1.xpose.msra.mxu0 0.0
    %2623 = vmatprep.subr.mxu0 0.0
    %2624 = vmatpush1.xpose.msra.mxu0 0.0
    %2625 = vmatprep.subr.mxu0 0.0
    %2626 = vmatpush1.xpose.msra.mxu0 0.0
    %2627 = vmatprep.subr.mxu0 0.0
    %2628 = vmatpush1.xpose.msra.mxu0 0.0
    %2629 = vmatprep.subr.mxu0 0.0
    %2630 = vmatpush1.xpose.msra.mxu0 0.0
    %2631 = vmatprep.subr.mxu0 0.0
    %2632 = vmatpush1.xpose.msra.mxu0 0.0
    %2633 = vmatprep.subr.mxu0 0.0
    %2634 = vmatpush1.xpose.msra.mxu0 0.0
    %2635 = vmatprep.subr.mxu0 0.0
    %2636 = vmatpush1.xpose.msra.mxu0 0.0
    %2637 = vmatprep.subr.mxu0 0.0
    %2638 = vmatpush1.xpose.msra.mxu0 0.0
    %2639 = vmatprep.subr.mxu0 0.0
    %2640 = vmatpush1.xpose.msra.mxu0 0.0
    %2641 = vmatprep.subr.mxu0 0.0
    %2642 = vmatpush1.xpose.msra.mxu0 0.0
    %2643 = vmatprep.subr.mxu0 0.0
    %2644 = vmatpush1.xpose.msra.mxu0 0.0
    %2645 = vmatprep.subr.mxu0 0.0
    %2646 = vmatpush1.xpose.msra.mxu0 0.0
    %2647 = vmatprep.subr.mxu0 0.0
    %2648 = vmatpush1.xpose.msra.mxu0 0.0
    %2649 = vmatprep.subr.mxu0 0.0
    %2650 = vmatpush1.xpose.msra.mxu0 0.0
    %2651 = vmatprep.subr.mxu0 0.0
    %2652 = vmatpush1.xpose.msra.mxu0 0.0
    %2653 = vmatprep.subr.mxu0 0.0
    %2654 = vmatpush1.xpose.msra.mxu0 0.0
    %2655 = vmatprep.subr.mxu0 0.0
    %2656 = vmatpush1.xpose.msra.mxu0 0.0
    %2657 = vmatprep.subr.mxu0 0.0
    %2658 = vmatpush1.xpose.msra.mxu0 0.0
    %2659 = vmatprep.subr.mxu0 0.0
    %2660 = vmatpush1.xpose.msra.mxu0 0.0
    %2661 = vmatprep.subr.mxu0 0.0
    %2662 = vmatpush1.xpose.msra.mxu0 0.0
    %2663 = vmatprep.subr.mxu0 0.0
    %2664 = vmatpush1.xpose.msra.mxu0 0.0
    %2665 = vmatprep.subr.mxu0 0.0
    %2666 = vmatpush1.xpose.msra.mxu0 0.0
    %2667 = vmatprep.subr.mxu0 0.0
    %2668 = vmatpush1.xpose.msra.mxu0 0.0
    %2669 = vmatprep.subr.mxu0 0.0
    %2670 = vmatpush1.xpose.msra.mxu0 0.0
    %2671 = vmatprep.subr.mxu0 0.0
    %2672 = vmatpush1.xpose.msra.mxu0 0.0
    %2673 = vmatprep.subr.mxu0 0.0
    %2674 = vmatpush1.xpose.msra.mxu0 0.0
    %2675 = vmatprep.mubr.f32.mxu0 0.0
    %2676 = vmatmul.mubr.f32.gmra.mrb[0].mxu0 %v2607
    %v2677 = vpop.f32.mrb[0].mxu0
    %v2678 = vadd.f32 0.0, %v2677
    %v2679 = vpop.f32.mrb[0].mxu0
    %2680 = vdwg.mxu0
    %v2681 = vsel %vm302, %v2600, -inf
    %2682 = vmax.xlane.f32.xlu0 %v2681
    %v2683 = vpop.xlane.xlu0 %2682
    %v2684 = vsel %vm302, %v2678, -inf
    %2685 = vmax.xlane.f32.xlu0 %v2684
    %v2686 = vpop.xlane.xlu0 %2685
    %v2687 = vsub.f32 %v2600, %v2683
    %v2688 = vsub.f32 %v2678, %v2686
    %v2689 = vmul.f32 %v2687, 1.442695
    %v2690 = vpow.pop %v2689
    %v2691 = vmul.f32 %v2688, 1.442695
    %v2692 = vpow.pop %v2691
    %v2693 = vsel %vm302, %v2690, 0.0
    %2694 = vadd.xlane.f32.xlu0 %v2693
    %v2695 = vpop.xlane.xlu0 %2694
    %v2696 = vsel %vm302, %v2692, 0.0
    %2697 = vadd.xlane.f32.xlu0 %v2696
    %v2698 = vpop.xlane.xlu0 %2697
    %2699 = vrot.lane.b32.xlu0 %v139, 36
    %v2700 = vpop.permute.xlu0 %2699
    %v2703 = vsel %vm302, %v2690, 0
    %2705 = vmatprep.subr.mxu0 0.0
    %2706 = vmatpush1.msra.mxu0 %v2700
    %2707 = vmatprep.subr.mxu0 0.0
    %2708 = vmatpush1.msra.mxu0 0.0
    %2709 = vmatprep.subr.mxu0 0.0
    %2710 = vmatpush1.msra.mxu0 0.0
    %2711 = vmatprep.subr.mxu0 0.0
    %2712 = vmatpush1.msra.mxu0 0.0
    %2713 = vmatprep.subr.mxu0 0.0
    %2714 = vmatpush1.msra.mxu0 0.0
    %2715 = vmatprep.subr.mxu0 0.0
    %2716 = vmatpush1.msra.mxu0 0.0
    %2717 = vmatprep.subr.mxu0 0.0
    %2718 = vmatpush1.msra.mxu0 0.0
    %2719 = vmatprep.subr.mxu0 0.0
    %2720 = vmatpush1.msra.mxu0 0.0
    %2721 = vmatprep.subr.mxu0 0.0
    %2722 = vmatpush1.msra.mxu0 0.0
    %2723 = vmatprep.subr.mxu0 0.0
    %2724 = vmatpush1.msra.mxu0 0.0
    %2725 = vmatprep.subr.mxu0 0.0
    %2726 = vmatpush1.msra.mxu0 0.0
    %2727 = vmatprep.subr.mxu0 0.0
    %2728 = vmatpush1.msra.mxu0 0.0
    %2729 = vmatprep.subr.mxu0 0.0
    %2730 = vmatpush1.msra.mxu0 0.0
    %2731 = vmatprep.subr.mxu0 0.0
    %2732 = vmatpush1.msra.mxu0 0.0
    %2733 = vmatprep.subr.mxu0 0.0
    %2734 = vmatpush1.msra.mxu0 0.0
    %2735 = vmatprep.subr.mxu0 0.0
    %2736 = vmatpush1.msra.mxu0 0.0
    %2737 = vmatprep.subr.mxu0 0.0
    %2738 = vmatpush1.msra.mxu0 0.0
    %2739 = vmatprep.subr.mxu0 0.0
    %2740 = vmatpush1.msra.mxu0 0.0
    %2741 = vmatprep.subr.mxu0 0.0
    %2742 = vmatpush1.msra.mxu0 0.0
    %2743 = vmatprep.subr.mxu0 0.0
    %2744 = vmatpush1.msra.mxu0 0.0
    %2745 = vmatprep.subr.mxu0 0.0
    %2746 = vmatpush1.msra.mxu0 0.0
    %2747 = vmatprep.subr.mxu0 0.0
    %2748 = vmatpush1.msra.mxu0 0.0
    %2749 = vmatprep.subr.mxu0 0.0
    %2750 = vmatpush1.msra.mxu0 0.0
    %2751 = vmatprep.subr.mxu0 0.0
    %2752 = vmatpush1.msra.mxu0 0.0
    %2753 = vmatprep.subr.mxu0 0.0
    %2754 = vmatpush1.msra.mxu0 0.0
    %2755 = vmatprep.subr.mxu0 0.0
    %2756 = vmatpush1.msra.mxu0 0.0
    %2757 = vmatprep.subr.mxu0 0.0
    %2758 = vmatpush1.msra.mxu0 0.0
    %2759 = vmatprep.subr.mxu0 0.0
    %2760 = vmatpush1.msra.mxu0 0.0
    %2761 = vmatprep.subr.mxu0 0.0
    %2762 = vmatpush1.msra.mxu0 0.0
    %2763 = vmatprep.subr.mxu0 0.0
    %2764 = vmatpush1.msra.mxu0 0.0
    %2765 = vmatprep.subr.mxu0 0.0
    %2766 = vmatpush1.msra.mxu0 0.0
    %2767 = vmatprep.subr.mxu0 0.0
    %2768 = vmatpush1.msra.mxu0 0.0
    %2769 = vmatprep.mubr.f32.mxu0 0.0
    %2770 = vmatmul.mubr.f32.gmra.mrb[0].mxu0 %v2703
    %v2771 = vpop.f32.mrb[0].mxu0
    %v2772 = vadd.f32 0.0, %v2771
    %v2773 = vpop.f32.mrb[0].mxu0
    %2774 = vdwg.mxu0
    %2775 = vrot.lane.b32.xlu0 %v144, 36
    %v2776 = vpop.permute.xlu0 %2775
    %v2779 = vsel %vm302, %v2692, 0
    %2781 = vmatprep.subr.mxu0 0.0
    %2782 = vmatpush1.msra.mxu0 %v2776
    %2783 = vmatprep.subr.mxu0 0.0
    %2784 = vmatpush1.msra.mxu0 0.0
    %2785 = vmatprep.subr.mxu0 0.0
    %2786 = vmatpush1.msra.mxu0 0.0
    %2787 = vmatprep.subr.mxu0 0.0
    %2788 = vmatpush1.msra.mxu0 0.0
    %2789 = vmatprep.subr.mxu0 0.0
    %2790 = vmatpush1.msra.mxu0 0.0
    %2791 = vmatprep.subr.mxu0 0.0
    %2792 = vmatpush1.msra.mxu0 0.0
    %2793 = vmatprep.subr.mxu0 0.0
    %2794 = vmatpush1.msra.mxu0 0.0
    %2795 = vmatprep.subr.mxu0 0.0
    %2796 = vmatpush1.msra.mxu0 0.0
    %2797 = vmatprep.subr.mxu0 0.0
    %2798 = vmatpush1.msra.mxu0 0.0
    %2799 = vmatprep.subr.mxu0 0.0
    %2800 = vmatpush1.msra.mxu0 0.0
    %2801 = vmatprep.subr.mxu0 0.0
    %2802 = vmatpush1.msra.mxu0 0.0
    %2803 = vmatprep.subr.mxu0 0.0
    %2804 = vmatpush1.msra.mxu0 0.0
    %2805 = vmatprep.subr.mxu0 0.0
    %2806 = vmatpush1.msra.mxu0 0.0
    %2807 = vmatprep.subr.mxu0 0.0
    %2808 = vmatpush1.msra.mxu0 0.0
    %2809 = vmatprep.subr.mxu0 0.0
    %2810 = vmatpush1.msra.mxu0 0.0
    %2811 = vmatprep.subr.mxu0 0.0
    %2812 = vmatpush1.msra.mxu0 0.0
    %2813 = vmatprep.subr.mxu0 0.0
    %2814 = vmatpush1.msra.mxu0 0.0
    %2815 = vmatprep.subr.mxu0 0.0
    %2816 = vmatpush1.msra.mxu0 0.0
    %2817 = vmatprep.subr.mxu0 0.0
    %2818 = vmatpush1.msra.mxu0 0.0
    %2819 = vmatprep.subr.mxu0 0.0
    %2820 = vmatpush1.msra.mxu0 0.0
    %2821 = vmatprep.subr.mxu0 0.0
    %2822 = vmatpush1.msra.mxu0 0.0
    %2823 = vmatprep.subr.mxu0 0.0
    %2824 = vmatpush1.msra.mxu0 0.0
    %2825 = vmatprep.subr.mxu0 0.0
    %2826 = vmatpush1.msra.mxu0 0.0
    %2827 = vmatprep.subr.mxu0 0.0
    %2828 = vmatpush1.msra.mxu0 0.0
    %2829 = vmatprep.subr.mxu0 0.0
    %2830 = vmatpush1.msra.mxu0 0.0
    %2831 = vmatprep.subr.mxu0 0.0
    %2832 = vmatpush1.msra.mxu0 0.0
    %2833 = vmatprep.subr.mxu0 0.0
    %2834 = vmatpush1.msra.mxu0 0.0
    %2835 = vmatprep.subr.mxu0 0.0
    %2836 = vmatpush1.msra.mxu0 0.0
    %2837 = vmatprep.subr.mxu0 0.0
    %2838 = vmatpush1.msra.mxu0 0.0
    %2839 = vmatprep.subr.mxu0 0.0
    %2840 = vmatpush1.msra.mxu0 0.0
    %2841 = vmatprep.subr.mxu0 0.0
    %2842 = vmatpush1.msra.mxu0 0.0
    %2843 = vmatprep.subr.mxu0 0.0
    %2844 = vmatpush1.msra.mxu0 0.0
    %2845 = vmatprep.mubr.f32.mxu0 0.0
    %2846 = vmatmul.mubr.f32.gmra.mrb[0].mxu0 %v2779
    %v2847 = vpop.f32.mrb[0].mxu0
    %v2848 = vadd.f32 0.0, %v2847
    %v2849 = vpop.f32.mrb[0].mxu0
    %2850 = vdwg.mxu0
    %v2851 = vrcp.pop %v2695
    %v2852 = vrcp.pop %v2698
    %v2853 = vmul.f32 %v2772, %v2851
    %v2854 = vmul.f32 %v2848, %v2852
    %2857 = vrot.lane.b32.xlu0 %v2853, 28
    %v2858 = vpop.permute.xlu0 %2857
    %2859 = vrot.lane.b32.xlu0 %v2854, 28
    %v2860 = vpop.permute.xlu0 %2859
    %vm2863 = vcmask 261344
    %2864 = vst.msk [vmem:[#allocation2] sm:$0xff] %vm2863, %v2858
    %2865 = vst.msk [vmem:[#allocation2 + $0x8] sm:$0xff] %vm2863, %v2860
    %v2866 = vld [vmem:[#allocation2] sm:$0xff]
    %v2867 = vld [vmem:[#allocation2 + $0x8] sm:$0xff]
    %v2868 = vld [vmem:[#allocation8] sm:$0xff]
    %v2869 = vld [vmem:[#allocation8 + $0x8] sm:$0xff]
    %v2870 = vld [vmem:[#allocation8 + $0x10] sm:$0xff]
    %v2871 = vld [vmem:[#allocation8 + $0x18] sm:$0xff]
    %v2872 = vld [vmem:[%s3] sm:$0x1]
    %v2874 = vlaneseq
    %v2875 = vshrl.u32 %v2874, 7
    %v2876 = vsub.s32 0, %v2875
    %v2877 = vrot.slane %v2872, %v2876
    %v2880 = vsel %vm65, %v2866, 0
    %v2883 = vsel %vm65, %v2867, 0
    %2885 = vmatprep.subr.mxu0 0.0
    %2886 = vmatpush1.msra.mxu0 %v2868
    %2887 = vmatprep.subr.mxu0 0.0
    %2888 = vmatpush1.msra.mxu0 %v2869
    %2889 = vmatprep.subr.mxu0 0.0
    %2890 = vmatpush1.msra.mxu0 %v2870
    %2891 = vmatprep.subr.mxu0 0.0
    %2892 = vmatpush1.msra.mxu0 %v2871
    %2893 = vmatprep.subr.mxu0 0.0
    %2894 = vmatpush1.msra.mxu0 0.0
    %2895 = vmatprep.subr.mxu0 0.0
    %2896 = vmatpush1.msra.mxu0 0.0
    %2897 = vmatprep.subr.mxu0 0.0
    %2898 = vmatpush1.msra.mxu0 0.0
    %2899 = vmatprep.subr.mxu0 0.0
    %2900 = vmatpush1.msra.mxu0 0.0
    %2901 = vmatprep.subr.mxu0 0.0
    %2902 = vmatpush1.msra.mxu0 0.0
    %2903 = vmatprep.subr.mxu0 0.0
    %2904 = vmatpush1.msra.mxu0 0.0
    %2905 = vmatprep.subr.mxu0 0.0
    %2906 = vmatpush1.msra.mxu0 0.0
    %2907 = vmatprep.subr.mxu0 0.0
    %2908 = vmatpush1.msra.mxu0 0.0
    %2909 = vmatprep.subr.mxu0 0.0
    %2910 = vmatpush1.msra.mxu0 0.0
    %2911 = vmatprep.subr.mxu0 0.0
    %2912 = vmatpush1.msra.mxu0 0.0
    %2913 = vmatprep.subr.mxu0 0.0
    %2914 = vmatpush1.msra.mxu0 0.0
    %2915 = vmatprep.subr.mxu0 0.0
    %2916 = vmatpush1.msra.mxu0 0.0
    %2917 = vmatprep.subr.mxu0 0.0
    %2918 = vmatpush1.msra.mxu0 0.0
    %2919 = vmatprep.subr.mxu0 0.0
    %2920 = vmatpush1.msra.mxu0 0.0
    %2921 = vmatprep.subr.mxu0 0.0
    %2922 = vmatpush1.msra.mxu0 0.0
    %2923 = vmatprep.subr.mxu0 0.0
    %2924 = vmatpush1.msra.mxu0 0.0
    %2925 = vmatprep.subr.mxu0 0.0
    %2926 = vmatpush1.msra.mxu0 0.0
    %2927 = vmatprep.subr.mxu0 0.0
    %2928 = vmatpush1.msra.mxu0 0.0
    %2929 = vmatprep.subr.mxu0 0.0
    %2930 = vmatpush1.msra.mxu0 0.0
    %2931 = vmatprep.subr.mxu0 0.0
    %2932 = vmatpush1.msra.mxu0 0.0
    %2933 = vmatprep.subr.mxu0 0.0
    %2934 = vmatpush1.msra.mxu0 0.0
    %2935 = vmatprep.subr.mxu0 0.0
    %2936 = vmatpush1.msra.mxu0 0.0
    %2937 = vmatprep.subr.mxu0 0.0
    %2938 = vmatpush1.msra.mxu0 0.0
    %2939 = vmatprep.subr.mxu0 0.0
    %2940 = vmatpush1.msra.mxu0 0.0
    %2941 = vmatprep.subr.mxu0 0.0
    %2942 = vmatpush1.msra.mxu0 0.0
    %2943 = vmatprep.subr.mxu0 0.0
    %2944 = vmatpush1.msra.mxu0 0.0
    %2945 = vmatprep.subr.mxu0 0.0
    %2946 = vmatpush1.msra.mxu0 0.0
    %2947 = vmatprep.subr.mxu0 0.0
    %2948 = vmatpush1.msra.mxu0 0.0
    %2949 = vmatprep.mubr.f32.mxu0 0.0
    %2950 = vmatmul.mubr.f32.gmra.mrb[0].mxu0 %v2880
    %v2951 = vpop.f32.mrb[0].mxu0
    %v2952 = vadd.f32 %v2877, %v2951
    %v2953 = vpop.f32.mrb[0].mxu0
    %2954 = vmatprep.mubr.f32.mxu0 0.0
    %2955 = vmatmul.mubr.f32.gmra.mrb[0].mxu0 %v2883
    %v2956 = vpop.f32.mrb[0].mxu0
    %v2957 = vadd.f32 %v2877, %v2956
    %v2958 = vpop.f32.mrb[0].mxu0
    %2959 = vdwg.mxu0
    %2960 = vst.msk [vmem:[#allocation9] sm:$0xff] %vm65, %v2952
    %2961 = vst.msk [vmem:[#allocation9 + $0x8] sm:$0xff] %vm65, %v2957
    // Predicated region
    $region30: #{tpu_custom_call.1} parent=1 // pred_check
      _
    $region31: #{tpu_custom_call.1} parent=1 // pred_check_branch
      %2963 = sbr.rel (0) target = $region33
    $region32: #{tpu_custom_call.1} parent=1 // pred_region
      %s2965 = ssub.s32 256, 256
      %2966 = vsyncadd [#allocation5], %s2965
      %s2967 = sshll.u32 [#allocation9], 4
      %s2968 = int_to_ptr.vmem [resolvable:$true] %s2967
      %2973 = dma.vmem_to_hbm [thread:$0]  %s2968, 256, %s4, [#allocation5], 128, 128, 8
    $region33: #{tpu_custom_call.1} parent=1 // pred_fallthru
      _
    // Predicated region
    $region34: #{tpu_custom_call.1} parent=1 // pred_check
      _
    $region35: #{tpu_custom_call.1} parent=1 // pred_check_branch
      %2975 = sbr.rel (0) target = $region37
    $region36: #{tpu_custom_call.1} parent=1 // pred_region
      %2976 = dma.done [#allocation5], 256
    $region37: #{tpu_custom_call.1} parent=1 // pred_fallthru
      _
    %2977 = vsyncpa [#allocation4], 1
    %2978 = vsyncpa [#allocation7], 1
    %2979 = vsyncpa [#allocation5], 1

</llo_original>
